<compile_context>
chip_gen: v7x
topology: tpu7x:2x2x1
jax: 0.10.0
libtpu: 0.0.40
codegen_flags: <defaults>
</compile_context>

<pallas_src>
import functools

import numpy as np
import jax
import jax.numpy as jnp
from jax.experimental import pallas as pl
from jax.experimental.pallas import tpu as pltpu


def separable_conv3d_pallas(x, w_sp, b_sp, w_t, b_t, kernel_size):
    """x: [B, Cin, D, H, W]; w_sp: [Cs, Cin, 1, K, K]; w_t: [Cout, Cs, K, 1, 1]."""
    B, Cin, D, H, W = x.shape
    K = kernel_size
    P = (K - 1) // 2
    Cs = w_sp.shape[0]
    Cout = w_t.shape[0]
    HW = H * W
    N = D * H * W
    KK = K * K

    # ---- trace-time constants: per-tap boundary masks over the flat voxel axis
    idx = np.arange(N)
    d_idx = idx // HW
    h_idx = (idx // W) % H
    w_idx = idx % W
    msp = np.zeros((KK, 1, N), np.float32)
    for kh in range(K):
        for kw in range(K):
            dh, dw = kh - P, kw - P
            msp[kh * K + kw, 0] = ((h_idx + dh >= 0) & (h_idx + dh < H) &
                                   (w_idx + dw >= 0) & (w_idx + dw < W))
    mt = np.zeros((K, 1, N), np.float32)
    for kd in range(K):
        dd = kd - P
        mt[kd, 0] = (d_idx + dd >= 0) & (d_idx + dd < D)
    msp = jnp.asarray(msp)
    mt = jnp.asarray(mt)

    # ---- weight packing: tap t=(kh*K+kw) -> [Cs,Cin], tap kd -> [Cout,Cs] ----
    w_sp_k = jnp.transpose(w_sp[:, :, 0, :, :], (2, 3, 0, 1)).reshape(KK, Cs, Cin)
    w_t_k = jnp.transpose(w_t[:, :, :, 0, 0], (2, 0, 1))          # [K, Cout, Cs]
    b_sp_c = b_sp.reshape(Cs, 1)
    b_t_c = b_t.reshape(Cout, 1)

    # NCDHW already has channels leading per batch -> free reshape, no transpose.
    x_flat = x.reshape(B, Cin, N)

    def kernel(x_ref, wsp_ref, bsp_ref, wt_ref, bt_ref, msp_ref, mt_ref,
               o_ref, y_ref):
        xv = x_ref[...]                                          # [Cin, N]
        acc = jnp.zeros((Cs, N), jnp.float32)
        for kh in range(K):
            for kw in range(K):
                t = kh * K + kw
                s = (kh - P) * W + (kw - P)                      # static lane shift
                shifted = xv if s == 0 else pltpu.roll(xv, shift=(-s) % N, axis=1)
                shifted = shifted * msp_ref[t]                   # zero out-of-bounds taps
                acc = acc + jnp.dot(wsp_ref[t], shifted,
                                    preferred_element_type=jnp.float32)
        # spatial conv bias + ReLU; intermediate lives in VMEM scratch only.
        y_ref[...] = jnp.maximum(acc + bsp_ref[...], 0.0)        # [Cs, N]
        yv = y_ref[...]
        out = jnp.zeros((Cout, N), jnp.float32)
        for kd in range(K):
            s = (kd - P) * HW
            shifted = yv if s == 0 else pltpu.roll(yv, shift=(-s) % N, axis=1)
            c = jnp.dot(wt_ref[kd], shifted, preferred_element_type=jnp.float32)
            out = out + c * mt_ref[kd]                           # depth boundary mask
        o_ref[...] = out + bt_ref[...]

    out_flat = pl.pallas_call(
        kernel,
        out_shape=jax.ShapeDtypeStruct((B, Cout, N), jnp.float32),
        grid=(B,),
        in_specs=[
            pl.BlockSpec((None, Cin, N), lambda b: (b, 0, 0)),   # x slab
            pl.BlockSpec((KK, Cs, Cin), lambda b: (0, 0, 0)),    # spatial weights
            pl.BlockSpec((Cs, 1), lambda b: (0, 0)),             # spatial bias
            pl.BlockSpec((K, Cout, Cs), lambda b: (0, 0, 0)),    # temporal weights
            pl.BlockSpec((Cout, 1), lambda b: (0, 0)),           # temporal bias
            pl.BlockSpec((KK, 1, N), lambda b: (0, 0, 0)),       # spatial masks
            pl.BlockSpec((K, 1, N), lambda b: (0, 0, 0)),        # temporal masks
        ],
        out_specs=pl.BlockSpec((None, Cout, N), lambda b: (b, 0, 0)),
        scratch_shapes=[pltpu.VMEM((Cs, N), jnp.float32)],
        compiler_params=pltpu.CompilerParams(
            dimension_semantics=("parallel",)),                  # megacore on v7x
    )(x_flat, w_sp_k, b_sp_c, w_t_k, b_t_c, msp, mt)

    # TODO(synk): for very large D*H*W (v7x 64 MiB VMEM) add a second grid axis
    # tiling the voxel axis; unnecessary at these shapes (~2 MiB/step VMEM).
    return out_flat.reshape(B, Cout, D, H, W)


def reference(x, w_sp, b_sp, w_t, b_t, kernel_size):
    """Plain-JAX reference matching PyTorch Conv3d (cross-correlation) semantics."""
    P = (kernel_size - 1) // 2
    dn = ('NCDHW', 'OIDHW', 'NCDHW')
    y = jax.lax.conv_general_dilated(
        x, w_sp, window_strides=(1, 1, 1),
        padding=((0, 0), (P, P), (P, P)),
        dimension_numbers=dn, precision=jax.lax.Precision.HIGHEST)
    y = jnp.maximum(y + b_sp[None, :, None, None, None], 0.0)
    z = jax.lax.conv_general_dilated(
        y, w_t, window_strides=(1, 1, 1),
        padding=((P, P), (0, 0), (0, 0)),
        dimension_numbers=dn, precision=jax.lax.Precision.HIGHEST)
    return z + b_t[None, :, None, None, None]


if __name__ == "__main__":
    B, Cin, Cout, D, H, W, K = 2, 4, 4, 8, 16, 16, 3
    # spatial_chans formula from SeparableConv3d.__init__ (spatial_chans=None)
    Cs = int(K ** 3 * Cin * Cout / (K ** 2 * Cin + K * Cout))     # = 9

    key = jax.random.PRNGKey(0)
    k1, k2, k3, k4, k5 = jax.random.split(key, 5)
    x = jax.random.normal(k1, (B, Cin, D, H, W), jnp.float32)
    w_sp = 0.1 * jax.random.normal(k2, (Cs, Cin, 1, K, K), jnp.float32)
    b_sp = 0.1 * jax.random.normal(k3, (Cs,), jnp.float32)
    w_t = 0.1 * jax.random.normal(k4, (Cout, Cs, K, 1, 1), jnp.float32)
    b_t = 0.1 * jax.random.normal(k5, (Cout,), jnp.float32)

    # TODO(synk): is_complex=True path (ComplexConv3d) and non-relu activations
    # are not exercised here (module defaults: is_complex=False, act_type='relu').

    fn = jax.jit(functools.partial(separable_conv3d_pallas, kernel_size=K))
    out = jax.block_until_ready(fn(x, w_sp, b_sp, w_t, b_t))

    ref = reference(x, w_sp, b_sp, w_t, b_t, K)
    assert out.shape == (B, Cout, D, H, W), out.shape
    assert jnp.allclose(out, ref, rtol=2e-2, atol=2e-2), float(jnp.max(jnp.abs(out - ref)))
    print("KERNEL_OK")
</pallas_src>

<mosaic_0001>
module attributes {stable_mosaic.version = 11 : i64} {
  func.func @kernel(%arg0: i32, %arg1: memref<1x4x2048xf32, #tpu.memory_space<vmem>>, %arg2: memref<9x9x4xf32, #tpu.memory_space<vmem>>, %arg3: memref<9x1xf32, #tpu.memory_space<vmem>>, %arg4: memref<3x4x9xf32, #tpu.memory_space<vmem>>, %arg5: memref<4x1xf32, #tpu.memory_space<vmem>>, %arg6: memref<9x1x2048xf32, #tpu.memory_space<vmem>>, %arg7: memref<3x1x2048xf32, #tpu.memory_space<vmem>>, %arg8: memref<1x4x2048xf32, #tpu.memory_space<vmem>>, %arg9: memref<9x2048xf32, #tpu.memory_space<vmem>>) attributes {dimension_semantics = [#tpu.dimension_semantics<parallel>], iteration_bounds = array<i64: 2>, scalar_prefetch = 0 : i64, scratch_operands = 1 : i64, tpu.core_type = #tpu.core_type<tc>, window_params = [{transform_indices = @transform_0, window_bounds = array<i64: 1, 4, 2048>}, {pipeline_mode = #tpu.pipeline_mode<synchronous>, transform_indices = @transform_1, window_bounds = array<i64: 9, 9, 4>}, {pipeline_mode = #tpu.pipeline_mode<synchronous>, transform_indices = @transform_2, window_bounds = array<i64: 9, 1>}, {pipeline_mode = #tpu.pipeline_mode<synchronous>, transform_indices = @transform_3, window_bounds = array<i64: 3, 4, 9>}, {pipeline_mode = #tpu.pipeline_mode<synchronous>, transform_indices = @transform_4, window_bounds = array<i64: 4, 1>}, {pipeline_mode = #tpu.pipeline_mode<synchronous>, transform_indices = @transform_5, window_bounds = array<i64: 9, 1, 2048>}, {pipeline_mode = #tpu.pipeline_mode<synchronous>, transform_indices = @transform_6, window_bounds = array<i64: 3, 1, 2048>}, {transform_indices = @transform_7, window_bounds = array<i64: 1, 4, 2048>}]} {
    %c0 = arith.constant 0 : index
    %c0_0 = arith.constant 0 : index
    %c0_1 = arith.constant 0 : index
    %0 = vector.load %arg1[%c0, %c0_0, %c0_1] : memref<1x4x2048xf32, #tpu.memory_space<vmem>>, vector<1x4x2048xf32>
    %1 = vector.shape_cast %0 : vector<1x4x2048xf32> to vector<4x2048xf32>
    %cst = arith.constant 0.000000e+00 : f32
    %2 = vector.broadcast %cst : f32 to vector<9x2048xf32>
    %c17_i32 = arith.constant 17 : i32
    %3 = tpu.dynamic_rotate %1 by %c17_i32 dim 1 : vector<4x2048xf32>, i32 -> vector<4x2048xf32>
    %c0_2 = arith.constant 0 : index
    %c0_3 = arith.constant 0 : index
    %c0_4 = arith.constant 0 : index
    %4 = vector.load %arg6[%c0_2, %c0_3, %c0_4] : memref<9x1x2048xf32, #tpu.memory_space<vmem>>, vector<1x1x2048xf32>
    %5 = vector.shape_cast %4 : vector<1x1x2048xf32> to vector<1x2048xf32>
    %6 = vector.broadcast %5 : vector<1x2048xf32> to vector<4x2048xf32>
    %7 = arith.mulf %3, %6 : vector<4x2048xf32>
    %c0_5 = arith.constant 0 : index
    %c0_6 = arith.constant 0 : index
    %c0_7 = arith.constant 0 : index
    %8 = vector.load %arg2[%c0_5, %c0_6, %c0_7] : memref<9x9x4xf32, #tpu.memory_space<vmem>>, vector<1x9x4xf32>
    %9 = vector.shape_cast %8 : vector<1x9x4xf32> to vector<9x4xf32>
    %cst_8 = arith.constant dense<0.000000e+00> : vector<9x2048xf32>
    %10 = tpu.matmul %9, %7, %cst_8 {dimension_numbers = #tpu.dot_dimension_numbers<[1], [0], [0], [1], [0, 0, 1, 1], [], []>} : vector<9x4xf32>, vector<4x2048xf32>, vector<9x2048xf32> -> vector<9x2048xf32>
    %11 = arith.addf %2, %10 : vector<9x2048xf32>
    %c16_i32 = arith.constant 16 : i32
    %12 = tpu.dynamic_rotate %1 by %c16_i32 dim 1 : vector<4x2048xf32>, i32 -> vector<4x2048xf32>
    %c1 = arith.constant 1 : index
    %c0_9 = arith.constant 0 : index
    %c0_10 = arith.constant 0 : index
    %13 = vector.load %arg6[%c1, %c0_9, %c0_10] : memref<9x1x2048xf32, #tpu.memory_space<vmem>>, vector<1x1x2048xf32>
    %14 = vector.shape_cast %13 : vector<1x1x2048xf32> to vector<1x2048xf32>
    %15 = vector.broadcast %14 : vector<1x2048xf32> to vector<4x2048xf32>
    %16 = arith.mulf %12, %15 : vector<4x2048xf32>
    %c1_11 = arith.constant 1 : index
    %c0_12 = arith.constant 0 : index
    %c0_13 = arith.constant 0 : index
    %17 = vector.load %arg2[%c1_11, %c0_12, %c0_13] : memref<9x9x4xf32, #tpu.memory_space<vmem>>, vector<1x9x4xf32>
    %18 = vector.shape_cast %17 : vector<1x9x4xf32> to vector<9x4xf32>
    %cst_14 = arith.constant dense<0.000000e+00> : vector<9x2048xf32>
    %19 = tpu.matmul %18, %16, %cst_14 {dimension_numbers = #tpu.dot_dimension_numbers<[1], [0], [0], [1], [0, 0, 1, 1], [], []>} : vector<9x4xf32>, vector<4x2048xf32>, vector<9x2048xf32> -> vector<9x2048xf32>
    %20 = arith.addf %11, %19 : vector<9x2048xf32>
    %c15_i32 = arith.constant 15 : i32
    %21 = tpu.dynamic_rotate %1 by %c15_i32 dim 1 : vector<4x2048xf32>, i32 -> vector<4x2048xf32>
    %c2 = arith.constant 2 : index
    %c0_15 = arith.constant 0 : index
    %c0_16 = arith.constant 0 : index
    %22 = vector.load %arg6[%c2, %c0_15, %c0_16] : memref<9x1x2048xf32, #tpu.memory_space<vmem>>, vector<1x1x2048xf32>
    %23 = vector.shape_cast %22 : vector<1x1x2048xf32> to vector<1x2048xf32>
    %24 = vector.broadcast %23 : vector<1x2048xf32> to vector<4x2048xf32>
    %25 = arith.mulf %21, %24 : vector<4x2048xf32>
    %c2_17 = arith.constant 2 : index
    %c0_18 = arith.constant 0 : index
    %c0_19 = arith.constant 0 : index
    %26 = vector.load %arg2[%c2_17, %c0_18, %c0_19] : memref<9x9x4xf32, #tpu.memory_space<vmem>>, vector<1x9x4xf32>
    %27 = vector.shape_cast %26 : vector<1x9x4xf32> to vector<9x4xf32>
    %cst_20 = arith.constant dense<0.000000e+00> : vector<9x2048xf32>
    %28 = tpu.matmul %27, %25, %cst_20 {dimension_numbers = #tpu.dot_dimension_numbers<[1], [0], [0], [1], [0, 0, 1, 1], [], []>} : vector<9x4xf32>, vector<4x2048xf32>, vector<9x2048xf32> -> vector<9x2048xf32>
    %29 = arith.addf %20, %28 : vector<9x2048xf32>
    %c1_i32 = arith.constant 1 : i32
    %30 = tpu.dynamic_rotate %1 by %c1_i32 dim 1 : vector<4x2048xf32>, i32 -> vector<4x2048xf32>
    %c3 = arith.constant 3 : index
    %c0_21 = arith.constant 0 : index
    %c0_22 = arith.constant 0 : index
    %31 = vector.load %arg6[%c3, %c0_21, %c0_22] : memref<9x1x2048xf32, #tpu.memory_space<vmem>>, vector<1x1x2048xf32>
    %32 = vector.shape_cast %31 : vector<1x1x2048xf32> to vector<1x2048xf32>
    %33 = vector.broadcast %32 : vector<1x2048xf32> to vector<4x2048xf32>
    %34 = arith.mulf %30, %33 : vector<4x2048xf32>
    %c3_23 = arith.constant 3 : index
    %c0_24 = arith.constant 0 : index
    %c0_25 = arith.constant 0 : index
    %35 = vector.load %arg2[%c3_23, %c0_24, %c0_25] : memref<9x9x4xf32, #tpu.memory_space<vmem>>, vector<1x9x4xf32>
    %36 = vector.shape_cast %35 : vector<1x9x4xf32> to vector<9x4xf32>
    %cst_26 = arith.constant dense<0.000000e+00> : vector<9x2048xf32>
    %37 = tpu.matmul %36, %34, %cst_26 {dimension_numbers = #tpu.dot_dimension_numbers<[1], [0], [0], [1], [0, 0, 1, 1], [], []>} : vector<9x4xf32>, vector<4x2048xf32>, vector<9x2048xf32> -> vector<9x2048xf32>
    %38 = arith.addf %29, %37 : vector<9x2048xf32>
    %c4 = arith.constant 4 : index
    %c0_27 = arith.constant 0 : index
    %c0_28 = arith.constant 0 : index
    %39 = vector.load %arg6[%c4, %c0_27, %c0_28] : memref<9x1x2048xf32, #tpu.memory_space<vmem>>, vector<1x1x2048xf32>
    %40 = vector.shape_cast %39 : vector<1x1x2048xf32> to vector<1x2048xf32>
    %41 = vector.broadcast %40 : vector<1x2048xf32> to vector<4x2048xf32>
    %42 = arith.mulf %1, %41 : vector<4x2048xf32>
    %c4_29 = arith.constant 4 : index
    %c0_30 = arith.constant 0 : index
    %c0_31 = arith.constant 0 : index
    %43 = vector.load %arg2[%c4_29, %c0_30, %c0_31] : memref<9x9x4xf32, #tpu.memory_space<vmem>>, vector<1x9x4xf32>
    %44 = vector.shape_cast %43 : vector<1x9x4xf32> to vector<9x4xf32>
    %cst_32 = arith.constant dense<0.000000e+00> : vector<9x2048xf32>
    %45 = tpu.matmul %44, %42, %cst_32 {dimension_numbers = #tpu.dot_dimension_numbers<[1], [0], [0], [1], [0, 0, 1, 1], [], []>} : vector<9x4xf32>, vector<4x2048xf32>, vector<9x2048xf32> -> vector<9x2048xf32>
    %46 = arith.addf %38, %45 : vector<9x2048xf32>
    %c2047_i32 = arith.constant 2047 : i32
    %47 = tpu.dynamic_rotate %1 by %c2047_i32 dim 1 : vector<4x2048xf32>, i32 -> vector<4x2048xf32>
    %c5 = arith.constant 5 : index
    %c0_33 = arith.constant 0 : index
    %c0_34 = arith.constant 0 : index
    %48 = vector.load %arg6[%c5, %c0_33, %c0_34] : memref<9x1x2048xf32, #tpu.memory_space<vmem>>, vector<1x1x2048xf32>
    %49 = vector.shape_cast %48 : vector<1x1x2048xf32> to vector<1x2048xf32>
    %50 = vector.broadcast %49 : vector<1x2048xf32> to vector<4x2048xf32>
    %51 = arith.mulf %47, %50 : vector<4x2048xf32>
    %c5_35 = arith.constant 5 : index
    %c0_36 = arith.constant 0 : index
    %c0_37 = arith.constant 0 : index
    %52 = vector.load %arg2[%c5_35, %c0_36, %c0_37] : memref<9x9x4xf32, #tpu.memory_space<vmem>>, vector<1x9x4xf32>
    %53 = vector.shape_cast %52 : vector<1x9x4xf32> to vector<9x4xf32>
    %cst_38 = arith.constant dense<0.000000e+00> : vector<9x2048xf32>
    %54 = tpu.matmul %53, %51, %cst_38 {dimension_numbers = #tpu.dot_dimension_numbers<[1], [0], [0], [1], [0, 0, 1, 1], [], []>} : vector<9x4xf32>, vector<4x2048xf32>, vector<9x2048xf32> -> vector<9x2048xf32>
    %55 = arith.addf %46, %54 : vector<9x2048xf32>
    %c2033_i32 = arith.constant 2033 : i32
    %56 = tpu.dynamic_rotate %1 by %c2033_i32 dim 1 : vector<4x2048xf32>, i32 -> vector<4x2048xf32>
    %c6 = arith.constant 6 : index
    %c0_39 = arith.constant 0 : index
    %c0_40 = arith.constant 0 : index
    %57 = vector.load %arg6[%c6, %c0_39, %c0_40] : memref<9x1x2048xf32, #tpu.memory_space<vmem>>, vector<1x1x2048xf32>
    %58 = vector.shape_cast %57 : vector<1x1x2048xf32> to vector<1x2048xf32>
    %59 = vector.broadcast %58 : vector<1x2048xf32> to vector<4x2048xf32>
    %60 = arith.mulf %56, %59 : vector<4x2048xf32>
    %c6_41 = arith.constant 6 : index
    %c0_42 = arith.constant 0 : index
    %c0_43 = arith.constant 0 : index
    %61 = vector.load %arg2[%c6_41, %c0_42, %c0_43] : memref<9x9x4xf32, #tpu.memory_space<vmem>>, vector<1x9x4xf32>
    %62 = vector.shape_cast %61 : vector<1x9x4xf32> to vector<9x4xf32>
    %cst_44 = arith.constant dense<0.000000e+00> : vector<9x2048xf32>
    %63 = tpu.matmul %62, %60, %cst_44 {dimension_numbers = #tpu.dot_dimension_numbers<[1], [0], [0], [1], [0, 0, 1, 1], [], []>} : vector<9x4xf32>, vector<4x2048xf32>, vector<9x2048xf32> -> vector<9x2048xf32>
    %64 = arith.addf %55, %63 : vector<9x2048xf32>
    %c2032_i32 = arith.constant 2032 : i32
    %65 = tpu.dynamic_rotate %1 by %c2032_i32 dim 1 : vector<4x2048xf32>, i32 -> vector<4x2048xf32>
    %c7 = arith.constant 7 : index
    %c0_45 = arith.constant 0 : index
    %c0_46 = arith.constant 0 : index
    %66 = vector.load %arg6[%c7, %c0_45, %c0_46] : memref<9x1x2048xf32, #tpu.memory_space<vmem>>, vector<1x1x2048xf32>
    %67 = vector.shape_cast %66 : vector<1x1x2048xf32> to vector<1x2048xf32>
    %68 = vector.broadcast %67 : vector<1x2048xf32> to vector<4x2048xf32>
    %69 = arith.mulf %65, %68 : vector<4x2048xf32>
    %c7_47 = arith.constant 7 : index
    %c0_48 = arith.constant 0 : index
    %c0_49 = arith.constant 0 : index
    %70 = vector.load %arg2[%c7_47, %c0_48, %c0_49] : memref<9x9x4xf32, #tpu.memory_space<vmem>>, vector<1x9x4xf32>
    %71 = vector.shape_cast %70 : vector<1x9x4xf32> to vector<9x4xf32>
    %cst_50 = arith.constant dense<0.000000e+00> : vector<9x2048xf32>
    %72 = tpu.matmul %71, %69, %cst_50 {dimension_numbers = #tpu.dot_dimension_numbers<[1], [0], [0], [1], [0, 0, 1, 1], [], []>} : vector<9x4xf32>, vector<4x2048xf32>, vector<9x2048xf32> -> vector<9x2048xf32>
    %73 = arith.addf %64, %72 : vector<9x2048xf32>
    %c2031_i32 = arith.constant 2031 : i32
    %74 = tpu.dynamic_rotate %1 by %c2031_i32 dim 1 : vector<4x2048xf32>, i32 -> vector<4x2048xf32>
    %c8 = arith.constant 8 : index
    %c0_51 = arith.constant 0 : index
    %c0_52 = arith.constant 0 : index
    %75 = vector.load %arg6[%c8, %c0_51, %c0_52] : memref<9x1x2048xf32, #tpu.memory_space<vmem>>, vector<1x1x2048xf32>
    %76 = vector.shape_cast %75 : vector<1x1x2048xf32> to vector<1x2048xf32>
    %77 = vector.broadcast %76 : vector<1x2048xf32> to vector<4x2048xf32>
    %78 = arith.mulf %74, %77 : vector<4x2048xf32>
    %c8_53 = arith.constant 8 : index
    %c0_54 = arith.constant 0 : index
    %c0_55 = arith.constant 0 : index
    %79 = vector.load %arg2[%c8_53, %c0_54, %c0_55] : memref<9x9x4xf32, #tpu.memory_space<vmem>>, vector<1x9x4xf32>
    %80 = vector.shape_cast %79 : vector<1x9x4xf32> to vector<9x4xf32>
    %cst_56 = arith.constant dense<0.000000e+00> : vector<9x2048xf32>
    %81 = tpu.matmul %80, %78, %cst_56 {dimension_numbers = #tpu.dot_dimension_numbers<[1], [0], [0], [1], [0, 0, 1, 1], [], []>} : vector<9x4xf32>, vector<4x2048xf32>, vector<9x2048xf32> -> vector<9x2048xf32>
    %82 = arith.addf %73, %81 : vector<9x2048xf32>
    %c0_57 = arith.constant 0 : index
    %c0_58 = arith.constant 0 : index
    %83 = vector.load %arg3[%c0_57, %c0_58] : memref<9x1xf32, #tpu.memory_space<vmem>>, vector<9x1xf32>
    %84 = vector.broadcast %83 : vector<9x1xf32> to vector<9x2048xf32>
    %85 = arith.addf %82, %84 : vector<9x2048xf32>
    %cst_59 = arith.constant 0.000000e+00 : f32
    %86 = vector.broadcast %cst_59 : f32 to vector<9x2048xf32>
    %87 = arith.maximumf %85, %86 : vector<9x2048xf32>
    %c0_60 = arith.constant 0 : index
    %c0_61 = arith.constant 0 : index
    %88 = vector.load %arg9[%c0_60, %c0_61] : memref<9x2048xf32, #tpu.memory_space<vmem>>, vector<9x2048xf32>
    tpu.vector_store %arg9[%c0_60, %c0_61], %87 {strides = array<i32>} : memref<9x2048xf32, #tpu.memory_space<vmem>>, vector<9x2048xf32>,
    %c0_62 = arith.constant 0 : index
    %c0_63 = arith.constant 0 : index
    %89 = vector.load %arg9[%c0_62, %c0_63] : memref<9x2048xf32, #tpu.memory_space<vmem>>, vector<9x2048xf32>
    %cst_64 = arith.constant 0.000000e+00 : f32
    %90 = vector.broadcast %cst_64 : f32 to vector<4x2048xf32>
    %c256_i32 = arith.constant 256 : i32
    %91 = tpu.dynamic_rotate %89 by %c256_i32 dim 1 : vector<9x2048xf32>, i32 -> vector<9x2048xf32>
    %c0_65 = arith.constant 0 : index
    %c0_66 = arith.constant 0 : index
    %c0_67 = arith.constant 0 : index
    %92 = vector.load %arg4[%c0_65, %c0_66, %c0_67] : memref<3x4x9xf32, #tpu.memory_space<vmem>>, vector<1x4x9xf32>
    %93 = vector.shape_cast %92 : vector<1x4x9xf32> to vector<4x9xf32>
    %cst_68 = arith.constant dense<0.000000e+00> : vector<4x2048xf32>
    %94 = tpu.matmul %93, %91, %cst_68 {dimension_numbers = #tpu.dot_dimension_numbers<[1], [0], [0], [1], [0, 0, 1, 1], [], []>} : vector<4x9xf32>, vector<9x2048xf32>, vector<4x2048xf32> -> vector<4x2048xf32>
    %c0_69 = arith.constant 0 : index
    %c0_70 = arith.constant 0 : index
    %c0_71 = arith.constant 0 : index
    %95 = vector.load %arg7[%c0_69, %c0_70, %c0_71] : memref<3x1x2048xf32, #tpu.memory_space<vmem>>, vector<1x1x2048xf32>
    %96 = vector.shape_cast %95 : vector<1x1x2048xf32> to vector<1x2048xf32>
    %97 = vector.broadcast %96 : vector<1x2048xf32> to vector<4x2048xf32>
    %98 = arith.mulf %94, %97 : vector<4x2048xf32>
    %99 = arith.addf %90, %98 : vector<4x2048xf32>
    %c1_72 = arith.constant 1 : index
    %c0_73 = arith.constant 0 : index
    %c0_74 = arith.constant 0 : index
    %100 = vector.load %arg4[%c1_72, %c0_73, %c0_74] : memref<3x4x9xf32, #tpu.memory_space<vmem>>, vector<1x4x9xf32>
    %101 = vector.shape_cast %100 : vector<1x4x9xf32> to vector<4x9xf32>
    %cst_75 = arith.constant dense<0.000000e+00> : vector<4x2048xf32>
    %102 = tpu.matmul %101, %89, %cst_75 {dimension_numbers = #tpu.dot_dimension_numbers<[1], [0], [0], [1], [0, 0, 1, 1], [], []>} : vector<4x9xf32>, vector<9x2048xf32>, vector<4x2048xf32> -> vector<4x2048xf32>
    %c1_76 = arith.constant 1 : index
    %c0_77 = arith.constant 0 : index
    %c0_78 = arith.constant 0 : index
    %103 = vector.load %arg7[%c1_76, %c0_77, %c0_78] : memref<3x1x2048xf32, #tpu.memory_space<vmem>>, vector<1x1x2048xf32>
    %104 = vector.shape_cast %103 : vector<1x1x2048xf32> to vector<1x2048xf32>
    %105 = vector.broadcast %104 : vector<1x2048xf32> to vector<4x2048xf32>
    %106 = arith.mulf %102, %105 : vector<4x2048xf32>
    %107 = arith.addf %99, %106 : vector<4x2048xf32>
    %c1792_i32 = arith.constant 1792 : i32
    %108 = tpu.dynamic_rotate %89 by %c1792_i32 dim 1 : vector<9x2048xf32>, i32 -> vector<9x2048xf32>
    %c2_79 = arith.constant 2 : index
    %c0_80 = arith.constant 0 : index
    %c0_81 = arith.constant 0 : index
    %109 = vector.load %arg4[%c2_79, %c0_80, %c0_81] : memref<3x4x9xf32, #tpu.memory_space<vmem>>, vector<1x4x9xf32>
    %110 = vector.shape_cast %109 : vector<1x4x9xf32> to vector<4x9xf32>
    %cst_82 = arith.constant dense<0.000000e+00> : vector<4x2048xf32>
    %111 = tpu.matmul %110, %108, %cst_82 {dimension_numbers = #tpu.dot_dimension_numbers<[1], [0], [0], [1], [0, 0, 1, 1], [], []>} : vector<4x9xf32>, vector<9x2048xf32>, vector<4x2048xf32> -> vector<4x2048xf32>
    %c2_83 = arith.constant 2 : index
    %c0_84 = arith.constant 0 : index
    %c0_85 = arith.constant 0 : index
    %112 = vector.load %arg7[%c2_83, %c0_84, %c0_85] : memref<3x1x2048xf32, #tpu.memory_space<vmem>>, vector<1x1x2048xf32>
    %113 = vector.shape_cast %112 : vector<1x1x2048xf32> to vector<1x2048xf32>
    %114 = vector.broadcast %113 : vector<1x2048xf32> to vector<4x2048xf32>
    %115 = arith.mulf %111, %114 : vector<4x2048xf32>
    %116 = arith.addf %107, %115 : vector<4x2048xf32>
    %c0_86 = arith.constant 0 : index
    %c0_87 = arith.constant 0 : index
    %117 = vector.load %arg5[%c0_86, %c0_87] : memref<4x1xf32, #tpu.memory_space<vmem>>, vector<4x1xf32>
    %118 = vector.broadcast %117 : vector<4x1xf32> to vector<4x2048xf32>
    %119 = arith.addf %116, %118 : vector<4x2048xf32>
    %c0_88 = arith.constant 0 : index
    %c0_89 = arith.constant 0 : index
    %c0_90 = arith.constant 0 : index
    %120 = vector.load %arg8[%c0_88, %c0_89, %c0_90] : memref<1x4x2048xf32, #tpu.memory_space<vmem>>, vector<1x4x2048xf32>
    %121 = vector.shape_cast %120 : vector<1x4x2048xf32> to vector<4x2048xf32>
    %122 = vector.shape_cast %119 : vector<4x2048xf32> to vector<1x4x2048xf32>
    tpu.vector_store %arg8[%c0_88, %c0_89, %c0_90], %122 {strides = array<i32>} : memref<1x4x2048xf32, #tpu.memory_space<vmem>>, vector<1x4x2048xf32>,
    return
  }
  func.func @transform_0(%arg0: i32) -> (i32, i32, i32) {
    %c0_i32 = arith.constant 0 : i32
    %c0_i32_0 = arith.constant 0 : i32
    %c0_i32_1 = arith.constant 0 : i32
    return %arg0, %c0_i32, %c0_i32_0 : i32, i32, i32
  }
  func.func @transform_1(%arg0: i32) -> (i32, i32, i32) {
    %c0_i32 = arith.constant 0 : i32
    %c0_i32_0 = arith.constant 0 : i32
    %c0_i32_1 = arith.constant 0 : i32
    %c0_i32_2 = arith.constant 0 : i32
    return %c0_i32, %c0_i32_0, %c0_i32_1 : i32, i32, i32
  }
  func.func @transform_2(%arg0: i32) -> (i32, i32) {
    %c0_i32 = arith.constant 0 : i32
    %c0_i32_0 = arith.constant 0 : i32
    %c0_i32_1 = arith.constant 0 : i32
    return %c0_i32, %c0_i32_0 : i32, i32
  }
  func.func @transform_3(%arg0: i32) -> (i32, i32, i32) {
    %c0_i32 = arith.constant 0 : i32
    %c0_i32_0 = arith.constant 0 : i32
    %c0_i32_1 = arith.constant 0 : i32
    %c0_i32_2 = arith.constant 0 : i32
    return %c0_i32, %c0_i32_0, %c0_i32_1 : i32, i32, i32
  }
  func.func @transform_4(%arg0: i32) -> (i32, i32) {
    %c0_i32 = arith.constant 0 : i32
    %c0_i32_0 = arith.constant 0 : i32
    %c0_i32_1 = arith.constant 0 : i32
    return %c0_i32, %c0_i32_0 : i32, i32
  }
  func.func @transform_5(%arg0: i32) -> (i32, i32, i32) {
    %c0_i32 = arith.constant 0 : i32
    %c0_i32_0 = arith.constant 0 : i32
    %c0_i32_1 = arith.constant 0 : i32
    %c0_i32_2 = arith.constant 0 : i32
    return %c0_i32, %c0_i32_0, %c0_i32_1 : i32, i32, i32
  }
  func.func @transform_6(%arg0: i32) -> (i32, i32, i32) {
    %c0_i32 = arith.constant 0 : i32
    %c0_i32_0 = arith.constant 0 : i32
    %c0_i32_1 = arith.constant 0 : i32
    %c0_i32_2 = arith.constant 0 : i32
    return %c0_i32, %c0_i32_0, %c0_i32_1 : i32, i32, i32
  }
  func.func @transform_7(%arg0: i32) -> (i32, i32, i32) {
    %c0_i32 = arith.constant 0 : i32
    %c0_i32_0 = arith.constant 0 : i32
    %c0_i32_1 = arith.constant 0 : i32
    return %arg0, %c0_i32, %c0_i32_0 : i32, i32, i32
  }
}

</mosaic_0001>

<llo_original>
// kernel: separable_conv3d_pallas.1
$region0: #{separable_conv3d_pallas.1}
  #allocation0 [shape = 'u32[]', space=smem, size = 0x4, offset = 0x4, fixed_abs, tag = 'smem constant byte address 0x4 - core index']
  #allocation1 [shape = 'u32[144,128]{1,0:T(1,128)}', space=vmem, size = 0x12000, scoped, tag = 'internal scratch']
  #allocation2 [shape = 'f32[9,2048]{1,0:T(8,128)}', space=vmem, size = 0x20000, scoped, tag = 'scratch operand']
  %s0 = inlined_call_operand.vmem [shape: f32[2,4,2048], index: 0, kind: input, shape index: {}]
  %s1 = inlined_call_operand.vmem [shape: f32[9,9,4], index: 1, kind: input, shape index: {}]
  %s2 = inlined_call_operand.vmem [shape: f32[9,1], index: 2, kind: input, shape index: {}]
  %s3 = inlined_call_operand.vmem [shape: f32[3,4,9], index: 3, kind: input, shape index: {}]
  %s4 = inlined_call_operand.vmem [shape: f32[4,1], index: 4, kind: input, shape index: {}]
  %s5 = inlined_call_operand.vmem [shape: f32[9,1,2048], index: 5, kind: input, shape index: {}]
  %s6 = inlined_call_operand.vmem [shape: f32[3,1,2048], index: 6, kind: input, shape index: {}]
  %s7 = inlined_call_operand.vmem [shape: f32[2,4,2048], index: 7, kind: output, shape index: {}]
  %s8 = sld [smem:[#allocation0]]
  $region61: #{separable_conv3d_pallas.1} parent=0
    _
  %s10 = ssub.s32 1, %s8
  %s11 = scalar_select 0, %s10, %s8
  loop: start=0, step=1, limit=4
  $region2: #{separable_conv3d_pallas.1} parent=0 // loop_pre_header
    _
  $region3: #{separable_conv3d_pallas.1} parent=0 // loop_header
    %s13 = sphi 0, %s17
    %p14 = scmp.ge.s32.totalorder %s13, 4
    %s23 = sphi 0, %s25
    %s26 = sphi 0, %s23
    %s27 = sphi 0, %s26
    %s43 = sphi 0, %s27
    %s47 = sphi 0, %s47
    %s49 = sphi 0, %s47
    %s50 = sphi 0, %s49
    %s64 = sphi 0, %s50
    %s68 = sphi 0, %s68
    %s70 = sphi 0, %s68
    %s71 = sphi 0, %s70
    %s85 = sphi 0, %s71
    %s89 = sphi 0, %s89
    %s91 = sphi 0, %s89
    %s92 = sphi 0, %s91
    %s106 = sphi 0, %s92
    %s110 = sphi 0, %s110
    %s112 = sphi 0, %s110
    %s113 = sphi 0, %s112
    %s127 = sphi 0, %s113
    %s131 = sphi 0, %s131
    %s133 = sphi 0, %s131
    %s134 = sphi 0, %s133
    %s148 = sphi 0, %s134
    %s152 = sphi 0, %s152
    %s154 = sphi 0, %s152
    %s155 = sphi 0, %s154
    %s169 = sphi 0, %s155
    %s175 = sphi 0, %s177
    %s178 = sphi 0, %s175
    %s179 = sphi 0, %s178
    %s195 = sphi 0, %s179
  $region4: #{separable_conv3d_pallas.1} parent=0 // loop_header_branch
    %16 = sbr.rel (%p14) target = $region8
  $region5: #{separable_conv3d_pallas.1} parent=0 // loop_body
    %s18 = ssub.s32 %s13, 1
    %s19 = ssub.s32 %s13, 2
    %s20 = sadd.s32 %s13, 1
    %s21 = ssub.s32 %s13, %s20
    %p22 = scmp.eq.s32.totalorder %s21, 0
    %s24 = sadd.s32 %s23, 1
    %s25 = scalar_select %p22, %s23, %s24
    %p28 = pneg %p22
    %p29 = scmp.eq.s32.totalorder %s13, 1
    %p30 = por %p28, %p29
    %p31 = scmp.ne.s32.totalorder %s23, %s26
    %p32 = scmp.eq.s32.totalorder %s13, 0
    %p33 = por %p31, %p32
    %p34 = scmp.ne.s32.totalorder %s23, %s26
    %p35 = scmp.eq.s32.totalorder %s18, 1
    %p36 = por %p34, %p35
    %p37 = scmp.ne.s32.totalorder %s26, %s27
    %p38 = scmp.eq.s32.totalorder %s18, 0
    %p39 = por %p37, %p38
    %p40 = scmp.ne.s32.totalorder %s26, %s27
    %p41 = scmp.eq.s32.totalorder %s19, 1
    %p42 = por %p40, %p41
    %p44 = scmp.ne.s32.totalorder %s27, %s43
    %p45 = scmp.eq.s32.totalorder %s19, 0
    %p46 = por %p44, %p45
    %s48 = sadd.s32 %s47, 1
    %p51 = scmp.eq.s32.totalorder %s13, 1
    %p52 = scmp.ne.s32.totalorder %s47, %s49
    %p53 = scmp.eq.s32.totalorder %s13, 0
    %p54 = por %p52, %p53
    %p55 = scmp.ne.s32.totalorder %s47, %s49
    %p56 = scmp.eq.s32.totalorder %s18, 1
    %p57 = por %p55, %p56
    %p58 = scmp.ne.s32.totalorder %s49, %s50
    %p59 = scmp.eq.s32.totalorder %s18, 0
    %p60 = por %p58, %p59
    %p61 = scmp.ne.s32.totalorder %s49, %s50
    %p62 = scmp.eq.s32.totalorder %s19, 1
    %p63 = por %p61, %p62
    %p65 = scmp.ne.s32.totalorder %s50, %s64
    %p66 = scmp.eq.s32.totalorder %s19, 0
    %p67 = por %p65, %p66
    %s69 = sadd.s32 %s68, 1
    %p72 = scmp.eq.s32.totalorder %s13, 1
    %p73 = scmp.ne.s32.totalorder %s68, %s70
    %p74 = scmp.eq.s32.totalorder %s13, 0
    %p75 = por %p73, %p74
    %p76 = scmp.ne.s32.totalorder %s68, %s70
    %p77 = scmp.eq.s32.totalorder %s18, 1
    %p78 = por %p76, %p77
    %p79 = scmp.ne.s32.totalorder %s70, %s71
    %p80 = scmp.eq.s32.totalorder %s18, 0
    %p81 = por %p79, %p80
    %p82 = scmp.ne.s32.totalorder %s70, %s71
    %p83 = scmp.eq.s32.totalorder %s19, 1
    %p84 = por %p82, %p83
    %p86 = scmp.ne.s32.totalorder %s71, %s85
    %p87 = scmp.eq.s32.totalorder %s19, 0
    %p88 = por %p86, %p87
    %s90 = sadd.s32 %s89, 1
    %p93 = scmp.eq.s32.totalorder %s13, 1
    %p94 = scmp.ne.s32.totalorder %s89, %s91
    %p95 = scmp.eq.s32.totalorder %s13, 0
    %p96 = por %p94, %p95
    %p97 = scmp.ne.s32.totalorder %s89, %s91
    %p98 = scmp.eq.s32.totalorder %s18, 1
    %p99 = por %p97, %p98
    %p100 = scmp.ne.s32.totalorder %s91, %s92
    %p101 = scmp.eq.s32.totalorder %s18, 0
    %p102 = por %p100, %p101
    %p103 = scmp.ne.s32.totalorder %s91, %s92
    %p104 = scmp.eq.s32.totalorder %s19, 1
    %p105 = por %p103, %p104
    %p107 = scmp.ne.s32.totalorder %s92, %s106
    %p108 = scmp.eq.s32.totalorder %s19, 0
    %p109 = por %p107, %p108
    %s111 = sadd.s32 %s110, 1
    %p114 = scmp.eq.s32.totalorder %s13, 1
    %p115 = scmp.ne.s32.totalorder %s110, %s112
    %p116 = scmp.eq.s32.totalorder %s13, 0
    %p117 = por %p115, %p116
    %p118 = scmp.ne.s32.totalorder %s110, %s112
    %p119 = scmp.eq.s32.totalorder %s18, 1
    %p120 = por %p118, %p119
    %p121 = scmp.ne.s32.totalorder %s112, %s113
    %p122 = scmp.eq.s32.totalorder %s18, 0
    %p123 = por %p121, %p122
    %p124 = scmp.ne.s32.totalorder %s112, %s113
    %p125 = scmp.eq.s32.totalorder %s19, 1
    %p126 = por %p124, %p125
    %p128 = scmp.ne.s32.totalorder %s113, %s127
    %p129 = scmp.eq.s32.totalorder %s19, 0
    %p130 = por %p128, %p129
    %s132 = sadd.s32 %s131, 1
    %p135 = scmp.eq.s32.totalorder %s13, 1
    %p136 = scmp.ne.s32.totalorder %s131, %s133
    %p137 = scmp.eq.s32.totalorder %s13, 0
    %p138 = por %p136, %p137
    %p139 = scmp.ne.s32.totalorder %s131, %s133
    %p140 = scmp.eq.s32.totalorder %s18, 1
    %p141 = por %p139, %p140
    %p142 = scmp.ne.s32.totalorder %s133, %s134
    %p143 = scmp.eq.s32.totalorder %s18, 0
    %p144 = por %p142, %p143
    %p145 = scmp.ne.s32.totalorder %s133, %s134
    %p146 = scmp.eq.s32.totalorder %s19, 1
    %p147 = por %p145, %p146
    %p149 = scmp.ne.s32.totalorder %s134, %s148
    %p150 = scmp.eq.s32.totalorder %s19, 0
    %p151 = por %p149, %p150
    %s153 = sadd.s32 %s152, 1
    %p156 = scmp.eq.s32.totalorder %s13, 1
    %p157 = scmp.ne.s32.totalorder %s152, %s154
    %p158 = scmp.eq.s32.totalorder %s13, 0
    %p159 = por %p157, %p158
    %p160 = scmp.ne.s32.totalorder %s152, %s154
    %p161 = scmp.eq.s32.totalorder %s18, 1
    %p162 = por %p160, %p161
    %p163 = scmp.ne.s32.totalorder %s154, %s155
    %p164 = scmp.eq.s32.totalorder %s18, 0
    %p165 = por %p163, %p164
    %p166 = scmp.ne.s32.totalorder %s154, %s155
    %p167 = scmp.eq.s32.totalorder %s19, 1
    %p168 = por %p166, %p167
    %p170 = scmp.ne.s32.totalorder %s155, %s169
    %p171 = scmp.eq.s32.totalorder %s19, 0
    %p172 = por %p170, %p171
    %s173 = ssub.s32 %s13, %s20
    %p174 = scmp.eq.s32.totalorder %s173, 0
    %s176 = sadd.s32 %s175, 1
    %s177 = scalar_select %p174, %s175, %s176
    %p180 = pneg %p174
    %p181 = scmp.eq.s32.totalorder %s13, 1
    %p182 = por %p180, %p181
    %p183 = scmp.ne.s32.totalorder %s175, %s178
    %p184 = scmp.eq.s32.totalorder %s13, 0
    %p185 = por %p183, %p184
    %p186 = scmp.ne.s32.totalorder %s175, %s178
    %p187 = scmp.eq.s32.totalorder %s18, 1
    %p188 = por %p186, %p187
    %p189 = scmp.ne.s32.totalorder %s178, %s179
    %p190 = scmp.eq.s32.totalorder %s18, 0
    %p191 = por %p189, %p190
    %p192 = scmp.ne.s32.totalorder %s178, %s179
    %p193 = scmp.eq.s32.totalorder %s19, 1
    %p194 = por %p192, %p193
    %p196 = scmp.ne.s32.totalorder %s179, %s195
    %p197 = scmp.eq.s32.totalorder %s19, 0
    %p198 = por %p196, %p197
    %p199 = scmp.le.s32.totalorder 1, %s13
    %p200 = scmp.lt.s32.totalorder %s13, 3
    %p201 = pnand %p199, %p200
    %p202 = pneg %p201
    // Predicated region
    $region9: #{separable_conv3d_pallas.1} parent=5 // pred_check
      _
    $region10: #{separable_conv3d_pallas.1} parent=5 // pred_check_branch
      %204 = sbr.rel (%p201) target = $region12
    $region11: #{separable_conv3d_pallas.1} parent=5 // pred_region
      %s205 = ssub.s32 %s13, 1
      // Predicated region
      $region13: #{separable_conv3d_pallas.1} parent=11 // pred_check
        %p206 = pneg %p60
      $region14: #{separable_conv3d_pallas.1} parent=11 // pred_check_branch
        %208 = sbr.rel (%p206) target = $region16
      $region15: #{separable_conv3d_pallas.1} parent=11 // pred_region
        _
      $region16: #{separable_conv3d_pallas.1} parent=11 // pred_fallthru
        _
      // Predicated region
      $region17: #{separable_conv3d_pallas.1} parent=11 // pred_check
        %p209 = pneg %p81
      $region18: #{separable_conv3d_pallas.1} parent=11 // pred_check_branch
        %211 = sbr.rel (%p209) target = $region20
      $region19: #{separable_conv3d_pallas.1} parent=11 // pred_region
        _
      $region20: #{separable_conv3d_pallas.1} parent=11 // pred_fallthru
        _
      // Predicated region
      $region21: #{separable_conv3d_pallas.1} parent=11 // pred_check
        %p212 = pneg %p102
      $region22: #{separable_conv3d_pallas.1} parent=11 // pred_check_branch
        %214 = sbr.rel (%p212) target = $region24
      $region23: #{separable_conv3d_pallas.1} parent=11 // pred_region
        _
      $region24: #{separable_conv3d_pallas.1} parent=11 // pred_fallthru
        _
      // Predicated region
      $region25: #{separable_conv3d_pallas.1} parent=11 // pred_check
        %p215 = pneg %p123
      $region26: #{separable_conv3d_pallas.1} parent=11 // pred_check_branch
        %217 = sbr.rel (%p215) target = $region28
      $region27: #{separable_conv3d_pallas.1} parent=11 // pred_region
        _
      $region28: #{separable_conv3d_pallas.1} parent=11 // pred_fallthru
        _
      // Predicated region
      $region29: #{separable_conv3d_pallas.1} parent=11 // pred_check
        %p218 = pneg %p144
      $region30: #{separable_conv3d_pallas.1} parent=11 // pred_check_branch
        %220 = sbr.rel (%p218) target = $region32
      $region31: #{separable_conv3d_pallas.1} parent=11 // pred_region
        _
      $region32: #{separable_conv3d_pallas.1} parent=11 // pred_fallthru
        _
      // Predicated region
      $region33: #{separable_conv3d_pallas.1} parent=11 // pred_check
        %p221 = pneg %p165
      $region34: #{separable_conv3d_pallas.1} parent=11 // pred_check_branch
        %223 = sbr.rel (%p221) target = $region36
      $region35: #{separable_conv3d_pallas.1} parent=11 // pred_region
        _
      $region36: #{separable_conv3d_pallas.1} parent=11 // pred_fallthru
        _
    $region12: #{separable_conv3d_pallas.1} parent=5 // pred_fallthru
      _
    %p224 = scmp.lt.s32.totalorder %s13, 2
    // Predicated region
    $region37: #{separable_conv3d_pallas.1} parent=5 // pred_check
      %p225 = pneg %p224
    $region38: #{separable_conv3d_pallas.1} parent=5 // pred_check_branch
      %227 = sbr.rel (%p225) target = $region40
    $region39: #{separable_conv3d_pallas.1} parent=5 // pred_region
      // Predicated region
      $region41: #{separable_conv3d_pallas.1} parent=39 // pred_check
        %p228 = pneg %p33
      $region42: #{separable_conv3d_pallas.1} parent=39 // pred_check_branch
        %230 = sbr.rel (%p228) target = $region44
      $region43: #{separable_conv3d_pallas.1} parent=39 // pred_region
        %p231 = scmp.lt.s32.totalorder %s13, 1
        %s232 = scalar_select %p231, %s13, 1
        %s233 = smul.addr %s232, 16
        %s234 = smul.addr %s233, 4
        %s235 = scalar_lea.vmem %s0, %s234
      $region44: #{separable_conv3d_pallas.1} parent=39 // pred_fallthru
        _
    $region40: #{separable_conv3d_pallas.1} parent=5 // pred_fallthru
      _
    %p236 = scmp.le.s32.totalorder 1, %s13
    %p237 = scmp.lt.s32.totalorder %s13, 3
    %p238 = pnand %p236, %p237
    %p239 = pneg %p238
    // Predicated region
    $region45: #{separable_conv3d_pallas.1} parent=5 // pred_check
      _
    $region46: #{separable_conv3d_pallas.1} parent=5 // pred_check_branch
      %241 = sbr.rel (%p238) target = $region48
    $region47: #{separable_conv3d_pallas.1} parent=5 // pred_region
      %s242 = ssub.s32 %s13, 1
      %p243 = scmp.lt.s32.totalorder %s18, 1
      %s244 = scalar_select %p243, %s18, 1
      %s245 = smul.addr %s244, 16
      %s246 = smul.addr %s245, 4
      %s247 = scalar_lea.vmem %s0, %s246
      %p248 = pneg %p39
      %p249 = pneg %p36
      %p250 = pneg %p60
      %p251 = pneg %p57
      %p252 = pneg %p81
      %p253 = pneg %p78
      %p254 = pneg %p102
      %p255 = pneg %p99
      %p256 = pneg %p123
      %p257 = pneg %p120
      %p258 = pneg %p144
      %p259 = pneg %p141
      %p260 = pneg %p165
      %p261 = pneg %p162
      %p262 = pneg %p191
      %p263 = pneg %p188
      %p264 = scmp.lt.s32.totalorder %s18, 1
      %s265 = scalar_select %p264, %s18, 1
      %s266 = smul.addr %s265, 16
      %s267 = smul.addr %s266, 4
      %s268 = scalar_lea.vmem %s7, %s267
      %p269 = scmp.lt.s32.totalorder %s18, 1
      %s270 = scalar_select %p269, %s18, 1
      %s271 = smul.addr %s270, 16
      %s272 = smul.addr %s271, 4
      %s273 = scalar_lea.vmem %s0, %s272
      %p274 = scmp.lt.s32.totalorder %s18, 1
      %s275 = scalar_select %p274, %s18, 1
      %s276 = smul.addr %s275, 16
      %s277 = smul.addr %s276, 4
      %s278 = scalar_lea.vmem %s7, %s277
      %v279 = vld [vmem:[%s273] sm:$0xff]
      %v280 = vld [vmem:[%s273 + $0x8] sm:$0xff]
      %v281 = vld [vmem:[%s273 + $0x10] sm:$0xff]
      %v282 = vld [vmem:[%s273 + $0x18] sm:$0xff]
      %v283 = vld [vmem:[%s273 + $0x20] sm:$0xff]
      %v284 = vld [vmem:[%s273 + $0x28] sm:$0xff]
      %v285 = vld [vmem:[%s273 + $0x30] sm:$0xff]
      %v286 = vld [vmem:[%s273 + $0x38] sm:$0xff]
      %v295 = vcombine.high %v279, %v279
      %v296 = vcombine.high %v280, %v280
      %v297 = vcombine.high %v281, %v281
      %v298 = vcombine.high %v282, %v282
      %v299 = vcombine.high %v283, %v283
      %v300 = vcombine.high %v284, %v284
      %v301 = vcombine.high %v285, %v285
      %v302 = vcombine.high %v286, %v286
      %311 = vrot.lane.b32.xlu0 %v279, 17
      %v312 = vpop.permute.xlu0 %311
      %313 = vrot.lane.b32.xlu0 %v295, 17
      %v314 = vpop.permute.xlu0 %313
      %315 = vrot.lane.b32.xlu0 %v280, 17
      %v316 = vpop.permute.xlu0 %315
      %317 = vrot.lane.b32.xlu0 %v296, 17
      %v318 = vpop.permute.xlu0 %317
      %319 = vrot.lane.b32.xlu0 %v281, 17
      %v320 = vpop.permute.xlu0 %319
      %321 = vrot.lane.b32.xlu0 %v297, 17
      %v322 = vpop.permute.xlu0 %321
      %323 = vrot.lane.b32.xlu0 %v282, 17
      %v324 = vpop.permute.xlu0 %323
      %325 = vrot.lane.b32.xlu0 %v298, 17
      %v326 = vpop.permute.xlu0 %325
      %327 = vrot.lane.b32.xlu0 %v283, 17
      %v328 = vpop.permute.xlu0 %327
      %329 = vrot.lane.b32.xlu0 %v299, 17
      %v330 = vpop.permute.xlu0 %329
      %331 = vrot.lane.b32.xlu0 %v284, 17
      %v332 = vpop.permute.xlu0 %331
      %333 = vrot.lane.b32.xlu0 %v300, 17
      %v334 = vpop.permute.xlu0 %333
      %335 = vrot.lane.b32.xlu0 %v285, 17
      %v336 = vpop.permute.xlu0 %335
      %337 = vrot.lane.b32.xlu0 %v301, 17
      %v338 = vpop.permute.xlu0 %337
      %339 = vrot.lane.b32.xlu0 %v286, 17
      %v340 = vpop.permute.xlu0 %339
      %341 = vrot.lane.b32.xlu0 %v302, 17
      %v342 = vpop.permute.xlu0 %341
      %v343 = vlaneseq
      %v344 = vand.u32 %v343, 127
      %vm345 = vcmp.lt.s32.totalorder %v344, 17
      %v346 = vsel %vm345, %v340, %v342
      %v347 = vsel %vm345, %v338, %v340
      %v348 = vsel %vm345, %v336, %v338
      %v349 = vsel %vm345, %v334, %v336
      %v350 = vsel %vm345, %v332, %v334
      %v351 = vsel %vm345, %v330, %v332
      %v352 = vsel %vm345, %v328, %v330
      %v353 = vsel %vm345, %v326, %v328
      %v354 = vsel %vm345, %v324, %v326
      %v355 = vsel %vm345, %v322, %v324
      %v356 = vsel %vm345, %v320, %v322
      %v357 = vsel %vm345, %v318, %v320
      %v358 = vsel %vm345, %v316, %v318
      %v359 = vsel %vm345, %v314, %v316
      %v360 = vsel %vm345, %v312, %v314
      %v361 = vsel %vm345, %v342, %v312
      %v362 = vld [vmem:[%s5] sm:$0xff]
      %v363 = vld [vmem:[%s5 + $0x8] sm:$0xff]
      %v366 = vlaneseq
      %v367 = vshrl.u32 %v366, 7
      %v368 = vsub.s32 0, %v367
      %v369 = vrot.slane %v362, %v368
      %v370 = vlaneseq
      %v371 = vshrl.u32 %v370, 7
      %v372 = vsub.s32 1, %v371
      %v373 = vrot.slane %v362, %v372
      %v374 = vlaneseq
      %v375 = vshrl.u32 %v374, 7
      %v376 = vsub.s32 2, %v375
      %v377 = vrot.slane %v362, %v376
      %v378 = vlaneseq
      %v379 = vshrl.u32 %v378, 7
      %v380 = vsub.s32 3, %v379
      %v381 = vrot.slane %v362, %v380
      %v382 = vlaneseq
      %v383 = vshrl.u32 %v382, 7
      %v384 = vsub.s32 4, %v383
      %v385 = vrot.slane %v362, %v384
      %v386 = vlaneseq
      %v387 = vshrl.u32 %v386, 7
      %v388 = vsub.s32 5, %v387
      %v389 = vrot.slane %v362, %v388
      %v390 = vlaneseq
      %v391 = vshrl.u32 %v390, 7
      %v392 = vsub.s32 6, %v391
      %v393 = vrot.slane %v362, %v392
      %v394 = vlaneseq
      %v395 = vshrl.u32 %v394, 7
      %v396 = vsub.s32 7, %v395
      %v397 = vrot.slane %v362, %v396
      %v398 = vlaneseq
      %v399 = vshrl.u32 %v398, 7
      %v400 = vsub.s32 0, %v399
      %v401 = vrot.slane %v363, %v400
      %v402 = vlaneseq
      %v403 = vshrl.u32 %v402, 7
      %v404 = vsub.s32 1, %v403
      %v405 = vrot.slane %v363, %v404
      %v406 = vlaneseq
      %v407 = vshrl.u32 %v406, 7
      %v408 = vsub.s32 2, %v407
      %v409 = vrot.slane %v363, %v408
      %v410 = vlaneseq
      %v411 = vshrl.u32 %v410, 7
      %v412 = vsub.s32 3, %v411
      %v413 = vrot.slane %v363, %v412
      %v414 = vlaneseq
      %v415 = vshrl.u32 %v414, 7
      %v416 = vsub.s32 4, %v415
      %v417 = vrot.slane %v363, %v416
      %v418 = vlaneseq
      %v419 = vshrl.u32 %v418, 7
      %v420 = vsub.s32 5, %v419
      %v421 = vrot.slane %v363, %v420
      %v422 = vlaneseq
      %v423 = vshrl.u32 %v422, 7
      %v424 = vsub.s32 6, %v423
      %v425 = vrot.slane %v363, %v424
      %v426 = vlaneseq
      %v427 = vshrl.u32 %v426, 7
      %v428 = vsub.s32 7, %v427
      %v429 = vrot.slane %v363, %v428
      %v446 = vmul.f32 %v361, %v369
      %v447 = vmul.f32 %v360, %v373
      %v448 = vmul.f32 %v359, %v377
      %v449 = vmul.f32 %v358, %v381
      %v450 = vmul.f32 %v357, %v385
      %v451 = vmul.f32 %v356, %v389
      %v452 = vmul.f32 %v355, %v393
      %v453 = vmul.f32 %v354, %v397
      %v454 = vmul.f32 %v353, %v401
      %v455 = vmul.f32 %v352, %v405
      %v456 = vmul.f32 %v351, %v409
      %v457 = vmul.f32 %v350, %v413
      %v458 = vmul.f32 %v349, %v417
      %v459 = vmul.f32 %v348, %v421
      %v460 = vmul.f32 %v347, %v425
      %v461 = vmul.f32 %v346, %v429
      %v462 = vld [vmem:[%s1] sm:$0xff]
      %v463 = vld [vmem:[%s1 + $0x8] sm:$0x1]
      %464 = vrot.lane.b32.xlu0 %v279, 16
      %v465 = vpop.permute.xlu0 %464
      %466 = vrot.lane.b32.xlu0 %v295, 16
      %v467 = vpop.permute.xlu0 %466
      %468 = vrot.lane.b32.xlu0 %v280, 16
      %v469 = vpop.permute.xlu0 %468
      %470 = vrot.lane.b32.xlu0 %v296, 16
      %v471 = vpop.permute.xlu0 %470
      %472 = vrot.lane.b32.xlu0 %v281, 16
      %v473 = vpop.permute.xlu0 %472
      %474 = vrot.lane.b32.xlu0 %v297, 16
      %v475 = vpop.permute.xlu0 %474
      %476 = vrot.lane.b32.xlu0 %v282, 16
      %v477 = vpop.permute.xlu0 %476
      %478 = vrot.lane.b32.xlu0 %v298, 16
      %v479 = vpop.permute.xlu0 %478
      %480 = vrot.lane.b32.xlu0 %v283, 16
      %v481 = vpop.permute.xlu0 %480
      %482 = vrot.lane.b32.xlu0 %v299, 16
      %v483 = vpop.permute.xlu0 %482
      %484 = vrot.lane.b32.xlu0 %v284, 16
      %v485 = vpop.permute.xlu0 %484
      %486 = vrot.lane.b32.xlu0 %v300, 16
      %v487 = vpop.permute.xlu0 %486
      %488 = vrot.lane.b32.xlu0 %v285, 16
      %v489 = vpop.permute.xlu0 %488
      %490 = vrot.lane.b32.xlu0 %v301, 16
      %v491 = vpop.permute.xlu0 %490
      %492 = vrot.lane.b32.xlu0 %v286, 16
      %v493 = vpop.permute.xlu0 %492
      %494 = vrot.lane.b32.xlu0 %v302, 16
      %v495 = vpop.permute.xlu0 %494
      %vm496 = vcmp.lt.s32.totalorder %v344, 16
      %v497 = vsel %vm496, %v493, %v495
      %v498 = vsel %vm496, %v491, %v493
      %v499 = vsel %vm496, %v489, %v491
      %v500 = vsel %vm496, %v487, %v489
      %v501 = vsel %vm496, %v485, %v487
      %v502 = vsel %vm496, %v483, %v485
      %v503 = vsel %vm496, %v481, %v483
      %v504 = vsel %vm496, %v479, %v481
      %v505 = vsel %vm496, %v477, %v479
      %v506 = vsel %vm496, %v475, %v477
      %v507 = vsel %vm496, %v473, %v475
      %v508 = vsel %vm496, %v471, %v473
      %v509 = vsel %vm496, %v469, %v471
      %v510 = vsel %vm496, %v467, %v469
      %v511 = vsel %vm496, %v465, %v467
      %v512 = vsel %vm496, %v495, %v465
      %s513 = scalar_lea.vmem %s5, 16
      %v514 = vld [vmem:[%s513] sm:$0xff]
      %v515 = vld [vmem:[%s513 + $0x8] sm:$0xff]
      %v518 = vlaneseq
      %v519 = vshrl.u32 %v518, 7
      %v520 = vsub.s32 0, %v519
      %v521 = vrot.slane %v514, %v520
      %v522 = vlaneseq
      %v523 = vshrl.u32 %v522, 7
      %v524 = vsub.s32 1, %v523
      %v525 = vrot.slane %v514, %v524
      %v526 = vlaneseq
      %v527 = vshrl.u32 %v526, 7
      %v528 = vsub.s32 2, %v527
      %v529 = vrot.slane %v514, %v528
      %v530 = vlaneseq
      %v531 = vshrl.u32 %v530, 7
      %v532 = vsub.s32 3, %v531
      %v533 = vrot.slane %v514, %v532
      %v534 = vlaneseq
      %v535 = vshrl.u32 %v534, 7
      %v536 = vsub.s32 4, %v535
      %v537 = vrot.slane %v514, %v536
      %v538 = vlaneseq
      %v539 = vshrl.u32 %v538, 7
      %v540 = vsub.s32 5, %v539
      %v541 = vrot.slane %v514, %v540
      %v542 = vlaneseq
      %v543 = vshrl.u32 %v542, 7
      %v544 = vsub.s32 6, %v543
      %v545 = vrot.slane %v514, %v544
      %v546 = vlaneseq
      %v547 = vshrl.u32 %v546, 7
      %v548 = vsub.s32 7, %v547
      %v549 = vrot.slane %v514, %v548
      %v550 = vlaneseq
      %v551 = vshrl.u32 %v550, 7
      %v552 = vsub.s32 0, %v551
      %v553 = vrot.slane %v515, %v552
      %v554 = vlaneseq
      %v555 = vshrl.u32 %v554, 7
      %v556 = vsub.s32 1, %v555
      %v557 = vrot.slane %v515, %v556
      %v558 = vlaneseq
      %v559 = vshrl.u32 %v558, 7
      %v560 = vsub.s32 2, %v559
      %v561 = vrot.slane %v515, %v560
      %v562 = vlaneseq
      %v563 = vshrl.u32 %v562, 7
      %v564 = vsub.s32 3, %v563
      %v565 = vrot.slane %v515, %v564
      %v566 = vlaneseq
      %v567 = vshrl.u32 %v566, 7
      %v568 = vsub.s32 4, %v567
      %v569 = vrot.slane %v515, %v568
      %v570 = vlaneseq
      %v571 = vshrl.u32 %v570, 7
      %v572 = vsub.s32 5, %v571
      %v573 = vrot.slane %v515, %v572
      %v574 = vlaneseq
      %v575 = vshrl.u32 %v574, 7
      %v576 = vsub.s32 6, %v575
      %v577 = vrot.slane %v515, %v576
      %v578 = vlaneseq
      %v579 = vshrl.u32 %v578, 7
      %v580 = vsub.s32 7, %v579
      %v581 = vrot.slane %v515, %v580
      %v598 = vmul.f32 %v512, %v521
      %v599 = vmul.f32 %v511, %v525
      %v600 = vmul.f32 %v510, %v529
      %v601 = vmul.f32 %v509, %v533
      %v602 = vmul.f32 %v508, %v537
      %v603 = vmul.f32 %v507, %v541
      %v604 = vmul.f32 %v506, %v545
      %v605 = vmul.f32 %v505, %v549
      %v606 = vmul.f32 %v504, %v553
      %v607 = vmul.f32 %v503, %v557
      %v608 = vmul.f32 %v502, %v561
      %v609 = vmul.f32 %v501, %v565
      %v610 = vmul.f32 %v500, %v569
      %v611 = vmul.f32 %v499, %v573
      %v612 = vmul.f32 %v498, %v577
      %v613 = vmul.f32 %v497, %v581
      %s614 = scalar_lea.vmem %s1, 16
      %v615 = vld [vmem:[%s614] sm:$0xff]
      %v616 = vld [vmem:[%s614 + $0x8] sm:$0x1]
      %vm617 = vcmask 31744
      %v619 = vsel %vm617, %v615, 0
      %v622 = vsel %vm617, %v616, 0
      %vm624 = vcmask 1043456
      %v626 = vsel %vm624, %v598, 0
      %v629 = vsel %vm624, %v599, 0
      %v632 = vsel %vm624, %v600, 0
      %v635 = vsel %vm624, %v601, 0
      %v638 = vsel %vm624, %v602, 0
      %v641 = vsel %vm624, %v603, 0
      %v644 = vsel %vm624, %v604, 0
      %v647 = vsel %vm624, %v605, 0
      %v650 = vsel %vm624, %v606, 0
      %v653 = vsel %vm624, %v607, 0
      %v656 = vsel %vm624, %v608, 0
      %v659 = vsel %vm624, %v609, 0
      %v662 = vsel %vm624, %v610, 0
      %v665 = vsel %vm624, %v611, 0
      %v668 = vsel %vm624, %v612, 0
      %v671 = vsel %vm624, %v613, 0
      %673 = vmatprep.subr.mxu0 %v629
      %674 = vmatpush1.msra.mxu0 %v626
      %675 = vmatprep.subr.mxu0 0.0
      %676 = vmatpush1.msra.mxu0 0.0
      %677 = vmatprep.subr.mxu0 0.0
      %678 = vmatpush1.msra.mxu0 0.0
      %679 = vmatprep.subr.mxu0 0.0
      %680 = vmatpush1.msra.mxu0 0.0
      %681 = vmatprep.subr.mxu0 0.0
      %682 = vmatpush1.msra.mxu0 0.0
      %683 = vmatprep.subr.mxu0 0.0
      %684 = vmatpush1.msra.mxu0 0.0
      %685 = vmatprep.subr.mxu0 0.0
      %686 = vmatpush1.msra.mxu0 0.0
      %687 = vmatprep.subr.mxu0 0.0
      %688 = vmatpush1.msra.mxu0 0.0
      %689 = vmatprep.subr.mxu0 0.0
      %690 = vmatpush1.msra.mxu0 0.0
      %691 = vmatprep.subr.mxu0 0.0
      %692 = vmatpush1.msra.mxu0 0.0
      %693 = vmatprep.subr.mxu0 0.0
      %694 = vmatpush1.msra.mxu0 0.0
      %695 = vmatprep.subr.mxu0 0.0
      %696 = vmatpush1.msra.mxu0 0.0
      %697 = vmatprep.subr.mxu0 0.0
      %698 = vmatpush1.msra.mxu0 0.0
      %699 = vmatprep.subr.mxu0 0.0
      %700 = vmatpush1.msra.mxu0 0.0
      %701 = vmatprep.subr.mxu0 0.0
      %702 = vmatpush1.msra.mxu0 0.0
      %703 = vmatprep.subr.mxu0 0.0
      %704 = vmatpush1.msra.mxu0 0.0
      %705 = vmatprep.subr.mxu0 0.0
      %706 = vmatpush1.msra.mxu0 0.0
      %707 = vmatprep.subr.mxu0 0.0
      %708 = vmatpush1.msra.mxu0 0.0
      %709 = vmatprep.subr.mxu0 0.0
      %710 = vmatpush1.msra.mxu0 0.0
      %711 = vmatprep.subr.mxu0 0.0
      %712 = vmatpush1.msra.mxu0 0.0
      %713 = vmatprep.subr.mxu0 0.0
      %714 = vmatpush1.msra.mxu0 0.0
      %715 = vmatprep.subr.mxu0 0.0
      %716 = vmatpush1.msra.mxu0 0.0
      %717 = vmatprep.subr.mxu0 0.0
      %718 = vmatpush1.msra.mxu0 0.0
      %719 = vmatprep.subr.mxu0 0.0
      %720 = vmatpush1.msra.mxu0 0.0
      %721 = vmatprep.subr.mxu0 0.0
      %722 = vmatpush1.msra.mxu0 0.0
      %723 = vmatprep.subr.mxu0 0.0
      %724 = vmatpush1.msra.mxu0 0.0
      %725 = vmatprep.subr.mxu0 0.0
      %726 = vmatpush1.msra.mxu0 0.0
      %727 = vmatprep.subr.mxu0 0.0
      %728 = vmatpush1.msra.mxu0 0.0
      %729 = vmatprep.subr.mxu0 0.0
      %730 = vmatpush1.msra.mxu0 0.0
      %731 = vmatprep.subr.mxu0 0.0
      %732 = vmatpush1.msra.mxu0 0.0
      %733 = vmatprep.subr.mxu0 0.0
      %734 = vmatpush1.msra.mxu0 0.0
      %735 = vmatprep.subr.mxu0 0.0
      %736 = vmatpush1.msra.mxu0 0.0
      %737 = vmatprep.mubr.f32.mxu0 0.0
      %738 = vmatmul.mubr.f32.gmra.mrb[0].mxu0 %v619
      %v739 = vpop.f32.mrb[0].mxu0
      %v740 = vadd.f32 0.0, %v739
      %v741 = vpop.f32.mrb[0].mxu0
      %v742 = vadd.f32 0.0, %v741
      %743 = vmatprep.mubr.f32.mxu0 0.0
      %744 = vmatmul.mubr.f32.gmra.mrb[0].mxu0 %v622
      %v745 = vpop.f32.mrb[0].mxu0
      %v746 = vadd.f32 0.0, %v745
      %v747 = vpop.f32.mrb[0].mxu0
      %v748 = vadd.f32 0.0, %v747
      %749 = vdwg.mxu0
      %750 = vmatprep.subr.mxu0 %v635
      %751 = vmatpush1.msra.mxu0 %v632
      %752 = vmatprep.subr.mxu0 0.0
      %753 = vmatpush1.msra.mxu0 0.0
      %754 = vmatprep.subr.mxu0 0.0
      %755 = vmatpush1.msra.mxu0 0.0
      %756 = vmatprep.subr.mxu0 0.0
      %757 = vmatpush1.msra.mxu0 0.0
      %758 = vmatprep.subr.mxu0 0.0
      %759 = vmatpush1.msra.mxu0 0.0
      %760 = vmatprep.subr.mxu0 0.0
      %761 = vmatpush1.msra.mxu0 0.0
      %762 = vmatprep.subr.mxu0 0.0
      %763 = vmatpush1.msra.mxu0 0.0
      %764 = vmatprep.subr.mxu0 0.0
      %765 = vmatpush1.msra.mxu0 0.0
      %766 = vmatprep.subr.mxu0 0.0
      %767 = vmatpush1.msra.mxu0 0.0
      %768 = vmatprep.subr.mxu0 0.0
      %769 = vmatpush1.msra.mxu0 0.0
      %770 = vmatprep.subr.mxu0 0.0
      %771 = vmatpush1.msra.mxu0 0.0
      %772 = vmatprep.subr.mxu0 0.0
      %773 = vmatpush1.msra.mxu0 0.0
      %774 = vmatprep.subr.mxu0 0.0
      %775 = vmatpush1.msra.mxu0 0.0
      %776 = vmatprep.subr.mxu0 0.0
      %777 = vmatpush1.msra.mxu0 0.0
      %778 = vmatprep.subr.mxu0 0.0
      %779 = vmatpush1.msra.mxu0 0.0
      %780 = vmatprep.subr.mxu0 0.0
      %781 = vmatpush1.msra.mxu0 0.0
      %782 = vmatprep.subr.mxu0 0.0
      %783 = vmatpush1.msra.mxu0 0.0
      %784 = vmatprep.subr.mxu0 0.0
      %785 = vmatpush1.msra.mxu0 0.0
      %786 = vmatprep.subr.mxu0 0.0
      %787 = vmatpush1.msra.mxu0 0.0
      %788 = vmatprep.subr.mxu0 0.0
      %789 = vmatpush1.msra.mxu0 0.0
      %790 = vmatprep.subr.mxu0 0.0
      %791 = vmatpush1.msra.mxu0 0.0
      %792 = vmatprep.subr.mxu0 0.0
      %793 = vmatpush1.msra.mxu0 0.0
      %794 = vmatprep.subr.mxu0 0.0
      %795 = vmatpush1.msra.mxu0 0.0
      %796 = vmatprep.subr.mxu0 0.0
      %797 = vmatpush1.msra.mxu0 0.0
      %798 = vmatprep.subr.mxu0 0.0
      %799 = vmatpush1.msra.mxu0 0.0
      %800 = vmatprep.subr.mxu0 0.0
      %801 = vmatpush1.msra.mxu0 0.0
      %802 = vmatprep.subr.mxu0 0.0
      %803 = vmatpush1.msra.mxu0 0.0
      %804 = vmatprep.subr.mxu0 0.0
      %805 = vmatpush1.msra.mxu0 0.0
      %806 = vmatprep.subr.mxu0 0.0
      %807 = vmatpush1.msra.mxu0 0.0
      %808 = vmatprep.subr.mxu0 0.0
      %809 = vmatpush1.msra.mxu0 0.0
      %810 = vmatprep.subr.mxu0 0.0
      %811 = vmatpush1.msra.mxu0 0.0
      %812 = vmatprep.subr.mxu0 0.0
      %813 = vmatpush1.msra.mxu0 0.0
      %814 = vmatprep.mubr.f32.mxu0 0.0
      %815 = vmatmul.mubr.f32.gmra.mrb[0].mxu0 %v619
      %v816 = vpop.f32.mrb[0].mxu0
      %v817 = vadd.f32 0.0, %v816
      %v818 = vpop.f32.mrb[0].mxu0
      %v819 = vadd.f32 0.0, %v818
      %820 = vmatprep.mubr.f32.mxu0 0.0
      %821 = vmatmul.mubr.f32.gmra.mrb[0].mxu0 %v622
      %v822 = vpop.f32.mrb[0].mxu0
      %v823 = vadd.f32 0.0, %v822
      %v824 = vpop.f32.mrb[0].mxu0
      %v825 = vadd.f32 0.0, %v824
      %826 = vdwg.mxu0
      %827 = vmatprep.subr.mxu0 %v641
      %828 = vmatpush1.msra.mxu0 %v638
      %829 = vmatprep.subr.mxu0 0.0
      %830 = vmatpush1.msra.mxu0 0.0
      %831 = vmatprep.subr.mxu0 0.0
      %832 = vmatpush1.msra.mxu0 0.0
      %833 = vmatprep.subr.mxu0 0.0
      %834 = vmatpush1.msra.mxu0 0.0
      %835 = vmatprep.subr.mxu0 0.0
      %836 = vmatpush1.msra.mxu0 0.0
      %837 = vmatprep.subr.mxu0 0.0
      %838 = vmatpush1.msra.mxu0 0.0
      %839 = vmatprep.subr.mxu0 0.0
      %840 = vmatpush1.msra.mxu0 0.0
      %841 = vmatprep.subr.mxu0 0.0
      %842 = vmatpush1.msra.mxu0 0.0
      %843 = vmatprep.subr.mxu0 0.0
      %844 = vmatpush1.msra.mxu0 0.0
      %845 = vmatprep.subr.mxu0 0.0
      %846 = vmatpush1.msra.mxu0 0.0
      %847 = vmatprep.subr.mxu0 0.0
      %848 = vmatpush1.msra.mxu0 0.0
      %849 = vmatprep.subr.mxu0 0.0
      %850 = vmatpush1.msra.mxu0 0.0
      %851 = vmatprep.subr.mxu0 0.0
      %852 = vmatpush1.msra.mxu0 0.0
      %853 = vmatprep.subr.mxu0 0.0
      %854 = vmatpush1.msra.mxu0 0.0
      %855 = vmatprep.subr.mxu0 0.0
      %856 = vmatpush1.msra.mxu0 0.0
      %857 = vmatprep.subr.mxu0 0.0
      %858 = vmatpush1.msra.mxu0 0.0
      %859 = vmatprep.subr.mxu0 0.0
      %860 = vmatpush1.msra.mxu0 0.0
      %861 = vmatprep.subr.mxu0 0.0
      %862 = vmatpush1.msra.mxu0 0.0
      %863 = vmatprep.subr.mxu0 0.0
      %864 = vmatpush1.msra.mxu0 0.0
      %865 = vmatprep.subr.mxu0 0.0
      %866 = vmatpush1.msra.mxu0 0.0
      %867 = vmatprep.subr.mxu0 0.0
      %868 = vmatpush1.msra.mxu0 0.0
      %869 = vmatprep.subr.mxu0 0.0
      %870 = vmatpush1.msra.mxu0 0.0
      %871 = vmatprep.subr.mxu0 0.0
      %872 = vmatpush1.msra.mxu0 0.0
      %873 = vmatprep.subr.mxu0 0.0
      %874 = vmatpush1.msra.mxu0 0.0
      %875 = vmatprep.subr.mxu0 0.0
      %876 = vmatpush1.msra.mxu0 0.0
      %877 = vmatprep.subr.mxu0 0.0
      %878 = vmatpush1.msra.mxu0 0.0
      %879 = vmatprep.subr.mxu0 0.0
      %880 = vmatpush1.msra.mxu0 0.0
      %881 = vmatprep.subr.mxu0 0.0
      %882 = vmatpush1.msra.mxu0 0.0
      %883 = vmatprep.subr.mxu0 0.0
      %884 = vmatpush1.msra.mxu0 0.0
      %885 = vmatprep.subr.mxu0 0.0
      %886 = vmatpush1.msra.mxu0 0.0
      %887 = vmatprep.subr.mxu0 0.0
      %888 = vmatpush1.msra.mxu0 0.0
      %889 = vmatprep.subr.mxu0 0.0
      %890 = vmatpush1.msra.mxu0 0.0
      %891 = vmatprep.mubr.f32.mxu0 0.0
      %892 = vmatmul.mubr.f32.gmra.mrb[0].mxu0 %v619
      %v893 = vpop.f32.mrb[0].mxu0
      %v894 = vadd.f32 0.0, %v893
      %v895 = vpop.f32.mrb[0].mxu0
      %v896 = vadd.f32 0.0, %v895
      %897 = vmatprep.mubr.f32.mxu0 0.0
      %898 = vmatmul.mubr.f32.gmra.mrb[0].mxu0 %v622
      %v899 = vpop.f32.mrb[0].mxu0
      %v900 = vadd.f32 0.0, %v899
      %v901 = vpop.f32.mrb[0].mxu0
      %v902 = vadd.f32 0.0, %v901
      %903 = vdwg.mxu0
      %904 = vmatprep.subr.mxu0 %v647
      %905 = vmatpush1.msra.mxu0 %v644
      %906 = vmatprep.subr.mxu0 0.0
      %907 = vmatpush1.msra.mxu0 0.0
      %908 = vmatprep.subr.mxu0 0.0
      %909 = vmatpush1.msra.mxu0 0.0
      %910 = vmatprep.subr.mxu0 0.0
      %911 = vmatpush1.msra.mxu0 0.0
      %912 = vmatprep.subr.mxu0 0.0
      %913 = vmatpush1.msra.mxu0 0.0
      %914 = vmatprep.subr.mxu0 0.0
      %915 = vmatpush1.msra.mxu0 0.0
      %916 = vmatprep.subr.mxu0 0.0
      %917 = vmatpush1.msra.mxu0 0.0
      %918 = vmatprep.subr.mxu0 0.0
      %919 = vmatpush1.msra.mxu0 0.0
      %920 = vmatprep.subr.mxu0 0.0
      %921 = vmatpush1.msra.mxu0 0.0
      %922 = vmatprep.subr.mxu0 0.0
      %923 = vmatpush1.msra.mxu0 0.0
      %924 = vmatprep.subr.mxu0 0.0
      %925 = vmatpush1.msra.mxu0 0.0
      %926 = vmatprep.subr.mxu0 0.0
      %927 = vmatpush1.msra.mxu0 0.0
      %928 = vmatprep.subr.mxu0 0.0
      %929 = vmatpush1.msra.mxu0 0.0
      %930 = vmatprep.subr.mxu0 0.0
      %931 = vmatpush1.msra.mxu0 0.0
      %932 = vmatprep.subr.mxu0 0.0
      %933 = vmatpush1.msra.mxu0 0.0
      %934 = vmatprep.subr.mxu0 0.0
      %935 = vmatpush1.msra.mxu0 0.0
      %936 = vmatprep.subr.mxu0 0.0
      %937 = vmatpush1.msra.mxu0 0.0
      %938 = vmatprep.subr.mxu0 0.0
      %939 = vmatpush1.msra.mxu0 0.0
      %940 = vmatprep.subr.mxu0 0.0
      %941 = vmatpush1.msra.mxu0 0.0
      %942 = vmatprep.subr.mxu0 0.0
      %943 = vmatpush1.msra.mxu0 0.0
      %944 = vmatprep.subr.mxu0 0.0
      %945 = vmatpush1.msra.mxu0 0.0
      %946 = vmatprep.subr.mxu0 0.0
      %947 = vmatpush1.msra.mxu0 0.0
      %948 = vmatprep.subr.mxu0 0.0
      %949 = vmatpush1.msra.mxu0 0.0
      %950 = vmatprep.subr.mxu0 0.0
      %951 = vmatpush1.msra.mxu0 0.0
      %952 = vmatprep.subr.mxu0 0.0
      %953 = vmatpush1.msra.mxu0 0.0
      %954 = vmatprep.subr.mxu0 0.0
      %955 = vmatpush1.msra.mxu0 0.0
      %956 = vmatprep.subr.mxu0 0.0
      %957 = vmatpush1.msra.mxu0 0.0
      %958 = vmatprep.subr.mxu0 0.0
      %959 = vmatpush1.msra.mxu0 0.0
      %960 = vmatprep.subr.mxu0 0.0
      %961 = vmatpush1.msra.mxu0 0.0
      %962 = vmatprep.subr.mxu0 0.0
      %963 = vmatpush1.msra.mxu0 0.0
      %964 = vmatprep.subr.mxu0 0.0
      %965 = vmatpush1.msra.mxu0 0.0
      %966 = vmatprep.subr.mxu0 0.0
      %967 = vmatpush1.msra.mxu0 0.0
      %968 = vmatprep.mubr.f32.mxu0 0.0
      %969 = vmatmul.mubr.f32.gmra.mrb[0].mxu0 %v619
      %v970 = vpop.f32.mrb[0].mxu0
      %v971 = vadd.f32 0.0, %v970
      %v972 = vpop.f32.mrb[0].mxu0
      %v973 = vadd.f32 0.0, %v972
      %974 = vmatprep.mubr.f32.mxu0 0.0
      %975 = vmatmul.mubr.f32.gmra.mrb[0].mxu0 %v622
      %v976 = vpop.f32.mrb[0].mxu0
      %v977 = vadd.f32 0.0, %v976
      %v978 = vpop.f32.mrb[0].mxu0
      %v979 = vadd.f32 0.0, %v978
      %980 = vdwg.mxu0
      %981 = vmatprep.subr.mxu0 %v653
      %982 = vmatpush1.msra.mxu0 %v650
      %983 = vmatprep.subr.mxu0 0.0
      %984 = vmatpush1.msra.mxu0 0.0
      %985 = vmatprep.subr.mxu0 0.0
      %986 = vmatpush1.msra.mxu0 0.0
      %987 = vmatprep.subr.mxu0 0.0
      %988 = vmatpush1.msra.mxu0 0.0
      %989 = vmatprep.subr.mxu0 0.0
      %990 = vmatpush1.msra.mxu0 0.0
      %991 = vmatprep.subr.mxu0 0.0
      %992 = vmatpush1.msra.mxu0 0.0
      %993 = vmatprep.subr.mxu0 0.0
      %994 = vmatpush1.msra.mxu0 0.0
      %995 = vmatprep.subr.mxu0 0.0
      %996 = vmatpush1.msra.mxu0 0.0
      %997 = vmatprep.subr.mxu0 0.0
      %998 = vmatpush1.msra.mxu0 0.0
      %999 = vmatprep.subr.mxu0 0.0
      %1000 = vmatpush1.msra.mxu0 0.0
      %1001 = vmatprep.subr.mxu0 0.0
      %1002 = vmatpush1.msra.mxu0 0.0
      %1003 = vmatprep.subr.mxu0 0.0
      %1004 = vmatpush1.msra.mxu0 0.0
      %1005 = vmatprep.subr.mxu0 0.0
      %1006 = vmatpush1.msra.mxu0 0.0
      %1007 = vmatprep.subr.mxu0 0.0
      %1008 = vmatpush1.msra.mxu0 0.0
      %1009 = vmatprep.subr.mxu0 0.0
      %1010 = vmatpush1.msra.mxu0 0.0
      %1011 = vmatprep.subr.mxu0 0.0
      %1012 = vmatpush1.msra.mxu0 0.0
      %1013 = vmatprep.subr.mxu0 0.0
      %1014 = vmatpush1.msra.mxu0 0.0
      %1015 = vmatprep.subr.mxu0 0.0
      %1016 = vmatpush1.msra.mxu0 0.0
      %1017 = vmatprep.subr.mxu0 0.0
      %1018 = vmatpush1.msra.mxu0 0.0
      %1019 = vmatprep.subr.mxu0 0.0
      %1020 = vmatpush1.msra.mxu0 0.0
      %1021 = vmatprep.subr.mxu0 0.0
      %1022 = vmatpush1.msra.mxu0 0.0
      %1023 = vmatprep.subr.mxu0 0.0
      %1024 = vmatpush1.msra.mxu0 0.0
      %1025 = vmatprep.subr.mxu0 0.0
      %1026 = vmatpush1.msra.mxu0 0.0
      %1027 = vmatprep.subr.mxu0 0.0
      %1028 = vmatpush1.msra.mxu0 0.0
      %1029 = vmatprep.subr.mxu0 0.0
      %1030 = vmatpush1.msra.mxu0 0.0
      %1031 = vmatprep.subr.mxu0 0.0
      %1032 = vmatpush1.msra.mxu0 0.0
      %1033 = vmatprep.subr.mxu0 0.0
      %1034 = vmatpush1.msra.mxu0 0.0
      %1035 = vmatprep.subr.mxu0 0.0
      %1036 = vmatpush1.msra.mxu0 0.0
      %1037 = vmatprep.subr.mxu0 0.0
      %1038 = vmatpush1.msra.mxu0 0.0
      %1039 = vmatprep.subr.mxu0 0.0
      %1040 = vmatpush1.msra.mxu0 0.0
      %1041 = vmatprep.subr.mxu0 0.0
      %1042 = vmatpush1.msra.mxu0 0.0
      %1043 = vmatprep.subr.mxu0 0.0
      %1044 = vmatpush1.msra.mxu0 0.0
      %1045 = vmatprep.mubr.f32.mxu0 0.0
      %1046 = vmatmul.mubr.f32.gmra.mrb[0].mxu0 %v619
      %v1047 = vpop.f32.mrb[0].mxu0
      %v1048 = vadd.f32 0.0, %v1047
      %v1049 = vpop.f32.mrb[0].mxu0
      %v1050 = vadd.f32 0.0, %v1049
      %1051 = vmatprep.mubr.f32.mxu0 0.0
      %1052 = vmatmul.mubr.f32.gmra.mrb[0].mxu0 %v622
      %v1053 = vpop.f32.mrb[0].mxu0
      %v1054 = vadd.f32 0.0, %v1053
      %v1055 = vpop.f32.mrb[0].mxu0
      %v1056 = vadd.f32 0.0, %v1055
      %1057 = vdwg.mxu0
      %1058 = vmatprep.subr.mxu0 %v659
      %1059 = vmatpush1.msra.mxu0 %v656
      %1060 = vmatprep.subr.mxu0 0.0
      %1061 = vmatpush1.msra.mxu0 0.0
      %1062 = vmatprep.subr.mxu0 0.0
      %1063 = vmatpush1.msra.mxu0 0.0
      %1064 = vmatprep.subr.mxu0 0.0
      %1065 = vmatpush1.msra.mxu0 0.0
      %1066 = vmatprep.subr.mxu0 0.0
      %1067 = vmatpush1.msra.mxu0 0.0
      %1068 = vmatprep.subr.mxu0 0.0
      %1069 = vmatpush1.msra.mxu0 0.0
      %1070 = vmatprep.subr.mxu0 0.0
      %1071 = vmatpush1.msra.mxu0 0.0
      %1072 = vmatprep.subr.mxu0 0.0
      %1073 = vmatpush1.msra.mxu0 0.0
      %1074 = vmatprep.subr.mxu0 0.0
      %1075 = vmatpush1.msra.mxu0 0.0
      %1076 = vmatprep.subr.mxu0 0.0
      %1077 = vmatpush1.msra.mxu0 0.0
      %1078 = vmatprep.subr.mxu0 0.0
      %1079 = vmatpush1.msra.mxu0 0.0
      %1080 = vmatprep.subr.mxu0 0.0
      %1081 = vmatpush1.msra.mxu0 0.0
      %1082 = vmatprep.subr.mxu0 0.0
      %1083 = vmatpush1.msra.mxu0 0.0
      %1084 = vmatprep.subr.mxu0 0.0
      %1085 = vmatpush1.msra.mxu0 0.0
      %1086 = vmatprep.subr.mxu0 0.0
      %1087 = vmatpush1.msra.mxu0 0.0
      %1088 = vmatprep.subr.mxu0 0.0
      %1089 = vmatpush1.msra.mxu0 0.0
      %1090 = vmatprep.subr.mxu0 0.0
      %1091 = vmatpush1.msra.mxu0 0.0
      %1092 = vmatprep.subr.mxu0 0.0
      %1093 = vmatpush1.msra.mxu0 0.0
      %1094 = vmatprep.subr.mxu0 0.0
      %1095 = vmatpush1.msra.mxu0 0.0
      %1096 = vmatprep.subr.mxu0 0.0
      %1097 = vmatpush1.msra.mxu0 0.0
      %1098 = vmatprep.subr.mxu0 0.0
      %1099 = vmatpush1.msra.mxu0 0.0
      %1100 = vmatprep.subr.mxu0 0.0
      %1101 = vmatpush1.msra.mxu0 0.0
      %1102 = vmatprep.subr.mxu0 0.0
      %1103 = vmatpush1.msra.mxu0 0.0
      %1104 = vmatprep.subr.mxu0 0.0
      %1105 = vmatpush1.msra.mxu0 0.0
      %1106 = vmatprep.subr.mxu0 0.0
      %1107 = vmatpush1.msra.mxu0 0.0
      %1108 = vmatprep.subr.mxu0 0.0
      %1109 = vmatpush1.msra.mxu0 0.0
      %1110 = vmatprep.subr.mxu0 0.0
      %1111 = vmatpush1.msra.mxu0 0.0
      %1112 = vmatprep.subr.mxu0 0.0
      %1113 = vmatpush1.msra.mxu0 0.0
      %1114 = vmatprep.subr.mxu0 0.0
      %1115 = vmatpush1.msra.mxu0 0.0
      %1116 = vmatprep.subr.mxu0 0.0
      %1117 = vmatpush1.msra.mxu0 0.0
      %1118 = vmatprep.subr.mxu0 0.0
      %1119 = vmatpush1.msra.mxu0 0.0
      %1120 = vmatprep.subr.mxu0 0.0
      %1121 = vmatpush1.msra.mxu0 0.0
      %1122 = vmatprep.mubr.f32.mxu0 0.0
      %1123 = vmatmul.mubr.f32.gmra.mrb[0].mxu0 %v619
      %v1124 = vpop.f32.mrb[0].mxu0
      %v1125 = vadd.f32 0.0, %v1124
      %v1126 = vpop.f32.mrb[0].mxu0
      %v1127 = vadd.f32 0.0, %v1126
      %1128 = vmatprep.mubr.f32.mxu0 0.0
      %1129 = vmatmul.mubr.f32.gmra.mrb[0].mxu0 %v622
      %v1130 = vpop.f32.mrb[0].mxu0
      %v1131 = vadd.f32 0.0, %v1130
      %v1132 = vpop.f32.mrb[0].mxu0
      %v1133 = vadd.f32 0.0, %v1132
      %1134 = vdwg.mxu0
      %1135 = vmatprep.subr.mxu0 %v665
      %1136 = vmatpush1.msra.mxu0 %v662
      %1137 = vmatprep.subr.mxu0 0.0
      %1138 = vmatpush1.msra.mxu0 0.0
      %1139 = vmatprep.subr.mxu0 0.0
      %1140 = vmatpush1.msra.mxu0 0.0
      %1141 = vmatprep.subr.mxu0 0.0
      %1142 = vmatpush1.msra.mxu0 0.0
      %1143 = vmatprep.subr.mxu0 0.0
      %1144 = vmatpush1.msra.mxu0 0.0
      %1145 = vmatprep.subr.mxu0 0.0
      %1146 = vmatpush1.msra.mxu0 0.0
      %1147 = vmatprep.subr.mxu0 0.0
      %1148 = vmatpush1.msra.mxu0 0.0
      %1149 = vmatprep.subr.mxu0 0.0
      %1150 = vmatpush1.msra.mxu0 0.0
      %1151 = vmatprep.subr.mxu0 0.0
      %1152 = vmatpush1.msra.mxu0 0.0
      %1153 = vmatprep.subr.mxu0 0.0
      %1154 = vmatpush1.msra.mxu0 0.0
      %1155 = vmatprep.subr.mxu0 0.0
      %1156 = vmatpush1.msra.mxu0 0.0
      %1157 = vmatprep.subr.mxu0 0.0
      %1158 = vmatpush1.msra.mxu0 0.0
      %1159 = vmatprep.subr.mxu0 0.0
      %1160 = vmatpush1.msra.mxu0 0.0
      %1161 = vmatprep.subr.mxu0 0.0
      %1162 = vmatpush1.msra.mxu0 0.0
      %1163 = vmatprep.subr.mxu0 0.0
      %1164 = vmatpush1.msra.mxu0 0.0
      %1165 = vmatprep.subr.mxu0 0.0
      %1166 = vmatpush1.msra.mxu0 0.0
      %1167 = vmatprep.subr.mxu0 0.0
      %1168 = vmatpush1.msra.mxu0 0.0
      %1169 = vmatprep.subr.mxu0 0.0
      %1170 = vmatpush1.msra.mxu0 0.0
      %1171 = vmatprep.subr.mxu0 0.0
      %1172 = vmatpush1.msra.mxu0 0.0
      %1173 = vmatprep.subr.mxu0 0.0
      %1174 = vmatpush1.msra.mxu0 0.0
      %1175 = vmatprep.subr.mxu0 0.0
      %1176 = vmatpush1.msra.mxu0 0.0
      %1177 = vmatprep.subr.mxu0 0.0
      %1178 = vmatpush1.msra.mxu0 0.0
      %1179 = vmatprep.subr.mxu0 0.0
      %1180 = vmatpush1.msra.mxu0 0.0
      %1181 = vmatprep.subr.mxu0 0.0
      %1182 = vmatpush1.msra.mxu0 0.0
      %1183 = vmatprep.subr.mxu0 0.0
      %1184 = vmatpush1.msra.mxu0 0.0
      %1185 = vmatprep.subr.mxu0 0.0
      %1186 = vmatpush1.msra.mxu0 0.0
      %1187 = vmatprep.subr.mxu0 0.0
      %1188 = vmatpush1.msra.mxu0 0.0
      %1189 = vmatprep.subr.mxu0 0.0
      %1190 = vmatpush1.msra.mxu0 0.0
      %1191 = vmatprep.subr.mxu0 0.0
      %1192 = vmatpush1.msra.mxu0 0.0
      %1193 = vmatprep.subr.mxu0 0.0
      %1194 = vmatpush1.msra.mxu0 0.0
      %1195 = vmatprep.subr.mxu0 0.0
      %1196 = vmatpush1.msra.mxu0 0.0
      %1197 = vmatprep.subr.mxu0 0.0
      %1198 = vmatpush1.msra.mxu0 0.0
      %1199 = vmatprep.mubr.f32.mxu0 0.0
      %1200 = vmatmul.mubr.f32.gmra.mrb[0].mxu0 %v619
      %v1201 = vpop.f32.mrb[0].mxu0
      %v1202 = vadd.f32 0.0, %v1201
      %v1203 = vpop.f32.mrb[0].mxu0
      %v1204 = vadd.f32 0.0, %v1203
      %1205 = vmatprep.mubr.f32.mxu0 0.0
      %1206 = vmatmul.mubr.f32.gmra.mrb[0].mxu0 %v622
      %v1207 = vpop.f32.mrb[0].mxu0
      %v1208 = vadd.f32 0.0, %v1207
      %v1209 = vpop.f32.mrb[0].mxu0
      %v1210 = vadd.f32 0.0, %v1209
      %1211 = vdwg.mxu0
      %1212 = vmatprep.subr.mxu0 %v671
      %1213 = vmatpush1.msra.mxu0 %v668
      %1214 = vmatprep.subr.mxu0 0.0
      %1215 = vmatpush1.msra.mxu0 0.0
      %1216 = vmatprep.subr.mxu0 0.0
      %1217 = vmatpush1.msra.mxu0 0.0
      %1218 = vmatprep.subr.mxu0 0.0
      %1219 = vmatpush1.msra.mxu0 0.0
      %1220 = vmatprep.subr.mxu0 0.0
      %1221 = vmatpush1.msra.mxu0 0.0
      %1222 = vmatprep.subr.mxu0 0.0
      %1223 = vmatpush1.msra.mxu0 0.0
      %1224 = vmatprep.subr.mxu0 0.0
      %1225 = vmatpush1.msra.mxu0 0.0
      %1226 = vmatprep.subr.mxu0 0.0
      %1227 = vmatpush1.msra.mxu0 0.0
      %1228 = vmatprep.subr.mxu0 0.0
      %1229 = vmatpush1.msra.mxu0 0.0
      %1230 = vmatprep.subr.mxu0 0.0
      %1231 = vmatpush1.msra.mxu0 0.0
      %1232 = vmatprep.subr.mxu0 0.0
      %1233 = vmatpush1.msra.mxu0 0.0
      %1234 = vmatprep.subr.mxu0 0.0
      %1235 = vmatpush1.msra.mxu0 0.0
      %1236 = vmatprep.subr.mxu0 0.0
      %1237 = vmatpush1.msra.mxu0 0.0
      %1238 = vmatprep.subr.mxu0 0.0
      %1239 = vmatpush1.msra.mxu0 0.0
      %1240 = vmatprep.subr.mxu0 0.0
      %1241 = vmatpush1.msra.mxu0 0.0
      %1242 = vmatprep.subr.mxu0 0.0
      %1243 = vmatpush1.msra.mxu0 0.0
      %1244 = vmatprep.subr.mxu0 0.0
      %1245 = vmatpush1.msra.mxu0 0.0
      %1246 = vmatprep.subr.mxu0 0.0
      %1247 = vmatpush1.msra.mxu0 0.0
      %1248 = vmatprep.subr.mxu0 0.0
      %1249 = vmatpush1.msra.mxu0 0.0
      %1250 = vmatprep.subr.mxu0 0.0
      %1251 = vmatpush1.msra.mxu0 0.0
      %1252 = vmatprep.subr.mxu0 0.0
      %1253 = vmatpush1.msra.mxu0 0.0
      %1254 = vmatprep.subr.mxu0 0.0
      %1255 = vmatpush1.msra.mxu0 0.0
      %1256 = vmatprep.subr.mxu0 0.0
      %1257 = vmatpush1.msra.mxu0 0.0
      %1258 = vmatprep.subr.mxu0 0.0
      %1259 = vmatpush1.msra.mxu0 0.0
      %1260 = vmatprep.subr.mxu0 0.0
      %1261 = vmatpush1.msra.mxu0 0.0
      %1262 = vmatprep.subr.mxu0 0.0
      %1263 = vmatpush1.msra.mxu0 0.0
      %1264 = vmatprep.subr.mxu0 0.0
      %1265 = vmatpush1.msra.mxu0 0.0
      %1266 = vmatprep.subr.mxu0 0.0
      %1267 = vmatpush1.msra.mxu0 0.0
      %1268 = vmatprep.subr.mxu0 0.0
      %1269 = vmatpush1.msra.mxu0 0.0
      %1270 = vmatprep.subr.mxu0 0.0
      %1271 = vmatpush1.msra.mxu0 0.0
      %1272 = vmatprep.subr.mxu0 0.0
      %1273 = vmatpush1.msra.mxu0 0.0
      %1274 = vmatprep.subr.mxu0 0.0
      %1275 = vmatpush1.msra.mxu0 0.0
      %1276 = vmatprep.mubr.f32.mxu0 0.0
      %1277 = vmatmul.mubr.f32.gmra.mrb[0].mxu0 %v619
      %v1278 = vpop.f32.mrb[0].mxu0
      %v1279 = vadd.f32 0.0, %v1278
      %v1280 = vpop.f32.mrb[0].mxu0
      %v1281 = vadd.f32 0.0, %v1280
      %1282 = vmatprep.mubr.f32.mxu0 0.0
      %1283 = vmatmul.mubr.f32.gmra.mrb[0].mxu0 %v622
      %v1284 = vpop.f32.mrb[0].mxu0
      %v1285 = vadd.f32 0.0, %v1284
      %v1286 = vpop.f32.mrb[0].mxu0
      %v1287 = vadd.f32 0.0, %v1286
      %1288 = vdwg.mxu0
      %v1290 = vsel %vm617, %v462, 0
      %v1293 = vsel %vm617, %v463, 0
      %v1296 = vsel %vm624, %v446, 0
      %v1299 = vsel %vm624, %v447, 0
      %v1302 = vsel %vm624, %v448, 0
      %v1305 = vsel %vm624, %v449, 0
      %v1308 = vsel %vm624, %v450, 0
      %v1311 = vsel %vm624, %v451, 0
      %v1314 = vsel %vm624, %v452, 0
      %v1317 = vsel %vm624, %v453, 0
      %v1320 = vsel %vm624, %v454, 0
      %v1323 = vsel %vm624, %v455, 0
      %v1326 = vsel %vm624, %v456, 0
      %v1329 = vsel %vm624, %v457, 0
      %v1332 = vsel %vm624, %v458, 0
      %v1335 = vsel %vm624, %v459, 0
      %v1338 = vsel %vm624, %v460, 0
      %v1341 = vsel %vm624, %v461, 0
      %1343 = vmatprep.subr.mxu0 %v1299
      %1344 = vmatpush1.msra.mxu0 %v1296
      %1345 = vmatprep.subr.mxu0 0.0
      %1346 = vmatpush1.msra.mxu0 0.0
      %1347 = vmatprep.subr.mxu0 0.0
      %1348 = vmatpush1.msra.mxu0 0.0
      %1349 = vmatprep.subr.mxu0 0.0
      %1350 = vmatpush1.msra.mxu0 0.0
      %1351 = vmatprep.subr.mxu0 0.0
      %1352 = vmatpush1.msra.mxu0 0.0
      %1353 = vmatprep.subr.mxu0 0.0
      %1354 = vmatpush1.msra.mxu0 0.0
      %1355 = vmatprep.subr.mxu0 0.0
      %1356 = vmatpush1.msra.mxu0 0.0
      %1357 = vmatprep.subr.mxu0 0.0
      %1358 = vmatpush1.msra.mxu0 0.0
      %1359 = vmatprep.subr.mxu0 0.0
      %1360 = vmatpush1.msra.mxu0 0.0
      %1361 = vmatprep.subr.mxu0 0.0
      %1362 = vmatpush1.msra.mxu0 0.0
      %1363 = vmatprep.subr.mxu0 0.0
      %1364 = vmatpush1.msra.mxu0 0.0
      %1365 = vmatprep.subr.mxu0 0.0
      %1366 = vmatpush1.msra.mxu0 0.0
      %1367 = vmatprep.subr.mxu0 0.0
      %1368 = vmatpush1.msra.mxu0 0.0
      %1369 = vmatprep.subr.mxu0 0.0
      %1370 = vmatpush1.msra.mxu0 0.0
      %1371 = vmatprep.subr.mxu0 0.0
      %1372 = vmatpush1.msra.mxu0 0.0
      %1373 = vmatprep.subr.mxu0 0.0
      %1374 = vmatpush1.msra.mxu0 0.0
      %1375 = vmatprep.subr.mxu0 0.0
      %1376 = vmatpush1.msra.mxu0 0.0
      %1377 = vmatprep.subr.mxu0 0.0
      %1378 = vmatpush1.msra.mxu0 0.0
      %1379 = vmatprep.subr.mxu0 0.0
      %1380 = vmatpush1.msra.mxu0 0.0
      %1381 = vmatprep.subr.mxu0 0.0
      %1382 = vmatpush1.msra.mxu0 0.0
      %1383 = vmatprep.subr.mxu0 0.0
      %1384 = vmatpush1.msra.mxu0 0.0
      %1385 = vmatprep.subr.mxu0 0.0
      %1386 = vmatpush1.msra.mxu0 0.0
      %1387 = vmatprep.subr.mxu0 0.0
      %1388 = vmatpush1.msra.mxu0 0.0
      %1389 = vmatprep.subr.mxu0 0.0
      %1390 = vmatpush1.msra.mxu0 0.0
      %1391 = vmatprep.subr.mxu0 0.0
      %1392 = vmatpush1.msra.mxu0 0.0
      %1393 = vmatprep.subr.mxu0 0.0
      %1394 = vmatpush1.msra.mxu0 0.0
      %1395 = vmatprep.subr.mxu0 0.0
      %1396 = vmatpush1.msra.mxu0 0.0
      %1397 = vmatprep.subr.mxu0 0.0
      %1398 = vmatpush1.msra.mxu0 0.0
      %1399 = vmatprep.subr.mxu0 0.0
      %1400 = vmatpush1.msra.mxu0 0.0
      %1401 = vmatprep.subr.mxu0 0.0
      %1402 = vmatpush1.msra.mxu0 0.0
      %1403 = vmatprep.subr.mxu0 0.0
      %1404 = vmatpush1.msra.mxu0 0.0
      %1405 = vmatprep.subr.mxu0 0.0
      %1406 = vmatpush1.msra.mxu0 0.0
      %1407 = vmatprep.mubr.f32.mxu0 0.0
      %1408 = vmatmul.mubr.f32.gmra.mrb[0].mxu0 %v1290
      %v1409 = vpop.f32.mrb[0].mxu0
      %v1410 = vadd.f32 %v740, %v1409
      %v1411 = vpop.f32.mrb[0].mxu0
      %v1412 = vadd.f32 %v742, %v1411
      %1413 = vmatprep.mubr.f32.mxu0 0.0
      %1414 = vmatmul.mubr.f32.gmra.mrb[0].mxu0 %v1293
      %v1415 = vpop.f32.mrb[0].mxu0
      %v1416 = vadd.f32 %v746, %v1415
      %v1417 = vpop.f32.mrb[0].mxu0
      %v1418 = vadd.f32 %v748, %v1417
      %1419 = vdwg.mxu0
      %1420 = vmatprep.subr.mxu0 %v1305
      %1421 = vmatpush1.msra.mxu0 %v1302
      %1422 = vmatprep.subr.mxu0 0.0
      %1423 = vmatpush1.msra.mxu0 0.0
      %1424 = vmatprep.subr.mxu0 0.0
      %1425 = vmatpush1.msra.mxu0 0.0
      %1426 = vmatprep.subr.mxu0 0.0
      %1427 = vmatpush1.msra.mxu0 0.0
      %1428 = vmatprep.subr.mxu0 0.0
      %1429 = vmatpush1.msra.mxu0 0.0
      %1430 = vmatprep.subr.mxu0 0.0
      %1431 = vmatpush1.msra.mxu0 0.0
      %1432 = vmatprep.subr.mxu0 0.0
      %1433 = vmatpush1.msra.mxu0 0.0
      %1434 = vmatprep.subr.mxu0 0.0
      %1435 = vmatpush1.msra.mxu0 0.0
      %1436 = vmatprep.subr.mxu0 0.0
      %1437 = vmatpush1.msra.mxu0 0.0
      %1438 = vmatprep.subr.mxu0 0.0
      %1439 = vmatpush1.msra.mxu0 0.0
      %1440 = vmatprep.subr.mxu0 0.0
      %1441 = vmatpush1.msra.mxu0 0.0
      %1442 = vmatprep.subr.mxu0 0.0
      %1443 = vmatpush1.msra.mxu0 0.0
      %1444 = vmatprep.subr.mxu0 0.0
      %1445 = vmatpush1.msra.mxu0 0.0
      %1446 = vmatprep.subr.mxu0 0.0
      %1447 = vmatpush1.msra.mxu0 0.0
      %1448 = vmatprep.subr.mxu0 0.0
      %1449 = vmatpush1.msra.mxu0 0.0
      %1450 = vmatprep.subr.mxu0 0.0
      %1451 = vmatpush1.msra.mxu0 0.0
      %1452 = vmatprep.subr.mxu0 0.0
      %1453 = vmatpush1.msra.mxu0 0.0
      %1454 = vmatprep.subr.mxu0 0.0
      %1455 = vmatpush1.msra.mxu0 0.0
      %1456 = vmatprep.subr.mxu0 0.0
      %1457 = vmatpush1.msra.mxu0 0.0
      %1458 = vmatprep.subr.mxu0 0.0
      %1459 = vmatpush1.msra.mxu0 0.0
      %1460 = vmatprep.subr.mxu0 0.0
      %1461 = vmatpush1.msra.mxu0 0.0
      %1462 = vmatprep.subr.mxu0 0.0
      %1463 = vmatpush1.msra.mxu0 0.0
      %1464 = vmatprep.subr.mxu0 0.0
      %1465 = vmatpush1.msra.mxu0 0.0
      %1466 = vmatprep.subr.mxu0 0.0
      %1467 = vmatpush1.msra.mxu0 0.0
      %1468 = vmatprep.subr.mxu0 0.0
      %1469 = vmatpush1.msra.mxu0 0.0
      %1470 = vmatprep.subr.mxu0 0.0
      %1471 = vmatpush1.msra.mxu0 0.0
      %1472 = vmatprep.subr.mxu0 0.0
      %1473 = vmatpush1.msra.mxu0 0.0
      %1474 = vmatprep.subr.mxu0 0.0
      %1475 = vmatpush1.msra.mxu0 0.0
      %1476 = vmatprep.subr.mxu0 0.0
      %1477 = vmatpush1.msra.mxu0 0.0
      %1478 = vmatprep.subr.mxu0 0.0
      %1479 = vmatpush1.msra.mxu0 0.0
      %1480 = vmatprep.subr.mxu0 0.0
      %1481 = vmatpush1.msra.mxu0 0.0
      %1482 = vmatprep.subr.mxu0 0.0
      %1483 = vmatpush1.msra.mxu0 0.0
      %1484 = vmatprep.mubr.f32.mxu0 0.0
      %1485 = vmatmul.mubr.f32.gmra.mrb[0].mxu0 %v1290
      %v1486 = vpop.f32.mrb[0].mxu0
      %v1487 = vadd.f32 %v817, %v1486
      %v1488 = vpop.f32.mrb[0].mxu0
      %v1489 = vadd.f32 %v819, %v1488
      %1490 = vmatprep.mubr.f32.mxu0 0.0
      %1491 = vmatmul.mubr.f32.gmra.mrb[0].mxu0 %v1293
      %v1492 = vpop.f32.mrb[0].mxu0
      %v1493 = vadd.f32 %v823, %v1492
      %v1494 = vpop.f32.mrb[0].mxu0
      %v1495 = vadd.f32 %v825, %v1494
      %1496 = vdwg.mxu0
      %1497 = vmatprep.subr.mxu0 %v1311
      %1498 = vmatpush1.msra.mxu0 %v1308
      %1499 = vmatprep.subr.mxu0 0.0
      %1500 = vmatpush1.msra.mxu0 0.0
      %1501 = vmatprep.subr.mxu0 0.0
      %1502 = vmatpush1.msra.mxu0 0.0
      %1503 = vmatprep.subr.mxu0 0.0
      %1504 = vmatpush1.msra.mxu0 0.0
      %1505 = vmatprep.subr.mxu0 0.0
      %1506 = vmatpush1.msra.mxu0 0.0
      %1507 = vmatprep.subr.mxu0 0.0
      %1508 = vmatpush1.msra.mxu0 0.0
      %1509 = vmatprep.subr.mxu0 0.0
      %1510 = vmatpush1.msra.mxu0 0.0
      %1511 = vmatprep.subr.mxu0 0.0
      %1512 = vmatpush1.msra.mxu0 0.0
      %1513 = vmatprep.subr.mxu0 0.0
      %1514 = vmatpush1.msra.mxu0 0.0
      %1515 = vmatprep.subr.mxu0 0.0
      %1516 = vmatpush1.msra.mxu0 0.0
      %1517 = vmatprep.subr.mxu0 0.0
      %1518 = vmatpush1.msra.mxu0 0.0
      %1519 = vmatprep.subr.mxu0 0.0
      %1520 = vmatpush1.msra.mxu0 0.0
      %1521 = vmatprep.subr.mxu0 0.0
      %1522 = vmatpush1.msra.mxu0 0.0
      %1523 = vmatprep.subr.mxu0 0.0
      %1524 = vmatpush1.msra.mxu0 0.0
      %1525 = vmatprep.subr.mxu0 0.0
      %1526 = vmatpush1.msra.mxu0 0.0
      %1527 = vmatprep.subr.mxu0 0.0
      %1528 = vmatpush1.msra.mxu0 0.0
      %1529 = vmatprep.subr.mxu0 0.0
      %1530 = vmatpush1.msra.mxu0 0.0
      %1531 = vmatprep.subr.mxu0 0.0
      %1532 = vmatpush1.msra.mxu0 0.0
      %1533 = vmatprep.subr.mxu0 0.0
      %1534 = vmatpush1.msra.mxu0 0.0
      %1535 = vmatprep.subr.mxu0 0.0
      %1536 = vmatpush1.msra.mxu0 0.0
      %1537 = vmatprep.subr.mxu0 0.0
      %1538 = vmatpush1.msra.mxu0 0.0
      %1539 = vmatprep.subr.mxu0 0.0
      %1540 = vmatpush1.msra.mxu0 0.0
      %1541 = vmatprep.subr.mxu0 0.0
      %1542 = vmatpush1.msra.mxu0 0.0
      %1543 = vmatprep.subr.mxu0 0.0
      %1544 = vmatpush1.msra.mxu0 0.0
      %1545 = vmatprep.subr.mxu0 0.0
      %1546 = vmatpush1.msra.mxu0 0.0
      %1547 = vmatprep.subr.mxu0 0.0
      %1548 = vmatpush1.msra.mxu0 0.0
      %1549 = vmatprep.subr.mxu0 0.0
      %1550 = vmatpush1.msra.mxu0 0.0
      %1551 = vmatprep.subr.mxu0 0.0
      %1552 = vmatpush1.msra.mxu0 0.0
      %1553 = vmatprep.subr.mxu0 0.0
      %1554 = vmatpush1.msra.mxu0 0.0
      %1555 = vmatprep.subr.mxu0 0.0
      %1556 = vmatpush1.msra.mxu0 0.0
      %1557 = vmatprep.subr.mxu0 0.0
      %1558 = vmatpush1.msra.mxu0 0.0
      %1559 = vmatprep.subr.mxu0 0.0
      %1560 = vmatpush1.msra.mxu0 0.0
      %1561 = vmatprep.mubr.f32.mxu0 0.0
      %1562 = vmatmul.mubr.f32.gmra.mrb[0].mxu0 %v1290
      %v1563 = vpop.f32.mrb[0].mxu0
      %v1564 = vadd.f32 %v894, %v1563
      %v1565 = vpop.f32.mrb[0].mxu0
      %v1566 = vadd.f32 %v896, %v1565
      %1567 = vmatprep.mubr.f32.mxu0 0.0
      %1568 = vmatmul.mubr.f32.gmra.mrb[0].mxu0 %v1293
      %v1569 = vpop.f32.mrb[0].mxu0
      %v1570 = vadd.f32 %v900, %v1569
      %v1571 = vpop.f32.mrb[0].mxu0
      %v1572 = vadd.f32 %v902, %v1571
      %1573 = vdwg.mxu0
      %1574 = vmatprep.subr.mxu0 %v1317
      %1575 = vmatpush1.msra.mxu0 %v1314
      %1576 = vmatprep.subr.mxu0 0.0
      %1577 = vmatpush1.msra.mxu0 0.0
      %1578 = vmatprep.subr.mxu0 0.0
      %1579 = vmatpush1.msra.mxu0 0.0
      %1580 = vmatprep.subr.mxu0 0.0
      %1581 = vmatpush1.msra.mxu0 0.0
      %1582 = vmatprep.subr.mxu0 0.0
      %1583 = vmatpush1.msra.mxu0 0.0
      %1584 = vmatprep.subr.mxu0 0.0
      %1585 = vmatpush1.msra.mxu0 0.0
      %1586 = vmatprep.subr.mxu0 0.0
      %1587 = vmatpush1.msra.mxu0 0.0
      %1588 = vmatprep.subr.mxu0 0.0
      %1589 = vmatpush1.msra.mxu0 0.0
      %1590 = vmatprep.subr.mxu0 0.0
      %1591 = vmatpush1.msra.mxu0 0.0
      %1592 = vmatprep.subr.mxu0 0.0
      %1593 = vmatpush1.msra.mxu0 0.0
      %1594 = vmatprep.subr.mxu0 0.0
      %1595 = vmatpush1.msra.mxu0 0.0
      %1596 = vmatprep.subr.mxu0 0.0
      %1597 = vmatpush1.msra.mxu0 0.0
      %1598 = vmatprep.subr.mxu0 0.0
      %1599 = vmatpush1.msra.mxu0 0.0
      %1600 = vmatprep.subr.mxu0 0.0
      %1601 = vmatpush1.msra.mxu0 0.0
      %1602 = vmatprep.subr.mxu0 0.0
      %1603 = vmatpush1.msra.mxu0 0.0
      %1604 = vmatprep.subr.mxu0 0.0
      %1605 = vmatpush1.msra.mxu0 0.0
      %1606 = vmatprep.subr.mxu0 0.0
      %1607 = vmatpush1.msra.mxu0 0.0
      %1608 = vmatprep.subr.mxu0 0.0
      %1609 = vmatpush1.msra.mxu0 0.0
      %1610 = vmatprep.subr.mxu0 0.0
      %1611 = vmatpush1.msra.mxu0 0.0
      %1612 = vmatprep.subr.mxu0 0.0
      %1613 = vmatpush1.msra.mxu0 0.0
      %1614 = vmatprep.subr.mxu0 0.0
      %1615 = vmatpush1.msra.mxu0 0.0
      %1616 = vmatprep.subr.mxu0 0.0
      %1617 = vmatpush1.msra.mxu0 0.0
      %1618 = vmatprep.subr.mxu0 0.0
      %1619 = vmatpush1.msra.mxu0 0.0
      %1620 = vmatprep.subr.mxu0 0.0
      %1621 = vmatpush1.msra.mxu0 0.0
      %1622 = vmatprep.subr.mxu0 0.0
      %1623 = vmatpush1.msra.mxu0 0.0
      %1624 = vmatprep.subr.mxu0 0.0
      %1625 = vmatpush1.msra.mxu0 0.0
      %1626 = vmatprep.subr.mxu0 0.0
      %1627 = vmatpush1.msra.mxu0 0.0
      %1628 = vmatprep.subr.mxu0 0.0
      %1629 = vmatpush1.msra.mxu0 0.0
      %1630 = vmatprep.subr.mxu0 0.0
      %1631 = vmatpush1.msra.mxu0 0.0
      %1632 = vmatprep.subr.mxu0 0.0
      %1633 = vmatpush1.msra.mxu0 0.0
      %1634 = vmatprep.subr.mxu0 0.0
      %1635 = vmatpush1.msra.mxu0 0.0
      %1636 = vmatprep.subr.mxu0 0.0
      %1637 = vmatpush1.msra.mxu0 0.0
      %1638 = vmatprep.mubr.f32.mxu0 0.0
      %1639 = vmatmul.mubr.f32.gmra.mrb[0].mxu0 %v1290
      %v1640 = vpop.f32.mrb[0].mxu0
      %v1641 = vadd.f32 %v971, %v1640
      %v1642 = vpop.f32.mrb[0].mxu0
      %v1643 = vadd.f32 %v973, %v1642
      %1644 = vmatprep.mubr.f32.mxu0 0.0
      %1645 = vmatmul.mubr.f32.gmra.mrb[0].mxu0 %v1293
      %v1646 = vpop.f32.mrb[0].mxu0
      %v1647 = vadd.f32 %v977, %v1646
      %v1648 = vpop.f32.mrb[0].mxu0
      %v1649 = vadd.f32 %v979, %v1648
      %1650 = vdwg.mxu0
      %1651 = vmatprep.subr.mxu0 %v1323
      %1652 = vmatpush1.msra.mxu0 %v1320
      %1653 = vmatprep.subr.mxu0 0.0
      %1654 = vmatpush1.msra.mxu0 0.0
      %1655 = vmatprep.subr.mxu0 0.0
      %1656 = vmatpush1.msra.mxu0 0.0
      %1657 = vmatprep.subr.mxu0 0.0
      %1658 = vmatpush1.msra.mxu0 0.0
      %1659 = vmatprep.subr.mxu0 0.0
      %1660 = vmatpush1.msra.mxu0 0.0
      %1661 = vmatprep.subr.mxu0 0.0
      %1662 = vmatpush1.msra.mxu0 0.0
      %1663 = vmatprep.subr.mxu0 0.0
      %1664 = vmatpush1.msra.mxu0 0.0
      %1665 = vmatprep.subr.mxu0 0.0
      %1666 = vmatpush1.msra.mxu0 0.0
      %1667 = vmatprep.subr.mxu0 0.0
      %1668 = vmatpush1.msra.mxu0 0.0
      %1669 = vmatprep.subr.mxu0 0.0
      %1670 = vmatpush1.msra.mxu0 0.0
      %1671 = vmatprep.subr.mxu0 0.0
      %1672 = vmatpush1.msra.mxu0 0.0
      %1673 = vmatprep.subr.mxu0 0.0
      %1674 = vmatpush1.msra.mxu0 0.0
      %1675 = vmatprep.subr.mxu0 0.0
      %1676 = vmatpush1.msra.mxu0 0.0
      %1677 = vmatprep.subr.mxu0 0.0
      %1678 = vmatpush1.msra.mxu0 0.0
      %1679 = vmatprep.subr.mxu0 0.0
      %1680 = vmatpush1.msra.mxu0 0.0
      %1681 = vmatprep.subr.mxu0 0.0
      %1682 = vmatpush1.msra.mxu0 0.0
      %1683 = vmatprep.subr.mxu0 0.0
      %1684 = vmatpush1.msra.mxu0 0.0
      %1685 = vmatprep.subr.mxu0 0.0
      %1686 = vmatpush1.msra.mxu0 0.0
      %1687 = vmatprep.subr.mxu0 0.0
      %1688 = vmatpush1.msra.mxu0 0.0
      %1689 = vmatprep.subr.mxu0 0.0
      %1690 = vmatpush1.msra.mxu0 0.0
      %1691 = vmatprep.subr.mxu0 0.0
      %1692 = vmatpush1.msra.mxu0 0.0
      %1693 = vmatprep.subr.mxu0 0.0
      %1694 = vmatpush1.msra.mxu0 0.0
      %1695 = vmatprep.subr.mxu0 0.0
      %1696 = vmatpush1.msra.mxu0 0.0
      %1697 = vmatprep.subr.mxu0 0.0
      %1698 = vmatpush1.msra.mxu0 0.0
      %1699 = vmatprep.subr.mxu0 0.0
      %1700 = vmatpush1.msra.mxu0 0.0
      %1701 = vmatprep.subr.mxu0 0.0
      %1702 = vmatpush1.msra.mxu0 0.0
      %1703 = vmatprep.subr.mxu0 0.0
      %1704 = vmatpush1.msra.mxu0 0.0
      %1705 = vmatprep.subr.mxu0 0.0
      %1706 = vmatpush1.msra.mxu0 0.0
      %1707 = vmatprep.subr.mxu0 0.0
      %1708 = vmatpush1.msra.mxu0 0.0
      %1709 = vmatprep.subr.mxu0 0.0
      %1710 = vmatpush1.msra.mxu0 0.0
      %1711 = vmatprep.subr.mxu0 0.0
      %1712 = vmatpush1.msra.mxu0 0.0
      %1713 = vmatprep.subr.mxu0 0.0
      %1714 = vmatpush1.msra.mxu0 0.0
      %1715 = vmatprep.mubr.f32.mxu0 0.0
      %1716 = vmatmul.mubr.f32.gmra.mrb[0].mxu0 %v1290
      %v1717 = vpop.f32.mrb[0].mxu0
      %v1718 = vadd.f32 %v1048, %v1717
      %v1719 = vpop.f32.mrb[0].mxu0
      %v1720 = vadd.f32 %v1050, %v1719
      %1721 = vmatprep.mubr.f32.mxu0 0.0
      %1722 = vmatmul.mubr.f32.gmra.mrb[0].mxu0 %v1293
      %v1723 = vpop.f32.mrb[0].mxu0
      %v1724 = vadd.f32 %v1054, %v1723
      %v1725 = vpop.f32.mrb[0].mxu0
      %v1726 = vadd.f32 %v1056, %v1725
      %1727 = vdwg.mxu0
      %1728 = vmatprep.subr.mxu0 %v1329
      %1729 = vmatpush1.msra.mxu0 %v1326
      %1730 = vmatprep.subr.mxu0 0.0
      %1731 = vmatpush1.msra.mxu0 0.0
      %1732 = vmatprep.subr.mxu0 0.0
      %1733 = vmatpush1.msra.mxu0 0.0
      %1734 = vmatprep.subr.mxu0 0.0
      %1735 = vmatpush1.msra.mxu0 0.0
      %1736 = vmatprep.subr.mxu0 0.0
      %1737 = vmatpush1.msra.mxu0 0.0
      %1738 = vmatprep.subr.mxu0 0.0
      %1739 = vmatpush1.msra.mxu0 0.0
      %1740 = vmatprep.subr.mxu0 0.0
      %1741 = vmatpush1.msra.mxu0 0.0
      %1742 = vmatprep.subr.mxu0 0.0
      %1743 = vmatpush1.msra.mxu0 0.0
      %1744 = vmatprep.subr.mxu0 0.0
      %1745 = vmatpush1.msra.mxu0 0.0
      %1746 = vmatprep.subr.mxu0 0.0
      %1747 = vmatpush1.msra.mxu0 0.0
      %1748 = vmatprep.subr.mxu0 0.0
      %1749 = vmatpush1.msra.mxu0 0.0
      %1750 = vmatprep.subr.mxu0 0.0
      %1751 = vmatpush1.msra.mxu0 0.0
      %1752 = vmatprep.subr.mxu0 0.0
      %1753 = vmatpush1.msra.mxu0 0.0
      %1754 = vmatprep.subr.mxu0 0.0
      %1755 = vmatpush1.msra.mxu0 0.0
      %1756 = vmatprep.subr.mxu0 0.0
      %1757 = vmatpush1.msra.mxu0 0.0
      %1758 = vmatprep.subr.mxu0 0.0
      %1759 = vmatpush1.msra.mxu0 0.0
      %1760 = vmatprep.subr.mxu0 0.0
      %1761 = vmatpush1.msra.mxu0 0.0
      %1762 = vmatprep.subr.mxu0 0.0
      %1763 = vmatpush1.msra.mxu0 0.0
      %1764 = vmatprep.subr.mxu0 0.0
      %1765 = vmatpush1.msra.mxu0 0.0
      %1766 = vmatprep.subr.mxu0 0.0
      %1767 = vmatpush1.msra.mxu0 0.0
      %1768 = vmatprep.subr.mxu0 0.0
      %1769 = vmatpush1.msra.mxu0 0.0
      %1770 = vmatprep.subr.mxu0 0.0
      %1771 = vmatpush1.msra.mxu0 0.0
      %1772 = vmatprep.subr.mxu0 0.0
      %1773 = vmatpush1.msra.mxu0 0.0
      %1774 = vmatprep.subr.mxu0 0.0
      %1775 = vmatpush1.msra.mxu0 0.0
      %1776 = vmatprep.subr.mxu0 0.0
      %1777 = vmatpush1.msra.mxu0 0.0
      %1778 = vmatprep.subr.mxu0 0.0
      %1779 = vmatpush1.msra.mxu0 0.0
      %1780 = vmatprep.subr.mxu0 0.0
      %1781 = vmatpush1.msra.mxu0 0.0
      %1782 = vmatprep.subr.mxu0 0.0
      %1783 = vmatpush1.msra.mxu0 0.0
      %1784 = vmatprep.subr.mxu0 0.0
      %1785 = vmatpush1.msra.mxu0 0.0
      %1786 = vmatprep.subr.mxu0 0.0
      %1787 = vmatpush1.msra.mxu0 0.0
      %1788 = vmatprep.subr.mxu0 0.0
      %1789 = vmatpush1.msra.mxu0 0.0
      %1790 = vmatprep.subr.mxu0 0.0
      %1791 = vmatpush1.msra.mxu0 0.0
      %1792 = vmatprep.mubr.f32.mxu0 0.0
      %1793 = vmatmul.mubr.f32.gmra.mrb[0].mxu0 %v1290
      %v1794 = vpop.f32.mrb[0].mxu0
      %v1795 = vadd.f32 %v1125, %v1794
      %v1796 = vpop.f32.mrb[0].mxu0
      %v1797 = vadd.f32 %v1127, %v1796
      %1798 = vmatprep.mubr.f32.mxu0 0.0
      %1799 = vmatmul.mubr.f32.gmra.mrb[0].mxu0 %v1293
      %v1800 = vpop.f32.mrb[0].mxu0
      %v1801 = vadd.f32 %v1131, %v1800
      %v1802 = vpop.f32.mrb[0].mxu0
      %v1803 = vadd.f32 %v1133, %v1802
      %1804 = vdwg.mxu0
      %1805 = vmatprep.subr.mxu0 %v1335
      %1806 = vmatpush1.msra.mxu0 %v1332
      %1807 = vmatprep.subr.mxu0 0.0
      %1808 = vmatpush1.msra.mxu0 0.0
      %1809 = vmatprep.subr.mxu0 0.0
      %1810 = vmatpush1.msra.mxu0 0.0
      %1811 = vmatprep.subr.mxu0 0.0
      %1812 = vmatpush1.msra.mxu0 0.0
      %1813 = vmatprep.subr.mxu0 0.0
      %1814 = vmatpush1.msra.mxu0 0.0
      %1815 = vmatprep.subr.mxu0 0.0
      %1816 = vmatpush1.msra.mxu0 0.0
      %1817 = vmatprep.subr.mxu0 0.0
      %1818 = vmatpush1.msra.mxu0 0.0
      %1819 = vmatprep.subr.mxu0 0.0
      %1820 = vmatpush1.msra.mxu0 0.0
      %1821 = vmatprep.subr.mxu0 0.0
      %1822 = vmatpush1.msra.mxu0 0.0
      %1823 = vmatprep.subr.mxu0 0.0
      %1824 = vmatpush1.msra.mxu0 0.0
      %1825 = vmatprep.subr.mxu0 0.0
      %1826 = vmatpush1.msra.mxu0 0.0
      %1827 = vmatprep.subr.mxu0 0.0
      %1828 = vmatpush1.msra.mxu0 0.0
      %1829 = vmatprep.subr.mxu0 0.0
      %1830 = vmatpush1.msra.mxu0 0.0
      %1831 = vmatprep.subr.mxu0 0.0
      %1832 = vmatpush1.msra.mxu0 0.0
      %1833 = vmatprep.subr.mxu0 0.0
      %1834 = vmatpush1.msra.mxu0 0.0
      %1835 = vmatprep.subr.mxu0 0.0
      %1836 = vmatpush1.msra.mxu0 0.0
      %1837 = vmatprep.subr.mxu0 0.0
      %1838 = vmatpush1.msra.mxu0 0.0
      %1839 = vmatprep.subr.mxu0 0.0
      %1840 = vmatpush1.msra.mxu0 0.0
      %1841 = vmatprep.subr.mxu0 0.0
      %1842 = vmatpush1.msra.mxu0 0.0
      %1843 = vmatprep.subr.mxu0 0.0
      %1844 = vmatpush1.msra.mxu0 0.0
      %1845 = vmatprep.subr.mxu0 0.0
      %1846 = vmatpush1.msra.mxu0 0.0
      %1847 = vmatprep.subr.mxu0 0.0
      %1848 = vmatpush1.msra.mxu0 0.0
      %1849 = vmatprep.subr.mxu0 0.0
      %1850 = vmatpush1.msra.mxu0 0.0
      %1851 = vmatprep.subr.mxu0 0.0
      %1852 = vmatpush1.msra.mxu0 0.0
      %1853 = vmatprep.subr.mxu0 0.0
      %1854 = vmatpush1.msra.mxu0 0.0
      %1855 = vmatprep.subr.mxu0 0.0
      %1856 = vmatpush1.msra.mxu0 0.0
      %1857 = vmatprep.subr.mxu0 0.0
      %1858 = vmatpush1.msra.mxu0 0.0
      %1859 = vmatprep.subr.mxu0 0.0
      %1860 = vmatpush1.msra.mxu0 0.0
      %1861 = vmatprep.subr.mxu0 0.0
      %1862 = vmatpush1.msra.mxu0 0.0
      %1863 = vmatprep.subr.mxu0 0.0
      %1864 = vmatpush1.msra.mxu0 0.0
      %1865 = vmatprep.subr.mxu0 0.0
      %1866 = vmatpush1.msra.mxu0 0.0
      %1867 = vmatprep.subr.mxu0 0.0
      %1868 = vmatpush1.msra.mxu0 0.0
      %1869 = vmatprep.mubr.f32.mxu0 0.0
      %1870 = vmatmul.mubr.f32.gmra.mrb[0].mxu0 %v1290
      %v1871 = vpop.f32.mrb[0].mxu0
      %v1872 = vadd.f32 %v1202, %v1871
      %v1873 = vpop.f32.mrb[0].mxu0
      %v1874 = vadd.f32 %v1204, %v1873
      %1875 = vmatprep.mubr.f32.mxu0 0.0
      %1876 = vmatmul.mubr.f32.gmra.mrb[0].mxu0 %v1293
      %v1877 = vpop.f32.mrb[0].mxu0
      %v1878 = vadd.f32 %v1208, %v1877
      %v1879 = vpop.f32.mrb[0].mxu0
      %v1880 = vadd.f32 %v1210, %v1879
      %1881 = vdwg.mxu0
      %1882 = vmatprep.subr.mxu0 %v1341
      %1883 = vmatpush1.msra.mxu0 %v1338
      %1884 = vmatprep.subr.mxu0 0.0
      %1885 = vmatpush1.msra.mxu0 0.0
      %1886 = vmatprep.subr.mxu0 0.0
      %1887 = vmatpush1.msra.mxu0 0.0
      %1888 = vmatprep.subr.mxu0 0.0
      %1889 = vmatpush1.msra.mxu0 0.0
      %1890 = vmatprep.subr.mxu0 0.0
      %1891 = vmatpush1.msra.mxu0 0.0
      %1892 = vmatprep.subr.mxu0 0.0
      %1893 = vmatpush1.msra.mxu0 0.0
      %1894 = vmatprep.subr.mxu0 0.0
      %1895 = vmatpush1.msra.mxu0 0.0
      %1896 = vmatprep.subr.mxu0 0.0
      %1897 = vmatpush1.msra.mxu0 0.0
      %1898 = vmatprep.subr.mxu0 0.0
      %1899 = vmatpush1.msra.mxu0 0.0
      %1900 = vmatprep.subr.mxu0 0.0
      %1901 = vmatpush1.msra.mxu0 0.0
      %1902 = vmatprep.subr.mxu0 0.0
      %1903 = vmatpush1.msra.mxu0 0.0
      %1904 = vmatprep.subr.mxu0 0.0
      %1905 = vmatpush1.msra.mxu0 0.0
      %1906 = vmatprep.subr.mxu0 0.0
      %1907 = vmatpush1.msra.mxu0 0.0
      %1908 = vmatprep.subr.mxu0 0.0
      %1909 = vmatpush1.msra.mxu0 0.0
      %1910 = vmatprep.subr.mxu0 0.0
      %1911 = vmatpush1.msra.mxu0 0.0
      %1912 = vmatprep.subr.mxu0 0.0
      %1913 = vmatpush1.msra.mxu0 0.0
      %1914 = vmatprep.subr.mxu0 0.0
      %1915 = vmatpush1.msra.mxu0 0.0
      %1916 = vmatprep.subr.mxu0 0.0
      %1917 = vmatpush1.msra.mxu0 0.0
      %1918 = vmatprep.subr.mxu0 0.0
      %1919 = vmatpush1.msra.mxu0 0.0
      %1920 = vmatprep.subr.mxu0 0.0
      %1921 = vmatpush1.msra.mxu0 0.0
      %1922 = vmatprep.subr.mxu0 0.0
      %1923 = vmatpush1.msra.mxu0 0.0
      %1924 = vmatprep.subr.mxu0 0.0
      %1925 = vmatpush1.msra.mxu0 0.0
      %1926 = vmatprep.subr.mxu0 0.0
      %1927 = vmatpush1.msra.mxu0 0.0
      %1928 = vmatprep.subr.mxu0 0.0
      %1929 = vmatpush1.msra.mxu0 0.0
      %1930 = vmatprep.subr.mxu0 0.0
      %1931 = vmatpush1.msra.mxu0 0.0
      %1932 = vmatprep.subr.mxu0 0.0
      %1933 = vmatpush1.msra.mxu0 0.0
      %1934 = vmatprep.subr.mxu0 0.0
      %1935 = vmatpush1.msra.mxu0 0.0
      %1936 = vmatprep.subr.mxu0 0.0
      %1937 = vmatpush1.msra.mxu0 0.0
      %1938 = vmatprep.subr.mxu0 0.0
      %1939 = vmatpush1.msra.mxu0 0.0
      %1940 = vmatprep.subr.mxu0 0.0
      %1941 = vmatpush1.msra.mxu0 0.0
      %1942 = vmatprep.subr.mxu0 0.0
      %1943 = vmatpush1.msra.mxu0 0.0
      %1944 = vmatprep.subr.mxu0 0.0
      %1945 = vmatpush1.msra.mxu0 0.0
      %1946 = vmatprep.mubr.f32.mxu0 0.0
      %1947 = vmatmul.mubr.f32.gmra.mrb[0].mxu0 %v1290
      %v1948 = vpop.f32.mrb[0].mxu0
      %v1949 = vadd.f32 %v1279, %v1948
      %v1950 = vpop.f32.mrb[0].mxu0
      %v1951 = vadd.f32 %v1281, %v1950
      %1952 = vmatprep.mubr.f32.mxu0 0.0
      %1953 = vmatmul.mubr.f32.gmra.mrb[0].mxu0 %v1293
      %v1954 = vpop.f32.mrb[0].mxu0
      %v1955 = vadd.f32 %v1285, %v1954
      %v1956 = vpop.f32.mrb[0].mxu0
      %v1957 = vadd.f32 %v1287, %v1956
      %1958 = vdwg.mxu0
      %1959 = vrot.lane.b32.xlu0 %v279, 15
      %v1960 = vpop.permute.xlu0 %1959
      %1961 = vrot.lane.b32.xlu0 %v295, 15
      %v1962 = vpop.permute.xlu0 %1961
      %1963 = vrot.lane.b32.xlu0 %v280, 15
      %v1964 = vpop.permute.xlu0 %1963
      %1965 = vrot.lane.b32.xlu0 %v296, 15
      %v1966 = vpop.permute.xlu0 %1965
      %1967 = vrot.lane.b32.xlu0 %v281, 15
      %v1968 = vpop.permute.xlu0 %1967
      %1969 = vrot.lane.b32.xlu0 %v297, 15
      %v1970 = vpop.permute.xlu0 %1969
      %1971 = vrot.lane.b32.xlu0 %v282, 15
      %v1972 = vpop.permute.xlu0 %1971
      %1973 = vrot.lane.b32.xlu0 %v298, 15
      %v1974 = vpop.permute.xlu0 %1973
      %1975 = vrot.lane.b32.xlu0 %v283, 15
      %v1976 = vpop.permute.xlu0 %1975
      %1977 = vrot.lane.b32.xlu0 %v299, 15
      %v1978 = vpop.permute.xlu0 %1977
      %1979 = vrot.lane.b32.xlu0 %v284, 15
      %v1980 = vpop.permute.xlu0 %1979
      %1981 = vrot.lane.b32.xlu0 %v300, 15
      %v1982 = vpop.permute.xlu0 %1981
      %1983 = vrot.lane.b32.xlu0 %v285, 15
      %v1984 = vpop.permute.xlu0 %1983
      %1985 = vrot.lane.b32.xlu0 %v301, 15
      %v1986 = vpop.permute.xlu0 %1985
      %1987 = vrot.lane.b32.xlu0 %v286, 15
      %v1988 = vpop.permute.xlu0 %1987
      %1989 = vrot.lane.b32.xlu0 %v302, 15
      %v1990 = vpop.permute.xlu0 %1989
      %vm1991 = vcmp.lt.s32.totalorder %v344, 15
      %v1992 = vsel %vm1991, %v1988, %v1990
      %v1993 = vsel %vm1991, %v1986, %v1988
      %v1994 = vsel %vm1991, %v1984, %v1986
      %v1995 = vsel %vm1991, %v1982, %v1984
      %v1996 = vsel %vm1991, %v1980, %v1982
      %v1997 = vsel %vm1991, %v1978, %v1980
      %v1998 = vsel %vm1991, %v1976, %v1978
      %v1999 = vsel %vm1991, %v1974, %v1976
      %v2000 = vsel %vm1991, %v1972, %v1974
      %v2001 = vsel %vm1991, %v1970, %v1972
      %v2002 = vsel %vm1991, %v1968, %v1970
      %v2003 = vsel %vm1991, %v1966, %v1968
      %v2004 = vsel %vm1991, %v1964, %v1966
      %v2005 = vsel %vm1991, %v1962, %v1964
      %v2006 = vsel %vm1991, %v1960, %v1962
      %v2007 = vsel %vm1991, %v1990, %v1960
      %s2008 = scalar_lea.vmem %s5, 32
      %v2009 = vld [vmem:[%s2008] sm:$0xff]
      %v2010 = vld [vmem:[%s2008 + $0x8] sm:$0xff]
      %v2013 = vlaneseq
      %v2014 = vshrl.u32 %v2013, 7
      %v2015 = vsub.s32 0, %v2014
      %v2016 = vrot.slane %v2009, %v2015
      %v2017 = vlaneseq
      %v2018 = vshrl.u32 %v2017, 7
      %v2019 = vsub.s32 1, %v2018
      %v2020 = vrot.slane %v2009, %v2019
      %v2021 = vlaneseq
      %v2022 = vshrl.u32 %v2021, 7
      %v2023 = vsub.s32 2, %v2022
      %v2024 = vrot.slane %v2009, %v2023
      %v2025 = vlaneseq
      %v2026 = vshrl.u32 %v2025, 7
      %v2027 = vsub.s32 3, %v2026
      %v2028 = vrot.slane %v2009, %v2027
      %v2029 = vlaneseq
      %v2030 = vshrl.u32 %v2029, 7
      %v2031 = vsub.s32 4, %v2030
      %v2032 = vrot.slane %v2009, %v2031
      %v2033 = vlaneseq
      %v2034 = vshrl.u32 %v2033, 7
      %v2035 = vsub.s32 5, %v2034
      %v2036 = vrot.slane %v2009, %v2035
      %v2037 = vlaneseq
      %v2038 = vshrl.u32 %v2037, 7
      %v2039 = vsub.s32 6, %v2038
      %v2040 = vrot.slane %v2009, %v2039
      %v2041 = vlaneseq
      %v2042 = vshrl.u32 %v2041, 7
      %v2043 = vsub.s32 7, %v2042
      %v2044 = vrot.slane %v2009, %v2043
      %v2045 = vlaneseq
      %v2046 = vshrl.u32 %v2045, 7
      %v2047 = vsub.s32 0, %v2046
      %v2048 = vrot.slane %v2010, %v2047
      %v2049 = vlaneseq
      %v2050 = vshrl.u32 %v2049, 7
      %v2051 = vsub.s32 1, %v2050
      %v2052 = vrot.slane %v2010, %v2051
      %v2053 = vlaneseq
      %v2054 = vshrl.u32 %v2053, 7
      %v2055 = vsub.s32 2, %v2054
      %v2056 = vrot.slane %v2010, %v2055
      %v2057 = vlaneseq
      %v2058 = vshrl.u32 %v2057, 7
      %v2059 = vsub.s32 3, %v2058
      %v2060 = vrot.slane %v2010, %v2059
      %v2061 = vlaneseq
      %v2062 = vshrl.u32 %v2061, 7
      %v2063 = vsub.s32 4, %v2062
      %v2064 = vrot.slane %v2010, %v2063
      %v2065 = vlaneseq
      %v2066 = vshrl.u32 %v2065, 7
      %v2067 = vsub.s32 5, %v2066
      %v2068 = vrot.slane %v2010, %v2067
      %v2069 = vlaneseq
      %v2070 = vshrl.u32 %v2069, 7
      %v2071 = vsub.s32 6, %v2070
      %v2072 = vrot.slane %v2010, %v2071
      %v2073 = vlaneseq
      %v2074 = vshrl.u32 %v2073, 7
      %v2075 = vsub.s32 7, %v2074
      %v2076 = vrot.slane %v2010, %v2075
      %v2093 = vmul.f32 %v2007, %v2016
      %v2094 = vmul.f32 %v2006, %v2020
      %v2095 = vmul.f32 %v2005, %v2024
      %v2096 = vmul.f32 %v2004, %v2028
      %v2097 = vmul.f32 %v2003, %v2032
      %v2098 = vmul.f32 %v2002, %v2036
      %v2099 = vmul.f32 %v2001, %v2040
      %v2100 = vmul.f32 %v2000, %v2044
      %v2101 = vmul.f32 %v1999, %v2048
      %v2102 = vmul.f32 %v1998, %v2052
      %v2103 = vmul.f32 %v1997, %v2056
      %v2104 = vmul.f32 %v1996, %v2060
      %v2105 = vmul.f32 %v1995, %v2064
      %v2106 = vmul.f32 %v1994, %v2068
      %v2107 = vmul.f32 %v1993, %v2072
      %v2108 = vmul.f32 %v1992, %v2076
      %s2109 = scalar_lea.vmem %s1, 32
      %v2110 = vld [vmem:[%s2109] sm:$0xff]
      %v2111 = vld [vmem:[%s2109 + $0x8] sm:$0x1]
      %v2113 = vsel %vm617, %v2110, 0
      %v2116 = vsel %vm617, %v2111, 0
      %v2119 = vsel %vm624, %v2093, 0
      %v2122 = vsel %vm624, %v2094, 0
      %v2125 = vsel %vm624, %v2095, 0
      %v2128 = vsel %vm624, %v2096, 0
      %v2131 = vsel %vm624, %v2097, 0
      %v2134 = vsel %vm624, %v2098, 0
      %v2137 = vsel %vm624, %v2099, 0
      %v2140 = vsel %vm624, %v2100, 0
      %v2143 = vsel %vm624, %v2101, 0
      %v2146 = vsel %vm624, %v2102, 0
      %v2149 = vsel %vm624, %v2103, 0
      %v2152 = vsel %vm624, %v2104, 0
      %v2155 = vsel %vm624, %v2105, 0
      %v2158 = vsel %vm624, %v2106, 0
      %v2161 = vsel %vm624, %v2107, 0
      %v2164 = vsel %vm624, %v2108, 0
      %2166 = vmatprep.subr.mxu0 %v2122
      %2167 = vmatpush1.msra.mxu0 %v2119
      %2168 = vmatprep.subr.mxu0 0.0
      %2169 = vmatpush1.msra.mxu0 0.0
      %2170 = vmatprep.subr.mxu0 0.0
      %2171 = vmatpush1.msra.mxu0 0.0
      %2172 = vmatprep.subr.mxu0 0.0
      %2173 = vmatpush1.msra.mxu0 0.0
      %2174 = vmatprep.subr.mxu0 0.0
      %2175 = vmatpush1.msra.mxu0 0.0
      %2176 = vmatprep.subr.mxu0 0.0
      %2177 = vmatpush1.msra.mxu0 0.0
      %2178 = vmatprep.subr.mxu0 0.0
      %2179 = vmatpush1.msra.mxu0 0.0
      %2180 = vmatprep.subr.mxu0 0.0
      %2181 = vmatpush1.msra.mxu0 0.0
      %2182 = vmatprep.subr.mxu0 0.0
      %2183 = vmatpush1.msra.mxu0 0.0
      %2184 = vmatprep.subr.mxu0 0.0
      %2185 = vmatpush1.msra.mxu0 0.0
      %2186 = vmatprep.subr.mxu0 0.0
      %2187 = vmatpush1.msra.mxu0 0.0
      %2188 = vmatprep.subr.mxu0 0.0
      %2189 = vmatpush1.msra.mxu0 0.0
      %2190 = vmatprep.subr.mxu0 0.0
      %2191 = vmatpush1.msra.mxu0 0.0
      %2192 = vmatprep.subr.mxu0 0.0
      %2193 = vmatpush1.msra.mxu0 0.0
      %2194 = vmatprep.subr.mxu0 0.0
      %2195 = vmatpush1.msra.mxu0 0.0
      %2196 = vmatprep.subr.mxu0 0.0
      %2197 = vmatpush1.msra.mxu0 0.0
      %2198 = vmatprep.subr.mxu0 0.0
      %2199 = vmatpush1.msra.mxu0 0.0
      %2200 = vmatprep.subr.mxu0 0.0
      %2201 = vmatpush1.msra.mxu0 0.0
      %2202 = vmatprep.subr.mxu0 0.0
      %2203 = vmatpush1.msra.mxu0 0.0
      %2204 = vmatprep.subr.mxu0 0.0
      %2205 = vmatpush1.msra.mxu0 0.0
      %2206 = vmatprep.subr.mxu0 0.0
      %2207 = vmatpush1.msra.mxu0 0.0
      %2208 = vmatprep.subr.mxu0 0.0
      %2209 = vmatpush1.msra.mxu0 0.0
      %2210 = vmatprep.subr.mxu0 0.0
      %2211 = vmatpush1.msra.mxu0 0.0
      %2212 = vmatprep.subr.mxu0 0.0
      %2213 = vmatpush1.msra.mxu0 0.0
      %2214 = vmatprep.subr.mxu0 0.0
      %2215 = vmatpush1.msra.mxu0 0.0
      %2216 = vmatprep.subr.mxu0 0.0
      %2217 = vmatpush1.msra.mxu0 0.0
      %2218 = vmatprep.subr.mxu0 0.0
      %2219 = vmatpush1.msra.mxu0 0.0
      %2220 = vmatprep.subr.mxu0 0.0
      %2221 = vmatpush1.msra.mxu0 0.0
      %2222 = vmatprep.subr.mxu0 0.0
      %2223 = vmatpush1.msra.mxu0 0.0
      %2224 = vmatprep.subr.mxu0 0.0
      %2225 = vmatpush1.msra.mxu0 0.0
      %2226 = vmatprep.subr.mxu0 0.0
      %2227 = vmatpush1.msra.mxu0 0.0
      %2228 = vmatprep.subr.mxu0 0.0
      %2229 = vmatpush1.msra.mxu0 0.0
      %2230 = vmatprep.mubr.f32.mxu0 0.0
      %2231 = vmatmul.mubr.f32.gmra.mrb[0].mxu0 %v2113
      %v2232 = vpop.f32.mrb[0].mxu0
      %v2233 = vadd.f32 0.0, %v2232
      %v2234 = vpop.f32.mrb[0].mxu0
      %v2235 = vadd.f32 0.0, %v2234
      %2236 = vmatprep.mubr.f32.mxu0 0.0
      %2237 = vmatmul.mubr.f32.gmra.mrb[0].mxu0 %v2116
      %v2238 = vpop.f32.mrb[0].mxu0
      %v2239 = vadd.f32 0.0, %v2238
      %v2240 = vpop.f32.mrb[0].mxu0
      %v2241 = vadd.f32 0.0, %v2240
      %2242 = vdwg.mxu0
      %2243 = vmatprep.subr.mxu0 %v2128
      %2244 = vmatpush1.msra.mxu0 %v2125
      %2245 = vmatprep.subr.mxu0 0.0
      %2246 = vmatpush1.msra.mxu0 0.0
      %2247 = vmatprep.subr.mxu0 0.0
      %2248 = vmatpush1.msra.mxu0 0.0
      %2249 = vmatprep.subr.mxu0 0.0
      %2250 = vmatpush1.msra.mxu0 0.0
      %2251 = vmatprep.subr.mxu0 0.0
      %2252 = vmatpush1.msra.mxu0 0.0
      %2253 = vmatprep.subr.mxu0 0.0
      %2254 = vmatpush1.msra.mxu0 0.0
      %2255 = vmatprep.subr.mxu0 0.0
      %2256 = vmatpush1.msra.mxu0 0.0
      %2257 = vmatprep.subr.mxu0 0.0
      %2258 = vmatpush1.msra.mxu0 0.0
      %2259 = vmatprep.subr.mxu0 0.0
      %2260 = vmatpush1.msra.mxu0 0.0
      %2261 = vmatprep.subr.mxu0 0.0
      %2262 = vmatpush1.msra.mxu0 0.0
      %2263 = vmatprep.subr.mxu0 0.0
      %2264 = vmatpush1.msra.mxu0 0.0
      %2265 = vmatprep.subr.mxu0 0.0
      %2266 = vmatpush1.msra.mxu0 0.0
      %2267 = vmatprep.subr.mxu0 0.0
      %2268 = vmatpush1.msra.mxu0 0.0
      %2269 = vmatprep.subr.mxu0 0.0
      %2270 = vmatpush1.msra.mxu0 0.0
      %2271 = vmatprep.subr.mxu0 0.0
      %2272 = vmatpush1.msra.mxu0 0.0
      %2273 = vmatprep.subr.mxu0 0.0
      %2274 = vmatpush1.msra.mxu0 0.0
      %2275 = vmatprep.subr.mxu0 0.0
      %2276 = vmatpush1.msra.mxu0 0.0
      %2277 = vmatprep.subr.mxu0 0.0
      %2278 = vmatpush1.msra.mxu0 0.0
      %2279 = vmatprep.subr.mxu0 0.0
      %2280 = vmatpush1.msra.mxu0 0.0
      %2281 = vmatprep.subr.mxu0 0.0
      %2282 = vmatpush1.msra.mxu0 0.0
      %2283 = vmatprep.subr.mxu0 0.0
      %2284 = vmatpush1.msra.mxu0 0.0
      %2285 = vmatprep.subr.mxu0 0.0
      %2286 = vmatpush1.msra.mxu0 0.0
      %2287 = vmatprep.subr.mxu0 0.0
      %2288 = vmatpush1.msra.mxu0 0.0
      %2289 = vmatprep.subr.mxu0 0.0
      %2290 = vmatpush1.msra.mxu0 0.0
      %2291 = vmatprep.subr.mxu0 0.0
      %2292 = vmatpush1.msra.mxu0 0.0
      %2293 = vmatprep.subr.mxu0 0.0
      %2294 = vmatpush1.msra.mxu0 0.0
      %2295 = vmatprep.subr.mxu0 0.0
      %2296 = vmatpush1.msra.mxu0 0.0
      %2297 = vmatprep.subr.mxu0 0.0
      %2298 = vmatpush1.msra.mxu0 0.0
      %2299 = vmatprep.subr.mxu0 0.0
      %2300 = vmatpush1.msra.mxu0 0.0
      %2301 = vmatprep.subr.mxu0 0.0
      %2302 = vmatpush1.msra.mxu0 0.0
      %2303 = vmatprep.subr.mxu0 0.0
      %2304 = vmatpush1.msra.mxu0 0.0
      %2305 = vmatprep.subr.mxu0 0.0
      %2306 = vmatpush1.msra.mxu0 0.0
      %2307 = vmatprep.mubr.f32.mxu0 0.0
      %2308 = vmatmul.mubr.f32.gmra.mrb[0].mxu0 %v2113
      %v2309 = vpop.f32.mrb[0].mxu0
      %v2310 = vadd.f32 0.0, %v2309
      %v2311 = vpop.f32.mrb[0].mxu0
      %v2312 = vadd.f32 0.0, %v2311
      %2313 = vmatprep.mubr.f32.mxu0 0.0
      %2314 = vmatmul.mubr.f32.gmra.mrb[0].mxu0 %v2116
      %v2315 = vpop.f32.mrb[0].mxu0
      %v2316 = vadd.f32 0.0, %v2315
      %v2317 = vpop.f32.mrb[0].mxu0
      %v2318 = vadd.f32 0.0, %v2317
      %2319 = vdwg.mxu0
      %2320 = vmatprep.subr.mxu0 %v2134
      %2321 = vmatpush1.msra.mxu0 %v2131
      %2322 = vmatprep.subr.mxu0 0.0
      %2323 = vmatpush1.msra.mxu0 0.0
      %2324 = vmatprep.subr.mxu0 0.0
      %2325 = vmatpush1.msra.mxu0 0.0
      %2326 = vmatprep.subr.mxu0 0.0
      %2327 = vmatpush1.msra.mxu0 0.0
      %2328 = vmatprep.subr.mxu0 0.0
      %2329 = vmatpush1.msra.mxu0 0.0
      %2330 = vmatprep.subr.mxu0 0.0
      %2331 = vmatpush1.msra.mxu0 0.0
      %2332 = vmatprep.subr.mxu0 0.0
      %2333 = vmatpush1.msra.mxu0 0.0
      %2334 = vmatprep.subr.mxu0 0.0
      %2335 = vmatpush1.msra.mxu0 0.0
      %2336 = vmatprep.subr.mxu0 0.0
      %2337 = vmatpush1.msra.mxu0 0.0
      %2338 = vmatprep.subr.mxu0 0.0
      %2339 = vmatpush1.msra.mxu0 0.0
      %2340 = vmatprep.subr.mxu0 0.0
      %2341 = vmatpush1.msra.mxu0 0.0
      %2342 = vmatprep.subr.mxu0 0.0
      %2343 = vmatpush1.msra.mxu0 0.0
      %2344 = vmatprep.subr.mxu0 0.0
      %2345 = vmatpush1.msra.mxu0 0.0
      %2346 = vmatprep.subr.mxu0 0.0
      %2347 = vmatpush1.msra.mxu0 0.0
      %2348 = vmatprep.subr.mxu0 0.0
      %2349 = vmatpush1.msra.mxu0 0.0
      %2350 = vmatprep.subr.mxu0 0.0
      %2351 = vmatpush1.msra.mxu0 0.0
      %2352 = vmatprep.subr.mxu0 0.0
      %2353 = vmatpush1.msra.mxu0 0.0
      %2354 = vmatprep.subr.mxu0 0.0
      %2355 = vmatpush1.msra.mxu0 0.0
      %2356 = vmatprep.subr.mxu0 0.0
      %2357 = vmatpush1.msra.mxu0 0.0
      %2358 = vmatprep.subr.mxu0 0.0
      %2359 = vmatpush1.msra.mxu0 0.0
      %2360 = vmatprep.subr.mxu0 0.0
      %2361 = vmatpush1.msra.mxu0 0.0
      %2362 = vmatprep.subr.mxu0 0.0
      %2363 = vmatpush1.msra.mxu0 0.0
      %2364 = vmatprep.subr.mxu0 0.0
      %2365 = vmatpush1.msra.mxu0 0.0
      %2366 = vmatprep.subr.mxu0 0.0
      %2367 = vmatpush1.msra.mxu0 0.0
      %2368 = vmatprep.subr.mxu0 0.0
      %2369 = vmatpush1.msra.mxu0 0.0
      %2370 = vmatprep.subr.mxu0 0.0
      %2371 = vmatpush1.msra.mxu0 0.0
      %2372 = vmatprep.subr.mxu0 0.0
      %2373 = vmatpush1.msra.mxu0 0.0
      %2374 = vmatprep.subr.mxu0 0.0
      %2375 = vmatpush1.msra.mxu0 0.0
      %2376 = vmatprep.subr.mxu0 0.0
      %2377 = vmatpush1.msra.mxu0 0.0
      %2378 = vmatprep.subr.mxu0 0.0
      %2379 = vmatpush1.msra.mxu0 0.0
      %2380 = vmatprep.subr.mxu0 0.0
      %2381 = vmatpush1.msra.mxu0 0.0
      %2382 = vmatprep.subr.mxu0 0.0
      %2383 = vmatpush1.msra.mxu0 0.0
      %2384 = vmatprep.mubr.f32.mxu0 0.0
      %2385 = vmatmul.mubr.f32.gmra.mrb[0].mxu0 %v2113
      %v2386 = vpop.f32.mrb[0].mxu0
      %v2387 = vadd.f32 0.0, %v2386
      %v2388 = vpop.f32.mrb[0].mxu0
      %v2389 = vadd.f32 0.0, %v2388
      %2390 = vmatprep.mubr.f32.mxu0 0.0
      %2391 = vmatmul.mubr.f32.gmra.mrb[0].mxu0 %v2116
      %v2392 = vpop.f32.mrb[0].mxu0
      %v2393 = vadd.f32 0.0, %v2392
      %v2394 = vpop.f32.mrb[0].mxu0
      %v2395 = vadd.f32 0.0, %v2394
      %2396 = vdwg.mxu0
      %2397 = vmatprep.subr.mxu0 %v2140
      %2398 = vmatpush1.msra.mxu0 %v2137
      %2399 = vmatprep.subr.mxu0 0.0
      %2400 = vmatpush1.msra.mxu0 0.0
      %2401 = vmatprep.subr.mxu0 0.0
      %2402 = vmatpush1.msra.mxu0 0.0
      %2403 = vmatprep.subr.mxu0 0.0
      %2404 = vmatpush1.msra.mxu0 0.0
      %2405 = vmatprep.subr.mxu0 0.0
      %2406 = vmatpush1.msra.mxu0 0.0
      %2407 = vmatprep.subr.mxu0 0.0
      %2408 = vmatpush1.msra.mxu0 0.0
      %2409 = vmatprep.subr.mxu0 0.0
      %2410 = vmatpush1.msra.mxu0 0.0
      %2411 = vmatprep.subr.mxu0 0.0
      %2412 = vmatpush1.msra.mxu0 0.0
      %2413 = vmatprep.subr.mxu0 0.0
      %2414 = vmatpush1.msra.mxu0 0.0
      %2415 = vmatprep.subr.mxu0 0.0
      %2416 = vmatpush1.msra.mxu0 0.0
      %2417 = vmatprep.subr.mxu0 0.0
      %2418 = vmatpush1.msra.mxu0 0.0
      %2419 = vmatprep.subr.mxu0 0.0
      %2420 = vmatpush1.msra.mxu0 0.0
      %2421 = vmatprep.subr.mxu0 0.0
      %2422 = vmatpush1.msra.mxu0 0.0
      %2423 = vmatprep.subr.mxu0 0.0
      %2424 = vmatpush1.msra.mxu0 0.0
      %2425 = vmatprep.subr.mxu0 0.0
      %2426 = vmatpush1.msra.mxu0 0.0
      %2427 = vmatprep.subr.mxu0 0.0
      %2428 = vmatpush1.msra.mxu0 0.0
      %2429 = vmatprep.subr.mxu0 0.0
      %2430 = vmatpush1.msra.mxu0 0.0
      %2431 = vmatprep.subr.mxu0 0.0
      %2432 = vmatpush1.msra.mxu0 0.0
      %2433 = vmatprep.subr.mxu0 0.0
      %2434 = vmatpush1.msra.mxu0 0.0
      %2435 = vmatprep.subr.mxu0 0.0
      %2436 = vmatpush1.msra.mxu0 0.0
      %2437 = vmatprep.subr.mxu0 0.0
      %2438 = vmatpush1.msra.mxu0 0.0
      %2439 = vmatprep.subr.mxu0 0.0
      %2440 = vmatpush1.msra.mxu0 0.0
      %2441 = vmatprep.subr.mxu0 0.0
      %2442 = vmatpush1.msra.mxu0 0.0
      %2443 = vmatprep.subr.mxu0 0.0
      %2444 = vmatpush1.msra.mxu0 0.0
      %2445 = vmatprep.subr.mxu0 0.0
      %2446 = vmatpush1.msra.mxu0 0.0
      %2447 = vmatprep.subr.mxu0 0.0
      %2448 = vmatpush1.msra.mxu0 0.0
      %2449 = vmatprep.subr.mxu0 0.0
      %2450 = vmatpush1.msra.mxu0 0.0
      %2451 = vmatprep.subr.mxu0 0.0
      %2452 = vmatpush1.msra.mxu0 0.0
      %2453 = vmatprep.subr.mxu0 0.0
      %2454 = vmatpush1.msra.mxu0 0.0
      %2455 = vmatprep.subr.mxu0 0.0
      %2456 = vmatpush1.msra.mxu0 0.0
      %2457 = vmatprep.subr.mxu0 0.0
      %2458 = vmatpush1.msra.mxu0 0.0
      %2459 = vmatprep.subr.mxu0 0.0
      %2460 = vmatpush1.msra.mxu0 0.0
      %2461 = vmatprep.mubr.f32.mxu0 0.0
      %2462 = vmatmul.mubr.f32.gmra.mrb[0].mxu0 %v2113
      %v2463 = vpop.f32.mrb[0].mxu0
      %v2464 = vadd.f32 0.0, %v2463
      %v2465 = vpop.f32.mrb[0].mxu0
      %v2466 = vadd.f32 0.0, %v2465
      %2467 = vmatprep.mubr.f32.mxu0 0.0
      %2468 = vmatmul.mubr.f32.gmra.mrb[0].mxu0 %v2116
      %v2469 = vpop.f32.mrb[0].mxu0
      %v2470 = vadd.f32 0.0, %v2469
      %v2471 = vpop.f32.mrb[0].mxu0
      %v2472 = vadd.f32 0.0, %v2471
      %2473 = vdwg.mxu0
      %2474 = vmatprep.subr.mxu0 %v2146
      %2475 = vmatpush1.msra.mxu0 %v2143
      %2476 = vmatprep.subr.mxu0 0.0
      %2477 = vmatpush1.msra.mxu0 0.0
      %2478 = vmatprep.subr.mxu0 0.0
      %2479 = vmatpush1.msra.mxu0 0.0
      %2480 = vmatprep.subr.mxu0 0.0
      %2481 = vmatpush1.msra.mxu0 0.0
      %2482 = vmatprep.subr.mxu0 0.0
      %2483 = vmatpush1.msra.mxu0 0.0
      %2484 = vmatprep.subr.mxu0 0.0
      %2485 = vmatpush1.msra.mxu0 0.0
      %2486 = vmatprep.subr.mxu0 0.0
      %2487 = vmatpush1.msra.mxu0 0.0
      %2488 = vmatprep.subr.mxu0 0.0
      %2489 = vmatpush1.msra.mxu0 0.0
      %2490 = vmatprep.subr.mxu0 0.0
      %2491 = vmatpush1.msra.mxu0 0.0
      %2492 = vmatprep.subr.mxu0 0.0
      %2493 = vmatpush1.msra.mxu0 0.0
      %2494 = vmatprep.subr.mxu0 0.0
      %2495 = vmatpush1.msra.mxu0 0.0
      %2496 = vmatprep.subr.mxu0 0.0
      %2497 = vmatpush1.msra.mxu0 0.0
      %2498 = vmatprep.subr.mxu0 0.0
      %2499 = vmatpush1.msra.mxu0 0.0
      %2500 = vmatprep.subr.mxu0 0.0
      %2501 = vmatpush1.msra.mxu0 0.0
      %2502 = vmatprep.subr.mxu0 0.0
      %2503 = vmatpush1.msra.mxu0 0.0
      %2504 = vmatprep.subr.mxu0 0.0
      %2505 = vmatpush1.msra.mxu0 0.0
      %2506 = vmatprep.subr.mxu0 0.0
      %2507 = vmatpush1.msra.mxu0 0.0
      %2508 = vmatprep.subr.mxu0 0.0
      %2509 = vmatpush1.msra.mxu0 0.0
      %2510 = vmatprep.subr.mxu0 0.0
      %2511 = vmatpush1.msra.mxu0 0.0
      %2512 = vmatprep.subr.mxu0 0.0
      %2513 = vmatpush1.msra.mxu0 0.0
      %2514 = vmatprep.subr.mxu0 0.0
      %2515 = vmatpush1.msra.mxu0 0.0
      %2516 = vmatprep.subr.mxu0 0.0
      %2517 = vmatpush1.msra.mxu0 0.0
      %2518 = vmatprep.subr.mxu0 0.0
      %2519 = vmatpush1.msra.mxu0 0.0
      %2520 = vmatprep.subr.mxu0 0.0
      %2521 = vmatpush1.msra.mxu0 0.0
      %2522 = vmatprep.subr.mxu0 0.0
      %2523 = vmatpush1.msra.mxu0 0.0
      %2524 = vmatprep.subr.mxu0 0.0
      %2525 = vmatpush1.msra.mxu0 0.0
      %2526 = vmatprep.subr.mxu0 0.0
      %2527 = vmatpush1.msra.mxu0 0.0
      %2528 = vmatprep.subr.mxu0 0.0
      %2529 = vmatpush1.msra.mxu0 0.0
      %2530 = vmatprep.subr.mxu0 0.0
      %2531 = vmatpush1.msra.mxu0 0.0
      %2532 = vmatprep.subr.mxu0 0.0
      %2533 = vmatpush1.msra.mxu0 0.0
      %2534 = vmatprep.subr.mxu0 0.0
      %2535 = vmatpush1.msra.mxu0 0.0
      %2536 = vmatprep.subr.mxu0 0.0
      %2537 = vmatpush1.msra.mxu0 0.0
      %2538 = vmatprep.mubr.f32.mxu0 0.0
      %2539 = vmatmul.mubr.f32.gmra.mrb[0].mxu0 %v2113
      %v2540 = vpop.f32.mrb[0].mxu0
      %v2541 = vadd.f32 0.0, %v2540
      %v2542 = vpop.f32.mrb[0].mxu0
      %v2543 = vadd.f32 0.0, %v2542
      %2544 = vmatprep.mubr.f32.mxu0 0.0
      %2545 = vmatmul.mubr.f32.gmra.mrb[0].mxu0 %v2116
      %v2546 = vpop.f32.mrb[0].mxu0
      %v2547 = vadd.f32 0.0, %v2546
      %v2548 = vpop.f32.mrb[0].mxu0
      %v2549 = vadd.f32 0.0, %v2548
      %2550 = vdwg.mxu0
      %2551 = vmatprep.subr.mxu0 %v2152
      %2552 = vmatpush1.msra.mxu0 %v2149
      %2553 = vmatprep.subr.mxu0 0.0
      %2554 = vmatpush1.msra.mxu0 0.0
      %2555 = vmatprep.subr.mxu0 0.0
      %2556 = vmatpush1.msra.mxu0 0.0
      %2557 = vmatprep.subr.mxu0 0.0
      %2558 = vmatpush1.msra.mxu0 0.0
      %2559 = vmatprep.subr.mxu0 0.0
      %2560 = vmatpush1.msra.mxu0 0.0
      %2561 = vmatprep.subr.mxu0 0.0
      %2562 = vmatpush1.msra.mxu0 0.0
      %2563 = vmatprep.subr.mxu0 0.0
      %2564 = vmatpush1.msra.mxu0 0.0
      %2565 = vmatprep.subr.mxu0 0.0
      %2566 = vmatpush1.msra.mxu0 0.0
      %2567 = vmatprep.subr.mxu0 0.0
      %2568 = vmatpush1.msra.mxu0 0.0
      %2569 = vmatprep.subr.mxu0 0.0
      %2570 = vmatpush1.msra.mxu0 0.0
      %2571 = vmatprep.subr.mxu0 0.0
      %2572 = vmatpush1.msra.mxu0 0.0
      %2573 = vmatprep.subr.mxu0 0.0
      %2574 = vmatpush1.msra.mxu0 0.0
      %2575 = vmatprep.subr.mxu0 0.0
      %2576 = vmatpush1.msra.mxu0 0.0
      %2577 = vmatprep.subr.mxu0 0.0
      %2578 = vmatpush1.msra.mxu0 0.0
      %2579 = vmatprep.subr.mxu0 0.0
      %2580 = vmatpush1.msra.mxu0 0.0
      %2581 = vmatprep.subr.mxu0 0.0
      %2582 = vmatpush1.msra.mxu0 0.0
      %2583 = vmatprep.subr.mxu0 0.0
      %2584 = vmatpush1.msra.mxu0 0.0
      %2585 = vmatprep.subr.mxu0 0.0
      %2586 = vmatpush1.msra.mxu0 0.0
      %2587 = vmatprep.subr.mxu0 0.0
      %2588 = vmatpush1.msra.mxu0 0.0
      %2589 = vmatprep.subr.mxu0 0.0
      %2590 = vmatpush1.msra.mxu0 0.0
      %2591 = vmatprep.subr.mxu0 0.0
      %2592 = vmatpush1.msra.mxu0 0.0
      %2593 = vmatprep.subr.mxu0 0.0
      %2594 = vmatpush1.msra.mxu0 0.0
      %2595 = vmatprep.subr.mxu0 0.0
      %2596 = vmatpush1.msra.mxu0 0.0
      %2597 = vmatprep.subr.mxu0 0.0
      %2598 = vmatpush1.msra.mxu0 0.0
      %2599 = vmatprep.subr.mxu0 0.0
      %2600 = vmatpush1.msra.mxu0 0.0
      %2601 = vmatprep.subr.mxu0 0.0
      %2602 = vmatpush1.msra.mxu0 0.0
      %2603 = vmatprep.subr.mxu0 0.0
      %2604 = vmatpush1.msra.mxu0 0.0
      %2605 = vmatprep.subr.mxu0 0.0
      %2606 = vmatpush1.msra.mxu0 0.0
      %2607 = vmatprep.subr.mxu0 0.0
      %2608 = vmatpush1.msra.mxu0 0.0
      %2609 = vmatprep.subr.mxu0 0.0
      %2610 = vmatpush1.msra.mxu0 0.0
      %2611 = vmatprep.subr.mxu0 0.0
      %2612 = vmatpush1.msra.mxu0 0.0
      %2613 = vmatprep.subr.mxu0 0.0
      %2614 = vmatpush1.msra.mxu0 0.0
      %2615 = vmatprep.mubr.f32.mxu0 0.0
      %2616 = vmatmul.mubr.f32.gmra.mrb[0].mxu0 %v2113
      %v2617 = vpop.f32.mrb[0].mxu0
      %v2618 = vadd.f32 0.0, %v2617
      %v2619 = vpop.f32.mrb[0].mxu0
      %v2620 = vadd.f32 0.0, %v2619
      %2621 = vmatprep.mubr.f32.mxu0 0.0
      %2622 = vmatmul.mubr.f32.gmra.mrb[0].mxu0 %v2116
      %v2623 = vpop.f32.mrb[0].mxu0
      %v2624 = vadd.f32 0.0, %v2623
      %v2625 = vpop.f32.mrb[0].mxu0
      %v2626 = vadd.f32 0.0, %v2625
      %2627 = vdwg.mxu0
      %2628 = vmatprep.subr.mxu0 %v2158
      %2629 = vmatpush1.msra.mxu0 %v2155
      %2630 = vmatprep.subr.mxu0 0.0
      %2631 = vmatpush1.msra.mxu0 0.0
      %2632 = vmatprep.subr.mxu0 0.0
      %2633 = vmatpush1.msra.mxu0 0.0
      %2634 = vmatprep.subr.mxu0 0.0
      %2635 = vmatpush1.msra.mxu0 0.0
      %2636 = vmatprep.subr.mxu0 0.0
      %2637 = vmatpush1.msra.mxu0 0.0
      %2638 = vmatprep.subr.mxu0 0.0
      %2639 = vmatpush1.msra.mxu0 0.0
      %2640 = vmatprep.subr.mxu0 0.0
      %2641 = vmatpush1.msra.mxu0 0.0
      %2642 = vmatprep.subr.mxu0 0.0
      %2643 = vmatpush1.msra.mxu0 0.0
      %2644 = vmatprep.subr.mxu0 0.0
      %2645 = vmatpush1.msra.mxu0 0.0
      %2646 = vmatprep.subr.mxu0 0.0
      %2647 = vmatpush1.msra.mxu0 0.0
      %2648 = vmatprep.subr.mxu0 0.0
      %2649 = vmatpush1.msra.mxu0 0.0
      %2650 = vmatprep.subr.mxu0 0.0
      %2651 = vmatpush1.msra.mxu0 0.0
      %2652 = vmatprep.subr.mxu0 0.0
      %2653 = vmatpush1.msra.mxu0 0.0
      %2654 = vmatprep.subr.mxu0 0.0
      %2655 = vmatpush1.msra.mxu0 0.0
      %2656 = vmatprep.subr.mxu0 0.0
      %2657 = vmatpush1.msra.mxu0 0.0
      %2658 = vmatprep.subr.mxu0 0.0
      %2659 = vmatpush1.msra.mxu0 0.0
      %2660 = vmatprep.subr.mxu0 0.0
      %2661 = vmatpush1.msra.mxu0 0.0
      %2662 = vmatprep.subr.mxu0 0.0
      %2663 = vmatpush1.msra.mxu0 0.0
      %2664 = vmatprep.subr.mxu0 0.0
      %2665 = vmatpush1.msra.mxu0 0.0
      %2666 = vmatprep.subr.mxu0 0.0
      %2667 = vmatpush1.msra.mxu0 0.0
      %2668 = vmatprep.subr.mxu0 0.0
      %2669 = vmatpush1.msra.mxu0 0.0
      %2670 = vmatprep.subr.mxu0 0.0
      %2671 = vmatpush1.msra.mxu0 0.0
      %2672 = vmatprep.subr.mxu0 0.0
      %2673 = vmatpush1.msra.mxu0 0.0
      %2674 = vmatprep.subr.mxu0 0.0
      %2675 = vmatpush1.msra.mxu0 0.0
      %2676 = vmatprep.subr.mxu0 0.0
      %2677 = vmatpush1.msra.mxu0 0.0
      %2678 = vmatprep.subr.mxu0 0.0
      %2679 = vmatpush1.msra.mxu0 0.0
      %2680 = vmatprep.subr.mxu0 0.0
      %2681 = vmatpush1.msra.mxu0 0.0
      %2682 = vmatprep.subr.mxu0 0.0
      %2683 = vmatpush1.msra.mxu0 0.0
      %2684 = vmatprep.subr.mxu0 0.0
      %2685 = vmatpush1.msra.mxu0 0.0
      %2686 = vmatprep.subr.mxu0 0.0
      %2687 = vmatpush1.msra.mxu0 0.0
      %2688 = vmatprep.subr.mxu0 0.0
      %2689 = vmatpush1.msra.mxu0 0.0
      %2690 = vmatprep.subr.mxu0 0.0
      %2691 = vmatpush1.msra.mxu0 0.0
      %2692 = vmatprep.mubr.f32.mxu0 0.0
      %2693 = vmatmul.mubr.f32.gmra.mrb[0].mxu0 %v2113
      %v2694 = vpop.f32.mrb[0].mxu0
      %v2695 = vadd.f32 0.0, %v2694
      %v2696 = vpop.f32.mrb[0].mxu0
      %v2697 = vadd.f32 0.0, %v2696
      %2698 = vmatprep.mubr.f32.mxu0 0.0
      %2699 = vmatmul.mubr.f32.gmra.mrb[0].mxu0 %v2116
      %v2700 = vpop.f32.mrb[0].mxu0
      %v2701 = vadd.f32 0.0, %v2700
      %v2702 = vpop.f32.mrb[0].mxu0
      %v2703 = vadd.f32 0.0, %v2702
      %2704 = vdwg.mxu0
      %2705 = vmatprep.subr.mxu0 %v2164
      %2706 = vmatpush1.msra.mxu0 %v2161
      %2707 = vmatprep.subr.mxu0 0.0
      %2708 = vmatpush1.msra.mxu0 0.0
      %2709 = vmatprep.subr.mxu0 0.0
      %2710 = vmatpush1.msra.mxu0 0.0
      %2711 = vmatprep.subr.mxu0 0.0
      %2712 = vmatpush1.msra.mxu0 0.0
      %2713 = vmatprep.subr.mxu0 0.0
      %2714 = vmatpush1.msra.mxu0 0.0
      %2715 = vmatprep.subr.mxu0 0.0
      %2716 = vmatpush1.msra.mxu0 0.0
      %2717 = vmatprep.subr.mxu0 0.0
      %2718 = vmatpush1.msra.mxu0 0.0
      %2719 = vmatprep.subr.mxu0 0.0
      %2720 = vmatpush1.msra.mxu0 0.0
      %2721 = vmatprep.subr.mxu0 0.0
      %2722 = vmatpush1.msra.mxu0 0.0
      %2723 = vmatprep.subr.mxu0 0.0
      %2724 = vmatpush1.msra.mxu0 0.0
      %2725 = vmatprep.subr.mxu0 0.0
      %2726 = vmatpush1.msra.mxu0 0.0
      %2727 = vmatprep.subr.mxu0 0.0
      %2728 = vmatpush1.msra.mxu0 0.0
      %2729 = vmatprep.subr.mxu0 0.0
      %2730 = vmatpush1.msra.mxu0 0.0
      %2731 = vmatprep.subr.mxu0 0.0
      %2732 = vmatpush1.msra.mxu0 0.0
      %2733 = vmatprep.subr.mxu0 0.0
      %2734 = vmatpush1.msra.mxu0 0.0
      %2735 = vmatprep.subr.mxu0 0.0
      %2736 = vmatpush1.msra.mxu0 0.0
      %2737 = vmatprep.subr.mxu0 0.0
      %2738 = vmatpush1.msra.mxu0 0.0
      %2739 = vmatprep.subr.mxu0 0.0
      %2740 = vmatpush1.msra.mxu0 0.0
      %2741 = vmatprep.subr.mxu0 0.0
      %2742 = vmatpush1.msra.mxu0 0.0
      %2743 = vmatprep.subr.mxu0 0.0
      %2744 = vmatpush1.msra.mxu0 0.0
      %2745 = vmatprep.subr.mxu0 0.0
      %2746 = vmatpush1.msra.mxu0 0.0
      %2747 = vmatprep.subr.mxu0 0.0
      %2748 = vmatpush1.msra.mxu0 0.0
      %2749 = vmatprep.subr.mxu0 0.0
      %2750 = vmatpush1.msra.mxu0 0.0
      %2751 = vmatprep.subr.mxu0 0.0
      %2752 = vmatpush1.msra.mxu0 0.0
      %2753 = vmatprep.subr.mxu0 0.0
      %2754 = vmatpush1.msra.mxu0 0.0
      %2755 = vmatprep.subr.mxu0 0.0
      %2756 = vmatpush1.msra.mxu0 0.0
      %2757 = vmatprep.subr.mxu0 0.0
      %2758 = vmatpush1.msra.mxu0 0.0
      %2759 = vmatprep.subr.mxu0 0.0
      %2760 = vmatpush1.msra.mxu0 0.0
      %2761 = vmatprep.subr.mxu0 0.0
      %2762 = vmatpush1.msra.mxu0 0.0
      %2763 = vmatprep.subr.mxu0 0.0
      %2764 = vmatpush1.msra.mxu0 0.0
      %2765 = vmatprep.subr.mxu0 0.0
      %2766 = vmatpush1.msra.mxu0 0.0
      %2767 = vmatprep.subr.mxu0 0.0
      %2768 = vmatpush1.msra.mxu0 0.0
      %2769 = vmatprep.mubr.f32.mxu0 0.0
      %2770 = vmatmul.mubr.f32.gmra.mrb[0].mxu0 %v2113
      %v2771 = vpop.f32.mrb[0].mxu0
      %v2772 = vadd.f32 0.0, %v2771
      %v2773 = vpop.f32.mrb[0].mxu0
      %v2774 = vadd.f32 0.0, %v2773
      %2775 = vmatprep.mubr.f32.mxu0 0.0
      %2776 = vmatmul.mubr.f32.gmra.mrb[0].mxu0 %v2116
      %v2777 = vpop.f32.mrb[0].mxu0
      %v2778 = vadd.f32 0.0, %v2777
      %v2779 = vpop.f32.mrb[0].mxu0
      %v2780 = vadd.f32 0.0, %v2779
      %2781 = vdwg.mxu0
      %v2782 = vadd.f32 %v1410, %v2233
      %v2783 = vadd.f32 %v1412, %v2235
      %v2784 = vadd.f32 %v1487, %v2310
      %v2785 = vadd.f32 %v1489, %v2312
      %v2786 = vadd.f32 %v1564, %v2387
      %v2787 = vadd.f32 %v1566, %v2389
      %v2788 = vadd.f32 %v1641, %v2464
      %v2789 = vadd.f32 %v1643, %v2466
      %v2790 = vadd.f32 %v1718, %v2541
      %v2791 = vadd.f32 %v1720, %v2543
      %v2792 = vadd.f32 %v1795, %v2618
      %v2793 = vadd.f32 %v1797, %v2620
      %v2794 = vadd.f32 %v1872, %v2695
      %v2795 = vadd.f32 %v1874, %v2697
      %v2796 = vadd.f32 %v1949, %v2772
      %v2797 = vadd.f32 %v1951, %v2774
      %v2798 = vadd.f32 %v1416, %v2239
      %v2799 = vadd.f32 %v1418, %v2241
      %v2800 = vadd.f32 %v1493, %v2316
      %v2801 = vadd.f32 %v1495, %v2318
      %v2802 = vadd.f32 %v1570, %v2393
      %v2803 = vadd.f32 %v1572, %v2395
      %v2804 = vadd.f32 %v1647, %v2470
      %v2805 = vadd.f32 %v1649, %v2472
      %v2806 = vadd.f32 %v1724, %v2547
      %v2807 = vadd.f32 %v1726, %v2549
      %v2808 = vadd.f32 %v1801, %v2624
      %v2809 = vadd.f32 %v1803, %v2626
      %v2810 = vadd.f32 %v1878, %v2701
      %v2811 = vadd.f32 %v1880, %v2703
      %v2812 = vadd.f32 %v1955, %v2778
      %v2813 = vadd.f32 %v1957, %v2780
      %2814 = vrot.lane.b32.xlu0 %v279, 1
      %v2815 = vpop.permute.xlu0 %2814
      %2816 = vrot.lane.b32.xlu0 %v295, 1
      %v2817 = vpop.permute.xlu0 %2816
      %2818 = vrot.lane.b32.xlu0 %v280, 1
      %v2819 = vpop.permute.xlu0 %2818
      %2820 = vrot.lane.b32.xlu0 %v296, 1
      %v2821 = vpop.permute.xlu0 %2820
      %2822 = vrot.lane.b32.xlu0 %v281, 1
      %v2823 = vpop.permute.xlu0 %2822
      %2824 = vrot.lane.b32.xlu0 %v297, 1
      %v2825 = vpop.permute.xlu0 %2824
      %2826 = vrot.lane.b32.xlu0 %v282, 1
      %v2827 = vpop.permute.xlu0 %2826
      %2828 = vrot.lane.b32.xlu0 %v298, 1
      %v2829 = vpop.permute.xlu0 %2828
      %2830 = vrot.lane.b32.xlu0 %v283, 1
      %v2831 = vpop.permute.xlu0 %2830
      %2832 = vrot.lane.b32.xlu0 %v299, 1
      %v2833 = vpop.permute.xlu0 %2832
      %2834 = vrot.lane.b32.xlu0 %v284, 1
      %v2835 = vpop.permute.xlu0 %2834
      %2836 = vrot.lane.b32.xlu0 %v300, 1
      %v2837 = vpop.permute.xlu0 %2836
      %2838 = vrot.lane.b32.xlu0 %v285, 1
      %v2839 = vpop.permute.xlu0 %2838
      %2840 = vrot.lane.b32.xlu0 %v301, 1
      %v2841 = vpop.permute.xlu0 %2840
      %2842 = vrot.lane.b32.xlu0 %v286, 1
      %v2843 = vpop.permute.xlu0 %2842
      %2844 = vrot.lane.b32.xlu0 %v302, 1
      %v2845 = vpop.permute.xlu0 %2844
      %vm2846 = vcmp.lt.s32.totalorder %v344, 1
      %v2847 = vsel %vm2846, %v2843, %v2845
      %v2848 = vsel %vm2846, %v2841, %v2843
      %v2849 = vsel %vm2846, %v2839, %v2841
      %v2850 = vsel %vm2846, %v2837, %v2839
      %v2851 = vsel %vm2846, %v2835, %v2837
      %v2852 = vsel %vm2846, %v2833, %v2835
      %v2853 = vsel %vm2846, %v2831, %v2833
      %v2854 = vsel %vm2846, %v2829, %v2831
      %v2855 = vsel %vm2846, %v2827, %v2829
      %v2856 = vsel %vm2846, %v2825, %v2827
      %v2857 = vsel %vm2846, %v2823, %v2825
      %v2858 = vsel %vm2846, %v2821, %v2823
      %v2859 = vsel %vm2846, %v2819, %v2821
      %v2860 = vsel %vm2846, %v2817, %v2819
      %v2861 = vsel %vm2846, %v2815, %v2817
      %v2862 = vsel %vm2846, %v2845, %v2815
      %s2863 = scalar_lea.vmem %s5, 48
      %v2864 = vld [vmem:[%s2863] sm:$0xff]
      %v2865 = vld [vmem:[%s2863 + $0x8] sm:$0xff]
      %v2868 = vlaneseq
      %v2869 = vshrl.u32 %v2868, 7
      %v2870 = vsub.s32 0, %v2869
      %v2871 = vrot.slane %v2864, %v2870
      %v2872 = vlaneseq
      %v2873 = vshrl.u32 %v2872, 7
      %v2874 = vsub.s32 1, %v2873
      %v2875 = vrot.slane %v2864, %v2874
      %v2876 = vlaneseq
      %v2877 = vshrl.u32 %v2876, 7
      %v2878 = vsub.s32 2, %v2877
      %v2879 = vrot.slane %v2864, %v2878
      %v2880 = vlaneseq
      %v2881 = vshrl.u32 %v2880, 7
      %v2882 = vsub.s32 3, %v2881
      %v2883 = vrot.slane %v2864, %v2882
      %v2884 = vlaneseq
      %v2885 = vshrl.u32 %v2884, 7
      %v2886 = vsub.s32 4, %v2885
      %v2887 = vrot.slane %v2864, %v2886
      %v2888 = vlaneseq
      %v2889 = vshrl.u32 %v2888, 7
      %v2890 = vsub.s32 5, %v2889
      %v2891 = vrot.slane %v2864, %v2890
      %v2892 = vlaneseq
      %v2893 = vshrl.u32 %v2892, 7
      %v2894 = vsub.s32 6, %v2893
      %v2895 = vrot.slane %v2864, %v2894
      %v2896 = vlaneseq
      %v2897 = vshrl.u32 %v2896, 7
      %v2898 = vsub.s32 7, %v2897
      %v2899 = vrot.slane %v2864, %v2898
      %v2900 = vlaneseq
      %v2901 = vshrl.u32 %v2900, 7
      %v2902 = vsub.s32 0, %v2901
      %v2903 = vrot.slane %v2865, %v2902
      %v2904 = vlaneseq
      %v2905 = vshrl.u32 %v2904, 7
      %v2906 = vsub.s32 1, %v2905
      %v2907 = vrot.slane %v2865, %v2906
      %v2908 = vlaneseq
      %v2909 = vshrl.u32 %v2908, 7
      %v2910 = vsub.s32 2, %v2909
      %v2911 = vrot.slane %v2865, %v2910
      %v2912 = vlaneseq
      %v2913 = vshrl.u32 %v2912, 7
      %v2914 = vsub.s32 3, %v2913
      %v2915 = vrot.slane %v2865, %v2914
      %v2916 = vlaneseq
      %v2917 = vshrl.u32 %v2916, 7
      %v2918 = vsub.s32 4, %v2917
      %v2919 = vrot.slane %v2865, %v2918
      %v2920 = vlaneseq
      %v2921 = vshrl.u32 %v2920, 7
      %v2922 = vsub.s32 5, %v2921
      %v2923 = vrot.slane %v2865, %v2922
      %v2924 = vlaneseq
      %v2925 = vshrl.u32 %v2924, 7
      %v2926 = vsub.s32 6, %v2925
      %v2927 = vrot.slane %v2865, %v2926
      %v2928 = vlaneseq
      %v2929 = vshrl.u32 %v2928, 7
      %v2930 = vsub.s32 7, %v2929
      %v2931 = vrot.slane %v2865, %v2930
      %v2948 = vmul.f32 %v2862, %v2871
      %v2949 = vmul.f32 %v2861, %v2875
      %v2950 = vmul.f32 %v2860, %v2879
      %v2951 = vmul.f32 %v2859, %v2883
      %v2952 = vmul.f32 %v2858, %v2887
      %v2953 = vmul.f32 %v2857, %v2891
      %v2954 = vmul.f32 %v2856, %v2895
      %v2955 = vmul.f32 %v2855, %v2899
      %v2956 = vmul.f32 %v2854, %v2903
      %v2957 = vmul.f32 %v2853, %v2907
      %v2958 = vmul.f32 %v2852, %v2911
      %v2959 = vmul.f32 %v2851, %v2915
      %v2960 = vmul.f32 %v2850, %v2919
      %v2961 = vmul.f32 %v2849, %v2923
      %v2962 = vmul.f32 %v2848, %v2927
      %v2963 = vmul.f32 %v2847, %v2931
      %s2964 = scalar_lea.vmem %s1, 48
      %v2965 = vld [vmem:[%s2964] sm:$0xff]
      %v2966 = vld [vmem:[%s2964 + $0x8] sm:$0x1]
      %v2968 = vsel %vm617, %v2965, 0
      %v2971 = vsel %vm617, %v2966, 0
      %v2974 = vsel %vm624, %v2948, 0
      %v2977 = vsel %vm624, %v2949, 0
      %v2980 = vsel %vm624, %v2950, 0
      %v2983 = vsel %vm624, %v2951, 0
      %v2986 = vsel %vm624, %v2952, 0
      %v2989 = vsel %vm624, %v2953, 0
      %v2992 = vsel %vm624, %v2954, 0
      %v2995 = vsel %vm624, %v2955, 0
      %v2998 = vsel %vm624, %v2956, 0
      %v3001 = vsel %vm624, %v2957, 0
      %v3004 = vsel %vm624, %v2958, 0
      %v3007 = vsel %vm624, %v2959, 0
      %v3010 = vsel %vm624, %v2960, 0
      %v3013 = vsel %vm624, %v2961, 0
      %v3016 = vsel %vm624, %v2962, 0
      %v3019 = vsel %vm624, %v2963, 0
      %3021 = vmatprep.subr.mxu0 %v2977
      %3022 = vmatpush1.msra.mxu0 %v2974
      %3023 = vmatprep.subr.mxu0 0.0
      %3024 = vmatpush1.msra.mxu0 0.0
      %3025 = vmatprep.subr.mxu0 0.0
      %3026 = vmatpush1.msra.mxu0 0.0
      %3027 = vmatprep.subr.mxu0 0.0
      %3028 = vmatpush1.msra.mxu0 0.0
      %3029 = vmatprep.subr.mxu0 0.0
      %3030 = vmatpush1.msra.mxu0 0.0
      %3031 = vmatprep.subr.mxu0 0.0
      %3032 = vmatpush1.msra.mxu0 0.0
      %3033 = vmatprep.subr.mxu0 0.0
      %3034 = vmatpush1.msra.mxu0 0.0
      %3035 = vmatprep.subr.mxu0 0.0
      %3036 = vmatpush1.msra.mxu0 0.0
      %3037 = vmatprep.subr.mxu0 0.0
      %3038 = vmatpush1.msra.mxu0 0.0
      %3039 = vmatprep.subr.mxu0 0.0
      %3040 = vmatpush1.msra.mxu0 0.0
      %3041 = vmatprep.subr.mxu0 0.0
      %3042 = vmatpush1.msra.mxu0 0.0
      %3043 = vmatprep.subr.mxu0 0.0
      %3044 = vmatpush1.msra.mxu0 0.0
      %3045 = vmatprep.subr.mxu0 0.0
      %3046 = vmatpush1.msra.mxu0 0.0
      %3047 = vmatprep.subr.mxu0 0.0
      %3048 = vmatpush1.msra.mxu0 0.0
      %3049 = vmatprep.subr.mxu0 0.0
      %3050 = vmatpush1.msra.mxu0 0.0
      %3051 = vmatprep.subr.mxu0 0.0
      %3052 = vmatpush1.msra.mxu0 0.0
      %3053 = vmatprep.subr.mxu0 0.0
      %3054 = vmatpush1.msra.mxu0 0.0
      %3055 = vmatprep.subr.mxu0 0.0
      %3056 = vmatpush1.msra.mxu0 0.0
      %3057 = vmatprep.subr.mxu0 0.0
      %3058 = vmatpush1.msra.mxu0 0.0
      %3059 = vmatprep.subr.mxu0 0.0
      %3060 = vmatpush1.msra.mxu0 0.0
      %3061 = vmatprep.subr.mxu0 0.0
      %3062 = vmatpush1.msra.mxu0 0.0
      %3063 = vmatprep.subr.mxu0 0.0
      %3064 = vmatpush1.msra.mxu0 0.0
      %3065 = vmatprep.subr.mxu0 0.0
      %3066 = vmatpush1.msra.mxu0 0.0
      %3067 = vmatprep.subr.mxu0 0.0
      %3068 = vmatpush1.msra.mxu0 0.0
      %3069 = vmatprep.subr.mxu0 0.0
      %3070 = vmatpush1.msra.mxu0 0.0
      %3071 = vmatprep.subr.mxu0 0.0
      %3072 = vmatpush1.msra.mxu0 0.0
      %3073 = vmatprep.subr.mxu0 0.0
      %3074 = vmatpush1.msra.mxu0 0.0
      %3075 = vmatprep.subr.mxu0 0.0
      %3076 = vmatpush1.msra.mxu0 0.0
      %3077 = vmatprep.subr.mxu0 0.0
      %3078 = vmatpush1.msra.mxu0 0.0
      %3079 = vmatprep.subr.mxu0 0.0
      %3080 = vmatpush1.msra.mxu0 0.0
      %3081 = vmatprep.subr.mxu0 0.0
      %3082 = vmatpush1.msra.mxu0 0.0
      %3083 = vmatprep.subr.mxu0 0.0
      %3084 = vmatpush1.msra.mxu0 0.0
      %3085 = vmatprep.mubr.f32.mxu0 0.0
      %3086 = vmatmul.mubr.f32.gmra.mrb[0].mxu0 %v2968
      %v3087 = vpop.f32.mrb[0].mxu0
      %v3088 = vadd.f32 0.0, %v3087
      %v3089 = vpop.f32.mrb[0].mxu0
      %v3090 = vadd.f32 0.0, %v3089
      %3091 = vmatprep.mubr.f32.mxu0 0.0
      %3092 = vmatmul.mubr.f32.gmra.mrb[0].mxu0 %v2971
      %v3093 = vpop.f32.mrb[0].mxu0
      %v3094 = vadd.f32 0.0, %v3093
      %v3095 = vpop.f32.mrb[0].mxu0
      %v3096 = vadd.f32 0.0, %v3095
      %3097 = vdwg.mxu0
      %3098 = vmatprep.subr.mxu0 %v2983
      %3099 = vmatpush1.msra.mxu0 %v2980
      %3100 = vmatprep.subr.mxu0 0.0
      %3101 = vmatpush1.msra.mxu0 0.0
      %3102 = vmatprep.subr.mxu0 0.0
      %3103 = vmatpush1.msra.mxu0 0.0
      %3104 = vmatprep.subr.mxu0 0.0
      %3105 = vmatpush1.msra.mxu0 0.0
      %3106 = vmatprep.subr.mxu0 0.0
      %3107 = vmatpush1.msra.mxu0 0.0
      %3108 = vmatprep.subr.mxu0 0.0
      %3109 = vmatpush1.msra.mxu0 0.0
      %3110 = vmatprep.subr.mxu0 0.0
      %3111 = vmatpush1.msra.mxu0 0.0
      %3112 = vmatprep.subr.mxu0 0.0
      %3113 = vmatpush1.msra.mxu0 0.0
      %3114 = vmatprep.subr.mxu0 0.0
      %3115 = vmatpush1.msra.mxu0 0.0
      %3116 = vmatprep.subr.mxu0 0.0
      %3117 = vmatpush1.msra.mxu0 0.0
      %3118 = vmatprep.subr.mxu0 0.0
      %3119 = vmatpush1.msra.mxu0 0.0
      %3120 = vmatprep.subr.mxu0 0.0
      %3121 = vmatpush1.msra.mxu0 0.0
      %3122 = vmatprep.subr.mxu0 0.0
      %3123 = vmatpush1.msra.mxu0 0.0
      %3124 = vmatprep.subr.mxu0 0.0
      %3125 = vmatpush1.msra.mxu0 0.0
      %3126 = vmatprep.subr.mxu0 0.0
      %3127 = vmatpush1.msra.mxu0 0.0
      %3128 = vmatprep.subr.mxu0 0.0
      %3129 = vmatpush1.msra.mxu0 0.0
      %3130 = vmatprep.subr.mxu0 0.0
      %3131 = vmatpush1.msra.mxu0 0.0
      %3132 = vmatprep.subr.mxu0 0.0
      %3133 = vmatpush1.msra.mxu0 0.0
      %3134 = vmatprep.subr.mxu0 0.0
      %3135 = vmatpush1.msra.mxu0 0.0
      %3136 = vmatprep.subr.mxu0 0.0
      %3137 = vmatpush1.msra.mxu0 0.0
      %3138 = vmatprep.subr.mxu0 0.0
      %3139 = vmatpush1.msra.mxu0 0.0
      %3140 = vmatprep.subr.mxu0 0.0
      %3141 = vmatpush1.msra.mxu0 0.0
      %3142 = vmatprep.subr.mxu0 0.0
      %3143 = vmatpush1.msra.mxu0 0.0
      %3144 = vmatprep.subr.mxu0 0.0
      %3145 = vmatpush1.msra.mxu0 0.0
      %3146 = vmatprep.subr.mxu0 0.0
      %3147 = vmatpush1.msra.mxu0 0.0
      %3148 = vmatprep.subr.mxu0 0.0
      %3149 = vmatpush1.msra.mxu0 0.0
      %3150 = vmatprep.subr.mxu0 0.0
      %3151 = vmatpush1.msra.mxu0 0.0
      %3152 = vmatprep.subr.mxu0 0.0
      %3153 = vmatpush1.msra.mxu0 0.0
      %3154 = vmatprep.subr.mxu0 0.0
      %3155 = vmatpush1.msra.mxu0 0.0
      %3156 = vmatprep.subr.mxu0 0.0
      %3157 = vmatpush1.msra.mxu0 0.0
      %3158 = vmatprep.subr.mxu0 0.0
      %3159 = vmatpush1.msra.mxu0 0.0
      %3160 = vmatprep.subr.mxu0 0.0
      %3161 = vmatpush1.msra.mxu0 0.0
      %3162 = vmatprep.mubr.f32.mxu0 0.0
      %3163 = vmatmul.mubr.f32.gmra.mrb[0].mxu0 %v2968
      %v3164 = vpop.f32.mrb[0].mxu0
      %v3165 = vadd.f32 0.0, %v3164
      %v3166 = vpop.f32.mrb[0].mxu0
      %v3167 = vadd.f32 0.0, %v3166
      %3168 = vmatprep.mubr.f32.mxu0 0.0
      %3169 = vmatmul.mubr.f32.gmra.mrb[0].mxu0 %v2971
      %v3170 = vpop.f32.mrb[0].mxu0
      %v3171 = vadd.f32 0.0, %v3170
      %v3172 = vpop.f32.mrb[0].mxu0
      %v3173 = vadd.f32 0.0, %v3172
      %3174 = vdwg.mxu0
      %3175 = vmatprep.subr.mxu0 %v2989
      %3176 = vmatpush1.msra.mxu0 %v2986
      %3177 = vmatprep.subr.mxu0 0.0
      %3178 = vmatpush1.msra.mxu0 0.0
      %3179 = vmatprep.subr.mxu0 0.0
      %3180 = vmatpush1.msra.mxu0 0.0
      %3181 = vmatprep.subr.mxu0 0.0
      %3182 = vmatpush1.msra.mxu0 0.0
      %3183 = vmatprep.subr.mxu0 0.0
      %3184 = vmatpush1.msra.mxu0 0.0
      %3185 = vmatprep.subr.mxu0 0.0
      %3186 = vmatpush1.msra.mxu0 0.0
      %3187 = vmatprep.subr.mxu0 0.0
      %3188 = vmatpush1.msra.mxu0 0.0
      %3189 = vmatprep.subr.mxu0 0.0
      %3190 = vmatpush1.msra.mxu0 0.0
      %3191 = vmatprep.subr.mxu0 0.0
      %3192 = vmatpush1.msra.mxu0 0.0
      %3193 = vmatprep.subr.mxu0 0.0
      %3194 = vmatpush1.msra.mxu0 0.0
      %3195 = vmatprep.subr.mxu0 0.0
      %3196 = vmatpush1.msra.mxu0 0.0
      %3197 = vmatprep.subr.mxu0 0.0
      %3198 = vmatpush1.msra.mxu0 0.0
      %3199 = vmatprep.subr.mxu0 0.0
      %3200 = vmatpush1.msra.mxu0 0.0
      %3201 = vmatprep.subr.mxu0 0.0
      %3202 = vmatpush1.msra.mxu0 0.0
      %3203 = vmatprep.subr.mxu0 0.0
      %3204 = vmatpush1.msra.mxu0 0.0
      %3205 = vmatprep.subr.mxu0 0.0
      %3206 = vmatpush1.msra.mxu0 0.0
      %3207 = vmatprep.subr.mxu0 0.0
      %3208 = vmatpush1.msra.mxu0 0.0
      %3209 = vmatprep.subr.mxu0 0.0
      %3210 = vmatpush1.msra.mxu0 0.0
      %3211 = vmatprep.subr.mxu0 0.0
      %3212 = vmatpush1.msra.mxu0 0.0
      %3213 = vmatprep.subr.mxu0 0.0
      %3214 = vmatpush1.msra.mxu0 0.0
      %3215 = vmatprep.subr.mxu0 0.0
      %3216 = vmatpush1.msra.mxu0 0.0
      %3217 = vmatprep.subr.mxu0 0.0
      %3218 = vmatpush1.msra.mxu0 0.0
      %3219 = vmatprep.subr.mxu0 0.0
      %3220 = vmatpush1.msra.mxu0 0.0
      %3221 = vmatprep.subr.mxu0 0.0
      %3222 = vmatpush1.msra.mxu0 0.0
      %3223 = vmatprep.subr.mxu0 0.0
      %3224 = vmatpush1.msra.mxu0 0.0
      %3225 = vmatprep.subr.mxu0 0.0
      %3226 = vmatpush1.msra.mxu0 0.0
      %3227 = vmatprep.subr.mxu0 0.0
      %3228 = vmatpush1.msra.mxu0 0.0
      %3229 = vmatprep.subr.mxu0 0.0
      %3230 = vmatpush1.msra.mxu0 0.0
      %3231 = vmatprep.subr.mxu0 0.0
      %3232 = vmatpush1.msra.mxu0 0.0
      %3233 = vmatprep.subr.mxu0 0.0
      %3234 = vmatpush1.msra.mxu0 0.0
      %3235 = vmatprep.subr.mxu0 0.0
      %3236 = vmatpush1.msra.mxu0 0.0
      %3237 = vmatprep.subr.mxu0 0.0
      %3238 = vmatpush1.msra.mxu0 0.0
      %3239 = vmatprep.mubr.f32.mxu0 0.0
      %3240 = vmatmul.mubr.f32.gmra.mrb[0].mxu0 %v2968
      %v3241 = vpop.f32.mrb[0].mxu0
      %v3242 = vadd.f32 0.0, %v3241
      %v3243 = vpop.f32.mrb[0].mxu0
      %v3244 = vadd.f32 0.0, %v3243
      %3245 = vmatprep.mubr.f32.mxu0 0.0
      %3246 = vmatmul.mubr.f32.gmra.mrb[0].mxu0 %v2971
      %v3247 = vpop.f32.mrb[0].mxu0
      %v3248 = vadd.f32 0.0, %v3247
      %v3249 = vpop.f32.mrb[0].mxu0
      %v3250 = vadd.f32 0.0, %v3249
      %3251 = vdwg.mxu0
      %3252 = vmatprep.subr.mxu0 %v2995
      %3253 = vmatpush1.msra.mxu0 %v2992
      %3254 = vmatprep.subr.mxu0 0.0
      %3255 = vmatpush1.msra.mxu0 0.0
      %3256 = vmatprep.subr.mxu0 0.0
      %3257 = vmatpush1.msra.mxu0 0.0
      %3258 = vmatprep.subr.mxu0 0.0
      %3259 = vmatpush1.msra.mxu0 0.0
      %3260 = vmatprep.subr.mxu0 0.0
      %3261 = vmatpush1.msra.mxu0 0.0
      %3262 = vmatprep.subr.mxu0 0.0
      %3263 = vmatpush1.msra.mxu0 0.0
      %3264 = vmatprep.subr.mxu0 0.0
      %3265 = vmatpush1.msra.mxu0 0.0
      %3266 = vmatprep.subr.mxu0 0.0
      %3267 = vmatpush1.msra.mxu0 0.0
      %3268 = vmatprep.subr.mxu0 0.0
      %3269 = vmatpush1.msra.mxu0 0.0
      %3270 = vmatprep.subr.mxu0 0.0
      %3271 = vmatpush1.msra.mxu0 0.0
      %3272 = vmatprep.subr.mxu0 0.0
      %3273 = vmatpush1.msra.mxu0 0.0
      %3274 = vmatprep.subr.mxu0 0.0
      %3275 = vmatpush1.msra.mxu0 0.0
      %3276 = vmatprep.subr.mxu0 0.0
      %3277 = vmatpush1.msra.mxu0 0.0
      %3278 = vmatprep.subr.mxu0 0.0
      %3279 = vmatpush1.msra.mxu0 0.0
      %3280 = vmatprep.subr.mxu0 0.0
      %3281 = vmatpush1.msra.mxu0 0.0
      %3282 = vmatprep.subr.mxu0 0.0
      %3283 = vmatpush1.msra.mxu0 0.0
      %3284 = vmatprep.subr.mxu0 0.0
      %3285 = vmatpush1.msra.mxu0 0.0
      %3286 = vmatprep.subr.mxu0 0.0
      %3287 = vmatpush1.msra.mxu0 0.0
      %3288 = vmatprep.subr.mxu0 0.0
      %3289 = vmatpush1.msra.mxu0 0.0
      %3290 = vmatprep.subr.mxu0 0.0
      %3291 = vmatpush1.msra.mxu0 0.0
      %3292 = vmatprep.subr.mxu0 0.0
      %3293 = vmatpush1.msra.mxu0 0.0
      %3294 = vmatprep.subr.mxu0 0.0
      %3295 = vmatpush1.msra.mxu0 0.0
      %3296 = vmatprep.subr.mxu0 0.0
      %3297 = vmatpush1.msra.mxu0 0.0
      %3298 = vmatprep.subr.mxu0 0.0
      %3299 = vmatpush1.msra.mxu0 0.0
      %3300 = vmatprep.subr.mxu0 0.0
      %3301 = vmatpush1.msra.mxu0 0.0
      %3302 = vmatprep.subr.mxu0 0.0
      %3303 = vmatpush1.msra.mxu0 0.0
      %3304 = vmatprep.subr.mxu0 0.0
      %3305 = vmatpush1.msra.mxu0 0.0
      %3306 = vmatprep.subr.mxu0 0.0
      %3307 = vmatpush1.msra.mxu0 0.0
      %3308 = vmatprep.subr.mxu0 0.0
      %3309 = vmatpush1.msra.mxu0 0.0
      %3310 = vmatprep.subr.mxu0 0.0
      %3311 = vmatpush1.msra.mxu0 0.0
      %3312 = vmatprep.subr.mxu0 0.0
      %3313 = vmatpush1.msra.mxu0 0.0
      %3314 = vmatprep.subr.mxu0 0.0
      %3315 = vmatpush1.msra.mxu0 0.0
      %3316 = vmatprep.mubr.f32.mxu0 0.0
      %3317 = vmatmul.mubr.f32.gmra.mrb[0].mxu0 %v2968
      %v3318 = vpop.f32.mrb[0].mxu0
      %v3319 = vadd.f32 0.0, %v3318
      %v3320 = vpop.f32.mrb[0].mxu0
      %v3321 = vadd.f32 0.0, %v3320
      %3322 = vmatprep.mubr.f32.mxu0 0.0
      %3323 = vmatmul.mubr.f32.gmra.mrb[0].mxu0 %v2971
      %v3324 = vpop.f32.mrb[0].mxu0
      %v3325 = vadd.f32 0.0, %v3324
      %v3326 = vpop.f32.mrb[0].mxu0
      %v3327 = vadd.f32 0.0, %v3326
      %3328 = vdwg.mxu0
      %3329 = vmatprep.subr.mxu0 %v3001
      %3330 = vmatpush1.msra.mxu0 %v2998
      %3331 = vmatprep.subr.mxu0 0.0
      %3332 = vmatpush1.msra.mxu0 0.0
      %3333 = vmatprep.subr.mxu0 0.0
      %3334 = vmatpush1.msra.mxu0 0.0
      %3335 = vmatprep.subr.mxu0 0.0
      %3336 = vmatpush1.msra.mxu0 0.0
      %3337 = vmatprep.subr.mxu0 0.0
      %3338 = vmatpush1.msra.mxu0 0.0
      %3339 = vmatprep.subr.mxu0 0.0
      %3340 = vmatpush1.msra.mxu0 0.0
      %3341 = vmatprep.subr.mxu0 0.0
      %3342 = vmatpush1.msra.mxu0 0.0
      %3343 = vmatprep.subr.mxu0 0.0
      %3344 = vmatpush1.msra.mxu0 0.0
      %3345 = vmatprep.subr.mxu0 0.0
      %3346 = vmatpush1.msra.mxu0 0.0
      %3347 = vmatprep.subr.mxu0 0.0
      %3348 = vmatpush1.msra.mxu0 0.0
      %3349 = vmatprep.subr.mxu0 0.0
      %3350 = vmatpush1.msra.mxu0 0.0
      %3351 = vmatprep.subr.mxu0 0.0
      %3352 = vmatpush1.msra.mxu0 0.0
      %3353 = vmatprep.subr.mxu0 0.0
      %3354 = vmatpush1.msra.mxu0 0.0
      %3355 = vmatprep.subr.mxu0 0.0
      %3356 = vmatpush1.msra.mxu0 0.0
      %3357 = vmatprep.subr.mxu0 0.0
      %3358 = vmatpush1.msra.mxu0 0.0
      %3359 = vmatprep.subr.mxu0 0.0
      %3360 = vmatpush1.msra.mxu0 0.0
      %3361 = vmatprep.subr.mxu0 0.0
      %3362 = vmatpush1.msra.mxu0 0.0
      %3363 = vmatprep.subr.mxu0 0.0
      %3364 = vmatpush1.msra.mxu0 0.0
      %3365 = vmatprep.subr.mxu0 0.0
      %3366 = vmatpush1.msra.mxu0 0.0
      %3367 = vmatprep.subr.mxu0 0.0
      %3368 = vmatpush1.msra.mxu0 0.0
      %3369 = vmatprep.subr.mxu0 0.0
      %3370 = vmatpush1.msra.mxu0 0.0
      %3371 = vmatprep.subr.mxu0 0.0
      %3372 = vmatpush1.msra.mxu0 0.0
      %3373 = vmatprep.subr.mxu0 0.0
      %3374 = vmatpush1.msra.mxu0 0.0
      %3375 = vmatprep.subr.mxu0 0.0
      %3376 = vmatpush1.msra.mxu0 0.0
      %3377 = vmatprep.subr.mxu0 0.0
      %3378 = vmatpush1.msra.mxu0 0.0
      %3379 = vmatprep.subr.mxu0 0.0
      %3380 = vmatpush1.msra.mxu0 0.0
      %3381 = vmatprep.subr.mxu0 0.0
      %3382 = vmatpush1.msra.mxu0 0.0
      %3383 = vmatprep.subr.mxu0 0.0
      %3384 = vmatpush1.msra.mxu0 0.0
      %3385 = vmatprep.subr.mxu0 0.0
      %3386 = vmatpush1.msra.mxu0 0.0
      %3387 = vmatprep.subr.mxu0 0.0
      %3388 = vmatpush1.msra.mxu0 0.0
      %3389 = vmatprep.subr.mxu0 0.0
      %3390 = vmatpush1.msra.mxu0 0.0
      %3391 = vmatprep.subr.mxu0 0.0
      %3392 = vmatpush1.msra.mxu0 0.0
      %3393 = vmatprep.mubr.f32.mxu0 0.0
      %3394 = vmatmul.mubr.f32.gmra.mrb[0].mxu0 %v2968
      %v3395 = vpop.f32.mrb[0].mxu0
      %v3396 = vadd.f32 0.0, %v3395
      %v3397 = vpop.f32.mrb[0].mxu0
      %v3398 = vadd.f32 0.0, %v3397
      %3399 = vmatprep.mubr.f32.mxu0 0.0
      %3400 = vmatmul.mubr.f32.gmra.mrb[0].mxu0 %v2971
      %v3401 = vpop.f32.mrb[0].mxu0
      %v3402 = vadd.f32 0.0, %v3401
      %v3403 = vpop.f32.mrb[0].mxu0
      %v3404 = vadd.f32 0.0, %v3403
      %3405 = vdwg.mxu0
      %3406 = vmatprep.subr.mxu0 %v3007
      %3407 = vmatpush1.msra.mxu0 %v3004
      %3408 = vmatprep.subr.mxu0 0.0
      %3409 = vmatpush1.msra.mxu0 0.0
      %3410 = vmatprep.subr.mxu0 0.0
      %3411 = vmatpush1.msra.mxu0 0.0
      %3412 = vmatprep.subr.mxu0 0.0
      %3413 = vmatpush1.msra.mxu0 0.0
      %3414 = vmatprep.subr.mxu0 0.0
      %3415 = vmatpush1.msra.mxu0 0.0
      %3416 = vmatprep.subr.mxu0 0.0
      %3417 = vmatpush1.msra.mxu0 0.0
      %3418 = vmatprep.subr.mxu0 0.0
      %3419 = vmatpush1.msra.mxu0 0.0
      %3420 = vmatprep.subr.mxu0 0.0
      %3421 = vmatpush1.msra.mxu0 0.0
      %3422 = vmatprep.subr.mxu0 0.0
      %3423 = vmatpush1.msra.mxu0 0.0
      %3424 = vmatprep.subr.mxu0 0.0
      %3425 = vmatpush1.msra.mxu0 0.0
      %3426 = vmatprep.subr.mxu0 0.0
      %3427 = vmatpush1.msra.mxu0 0.0
      %3428 = vmatprep.subr.mxu0 0.0
      %3429 = vmatpush1.msra.mxu0 0.0
      %3430 = vmatprep.subr.mxu0 0.0
      %3431 = vmatpush1.msra.mxu0 0.0
      %3432 = vmatprep.subr.mxu0 0.0
      %3433 = vmatpush1.msra.mxu0 0.0
      %3434 = vmatprep.subr.mxu0 0.0
      %3435 = vmatpush1.msra.mxu0 0.0
      %3436 = vmatprep.subr.mxu0 0.0
      %3437 = vmatpush1.msra.mxu0 0.0
      %3438 = vmatprep.subr.mxu0 0.0
      %3439 = vmatpush1.msra.mxu0 0.0
      %3440 = vmatprep.subr.mxu0 0.0
      %3441 = vmatpush1.msra.mxu0 0.0
      %3442 = vmatprep.subr.mxu0 0.0
      %3443 = vmatpush1.msra.mxu0 0.0
      %3444 = vmatprep.subr.mxu0 0.0
      %3445 = vmatpush1.msra.mxu0 0.0
      %3446 = vmatprep.subr.mxu0 0.0
      %3447 = vmatpush1.msra.mxu0 0.0
      %3448 = vmatprep.subr.mxu0 0.0
      %3449 = vmatpush1.msra.mxu0 0.0
      %3450 = vmatprep.subr.mxu0 0.0
      %3451 = vmatpush1.msra.mxu0 0.0
      %3452 = vmatprep.subr.mxu0 0.0
      %3453 = vmatpush1.msra.mxu0 0.0
      %3454 = vmatprep.subr.mxu0 0.0
      %3455 = vmatpush1.msra.mxu0 0.0
      %3456 = vmatprep.subr.mxu0 0.0
      %3457 = vmatpush1.msra.mxu0 0.0
      %3458 = vmatprep.subr.mxu0 0.0
      %3459 = vmatpush1.msra.mxu0 0.0
      %3460 = vmatprep.subr.mxu0 0.0
      %3461 = vmatpush1.msra.mxu0 0.0
      %3462 = vmatprep.subr.mxu0 0.0
      %3463 = vmatpush1.msra.mxu0 0.0
      %3464 = vmatprep.subr.mxu0 0.0
      %3465 = vmatpush1.msra.mxu0 0.0
      %3466 = vmatprep.subr.mxu0 0.0
      %3467 = vmatpush1.msra.mxu0 0.0
      %3468 = vmatprep.subr.mxu0 0.0
      %3469 = vmatpush1.msra.mxu0 0.0
      %3470 = vmatprep.mubr.f32.mxu0 0.0
      %3471 = vmatmul.mubr.f32.gmra.mrb[0].mxu0 %v2968
      %v3472 = vpop.f32.mrb[0].mxu0
      %v3473 = vadd.f32 0.0, %v3472
      %v3474 = vpop.f32.mrb[0].mxu0
      %v3475 = vadd.f32 0.0, %v3474
      %3476 = vmatprep.mubr.f32.mxu0 0.0
      %3477 = vmatmul.mubr.f32.gmra.mrb[0].mxu0 %v2971
      %v3478 = vpop.f32.mrb[0].mxu0
      %v3479 = vadd.f32 0.0, %v3478
      %v3480 = vpop.f32.mrb[0].mxu0
      %v3481 = vadd.f32 0.0, %v3480
      %3482 = vdwg.mxu0
      %3483 = vmatprep.subr.mxu0 %v3013
      %3484 = vmatpush1.msra.mxu0 %v3010
      %3485 = vmatprep.subr.mxu0 0.0
      %3486 = vmatpush1.msra.mxu0 0.0
      %3487 = vmatprep.subr.mxu0 0.0
      %3488 = vmatpush1.msra.mxu0 0.0
      %3489 = vmatprep.subr.mxu0 0.0
      %3490 = vmatpush1.msra.mxu0 0.0
      %3491 = vmatprep.subr.mxu0 0.0
      %3492 = vmatpush1.msra.mxu0 0.0
      %3493 = vmatprep.subr.mxu0 0.0
      %3494 = vmatpush1.msra.mxu0 0.0
      %3495 = vmatprep.subr.mxu0 0.0
      %3496 = vmatpush1.msra.mxu0 0.0
      %3497 = vmatprep.subr.mxu0 0.0
      %3498 = vmatpush1.msra.mxu0 0.0
      %3499 = vmatprep.subr.mxu0 0.0
      %3500 = vmatpush1.msra.mxu0 0.0
      %3501 = vmatprep.subr.mxu0 0.0
      %3502 = vmatpush1.msra.mxu0 0.0
      %3503 = vmatprep.subr.mxu0 0.0
      %3504 = vmatpush1.msra.mxu0 0.0
      %3505 = vmatprep.subr.mxu0 0.0
      %3506 = vmatpush1.msra.mxu0 0.0
      %3507 = vmatprep.subr.mxu0 0.0
      %3508 = vmatpush1.msra.mxu0 0.0
      %3509 = vmatprep.subr.mxu0 0.0
      %3510 = vmatpush1.msra.mxu0 0.0
      %3511 = vmatprep.subr.mxu0 0.0
      %3512 = vmatpush1.msra.mxu0 0.0
      %3513 = vmatprep.subr.mxu0 0.0
      %3514 = vmatpush1.msra.mxu0 0.0
      %3515 = vmatprep.subr.mxu0 0.0
      %3516 = vmatpush1.msra.mxu0 0.0
      %3517 = vmatprep.subr.mxu0 0.0
      %3518 = vmatpush1.msra.mxu0 0.0
      %3519 = vmatprep.subr.mxu0 0.0
      %3520 = vmatpush1.msra.mxu0 0.0
      %3521 = vmatprep.subr.mxu0 0.0
      %3522 = vmatpush1.msra.mxu0 0.0
      %3523 = vmatprep.subr.mxu0 0.0
      %3524 = vmatpush1.msra.mxu0 0.0
      %3525 = vmatprep.subr.mxu0 0.0
      %3526 = vmatpush1.msra.mxu0 0.0
      %3527 = vmatprep.subr.mxu0 0.0
      %3528 = vmatpush1.msra.mxu0 0.0
      %3529 = vmatprep.subr.mxu0 0.0
      %3530 = vmatpush1.msra.mxu0 0.0
      %3531 = vmatprep.subr.mxu0 0.0
      %3532 = vmatpush1.msra.mxu0 0.0
      %3533 = vmatprep.subr.mxu0 0.0
      %3534 = vmatpush1.msra.mxu0 0.0
      %3535 = vmatprep.subr.mxu0 0.0
      %3536 = vmatpush1.msra.mxu0 0.0
      %3537 = vmatprep.subr.mxu0 0.0
      %3538 = vmatpush1.msra.mxu0 0.0
      %3539 = vmatprep.subr.mxu0 0.0
      %3540 = vmatpush1.msra.mxu0 0.0
      %3541 = vmatprep.subr.mxu0 0.0
      %3542 = vmatpush1.msra.mxu0 0.0
      %3543 = vmatprep.subr.mxu0 0.0
      %3544 = vmatpush1.msra.mxu0 0.0
      %3545 = vmatprep.subr.mxu0 0.0
      %3546 = vmatpush1.msra.mxu0 0.0
      %3547 = vmatprep.mubr.f32.mxu0 0.0
      %3548 = vmatmul.mubr.f32.gmra.mrb[0].mxu0 %v2968
      %v3549 = vpop.f32.mrb[0].mxu0
      %v3550 = vadd.f32 0.0, %v3549
      %v3551 = vpop.f32.mrb[0].mxu0
      %v3552 = vadd.f32 0.0, %v3551
      %3553 = vmatprep.mubr.f32.mxu0 0.0
      %3554 = vmatmul.mubr.f32.gmra.mrb[0].mxu0 %v2971
      %v3555 = vpop.f32.mrb[0].mxu0
      %v3556 = vadd.f32 0.0, %v3555
      %v3557 = vpop.f32.mrb[0].mxu0
      %v3558 = vadd.f32 0.0, %v3557
      %3559 = vdwg.mxu0
      %3560 = vmatprep.subr.mxu0 %v3019
      %3561 = vmatpush1.msra.mxu0 %v3016
      %3562 = vmatprep.subr.mxu0 0.0
      %3563 = vmatpush1.msra.mxu0 0.0
      %3564 = vmatprep.subr.mxu0 0.0
      %3565 = vmatpush1.msra.mxu0 0.0
      %3566 = vmatprep.subr.mxu0 0.0
      %3567 = vmatpush1.msra.mxu0 0.0
      %3568 = vmatprep.subr.mxu0 0.0
      %3569 = vmatpush1.msra.mxu0 0.0
      %3570 = vmatprep.subr.mxu0 0.0
      %3571 = vmatpush1.msra.mxu0 0.0
      %3572 = vmatprep.subr.mxu0 0.0
      %3573 = vmatpush1.msra.mxu0 0.0
      %3574 = vmatprep.subr.mxu0 0.0
      %3575 = vmatpush1.msra.mxu0 0.0
      %3576 = vmatprep.subr.mxu0 0.0
      %3577 = vmatpush1.msra.mxu0 0.0
      %3578 = vmatprep.subr.mxu0 0.0
      %3579 = vmatpush1.msra.mxu0 0.0
      %3580 = vmatprep.subr.mxu0 0.0
      %3581 = vmatpush1.msra.mxu0 0.0
      %3582 = vmatprep.subr.mxu0 0.0
      %3583 = vmatpush1.msra.mxu0 0.0
      %3584 = vmatprep.subr.mxu0 0.0
      %3585 = vmatpush1.msra.mxu0 0.0
      %3586 = vmatprep.subr.mxu0 0.0
      %3587 = vmatpush1.msra.mxu0 0.0
      %3588 = vmatprep.subr.mxu0 0.0
      %3589 = vmatpush1.msra.mxu0 0.0
      %3590 = vmatprep.subr.mxu0 0.0
      %3591 = vmatpush1.msra.mxu0 0.0
      %3592 = vmatprep.subr.mxu0 0.0
      %3593 = vmatpush1.msra.mxu0 0.0
      %3594 = vmatprep.subr.mxu0 0.0
      %3595 = vmatpush1.msra.mxu0 0.0
      %3596 = vmatprep.subr.mxu0 0.0
      %3597 = vmatpush1.msra.mxu0 0.0
      %3598 = vmatprep.subr.mxu0 0.0
      %3599 = vmatpush1.msra.mxu0 0.0
      %3600 = vmatprep.subr.mxu0 0.0
      %3601 = vmatpush1.msra.mxu0 0.0
      %3602 = vmatprep.subr.mxu0 0.0
      %3603 = vmatpush1.msra.mxu0 0.0
      %3604 = vmatprep.subr.mxu0 0.0
      %3605 = vmatpush1.msra.mxu0 0.0
      %3606 = vmatprep.subr.mxu0 0.0
      %3607 = vmatpush1.msra.mxu0 0.0
      %3608 = vmatprep.subr.mxu0 0.0
      %3609 = vmatpush1.msra.mxu0 0.0
      %3610 = vmatprep.subr.mxu0 0.0
      %3611 = vmatpush1.msra.mxu0 0.0
      %3612 = vmatprep.subr.mxu0 0.0
      %3613 = vmatpush1.msra.mxu0 0.0
      %3614 = vmatprep.subr.mxu0 0.0
      %3615 = vmatpush1.msra.mxu0 0.0
      %3616 = vmatprep.subr.mxu0 0.0
      %3617 = vmatpush1.msra.mxu0 0.0
      %3618 = vmatprep.subr.mxu0 0.0
      %3619 = vmatpush1.msra.mxu0 0.0
      %3620 = vmatprep.subr.mxu0 0.0
      %3621 = vmatpush1.msra.mxu0 0.0
      %3622 = vmatprep.subr.mxu0 0.0
      %3623 = vmatpush1.msra.mxu0 0.0
      %3624 = vmatprep.mubr.f32.mxu0 0.0
      %3625 = vmatmul.mubr.f32.gmra.mrb[0].mxu0 %v2968
      %v3626 = vpop.f32.mrb[0].mxu0
      %v3627 = vadd.f32 0.0, %v3626
      %v3628 = vpop.f32.mrb[0].mxu0
      %v3629 = vadd.f32 0.0, %v3628
      %3630 = vmatprep.mubr.f32.mxu0 0.0
      %3631 = vmatmul.mubr.f32.gmra.mrb[0].mxu0 %v2971
      %v3632 = vpop.f32.mrb[0].mxu0
      %v3633 = vadd.f32 0.0, %v3632
      %v3634 = vpop.f32.mrb[0].mxu0
      %v3635 = vadd.f32 0.0, %v3634
      %3636 = vdwg.mxu0
      %v3637 = vadd.f32 %v2782, %v3088
      %v3638 = vadd.f32 %v2783, %v3090
      %v3639 = vadd.f32 %v2784, %v3165
      %v3640 = vadd.f32 %v2785, %v3167
      %v3641 = vadd.f32 %v2786, %v3242
      %v3642 = vadd.f32 %v2787, %v3244
      %v3643 = vadd.f32 %v2788, %v3319
      %v3644 = vadd.f32 %v2789, %v3321
      %v3645 = vadd.f32 %v2790, %v3396
      %v3646 = vadd.f32 %v2791, %v3398
      %v3647 = vadd.f32 %v2792, %v3473
      %v3648 = vadd.f32 %v2793, %v3475
      %v3649 = vadd.f32 %v2794, %v3550
      %v3650 = vadd.f32 %v2795, %v3552
      %v3651 = vadd.f32 %v2796, %v3627
      %v3652 = vadd.f32 %v2797, %v3629
      %v3653 = vadd.f32 %v2798, %v3094
      %v3654 = vadd.f32 %v2799, %v3096
      %v3655 = vadd.f32 %v2800, %v3171
      %v3656 = vadd.f32 %v2801, %v3173
      %v3657 = vadd.f32 %v2802, %v3248
      %v3658 = vadd.f32 %v2803, %v3250
      %v3659 = vadd.f32 %v2804, %v3325
      %v3660 = vadd.f32 %v2805, %v3327
      %v3661 = vadd.f32 %v2806, %v3402
      %v3662 = vadd.f32 %v2807, %v3404
      %v3663 = vadd.f32 %v2808, %v3479
      %v3664 = vadd.f32 %v2809, %v3481
      %v3665 = vadd.f32 %v2810, %v3556
      %v3666 = vadd.f32 %v2811, %v3558
      %v3667 = vadd.f32 %v2812, %v3633
      %v3668 = vadd.f32 %v2813, %v3635
      %s3669 = scalar_lea.vmem %s5, 64
      %v3670 = vld [vmem:[%s3669] sm:$0xff]
      %v3671 = vld [vmem:[%s3669 + $0x8] sm:$0xff]
      %v3674 = vlaneseq
      %v3675 = vshrl.u32 %v3674, 7
      %v3676 = vsub.s32 0, %v3675
      %v3677 = vrot.slane %v3670, %v3676
      %v3678 = vlaneseq
      %v3679 = vshrl.u32 %v3678, 7
      %v3680 = vsub.s32 1, %v3679
      %v3681 = vrot.slane %v3670, %v3680
      %v3682 = vlaneseq
      %v3683 = vshrl.u32 %v3682, 7
      %v3684 = vsub.s32 2, %v3683
      %v3685 = vrot.slane %v3670, %v3684
      %v3686 = vlaneseq
      %v3687 = vshrl.u32 %v3686, 7
      %v3688 = vsub.s32 3, %v3687
      %v3689 = vrot.slane %v3670, %v3688
      %v3690 = vlaneseq
      %v3691 = vshrl.u32 %v3690, 7
      %v3692 = vsub.s32 4, %v3691
      %v3693 = vrot.slane %v3670, %v3692
      %v3694 = vlaneseq
      %v3695 = vshrl.u32 %v3694, 7
      %v3696 = vsub.s32 5, %v3695
      %v3697 = vrot.slane %v3670, %v3696
      %v3698 = vlaneseq
      %v3699 = vshrl.u32 %v3698, 7
      %v3700 = vsub.s32 6, %v3699
      %v3701 = vrot.slane %v3670, %v3700
      %v3702 = vlaneseq
      %v3703 = vshrl.u32 %v3702, 7
      %v3704 = vsub.s32 7, %v3703
      %v3705 = vrot.slane %v3670, %v3704
      %v3706 = vlaneseq
      %v3707 = vshrl.u32 %v3706, 7
      %v3708 = vsub.s32 0, %v3707
      %v3709 = vrot.slane %v3671, %v3708
      %v3710 = vlaneseq
      %v3711 = vshrl.u32 %v3710, 7
      %v3712 = vsub.s32 1, %v3711
      %v3713 = vrot.slane %v3671, %v3712
      %v3714 = vlaneseq
      %v3715 = vshrl.u32 %v3714, 7
      %v3716 = vsub.s32 2, %v3715
      %v3717 = vrot.slane %v3671, %v3716
      %v3718 = vlaneseq
      %v3719 = vshrl.u32 %v3718, 7
      %v3720 = vsub.s32 3, %v3719
      %v3721 = vrot.slane %v3671, %v3720
      %v3722 = vlaneseq
      %v3723 = vshrl.u32 %v3722, 7
      %v3724 = vsub.s32 4, %v3723
      %v3725 = vrot.slane %v3671, %v3724
      %v3726 = vlaneseq
      %v3727 = vshrl.u32 %v3726, 7
      %v3728 = vsub.s32 5, %v3727
      %v3729 = vrot.slane %v3671, %v3728
      %v3730 = vlaneseq
      %v3731 = vshrl.u32 %v3730, 7
      %v3732 = vsub.s32 6, %v3731
      %v3733 = vrot.slane %v3671, %v3732
      %v3734 = vlaneseq
      %v3735 = vshrl.u32 %v3734, 7
      %v3736 = vsub.s32 7, %v3735
      %v3737 = vrot.slane %v3671, %v3736
      %v3738 = vcombine.low %v3677, %v3681
      %v3739 = vcombine.low %v3685, %v3689
      %v3740 = vcombine.low %v3693, %v3697
      %v3741 = vcombine.low %v3701, %v3705
      %v3742 = vcombine.low %v3709, %v3713
      %v3743 = vcombine.low %v3717, %v3721
      %v3744 = vcombine.low %v3725, %v3729
      %v3745 = vcombine.low %v3733, %v3737
      %v3754 = vmul.f32 %v279, %v3738
      %v3755 = vmul.f32 %v280, %v3739
      %v3756 = vmul.f32 %v281, %v3740
      %v3757 = vmul.f32 %v282, %v3741
      %v3758 = vmul.f32 %v283, %v3742
      %v3759 = vmul.f32 %v284, %v3743
      %v3760 = vmul.f32 %v285, %v3744
      %v3761 = vmul.f32 %v286, %v3745
      %s3762 = scalar_lea.vmem %s1, 64
      %v3763 = vld [vmem:[%s3762] sm:$0xff]
      %v3764 = vld [vmem:[%s3762 + $0x8] sm:$0x1]
      %v3773 = vcombine.high %v3754, %v3754
      %v3774 = vcombine.high %v3755, %v3755
      %v3775 = vcombine.high %v3756, %v3756
      %v3776 = vcombine.high %v3757, %v3757
      %v3777 = vcombine.high %v3758, %v3758
      %v3778 = vcombine.high %v3759, %v3759
      %v3779 = vcombine.high %v3760, %v3760
      %v3780 = vcombine.high %v3761, %v3761
      %v3782 = vsel %vm617, %v3763, 0
      %v3785 = vsel %vm617, %v3764, 0
      %v3787 = vsel %vm624, %v3754, 0
      %v3789 = vsel %vm624, %v3773, 0
      %v3791 = vsel %vm624, %v3755, 0
      %v3793 = vsel %vm624, %v3774, 0
      %v3795 = vsel %vm624, %v3756, 0
      %v3797 = vsel %vm624, %v3775, 0
      %v3799 = vsel %vm624, %v3757, 0
      %v3801 = vsel %vm624, %v3776, 0
      %v3803 = vsel %vm624, %v3758, 0
      %v3805 = vsel %vm624, %v3777, 0
      %v3807 = vsel %vm624, %v3759, 0
      %v3809 = vsel %vm624, %v3778, 0
      %v3811 = vsel %vm624, %v3760, 0
      %v3813 = vsel %vm624, %v3779, 0
      %v3815 = vsel %vm624, %v3761, 0
      %v3817 = vsel %vm624, %v3780, 0
      %3819 = vmatprep.subr.mxu0 %v3789
      %3820 = vmatpush1.msra.mxu0 %v3787
      %3821 = vmatprep.subr.mxu0 0.0
      %3822 = vmatpush1.msra.mxu0 0.0
      %3823 = vmatprep.subr.mxu0 0.0
      %3824 = vmatpush1.msra.mxu0 0.0
      %3825 = vmatprep.subr.mxu0 0.0
      %3826 = vmatpush1.msra.mxu0 0.0
      %3827 = vmatprep.subr.mxu0 0.0
      %3828 = vmatpush1.msra.mxu0 0.0
      %3829 = vmatprep.subr.mxu0 0.0
      %3830 = vmatpush1.msra.mxu0 0.0
      %3831 = vmatprep.subr.mxu0 0.0
      %3832 = vmatpush1.msra.mxu0 0.0
      %3833 = vmatprep.subr.mxu0 0.0
      %3834 = vmatpush1.msra.mxu0 0.0
      %3835 = vmatprep.subr.mxu0 0.0
      %3836 = vmatpush1.msra.mxu0 0.0
      %3837 = vmatprep.subr.mxu0 0.0
      %3838 = vmatpush1.msra.mxu0 0.0
      %3839 = vmatprep.subr.mxu0 0.0
      %3840 = vmatpush1.msra.mxu0 0.0
      %3841 = vmatprep.subr.mxu0 0.0
      %3842 = vmatpush1.msra.mxu0 0.0
      %3843 = vmatprep.subr.mxu0 0.0
      %3844 = vmatpush1.msra.mxu0 0.0
      %3845 = vmatprep.subr.mxu0 0.0
      %3846 = vmatpush1.msra.mxu0 0.0
      %3847 = vmatprep.subr.mxu0 0.0
      %3848 = vmatpush1.msra.mxu0 0.0
      %3849 = vmatprep.subr.mxu0 0.0
      %3850 = vmatpush1.msra.mxu0 0.0
      %3851 = vmatprep.subr.mxu0 0.0
      %3852 = vmatpush1.msra.mxu0 0.0
      %3853 = vmatprep.subr.mxu0 0.0
      %3854 = vmatpush1.msra.mxu0 0.0
      %3855 = vmatprep.subr.mxu0 0.0
      %3856 = vmatpush1.msra.mxu0 0.0
      %3857 = vmatprep.subr.mxu0 0.0
      %3858 = vmatpush1.msra.mxu0 0.0
      %3859 = vmatprep.subr.mxu0 0.0
      %3860 = vmatpush1.msra.mxu0 0.0
      %3861 = vmatprep.subr.mxu0 0.0
      %3862 = vmatpush1.msra.mxu0 0.0
      %3863 = vmatprep.subr.mxu0 0.0
      %3864 = vmatpush1.msra.mxu0 0.0
      %3865 = vmatprep.subr.mxu0 0.0
      %3866 = vmatpush1.msra.mxu0 0.0
      %3867 = vmatprep.subr.mxu0 0.0
      %3868 = vmatpush1.msra.mxu0 0.0
      %3869 = vmatprep.subr.mxu0 0.0
      %3870 = vmatpush1.msra.mxu0 0.0
      %3871 = vmatprep.subr.mxu0 0.0
      %3872 = vmatpush1.msra.mxu0 0.0
      %3873 = vmatprep.subr.mxu0 0.0
      %3874 = vmatpush1.msra.mxu0 0.0
      %3875 = vmatprep.subr.mxu0 0.0
      %3876 = vmatpush1.msra.mxu0 0.0
      %3877 = vmatprep.subr.mxu0 0.0
      %3878 = vmatpush1.msra.mxu0 0.0
      %3879 = vmatprep.subr.mxu0 0.0
      %3880 = vmatpush1.msra.mxu0 0.0
      %3881 = vmatprep.subr.mxu0 0.0
      %3882 = vmatpush1.msra.mxu0 0.0
      %3883 = vmatprep.mubr.f32.mxu0 0.0
      %3884 = vmatmul.mubr.f32.gmra.mrb[0].mxu0 %v3782
      %v3885 = vpop.f32.mrb[0].mxu0
      %v3886 = vadd.f32 0.0, %v3885
      %v3887 = vpop.f32.mrb[0].mxu0
      %v3888 = vadd.f32 0.0, %v3887
      %3889 = vmatprep.mubr.f32.mxu0 0.0
      %3890 = vmatmul.mubr.f32.gmra.mrb[0].mxu0 %v3785
      %v3891 = vpop.f32.mrb[0].mxu0
      %v3892 = vadd.f32 0.0, %v3891
      %v3893 = vpop.f32.mrb[0].mxu0
      %v3894 = vadd.f32 0.0, %v3893
      %3895 = vdwg.mxu0
      %3896 = vmatprep.subr.mxu0 %v3793
      %3897 = vmatpush1.msra.mxu0 %v3791
      %3898 = vmatprep.subr.mxu0 0.0
      %3899 = vmatpush1.msra.mxu0 0.0
      %3900 = vmatprep.subr.mxu0 0.0
      %3901 = vmatpush1.msra.mxu0 0.0
      %3902 = vmatprep.subr.mxu0 0.0
      %3903 = vmatpush1.msra.mxu0 0.0
      %3904 = vmatprep.subr.mxu0 0.0
      %3905 = vmatpush1.msra.mxu0 0.0
      %3906 = vmatprep.subr.mxu0 0.0
      %3907 = vmatpush1.msra.mxu0 0.0
      %3908 = vmatprep.subr.mxu0 0.0
      %3909 = vmatpush1.msra.mxu0 0.0
      %3910 = vmatprep.subr.mxu0 0.0
      %3911 = vmatpush1.msra.mxu0 0.0
      %3912 = vmatprep.subr.mxu0 0.0
      %3913 = vmatpush1.msra.mxu0 0.0
      %3914 = vmatprep.subr.mxu0 0.0
      %3915 = vmatpush1.msra.mxu0 0.0
      %3916 = vmatprep.subr.mxu0 0.0
      %3917 = vmatpush1.msra.mxu0 0.0
      %3918 = vmatprep.subr.mxu0 0.0
      %3919 = vmatpush1.msra.mxu0 0.0
      %3920 = vmatprep.subr.mxu0 0.0
      %3921 = vmatpush1.msra.mxu0 0.0
      %3922 = vmatprep.subr.mxu0 0.0
      %3923 = vmatpush1.msra.mxu0 0.0
      %3924 = vmatprep.subr.mxu0 0.0
      %3925 = vmatpush1.msra.mxu0 0.0
      %3926 = vmatprep.subr.mxu0 0.0
      %3927 = vmatpush1.msra.mxu0 0.0
      %3928 = vmatprep.subr.mxu0 0.0
      %3929 = vmatpush1.msra.mxu0 0.0
      %3930 = vmatprep.subr.mxu0 0.0
      %3931 = vmatpush1.msra.mxu0 0.0
      %3932 = vmatprep.subr.mxu0 0.0
      %3933 = vmatpush1.msra.mxu0 0.0
      %3934 = vmatprep.subr.mxu0 0.0
      %3935 = vmatpush1.msra.mxu0 0.0
      %3936 = vmatprep.subr.mxu0 0.0
      %3937 = vmatpush1.msra.mxu0 0.0
      %3938 = vmatprep.subr.mxu0 0.0
      %3939 = vmatpush1.msra.mxu0 0.0
      %3940 = vmatprep.subr.mxu0 0.0
      %3941 = vmatpush1.msra.mxu0 0.0
      %3942 = vmatprep.subr.mxu0 0.0
      %3943 = vmatpush1.msra.mxu0 0.0
      %3944 = vmatprep.subr.mxu0 0.0
      %3945 = vmatpush1.msra.mxu0 0.0
      %3946 = vmatprep.subr.mxu0 0.0
      %3947 = vmatpush1.msra.mxu0 0.0
      %3948 = vmatprep.subr.mxu0 0.0
      %3949 = vmatpush1.msra.mxu0 0.0
      %3950 = vmatprep.subr.mxu0 0.0
      %3951 = vmatpush1.msra.mxu0 0.0
      %3952 = vmatprep.subr.mxu0 0.0
      %3953 = vmatpush1.msra.mxu0 0.0
      %3954 = vmatprep.subr.mxu0 0.0
      %3955 = vmatpush1.msra.mxu0 0.0
      %3956 = vmatprep.subr.mxu0 0.0
      %3957 = vmatpush1.msra.mxu0 0.0
      %3958 = vmatprep.subr.mxu0 0.0
      %3959 = vmatpush1.msra.mxu0 0.0
      %3960 = vmatprep.mubr.f32.mxu0 0.0
      %3961 = vmatmul.mubr.f32.gmra.mrb[0].mxu0 %v3782
      %v3962 = vpop.f32.mrb[0].mxu0
      %v3963 = vadd.f32 0.0, %v3962
      %v3964 = vpop.f32.mrb[0].mxu0
      %v3965 = vadd.f32 0.0, %v3964
      %3966 = vmatprep.mubr.f32.mxu0 0.0
      %3967 = vmatmul.mubr.f32.gmra.mrb[0].mxu0 %v3785
      %v3968 = vpop.f32.mrb[0].mxu0
      %v3969 = vadd.f32 0.0, %v3968
      %v3970 = vpop.f32.mrb[0].mxu0
      %v3971 = vadd.f32 0.0, %v3970
      %3972 = vdwg.mxu0
      %3973 = vmatprep.subr.mxu0 %v3797
      %3974 = vmatpush1.msra.mxu0 %v3795
      %3975 = vmatprep.subr.mxu0 0.0
      %3976 = vmatpush1.msra.mxu0 0.0
      %3977 = vmatprep.subr.mxu0 0.0
      %3978 = vmatpush1.msra.mxu0 0.0
      %3979 = vmatprep.subr.mxu0 0.0
      %3980 = vmatpush1.msra.mxu0 0.0
      %3981 = vmatprep.subr.mxu0 0.0
      %3982 = vmatpush1.msra.mxu0 0.0
      %3983 = vmatprep.subr.mxu0 0.0
      %3984 = vmatpush1.msra.mxu0 0.0
      %3985 = vmatprep.subr.mxu0 0.0
      %3986 = vmatpush1.msra.mxu0 0.0
      %3987 = vmatprep.subr.mxu0 0.0
      %3988 = vmatpush1.msra.mxu0 0.0
      %3989 = vmatprep.subr.mxu0 0.0
      %3990 = vmatpush1.msra.mxu0 0.0
      %3991 = vmatprep.subr.mxu0 0.0
      %3992 = vmatpush1.msra.mxu0 0.0
      %3993 = vmatprep.subr.mxu0 0.0
      %3994 = vmatpush1.msra.mxu0 0.0
      %3995 = vmatprep.subr.mxu0 0.0
      %3996 = vmatpush1.msra.mxu0 0.0
      %3997 = vmatprep.subr.mxu0 0.0
      %3998 = vmatpush1.msra.mxu0 0.0
      %3999 = vmatprep.subr.mxu0 0.0
      %4000 = vmatpush1.msra.mxu0 0.0
      %4001 = vmatprep.subr.mxu0 0.0
      %4002 = vmatpush1.msra.mxu0 0.0
      %4003 = vmatprep.subr.mxu0 0.0
      %4004 = vmatpush1.msra.mxu0 0.0
      %4005 = vmatprep.subr.mxu0 0.0
      %4006 = vmatpush1.msra.mxu0 0.0
      %4007 = vmatprep.subr.mxu0 0.0
      %4008 = vmatpush1.msra.mxu0 0.0
      %4009 = vmatprep.subr.mxu0 0.0
      %4010 = vmatpush1.msra.mxu0 0.0
      %4011 = vmatprep.subr.mxu0 0.0
      %4012 = vmatpush1.msra.mxu0 0.0
      %4013 = vmatprep.subr.mxu0 0.0
      %4014 = vmatpush1.msra.mxu0 0.0
      %4015 = vmatprep.subr.mxu0 0.0
      %4016 = vmatpush1.msra.mxu0 0.0
      %4017 = vmatprep.subr.mxu0 0.0
      %4018 = vmatpush1.msra.mxu0 0.0
      %4019 = vmatprep.subr.mxu0 0.0
      %4020 = vmatpush1.msra.mxu0 0.0
      %4021 = vmatprep.subr.mxu0 0.0
      %4022 = vmatpush1.msra.mxu0 0.0
      %4023 = vmatprep.subr.mxu0 0.0
      %4024 = vmatpush1.msra.mxu0 0.0
      %4025 = vmatprep.subr.mxu0 0.0
      %4026 = vmatpush1.msra.mxu0 0.0
      %4027 = vmatprep.subr.mxu0 0.0
      %4028 = vmatpush1.msra.mxu0 0.0
      %4029 = vmatprep.subr.mxu0 0.0
      %4030 = vmatpush1.msra.mxu0 0.0
      %4031 = vmatprep.subr.mxu0 0.0
      %4032 = vmatpush1.msra.mxu0 0.0
      %4033 = vmatprep.subr.mxu0 0.0
      %4034 = vmatpush1.msra.mxu0 0.0
      %4035 = vmatprep.subr.mxu0 0.0
      %4036 = vmatpush1.msra.mxu0 0.0
      %4037 = vmatprep.mubr.f32.mxu0 0.0
      %4038 = vmatmul.mubr.f32.gmra.mrb[0].mxu0 %v3782
      %v4039 = vpop.f32.mrb[0].mxu0
      %v4040 = vadd.f32 0.0, %v4039
      %v4041 = vpop.f32.mrb[0].mxu0
      %v4042 = vadd.f32 0.0, %v4041
      %4043 = vmatprep.mubr.f32.mxu0 0.0
      %4044 = vmatmul.mubr.f32.gmra.mrb[0].mxu0 %v3785
      %v4045 = vpop.f32.mrb[0].mxu0
      %v4046 = vadd.f32 0.0, %v4045
      %v4047 = vpop.f32.mrb[0].mxu0
      %v4048 = vadd.f32 0.0, %v4047
      %4049 = vdwg.mxu0
      %4050 = vmatprep.subr.mxu0 %v3801
      %4051 = vmatpush1.msra.mxu0 %v3799
      %4052 = vmatprep.subr.mxu0 0.0
      %4053 = vmatpush1.msra.mxu0 0.0
      %4054 = vmatprep.subr.mxu0 0.0
      %4055 = vmatpush1.msra.mxu0 0.0
      %4056 = vmatprep.subr.mxu0 0.0
      %4057 = vmatpush1.msra.mxu0 0.0
      %4058 = vmatprep.subr.mxu0 0.0
      %4059 = vmatpush1.msra.mxu0 0.0
      %4060 = vmatprep.subr.mxu0 0.0
      %4061 = vmatpush1.msra.mxu0 0.0
      %4062 = vmatprep.subr.mxu0 0.0
      %4063 = vmatpush1.msra.mxu0 0.0
      %4064 = vmatprep.subr.mxu0 0.0
      %4065 = vmatpush1.msra.mxu0 0.0
      %4066 = vmatprep.subr.mxu0 0.0
      %4067 = vmatpush1.msra.mxu0 0.0
      %4068 = vmatprep.subr.mxu0 0.0
      %4069 = vmatpush1.msra.mxu0 0.0
      %4070 = vmatprep.subr.mxu0 0.0
      %4071 = vmatpush1.msra.mxu0 0.0
      %4072 = vmatprep.subr.mxu0 0.0
      %4073 = vmatpush1.msra.mxu0 0.0
      %4074 = vmatprep.subr.mxu0 0.0
      %4075 = vmatpush1.msra.mxu0 0.0
      %4076 = vmatprep.subr.mxu0 0.0
      %4077 = vmatpush1.msra.mxu0 0.0
      %4078 = vmatprep.subr.mxu0 0.0
      %4079 = vmatpush1.msra.mxu0 0.0
      %4080 = vmatprep.subr.mxu0 0.0
      %4081 = vmatpush1.msra.mxu0 0.0
      %4082 = vmatprep.subr.mxu0 0.0
      %4083 = vmatpush1.msra.mxu0 0.0
      %4084 = vmatprep.subr.mxu0 0.0
      %4085 = vmatpush1.msra.mxu0 0.0
      %4086 = vmatprep.subr.mxu0 0.0
      %4087 = vmatpush1.msra.mxu0 0.0
      %4088 = vmatprep.subr.mxu0 0.0
      %4089 = vmatpush1.msra.mxu0 0.0
      %4090 = vmatprep.subr.mxu0 0.0
      %4091 = vmatpush1.msra.mxu0 0.0
      %4092 = vmatprep.subr.mxu0 0.0
      %4093 = vmatpush1.msra.mxu0 0.0
      %4094 = vmatprep.subr.mxu0 0.0
      %4095 = vmatpush1.msra.mxu0 0.0
      %4096 = vmatprep.subr.mxu0 0.0
      %4097 = vmatpush1.msra.mxu0 0.0
      %4098 = vmatprep.subr.mxu0 0.0
      %4099 = vmatpush1.msra.mxu0 0.0
      %4100 = vmatprep.subr.mxu0 0.0
      %4101 = vmatpush1.msra.mxu0 0.0
      %4102 = vmatprep.subr.mxu0 0.0
      %4103 = vmatpush1.msra.mxu0 0.0
      %4104 = vmatprep.subr.mxu0 0.0
      %4105 = vmatpush1.msra.mxu0 0.0
      %4106 = vmatprep.subr.mxu0 0.0
      %4107 = vmatpush1.msra.mxu0 0.0
      %4108 = vmatprep.subr.mxu0 0.0
      %4109 = vmatpush1.msra.mxu0 0.0
      %4110 = vmatprep.subr.mxu0 0.0
      %4111 = vmatpush1.msra.mxu0 0.0
      %4112 = vmatprep.subr.mxu0 0.0
      %4113 = vmatpush1.msra.mxu0 0.0
      %4114 = vmatprep.mubr.f32.mxu0 0.0
      %4115 = vmatmul.mubr.f32.gmra.mrb[0].mxu0 %v3782
      %v4116 = vpop.f32.mrb[0].mxu0
      %v4117 = vadd.f32 0.0, %v4116
      %v4118 = vpop.f32.mrb[0].mxu0
      %v4119 = vadd.f32 0.0, %v4118
      %4120 = vmatprep.mubr.f32.mxu0 0.0
      %4121 = vmatmul.mubr.f32.gmra.mrb[0].mxu0 %v3785
      %v4122 = vpop.f32.mrb[0].mxu0
      %v4123 = vadd.f32 0.0, %v4122
      %v4124 = vpop.f32.mrb[0].mxu0
      %v4125 = vadd.f32 0.0, %v4124
      %4126 = vdwg.mxu0
      %4127 = vmatprep.subr.mxu0 %v3805
      %4128 = vmatpush1.msra.mxu0 %v3803
      %4129 = vmatprep.subr.mxu0 0.0
      %4130 = vmatpush1.msra.mxu0 0.0
      %4131 = vmatprep.subr.mxu0 0.0
      %4132 = vmatpush1.msra.mxu0 0.0
      %4133 = vmatprep.subr.mxu0 0.0
      %4134 = vmatpush1.msra.mxu0 0.0
      %4135 = vmatprep.subr.mxu0 0.0
      %4136 = vmatpush1.msra.mxu0 0.0
      %4137 = vmatprep.subr.mxu0 0.0
      %4138 = vmatpush1.msra.mxu0 0.0
      %4139 = vmatprep.subr.mxu0 0.0
      %4140 = vmatpush1.msra.mxu0 0.0
      %4141 = vmatprep.subr.mxu0 0.0
      %4142 = vmatpush1.msra.mxu0 0.0
      %4143 = vmatprep.subr.mxu0 0.0
      %4144 = vmatpush1.msra.mxu0 0.0
      %4145 = vmatprep.subr.mxu0 0.0
      %4146 = vmatpush1.msra.mxu0 0.0
      %4147 = vmatprep.subr.mxu0 0.0
      %4148 = vmatpush1.msra.mxu0 0.0
      %4149 = vmatprep.subr.mxu0 0.0
      %4150 = vmatpush1.msra.mxu0 0.0
      %4151 = vmatprep.subr.mxu0 0.0
      %4152 = vmatpush1.msra.mxu0 0.0
      %4153 = vmatprep.subr.mxu0 0.0
      %4154 = vmatpush1.msra.mxu0 0.0
      %4155 = vmatprep.subr.mxu0 0.0
      %4156 = vmatpush1.msra.mxu0 0.0
      %4157 = vmatprep.subr.mxu0 0.0
      %4158 = vmatpush1.msra.mxu0 0.0
      %4159 = vmatprep.subr.mxu0 0.0
      %4160 = vmatpush1.msra.mxu0 0.0
      %4161 = vmatprep.subr.mxu0 0.0
      %4162 = vmatpush1.msra.mxu0 0.0
      %4163 = vmatprep.subr.mxu0 0.0
      %4164 = vmatpush1.msra.mxu0 0.0
      %4165 = vmatprep.subr.mxu0 0.0
      %4166 = vmatpush1.msra.mxu0 0.0
      %4167 = vmatprep.subr.mxu0 0.0
      %4168 = vmatpush1.msra.mxu0 0.0
      %4169 = vmatprep.subr.mxu0 0.0
      %4170 = vmatpush1.msra.mxu0 0.0
      %4171 = vmatprep.subr.mxu0 0.0
      %4172 = vmatpush1.msra.mxu0 0.0
      %4173 = vmatprep.subr.mxu0 0.0
      %4174 = vmatpush1.msra.mxu0 0.0
      %4175 = vmatprep.subr.mxu0 0.0
      %4176 = vmatpush1.msra.mxu0 0.0
      %4177 = vmatprep.subr.mxu0 0.0
      %4178 = vmatpush1.msra.mxu0 0.0
      %4179 = vmatprep.subr.mxu0 0.0
      %4180 = vmatpush1.msra.mxu0 0.0
      %4181 = vmatprep.subr.mxu0 0.0
      %4182 = vmatpush1.msra.mxu0 0.0
      %4183 = vmatprep.subr.mxu0 0.0
      %4184 = vmatpush1.msra.mxu0 0.0
      %4185 = vmatprep.subr.mxu0 0.0
      %4186 = vmatpush1.msra.mxu0 0.0
      %4187 = vmatprep.subr.mxu0 0.0
      %4188 = vmatpush1.msra.mxu0 0.0
      %4189 = vmatprep.subr.mxu0 0.0
      %4190 = vmatpush1.msra.mxu0 0.0
      %4191 = vmatprep.mubr.f32.mxu0 0.0
      %4192 = vmatmul.mubr.f32.gmra.mrb[0].mxu0 %v3782
      %v4193 = vpop.f32.mrb[0].mxu0
      %v4194 = vadd.f32 0.0, %v4193
      %v4195 = vpop.f32.mrb[0].mxu0
      %v4196 = vadd.f32 0.0, %v4195
      %4197 = vmatprep.mubr.f32.mxu0 0.0
      %4198 = vmatmul.mubr.f32.gmra.mrb[0].mxu0 %v3785
      %v4199 = vpop.f32.mrb[0].mxu0
      %v4200 = vadd.f32 0.0, %v4199
      %v4201 = vpop.f32.mrb[0].mxu0
      %v4202 = vadd.f32 0.0, %v4201
      %4203 = vdwg.mxu0
      %4204 = vmatprep.subr.mxu0 %v3809
      %4205 = vmatpush1.msra.mxu0 %v3807
      %4206 = vmatprep.subr.mxu0 0.0
      %4207 = vmatpush1.msra.mxu0 0.0
      %4208 = vmatprep.subr.mxu0 0.0
      %4209 = vmatpush1.msra.mxu0 0.0
      %4210 = vmatprep.subr.mxu0 0.0
      %4211 = vmatpush1.msra.mxu0 0.0
      %4212 = vmatprep.subr.mxu0 0.0
      %4213 = vmatpush1.msra.mxu0 0.0
      %4214 = vmatprep.subr.mxu0 0.0
      %4215 = vmatpush1.msra.mxu0 0.0
      %4216 = vmatprep.subr.mxu0 0.0
      %4217 = vmatpush1.msra.mxu0 0.0
      %4218 = vmatprep.subr.mxu0 0.0
      %4219 = vmatpush1.msra.mxu0 0.0
      %4220 = vmatprep.subr.mxu0 0.0
      %4221 = vmatpush1.msra.mxu0 0.0
      %4222 = vmatprep.subr.mxu0 0.0
      %4223 = vmatpush1.msra.mxu0 0.0
      %4224 = vmatprep.subr.mxu0 0.0
      %4225 = vmatpush1.msra.mxu0 0.0
      %4226 = vmatprep.subr.mxu0 0.0
      %4227 = vmatpush1.msra.mxu0 0.0
      %4228 = vmatprep.subr.mxu0 0.0
      %4229 = vmatpush1.msra.mxu0 0.0
      %4230 = vmatprep.subr.mxu0 0.0
      %4231 = vmatpush1.msra.mxu0 0.0
      %4232 = vmatprep.subr.mxu0 0.0
      %4233 = vmatpush1.msra.mxu0 0.0
      %4234 = vmatprep.subr.mxu0 0.0
      %4235 = vmatpush1.msra.mxu0 0.0
      %4236 = vmatprep.subr.mxu0 0.0
      %4237 = vmatpush1.msra.mxu0 0.0
      %4238 = vmatprep.subr.mxu0 0.0
      %4239 = vmatpush1.msra.mxu0 0.0
      %4240 = vmatprep.subr.mxu0 0.0
      %4241 = vmatpush1.msra.mxu0 0.0
      %4242 = vmatprep.subr.mxu0 0.0
      %4243 = vmatpush1.msra.mxu0 0.0
      %4244 = vmatprep.subr.mxu0 0.0
      %4245 = vmatpush1.msra.mxu0 0.0
      %4246 = vmatprep.subr.mxu0 0.0
      %4247 = vmatpush1.msra.mxu0 0.0
      %4248 = vmatprep.subr.mxu0 0.0
      %4249 = vmatpush1.msra.mxu0 0.0
      %4250 = vmatprep.subr.mxu0 0.0
      %4251 = vmatpush1.msra.mxu0 0.0
      %4252 = vmatprep.subr.mxu0 0.0
      %4253 = vmatpush1.msra.mxu0 0.0
      %4254 = vmatprep.subr.mxu0 0.0
      %4255 = vmatpush1.msra.mxu0 0.0
      %4256 = vmatprep.subr.mxu0 0.0
      %4257 = vmatpush1.msra.mxu0 0.0
      %4258 = vmatprep.subr.mxu0 0.0
      %4259 = vmatpush1.msra.mxu0 0.0
      %4260 = vmatprep.subr.mxu0 0.0
      %4261 = vmatpush1.msra.mxu0 0.0
      %4262 = vmatprep.subr.mxu0 0.0
      %4263 = vmatpush1.msra.mxu0 0.0
      %4264 = vmatprep.subr.mxu0 0.0
      %4265 = vmatpush1.msra.mxu0 0.0
      %4266 = vmatprep.subr.mxu0 0.0
      %4267 = vmatpush1.msra.mxu0 0.0
      %4268 = vmatprep.mubr.f32.mxu0 0.0
      %4269 = vmatmul.mubr.f32.gmra.mrb[0].mxu0 %v3782
      %v4270 = vpop.f32.mrb[0].mxu0
      %v4271 = vadd.f32 0.0, %v4270
      %v4272 = vpop.f32.mrb[0].mxu0
      %v4273 = vadd.f32 0.0, %v4272
      %4274 = vmatprep.mubr.f32.mxu0 0.0
      %4275 = vmatmul.mubr.f32.gmra.mrb[0].mxu0 %v3785
      %v4276 = vpop.f32.mrb[0].mxu0
      %v4277 = vadd.f32 0.0, %v4276
      %v4278 = vpop.f32.mrb[0].mxu0
      %v4279 = vadd.f32 0.0, %v4278
      %4280 = vdwg.mxu0
      %4281 = vmatprep.subr.mxu0 %v3813
      %4282 = vmatpush1.msra.mxu0 %v3811
      %4283 = vmatprep.subr.mxu0 0.0
      %4284 = vmatpush1.msra.mxu0 0.0
      %4285 = vmatprep.subr.mxu0 0.0
      %4286 = vmatpush1.msra.mxu0 0.0
      %4287 = vmatprep.subr.mxu0 0.0
      %4288 = vmatpush1.msra.mxu0 0.0
      %4289 = vmatprep.subr.mxu0 0.0
      %4290 = vmatpush1.msra.mxu0 0.0
      %4291 = vmatprep.subr.mxu0 0.0
      %4292 = vmatpush1.msra.mxu0 0.0
      %4293 = vmatprep.subr.mxu0 0.0
      %4294 = vmatpush1.msra.mxu0 0.0
      %4295 = vmatprep.subr.mxu0 0.0
      %4296 = vmatpush1.msra.mxu0 0.0
      %4297 = vmatprep.subr.mxu0 0.0
      %4298 = vmatpush1.msra.mxu0 0.0
      %4299 = vmatprep.subr.mxu0 0.0
      %4300 = vmatpush1.msra.mxu0 0.0
      %4301 = vmatprep.subr.mxu0 0.0
      %4302 = vmatpush1.msra.mxu0 0.0
      %4303 = vmatprep.subr.mxu0 0.0
      %4304 = vmatpush1.msra.mxu0 0.0
      %4305 = vmatprep.subr.mxu0 0.0
      %4306 = vmatpush1.msra.mxu0 0.0
      %4307 = vmatprep.subr.mxu0 0.0
      %4308 = vmatpush1.msra.mxu0 0.0
      %4309 = vmatprep.subr.mxu0 0.0
      %4310 = vmatpush1.msra.mxu0 0.0
      %4311 = vmatprep.subr.mxu0 0.0
      %4312 = vmatpush1.msra.mxu0 0.0
      %4313 = vmatprep.subr.mxu0 0.0
      %4314 = vmatpush1.msra.mxu0 0.0
      %4315 = vmatprep.subr.mxu0 0.0
      %4316 = vmatpush1.msra.mxu0 0.0
      %4317 = vmatprep.subr.mxu0 0.0
      %4318 = vmatpush1.msra.mxu0 0.0
      %4319 = vmatprep.subr.mxu0 0.0
      %4320 = vmatpush1.msra.mxu0 0.0
      %4321 = vmatprep.subr.mxu0 0.0
      %4322 = vmatpush1.msra.mxu0 0.0
      %4323 = vmatprep.subr.mxu0 0.0
      %4324 = vmatpush1.msra.mxu0 0.0
      %4325 = vmatprep.subr.mxu0 0.0
      %4326 = vmatpush1.msra.mxu0 0.0
      %4327 = vmatprep.subr.mxu0 0.0
      %4328 = vmatpush1.msra.mxu0 0.0
      %4329 = vmatprep.subr.mxu0 0.0
      %4330 = vmatpush1.msra.mxu0 0.0
      %4331 = vmatprep.subr.mxu0 0.0
      %4332 = vmatpush1.msra.mxu0 0.0
      %4333 = vmatprep.subr.mxu0 0.0
      %4334 = vmatpush1.msra.mxu0 0.0
      %4335 = vmatprep.subr.mxu0 0.0
      %4336 = vmatpush1.msra.mxu0 0.0
      %4337 = vmatprep.subr.mxu0 0.0
      %4338 = vmatpush1.msra.mxu0 0.0
      %4339 = vmatprep.subr.mxu0 0.0
      %4340 = vmatpush1.msra.mxu0 0.0
      %4341 = vmatprep.subr.mxu0 0.0
      %4342 = vmatpush1.msra.mxu0 0.0
      %4343 = vmatprep.subr.mxu0 0.0
      %4344 = vmatpush1.msra.mxu0 0.0
      %4345 = vmatprep.mubr.f32.mxu0 0.0
      %4346 = vmatmul.mubr.f32.gmra.mrb[0].mxu0 %v3782
      %v4347 = vpop.f32.mrb[0].mxu0
      %v4348 = vadd.f32 0.0, %v4347
      %v4349 = vpop.f32.mrb[0].mxu0
      %v4350 = vadd.f32 0.0, %v4349
      %4351 = vmatprep.mubr.f32.mxu0 0.0
      %4352 = vmatmul.mubr.f32.gmra.mrb[0].mxu0 %v3785
      %v4353 = vpop.f32.mrb[0].mxu0
      %v4354 = vadd.f32 0.0, %v4353
      %v4355 = vpop.f32.mrb[0].mxu0
      %v4356 = vadd.f32 0.0, %v4355
      %4357 = vdwg.mxu0
      %4358 = vmatprep.subr.mxu0 %v3817
      %4359 = vmatpush1.msra.mxu0 %v3815
      %4360 = vmatprep.subr.mxu0 0.0
      %4361 = vmatpush1.msra.mxu0 0.0
      %4362 = vmatprep.subr.mxu0 0.0
      %4363 = vmatpush1.msra.mxu0 0.0
      %4364 = vmatprep.subr.mxu0 0.0
      %4365 = vmatpush1.msra.mxu0 0.0
      %4366 = vmatprep.subr.mxu0 0.0
      %4367 = vmatpush1.msra.mxu0 0.0
      %4368 = vmatprep.subr.mxu0 0.0
      %4369 = vmatpush1.msra.mxu0 0.0
      %4370 = vmatprep.subr.mxu0 0.0
      %4371 = vmatpush1.msra.mxu0 0.0
      %4372 = vmatprep.subr.mxu0 0.0
      %4373 = vmatpush1.msra.mxu0 0.0
      %4374 = vmatprep.subr.mxu0 0.0
      %4375 = vmatpush1.msra.mxu0 0.0
      %4376 = vmatprep.subr.mxu0 0.0
      %4377 = vmatpush1.msra.mxu0 0.0
      %4378 = vmatprep.subr.mxu0 0.0
      %4379 = vmatpush1.msra.mxu0 0.0
      %4380 = vmatprep.subr.mxu0 0.0
      %4381 = vmatpush1.msra.mxu0 0.0
      %4382 = vmatprep.subr.mxu0 0.0
      %4383 = vmatpush1.msra.mxu0 0.0
      %4384 = vmatprep.subr.mxu0 0.0
      %4385 = vmatpush1.msra.mxu0 0.0
      %4386 = vmatprep.subr.mxu0 0.0
      %4387 = vmatpush1.msra.mxu0 0.0
      %4388 = vmatprep.subr.mxu0 0.0
      %4389 = vmatpush1.msra.mxu0 0.0
      %4390 = vmatprep.subr.mxu0 0.0
      %4391 = vmatpush1.msra.mxu0 0.0
      %4392 = vmatprep.subr.mxu0 0.0
      %4393 = vmatpush1.msra.mxu0 0.0
      %4394 = vmatprep.subr.mxu0 0.0
      %4395 = vmatpush1.msra.mxu0 0.0
      %4396 = vmatprep.subr.mxu0 0.0
      %4397 = vmatpush1.msra.mxu0 0.0
      %4398 = vmatprep.subr.mxu0 0.0
      %4399 = vmatpush1.msra.mxu0 0.0
      %4400 = vmatprep.subr.mxu0 0.0
      %4401 = vmatpush1.msra.mxu0 0.0
      %4402 = vmatprep.subr.mxu0 0.0
      %4403 = vmatpush1.msra.mxu0 0.0
      %4404 = vmatprep.subr.mxu0 0.0
      %4405 = vmatpush1.msra.mxu0 0.0
      %4406 = vmatprep.subr.mxu0 0.0
      %4407 = vmatpush1.msra.mxu0 0.0
      %4408 = vmatprep.subr.mxu0 0.0
      %4409 = vmatpush1.msra.mxu0 0.0
      %4410 = vmatprep.subr.mxu0 0.0
      %4411 = vmatpush1.msra.mxu0 0.0
      %4412 = vmatprep.subr.mxu0 0.0
      %4413 = vmatpush1.msra.mxu0 0.0
      %4414 = vmatprep.subr.mxu0 0.0
      %4415 = vmatpush1.msra.mxu0 0.0
      %4416 = vmatprep.subr.mxu0 0.0
      %4417 = vmatpush1.msra.mxu0 0.0
      %4418 = vmatprep.subr.mxu0 0.0
      %4419 = vmatpush1.msra.mxu0 0.0
      %4420 = vmatprep.subr.mxu0 0.0
      %4421 = vmatpush1.msra.mxu0 0.0
      %4422 = vmatprep.mubr.f32.mxu0 0.0
      %4423 = vmatmul.mubr.f32.gmra.mrb[0].mxu0 %v3782
      %v4424 = vpop.f32.mrb[0].mxu0
      %v4425 = vadd.f32 0.0, %v4424
      %v4426 = vpop.f32.mrb[0].mxu0
      %v4427 = vadd.f32 0.0, %v4426
      %4428 = vmatprep.mubr.f32.mxu0 0.0
      %4429 = vmatmul.mubr.f32.gmra.mrb[0].mxu0 %v3785
      %v4430 = vpop.f32.mrb[0].mxu0
      %v4431 = vadd.f32 0.0, %v4430
      %v4432 = vpop.f32.mrb[0].mxu0
      %v4433 = vadd.f32 0.0, %v4432
      %4434 = vdwg.mxu0
      %v4435 = vadd.f32 %v3637, %v3886
      %v4436 = vadd.f32 %v3638, %v3888
      %v4437 = vadd.f32 %v3639, %v3963
      %v4438 = vadd.f32 %v3640, %v3965
      %v4439 = vadd.f32 %v3641, %v4040
      %v4440 = vadd.f32 %v3642, %v4042
      %v4441 = vadd.f32 %v3643, %v4117
      %v4442 = vadd.f32 %v3644, %v4119
      %v4443 = vadd.f32 %v3645, %v4194
      %v4444 = vadd.f32 %v3646, %v4196
      %v4445 = vadd.f32 %v3647, %v4271
      %v4446 = vadd.f32 %v3648, %v4273
      %v4447 = vadd.f32 %v3649, %v4348
      %v4448 = vadd.f32 %v3650, %v4350
      %v4449 = vadd.f32 %v3651, %v4425
      %v4450 = vadd.f32 %v3652, %v4427
      %v4451 = vadd.f32 %v3653, %v3892
      %v4452 = vadd.f32 %v3654, %v3894
      %v4453 = vadd.f32 %v3655, %v3969
      %v4454 = vadd.f32 %v3656, %v3971
      %v4455 = vadd.f32 %v3657, %v4046
      %v4456 = vadd.f32 %v3658, %v4048
      %v4457 = vadd.f32 %v3659, %v4123
      %v4458 = vadd.f32 %v3660, %v4125
      %v4459 = vadd.f32 %v3661, %v4200
      %v4460 = vadd.f32 %v3662, %v4202
      %v4461 = vadd.f32 %v3663, %v4277
      %v4462 = vadd.f32 %v3664, %v4279
      %v4463 = vadd.f32 %v3665, %v4354
      %v4464 = vadd.f32 %v3666, %v4356
      %v4465 = vadd.f32 %v3667, %v4431
      %v4466 = vadd.f32 %v3668, %v4433
      %4467 = vrot.lane.b32.xlu0 %v279, 127
      %v4468 = vpop.permute.xlu0 %4467
      %4469 = vrot.lane.b32.xlu0 %v295, 127
      %v4470 = vpop.permute.xlu0 %4469
      %4471 = vrot.lane.b32.xlu0 %v280, 127
      %v4472 = vpop.permute.xlu0 %4471
      %4473 = vrot.lane.b32.xlu0 %v296, 127
      %v4474 = vpop.permute.xlu0 %4473
      %4475 = vrot.lane.b32.xlu0 %v281, 127
      %v4476 = vpop.permute.xlu0 %4475
      %4477 = vrot.lane.b32.xlu0 %v297, 127
      %v4478 = vpop.permute.xlu0 %4477
      %4479 = vrot.lane.b32.xlu0 %v282, 127
      %v4480 = vpop.permute.xlu0 %4479
      %4481 = vrot.lane.b32.xlu0 %v298, 127
      %v4482 = vpop.permute.xlu0 %4481
      %4483 = vrot.lane.b32.xlu0 %v283, 127
      %v4484 = vpop.permute.xlu0 %4483
      %4485 = vrot.lane.b32.xlu0 %v299, 127
      %v4486 = vpop.permute.xlu0 %4485
      %4487 = vrot.lane.b32.xlu0 %v284, 127
      %v4488 = vpop.permute.xlu0 %4487
      %4489 = vrot.lane.b32.xlu0 %v300, 127
      %v4490 = vpop.permute.xlu0 %4489
      %4491 = vrot.lane.b32.xlu0 %v285, 127
      %v4492 = vpop.permute.xlu0 %4491
      %4493 = vrot.lane.b32.xlu0 %v301, 127
      %v4494 = vpop.permute.xlu0 %4493
      %4495 = vrot.lane.b32.xlu0 %v286, 127
      %v4496 = vpop.permute.xlu0 %4495
      %4497 = vrot.lane.b32.xlu0 %v302, 127
      %v4498 = vpop.permute.xlu0 %4497
      %vm4499 = vcmp.lt.s32.totalorder %v344, 127
      %v4500 = vsel %vm4499, %v4496, %v4498
      %v4501 = vsel %vm4499, %v4494, %v4496
      %v4502 = vsel %vm4499, %v4492, %v4494
      %v4503 = vsel %vm4499, %v4490, %v4492
      %v4504 = vsel %vm4499, %v4488, %v4490
      %v4505 = vsel %vm4499, %v4486, %v4488
      %v4506 = vsel %vm4499, %v4484, %v4486
      %v4507 = vsel %vm4499, %v4482, %v4484
      %v4508 = vsel %vm4499, %v4480, %v4482
      %v4509 = vsel %vm4499, %v4478, %v4480
      %v4510 = vsel %vm4499, %v4476, %v4478
      %v4511 = vsel %vm4499, %v4474, %v4476
      %v4512 = vsel %vm4499, %v4472, %v4474
      %v4513 = vsel %vm4499, %v4470, %v4472
      %v4514 = vsel %vm4499, %v4468, %v4470
      %v4515 = vsel %vm4499, %v4498, %v4468
      %s4516 = scalar_lea.vmem %s5, 80
      %v4517 = vld [vmem:[%s4516] sm:$0xff]
      %v4518 = vld [vmem:[%s4516 + $0x8] sm:$0xff]
      %v4521 = vlaneseq
      %v4522 = vshrl.u32 %v4521, 7
      %v4523 = vsub.s32 0, %v4522
      %v4524 = vrot.slane %v4517, %v4523
      %v4525 = vlaneseq
      %v4526 = vshrl.u32 %v4525, 7
      %v4527 = vsub.s32 1, %v4526
      %v4528 = vrot.slane %v4517, %v4527
      %v4529 = vlaneseq
      %v4530 = vshrl.u32 %v4529, 7
      %v4531 = vsub.s32 2, %v4530
      %v4532 = vrot.slane %v4517, %v4531
      %v4533 = vlaneseq
      %v4534 = vshrl.u32 %v4533, 7
      %v4535 = vsub.s32 3, %v4534
      %v4536 = vrot.slane %v4517, %v4535
      %v4537 = vlaneseq
      %v4538 = vshrl.u32 %v4537, 7
      %v4539 = vsub.s32 4, %v4538
      %v4540 = vrot.slane %v4517, %v4539
      %v4541 = vlaneseq
      %v4542 = vshrl.u32 %v4541, 7
      %v4543 = vsub.s32 5, %v4542
      %v4544 = vrot.slane %v4517, %v4543
      %v4545 = vlaneseq
      %v4546 = vshrl.u32 %v4545, 7
      %v4547 = vsub.s32 6, %v4546
      %v4548 = vrot.slane %v4517, %v4547
      %v4549 = vlaneseq
      %v4550 = vshrl.u32 %v4549, 7
      %v4551 = vsub.s32 7, %v4550
      %v4552 = vrot.slane %v4517, %v4551
      %v4553 = vlaneseq
      %v4554 = vshrl.u32 %v4553, 7
      %v4555 = vsub.s32 0, %v4554
      %v4556 = vrot.slane %v4518, %v4555
      %v4557 = vlaneseq
      %v4558 = vshrl.u32 %v4557, 7
      %v4559 = vsub.s32 1, %v4558
      %v4560 = vrot.slane %v4518, %v4559
      %v4561 = vlaneseq
      %v4562 = vshrl.u32 %v4561, 7
      %v4563 = vsub.s32 2, %v4562
      %v4564 = vrot.slane %v4518, %v4563
      %v4565 = vlaneseq
      %v4566 = vshrl.u32 %v4565, 7
      %v4567 = vsub.s32 3, %v4566
      %v4568 = vrot.slane %v4518, %v4567
      %v4569 = vlaneseq
      %v4570 = vshrl.u32 %v4569, 7
      %v4571 = vsub.s32 4, %v4570
      %v4572 = vrot.slane %v4518, %v4571
      %v4573 = vlaneseq
      %v4574 = vshrl.u32 %v4573, 7
      %v4575 = vsub.s32 5, %v4574
      %v4576 = vrot.slane %v4518, %v4575
      %v4577 = vlaneseq
      %v4578 = vshrl.u32 %v4577, 7
      %v4579 = vsub.s32 6, %v4578
      %v4580 = vrot.slane %v4518, %v4579
      %v4581 = vlaneseq
      %v4582 = vshrl.u32 %v4581, 7
      %v4583 = vsub.s32 7, %v4582
      %v4584 = vrot.slane %v4518, %v4583
      %v4601 = vmul.f32 %v4514, %v4524
      %v4602 = vmul.f32 %v4513, %v4528
      %v4603 = vmul.f32 %v4512, %v4532
      %v4604 = vmul.f32 %v4511, %v4536
      %v4605 = vmul.f32 %v4510, %v4540
      %v4606 = vmul.f32 %v4509, %v4544
      %v4607 = vmul.f32 %v4508, %v4548
      %v4608 = vmul.f32 %v4507, %v4552
      %v4609 = vmul.f32 %v4506, %v4556
      %v4610 = vmul.f32 %v4505, %v4560
      %v4611 = vmul.f32 %v4504, %v4564
      %v4612 = vmul.f32 %v4503, %v4568
      %v4613 = vmul.f32 %v4502, %v4572
      %v4614 = vmul.f32 %v4501, %v4576
      %v4615 = vmul.f32 %v4500, %v4580
      %v4616 = vmul.f32 %v4515, %v4584
      %s4617 = scalar_lea.vmem %s1, 80
      %v4618 = vld [vmem:[%s4617] sm:$0xff]
      %v4619 = vld [vmem:[%s4617 + $0x8] sm:$0x1]
      %v4621 = vsel %vm617, %v4618, 0
      %v4624 = vsel %vm617, %v4619, 0
      %v4627 = vsel %vm624, %v4601, 0
      %v4630 = vsel %vm624, %v4602, 0
      %v4633 = vsel %vm624, %v4603, 0
      %v4636 = vsel %vm624, %v4604, 0
      %v4639 = vsel %vm624, %v4605, 0
      %v4642 = vsel %vm624, %v4606, 0
      %v4645 = vsel %vm624, %v4607, 0
      %v4648 = vsel %vm624, %v4608, 0
      %v4651 = vsel %vm624, %v4609, 0
      %v4654 = vsel %vm624, %v4610, 0
      %v4657 = vsel %vm624, %v4611, 0
      %v4660 = vsel %vm624, %v4612, 0
      %v4663 = vsel %vm624, %v4613, 0
      %v4666 = vsel %vm624, %v4614, 0
      %v4669 = vsel %vm624, %v4615, 0
      %v4672 = vsel %vm624, %v4616, 0
      %4674 = vmatprep.subr.mxu0 %v4630
      %4675 = vmatpush1.msra.mxu0 %v4627
      %4676 = vmatprep.subr.mxu0 0.0
      %4677 = vmatpush1.msra.mxu0 0.0
      %4678 = vmatprep.subr.mxu0 0.0
      %4679 = vmatpush1.msra.mxu0 0.0
      %4680 = vmatprep.subr.mxu0 0.0
      %4681 = vmatpush1.msra.mxu0 0.0
      %4682 = vmatprep.subr.mxu0 0.0
      %4683 = vmatpush1.msra.mxu0 0.0
      %4684 = vmatprep.subr.mxu0 0.0
      %4685 = vmatpush1.msra.mxu0 0.0
      %4686 = vmatprep.subr.mxu0 0.0
      %4687 = vmatpush1.msra.mxu0 0.0
      %4688 = vmatprep.subr.mxu0 0.0
      %4689 = vmatpush1.msra.mxu0 0.0
      %4690 = vmatprep.subr.mxu0 0.0
      %4691 = vmatpush1.msra.mxu0 0.0
      %4692 = vmatprep.subr.mxu0 0.0
      %4693 = vmatpush1.msra.mxu0 0.0
      %4694 = vmatprep.subr.mxu0 0.0
      %4695 = vmatpush1.msra.mxu0 0.0
      %4696 = vmatprep.subr.mxu0 0.0
      %4697 = vmatpush1.msra.mxu0 0.0
      %4698 = vmatprep.subr.mxu0 0.0
      %4699 = vmatpush1.msra.mxu0 0.0
      %4700 = vmatprep.subr.mxu0 0.0
      %4701 = vmatpush1.msra.mxu0 0.0
      %4702 = vmatprep.subr.mxu0 0.0
      %4703 = vmatpush1.msra.mxu0 0.0
      %4704 = vmatprep.subr.mxu0 0.0
      %4705 = vmatpush1.msra.mxu0 0.0
      %4706 = vmatprep.subr.mxu0 0.0
      %4707 = vmatpush1.msra.mxu0 0.0
      %4708 = vmatprep.subr.mxu0 0.0
      %4709 = vmatpush1.msra.mxu0 0.0
      %4710 = vmatprep.subr.mxu0 0.0
      %4711 = vmatpush1.msra.mxu0 0.0
      %4712 = vmatprep.subr.mxu0 0.0
      %4713 = vmatpush1.msra.mxu0 0.0
      %4714 = vmatprep.subr.mxu0 0.0
      %4715 = vmatpush1.msra.mxu0 0.0
      %4716 = vmatprep.subr.mxu0 0.0
      %4717 = vmatpush1.msra.mxu0 0.0
      %4718 = vmatprep.subr.mxu0 0.0
      %4719 = vmatpush1.msra.mxu0 0.0
      %4720 = vmatprep.subr.mxu0 0.0
      %4721 = vmatpush1.msra.mxu0 0.0
      %4722 = vmatprep.subr.mxu0 0.0
      %4723 = vmatpush1.msra.mxu0 0.0
      %4724 = vmatprep.subr.mxu0 0.0
      %4725 = vmatpush1.msra.mxu0 0.0
      %4726 = vmatprep.subr.mxu0 0.0
      %4727 = vmatpush1.msra.mxu0 0.0
      %4728 = vmatprep.subr.mxu0 0.0
      %4729 = vmatpush1.msra.mxu0 0.0
      %4730 = vmatprep.subr.mxu0 0.0
      %4731 = vmatpush1.msra.mxu0 0.0
      %4732 = vmatprep.subr.mxu0 0.0
      %4733 = vmatpush1.msra.mxu0 0.0
      %4734 = vmatprep.subr.mxu0 0.0
      %4735 = vmatpush1.msra.mxu0 0.0
      %4736 = vmatprep.subr.mxu0 0.0
      %4737 = vmatpush1.msra.mxu0 0.0
      %4738 = vmatprep.mubr.f32.mxu0 0.0
      %4739 = vmatmul.mubr.f32.gmra.mrb[0].mxu0 %v4621
      %v4740 = vpop.f32.mrb[0].mxu0
      %v4741 = vadd.f32 0.0, %v4740
      %v4742 = vpop.f32.mrb[0].mxu0
      %v4743 = vadd.f32 0.0, %v4742
      %4744 = vmatprep.mubr.f32.mxu0 0.0
      %4745 = vmatmul.mubr.f32.gmra.mrb[0].mxu0 %v4624
      %v4746 = vpop.f32.mrb[0].mxu0
      %v4747 = vadd.f32 0.0, %v4746
      %v4748 = vpop.f32.mrb[0].mxu0
      %v4749 = vadd.f32 0.0, %v4748
      %4750 = vdwg.mxu0
      %4751 = vmatprep.subr.mxu0 %v4636
      %4752 = vmatpush1.msra.mxu0 %v4633
      %4753 = vmatprep.subr.mxu0 0.0
      %4754 = vmatpush1.msra.mxu0 0.0
      %4755 = vmatprep.subr.mxu0 0.0
      %4756 = vmatpush1.msra.mxu0 0.0
      %4757 = vmatprep.subr.mxu0 0.0
      %4758 = vmatpush1.msra.mxu0 0.0
      %4759 = vmatprep.subr.mxu0 0.0
      %4760 = vmatpush1.msra.mxu0 0.0
      %4761 = vmatprep.subr.mxu0 0.0
      %4762 = vmatpush1.msra.mxu0 0.0
      %4763 = vmatprep.subr.mxu0 0.0
      %4764 = vmatpush1.msra.mxu0 0.0
      %4765 = vmatprep.subr.mxu0 0.0
      %4766 = vmatpush1.msra.mxu0 0.0
      %4767 = vmatprep.subr.mxu0 0.0
      %4768 = vmatpush1.msra.mxu0 0.0
      %4769 = vmatprep.subr.mxu0 0.0
      %4770 = vmatpush1.msra.mxu0 0.0
      %4771 = vmatprep.subr.mxu0 0.0
      %4772 = vmatpush1.msra.mxu0 0.0
      %4773 = vmatprep.subr.mxu0 0.0
      %4774 = vmatpush1.msra.mxu0 0.0
      %4775 = vmatprep.subr.mxu0 0.0
      %4776 = vmatpush1.msra.mxu0 0.0
      %4777 = vmatprep.subr.mxu0 0.0
      %4778 = vmatpush1.msra.mxu0 0.0
      %4779 = vmatprep.subr.mxu0 0.0
      %4780 = vmatpush1.msra.mxu0 0.0
      %4781 = vmatprep.subr.mxu0 0.0
      %4782 = vmatpush1.msra.mxu0 0.0
      %4783 = vmatprep.subr.mxu0 0.0
      %4784 = vmatpush1.msra.mxu0 0.0
      %4785 = vmatprep.subr.mxu0 0.0
      %4786 = vmatpush1.msra.mxu0 0.0
      %4787 = vmatprep.subr.mxu0 0.0
      %4788 = vmatpush1.msra.mxu0 0.0
      %4789 = vmatprep.subr.mxu0 0.0
      %4790 = vmatpush1.msra.mxu0 0.0
      %4791 = vmatprep.subr.mxu0 0.0
      %4792 = vmatpush1.msra.mxu0 0.0
      %4793 = vmatprep.subr.mxu0 0.0
      %4794 = vmatpush1.msra.mxu0 0.0
      %4795 = vmatprep.subr.mxu0 0.0
      %4796 = vmatpush1.msra.mxu0 0.0
      %4797 = vmatprep.subr.mxu0 0.0
      %4798 = vmatpush1.msra.mxu0 0.0
      %4799 = vmatprep.subr.mxu0 0.0
      %4800 = vmatpush1.msra.mxu0 0.0
      %4801 = vmatprep.subr.mxu0 0.0
      %4802 = vmatpush1.msra.mxu0 0.0
      %4803 = vmatprep.subr.mxu0 0.0
      %4804 = vmatpush1.msra.mxu0 0.0
      %4805 = vmatprep.subr.mxu0 0.0
      %4806 = vmatpush1.msra.mxu0 0.0
      %4807 = vmatprep.subr.mxu0 0.0
      %4808 = vmatpush1.msra.mxu0 0.0
      %4809 = vmatprep.subr.mxu0 0.0
      %4810 = vmatpush1.msra.mxu0 0.0
      %4811 = vmatprep.subr.mxu0 0.0
      %4812 = vmatpush1.msra.mxu0 0.0
      %4813 = vmatprep.subr.mxu0 0.0
      %4814 = vmatpush1.msra.mxu0 0.0
      %4815 = vmatprep.mubr.f32.mxu0 0.0
      %4816 = vmatmul.mubr.f32.gmra.mrb[0].mxu0 %v4621
      %v4817 = vpop.f32.mrb[0].mxu0
      %v4818 = vadd.f32 0.0, %v4817
      %v4819 = vpop.f32.mrb[0].mxu0
      %v4820 = vadd.f32 0.0, %v4819
      %4821 = vmatprep.mubr.f32.mxu0 0.0
      %4822 = vmatmul.mubr.f32.gmra.mrb[0].mxu0 %v4624
      %v4823 = vpop.f32.mrb[0].mxu0
      %v4824 = vadd.f32 0.0, %v4823
      %v4825 = vpop.f32.mrb[0].mxu0
      %v4826 = vadd.f32 0.0, %v4825
      %4827 = vdwg.mxu0
      %4828 = vmatprep.subr.mxu0 %v4642
      %4829 = vmatpush1.msra.mxu0 %v4639
      %4830 = vmatprep.subr.mxu0 0.0
      %4831 = vmatpush1.msra.mxu0 0.0
      %4832 = vmatprep.subr.mxu0 0.0
      %4833 = vmatpush1.msra.mxu0 0.0
      %4834 = vmatprep.subr.mxu0 0.0
      %4835 = vmatpush1.msra.mxu0 0.0
      %4836 = vmatprep.subr.mxu0 0.0
      %4837 = vmatpush1.msra.mxu0 0.0
      %4838 = vmatprep.subr.mxu0 0.0
      %4839 = vmatpush1.msra.mxu0 0.0
      %4840 = vmatprep.subr.mxu0 0.0
      %4841 = vmatpush1.msra.mxu0 0.0
      %4842 = vmatprep.subr.mxu0 0.0
      %4843 = vmatpush1.msra.mxu0 0.0
      %4844 = vmatprep.subr.mxu0 0.0
      %4845 = vmatpush1.msra.mxu0 0.0
      %4846 = vmatprep.subr.mxu0 0.0
      %4847 = vmatpush1.msra.mxu0 0.0
      %4848 = vmatprep.subr.mxu0 0.0
      %4849 = vmatpush1.msra.mxu0 0.0
      %4850 = vmatprep.subr.mxu0 0.0
      %4851 = vmatpush1.msra.mxu0 0.0
      %4852 = vmatprep.subr.mxu0 0.0
      %4853 = vmatpush1.msra.mxu0 0.0
      %4854 = vmatprep.subr.mxu0 0.0
      %4855 = vmatpush1.msra.mxu0 0.0
      %4856 = vmatprep.subr.mxu0 0.0
      %4857 = vmatpush1.msra.mxu0 0.0
      %4858 = vmatprep.subr.mxu0 0.0
      %4859 = vmatpush1.msra.mxu0 0.0
      %4860 = vmatprep.subr.mxu0 0.0
      %4861 = vmatpush1.msra.mxu0 0.0
      %4862 = vmatprep.subr.mxu0 0.0
      %4863 = vmatpush1.msra.mxu0 0.0
      %4864 = vmatprep.subr.mxu0 0.0
      %4865 = vmatpush1.msra.mxu0 0.0
      %4866 = vmatprep.subr.mxu0 0.0
      %4867 = vmatpush1.msra.mxu0 0.0
      %4868 = vmatprep.subr.mxu0 0.0
      %4869 = vmatpush1.msra.mxu0 0.0
      %4870 = vmatprep.subr.mxu0 0.0
      %4871 = vmatpush1.msra.mxu0 0.0
      %4872 = vmatprep.subr.mxu0 0.0
      %4873 = vmatpush1.msra.mxu0 0.0
      %4874 = vmatprep.subr.mxu0 0.0
      %4875 = vmatpush1.msra.mxu0 0.0
      %4876 = vmatprep.subr.mxu0 0.0
      %4877 = vmatpush1.msra.mxu0 0.0
      %4878 = vmatprep.subr.mxu0 0.0
      %4879 = vmatpush1.msra.mxu0 0.0
      %4880 = vmatprep.subr.mxu0 0.0
      %4881 = vmatpush1.msra.mxu0 0.0
      %4882 = vmatprep.subr.mxu0 0.0
      %4883 = vmatpush1.msra.mxu0 0.0
      %4884 = vmatprep.subr.mxu0 0.0
      %4885 = vmatpush1.msra.mxu0 0.0
      %4886 = vmatprep.subr.mxu0 0.0
      %4887 = vmatpush1.msra.mxu0 0.0
      %4888 = vmatprep.subr.mxu0 0.0
      %4889 = vmatpush1.msra.mxu0 0.0
      %4890 = vmatprep.subr.mxu0 0.0
      %4891 = vmatpush1.msra.mxu0 0.0
      %4892 = vmatprep.mubr.f32.mxu0 0.0
      %4893 = vmatmul.mubr.f32.gmra.mrb[0].mxu0 %v4621
      %v4894 = vpop.f32.mrb[0].mxu0
      %v4895 = vadd.f32 0.0, %v4894
      %v4896 = vpop.f32.mrb[0].mxu0
      %v4897 = vadd.f32 0.0, %v4896
      %4898 = vmatprep.mubr.f32.mxu0 0.0
      %4899 = vmatmul.mubr.f32.gmra.mrb[0].mxu0 %v4624
      %v4900 = vpop.f32.mrb[0].mxu0
      %v4901 = vadd.f32 0.0, %v4900
      %v4902 = vpop.f32.mrb[0].mxu0
      %v4903 = vadd.f32 0.0, %v4902
      %4904 = vdwg.mxu0
      %4905 = vmatprep.subr.mxu0 %v4648
      %4906 = vmatpush1.msra.mxu0 %v4645
      %4907 = vmatprep.subr.mxu0 0.0
      %4908 = vmatpush1.msra.mxu0 0.0
      %4909 = vmatprep.subr.mxu0 0.0
      %4910 = vmatpush1.msra.mxu0 0.0
      %4911 = vmatprep.subr.mxu0 0.0
      %4912 = vmatpush1.msra.mxu0 0.0
      %4913 = vmatprep.subr.mxu0 0.0
      %4914 = vmatpush1.msra.mxu0 0.0
      %4915 = vmatprep.subr.mxu0 0.0
      %4916 = vmatpush1.msra.mxu0 0.0
      %4917 = vmatprep.subr.mxu0 0.0
      %4918 = vmatpush1.msra.mxu0 0.0
      %4919 = vmatprep.subr.mxu0 0.0
      %4920 = vmatpush1.msra.mxu0 0.0
      %4921 = vmatprep.subr.mxu0 0.0
      %4922 = vmatpush1.msra.mxu0 0.0
      %4923 = vmatprep.subr.mxu0 0.0
      %4924 = vmatpush1.msra.mxu0 0.0
      %4925 = vmatprep.subr.mxu0 0.0
      %4926 = vmatpush1.msra.mxu0 0.0
      %4927 = vmatprep.subr.mxu0 0.0
      %4928 = vmatpush1.msra.mxu0 0.0
      %4929 = vmatprep.subr.mxu0 0.0
      %4930 = vmatpush1.msra.mxu0 0.0
      %4931 = vmatprep.subr.mxu0 0.0
      %4932 = vmatpush1.msra.mxu0 0.0
      %4933 = vmatprep.subr.mxu0 0.0
      %4934 = vmatpush1.msra.mxu0 0.0
      %4935 = vmatprep.subr.mxu0 0.0
      %4936 = vmatpush1.msra.mxu0 0.0
      %4937 = vmatprep.subr.mxu0 0.0
      %4938 = vmatpush1.msra.mxu0 0.0
      %4939 = vmatprep.subr.mxu0 0.0
      %4940 = vmatpush1.msra.mxu0 0.0
      %4941 = vmatprep.subr.mxu0 0.0
      %4942 = vmatpush1.msra.mxu0 0.0
      %4943 = vmatprep.subr.mxu0 0.0
      %4944 = vmatpush1.msra.mxu0 0.0
      %4945 = vmatprep.subr.mxu0 0.0
      %4946 = vmatpush1.msra.mxu0 0.0
      %4947 = vmatprep.subr.mxu0 0.0
      %4948 = vmatpush1.msra.mxu0 0.0
      %4949 = vmatprep.subr.mxu0 0.0
      %4950 = vmatpush1.msra.mxu0 0.0
      %4951 = vmatprep.subr.mxu0 0.0
      %4952 = vmatpush1.msra.mxu0 0.0
      %4953 = vmatprep.subr.mxu0 0.0
      %4954 = vmatpush1.msra.mxu0 0.0
      %4955 = vmatprep.subr.mxu0 0.0
      %4956 = vmatpush1.msra.mxu0 0.0
      %4957 = vmatprep.subr.mxu0 0.0
      %4958 = vmatpush1.msra.mxu0 0.0
      %4959 = vmatprep.subr.mxu0 0.0
      %4960 = vmatpush1.msra.mxu0 0.0
      %4961 = vmatprep.subr.mxu0 0.0
      %4962 = vmatpush1.msra.mxu0 0.0
      %4963 = vmatprep.subr.mxu0 0.0
      %4964 = vmatpush1.msra.mxu0 0.0
      %4965 = vmatprep.subr.mxu0 0.0
      %4966 = vmatpush1.msra.mxu0 0.0
      %4967 = vmatprep.subr.mxu0 0.0
      %4968 = vmatpush1.msra.mxu0 0.0
      %4969 = vmatprep.mubr.f32.mxu0 0.0
      %4970 = vmatmul.mubr.f32.gmra.mrb[0].mxu0 %v4621
      %v4971 = vpop.f32.mrb[0].mxu0
      %v4972 = vadd.f32 0.0, %v4971
      %v4973 = vpop.f32.mrb[0].mxu0
      %v4974 = vadd.f32 0.0, %v4973
      %4975 = vmatprep.mubr.f32.mxu0 0.0
      %4976 = vmatmul.mubr.f32.gmra.mrb[0].mxu0 %v4624
      %v4977 = vpop.f32.mrb[0].mxu0
      %v4978 = vadd.f32 0.0, %v4977
      %v4979 = vpop.f32.mrb[0].mxu0
      %v4980 = vadd.f32 0.0, %v4979
      %4981 = vdwg.mxu0
      %4982 = vmatprep.subr.mxu0 %v4654
      %4983 = vmatpush1.msra.mxu0 %v4651
      %4984 = vmatprep.subr.mxu0 0.0
      %4985 = vmatpush1.msra.mxu0 0.0
      %4986 = vmatprep.subr.mxu0 0.0
      %4987 = vmatpush1.msra.mxu0 0.0
      %4988 = vmatprep.subr.mxu0 0.0
      %4989 = vmatpush1.msra.mxu0 0.0
      %4990 = vmatprep.subr.mxu0 0.0
      %4991 = vmatpush1.msra.mxu0 0.0
      %4992 = vmatprep.subr.mxu0 0.0
      %4993 = vmatpush1.msra.mxu0 0.0
      %4994 = vmatprep.subr.mxu0 0.0
      %4995 = vmatpush1.msra.mxu0 0.0
      %4996 = vmatprep.subr.mxu0 0.0
      %4997 = vmatpush1.msra.mxu0 0.0
      %4998 = vmatprep.subr.mxu0 0.0
      %4999 = vmatpush1.msra.mxu0 0.0
      %5000 = vmatprep.subr.mxu0 0.0
      %5001 = vmatpush1.msra.mxu0 0.0
      %5002 = vmatprep.subr.mxu0 0.0
      %5003 = vmatpush1.msra.mxu0 0.0
      %5004 = vmatprep.subr.mxu0 0.0
      %5005 = vmatpush1.msra.mxu0 0.0
      %5006 = vmatprep.subr.mxu0 0.0
      %5007 = vmatpush1.msra.mxu0 0.0
      %5008 = vmatprep.subr.mxu0 0.0
      %5009 = vmatpush1.msra.mxu0 0.0
      %5010 = vmatprep.subr.mxu0 0.0
      %5011 = vmatpush1.msra.mxu0 0.0
      %5012 = vmatprep.subr.mxu0 0.0
      %5013 = vmatpush1.msra.mxu0 0.0
      %5014 = vmatprep.subr.mxu0 0.0
      %5015 = vmatpush1.msra.mxu0 0.0
      %5016 = vmatprep.subr.mxu0 0.0
      %5017 = vmatpush1.msra.mxu0 0.0
      %5018 = vmatprep.subr.mxu0 0.0
      %5019 = vmatpush1.msra.mxu0 0.0
      %5020 = vmatprep.subr.mxu0 0.0
      %5021 = vmatpush1.msra.mxu0 0.0
      %5022 = vmatprep.subr.mxu0 0.0
      %5023 = vmatpush1.msra.mxu0 0.0
      %5024 = vmatprep.subr.mxu0 0.0
      %5025 = vmatpush1.msra.mxu0 0.0
      %5026 = vmatprep.subr.mxu0 0.0
      %5027 = vmatpush1.msra.mxu0 0.0
      %5028 = vmatprep.subr.mxu0 0.0
      %5029 = vmatpush1.msra.mxu0 0.0
      %5030 = vmatprep.subr.mxu0 0.0
      %5031 = vmatpush1.msra.mxu0 0.0
      %5032 = vmatprep.subr.mxu0 0.0
      %5033 = vmatpush1.msra.mxu0 0.0
      %5034 = vmatprep.subr.mxu0 0.0
      %5035 = vmatpush1.msra.mxu0 0.0
      %5036 = vmatprep.subr.mxu0 0.0
      %5037 = vmatpush1.msra.mxu0 0.0
      %5038 = vmatprep.subr.mxu0 0.0
      %5039 = vmatpush1.msra.mxu0 0.0
      %5040 = vmatprep.subr.mxu0 0.0
      %5041 = vmatpush1.msra.mxu0 0.0
      %5042 = vmatprep.subr.mxu0 0.0
      %5043 = vmatpush1.msra.mxu0 0.0
      %5044 = vmatprep.subr.mxu0 0.0
      %5045 = vmatpush1.msra.mxu0 0.0
      %5046 = vmatprep.mubr.f32.mxu0 0.0
      %5047 = vmatmul.mubr.f32.gmra.mrb[0].mxu0 %v4621
      %v5048 = vpop.f32.mrb[0].mxu0
      %v5049 = vadd.f32 0.0, %v5048
      %v5050 = vpop.f32.mrb[0].mxu0
      %v5051 = vadd.f32 0.0, %v5050
      %5052 = vmatprep.mubr.f32.mxu0 0.0
      %5053 = vmatmul.mubr.f32.gmra.mrb[0].mxu0 %v4624
      %v5054 = vpop.f32.mrb[0].mxu0
      %v5055 = vadd.f32 0.0, %v5054
      %v5056 = vpop.f32.mrb[0].mxu0
      %v5057 = vadd.f32 0.0, %v5056
      %5058 = vdwg.mxu0
      %5059 = vmatprep.subr.mxu0 %v4660
      %5060 = vmatpush1.msra.mxu0 %v4657
      %5061 = vmatprep.subr.mxu0 0.0
      %5062 = vmatpush1.msra.mxu0 0.0
      %5063 = vmatprep.subr.mxu0 0.0
      %5064 = vmatpush1.msra.mxu0 0.0
      %5065 = vmatprep.subr.mxu0 0.0
      %5066 = vmatpush1.msra.mxu0 0.0
      %5067 = vmatprep.subr.mxu0 0.0
      %5068 = vmatpush1.msra.mxu0 0.0
      %5069 = vmatprep.subr.mxu0 0.0
      %5070 = vmatpush1.msra.mxu0 0.0
      %5071 = vmatprep.subr.mxu0 0.0
      %5072 = vmatpush1.msra.mxu0 0.0
      %5073 = vmatprep.subr.mxu0 0.0
      %5074 = vmatpush1.msra.mxu0 0.0
      %5075 = vmatprep.subr.mxu0 0.0
      %5076 = vmatpush1.msra.mxu0 0.0
      %5077 = vmatprep.subr.mxu0 0.0
      %5078 = vmatpush1.msra.mxu0 0.0
      %5079 = vmatprep.subr.mxu0 0.0
      %5080 = vmatpush1.msra.mxu0 0.0
      %5081 = vmatprep.subr.mxu0 0.0
      %5082 = vmatpush1.msra.mxu0 0.0
      %5083 = vmatprep.subr.mxu0 0.0
      %5084 = vmatpush1.msra.mxu0 0.0
      %5085 = vmatprep.subr.mxu0 0.0
      %5086 = vmatpush1.msra.mxu0 0.0
      %5087 = vmatprep.subr.mxu0 0.0
      %5088 = vmatpush1.msra.mxu0 0.0
      %5089 = vmatprep.subr.mxu0 0.0
      %5090 = vmatpush1.msra.mxu0 0.0
      %5091 = vmatprep.subr.mxu0 0.0
      %5092 = vmatpush1.msra.mxu0 0.0
      %5093 = vmatprep.subr.mxu0 0.0
      %5094 = vmatpush1.msra.mxu0 0.0
      %5095 = vmatprep.subr.mxu0 0.0
      %5096 = vmatpush1.msra.mxu0 0.0
      %5097 = vmatprep.subr.mxu0 0.0
      %5098 = vmatpush1.msra.mxu0 0.0
      %5099 = vmatprep.subr.mxu0 0.0
      %5100 = vmatpush1.msra.mxu0 0.0
      %5101 = vmatprep.subr.mxu0 0.0
      %5102 = vmatpush1.msra.mxu0 0.0
      %5103 = vmatprep.subr.mxu0 0.0
      %5104 = vmatpush1.msra.mxu0 0.0
      %5105 = vmatprep.subr.mxu0 0.0
      %5106 = vmatpush1.msra.mxu0 0.0
      %5107 = vmatprep.subr.mxu0 0.0
      %5108 = vmatpush1.msra.mxu0 0.0
      %5109 = vmatprep.subr.mxu0 0.0
      %5110 = vmatpush1.msra.mxu0 0.0
      %5111 = vmatprep.subr.mxu0 0.0
      %5112 = vmatpush1.msra.mxu0 0.0
      %5113 = vmatprep.subr.mxu0 0.0
      %5114 = vmatpush1.msra.mxu0 0.0
      %5115 = vmatprep.subr.mxu0 0.0
      %5116 = vmatpush1.msra.mxu0 0.0
      %5117 = vmatprep.subr.mxu0 0.0
      %5118 = vmatpush1.msra.mxu0 0.0
      %5119 = vmatprep.subr.mxu0 0.0
      %5120 = vmatpush1.msra.mxu0 0.0
      %5121 = vmatprep.subr.mxu0 0.0
      %5122 = vmatpush1.msra.mxu0 0.0
      %5123 = vmatprep.mubr.f32.mxu0 0.0
      %5124 = vmatmul.mubr.f32.gmra.mrb[0].mxu0 %v4621
      %v5125 = vpop.f32.mrb[0].mxu0
      %v5126 = vadd.f32 0.0, %v5125
      %v5127 = vpop.f32.mrb[0].mxu0
      %v5128 = vadd.f32 0.0, %v5127
      %5129 = vmatprep.mubr.f32.mxu0 0.0
      %5130 = vmatmul.mubr.f32.gmra.mrb[0].mxu0 %v4624
      %v5131 = vpop.f32.mrb[0].mxu0
      %v5132 = vadd.f32 0.0, %v5131
      %v5133 = vpop.f32.mrb[0].mxu0
      %v5134 = vadd.f32 0.0, %v5133
      %5135 = vdwg.mxu0
      %5136 = vmatprep.subr.mxu0 %v4666
      %5137 = vmatpush1.msra.mxu0 %v4663
      %5138 = vmatprep.subr.mxu0 0.0
      %5139 = vmatpush1.msra.mxu0 0.0
      %5140 = vmatprep.subr.mxu0 0.0
      %5141 = vmatpush1.msra.mxu0 0.0
      %5142 = vmatprep.subr.mxu0 0.0
      %5143 = vmatpush1.msra.mxu0 0.0
      %5144 = vmatprep.subr.mxu0 0.0
      %5145 = vmatpush1.msra.mxu0 0.0
      %5146 = vmatprep.subr.mxu0 0.0
      %5147 = vmatpush1.msra.mxu0 0.0
      %5148 = vmatprep.subr.mxu0 0.0
      %5149 = vmatpush1.msra.mxu0 0.0
      %5150 = vmatprep.subr.mxu0 0.0
      %5151 = vmatpush1.msra.mxu0 0.0
      %5152 = vmatprep.subr.mxu0 0.0
      %5153 = vmatpush1.msra.mxu0 0.0
      %5154 = vmatprep.subr.mxu0 0.0
      %5155 = vmatpush1.msra.mxu0 0.0
      %5156 = vmatprep.subr.mxu0 0.0
      %5157 = vmatpush1.msra.mxu0 0.0
      %5158 = vmatprep.subr.mxu0 0.0
      %5159 = vmatpush1.msra.mxu0 0.0
      %5160 = vmatprep.subr.mxu0 0.0
      %5161 = vmatpush1.msra.mxu0 0.0
      %5162 = vmatprep.subr.mxu0 0.0
      %5163 = vmatpush1.msra.mxu0 0.0
      %5164 = vmatprep.subr.mxu0 0.0
      %5165 = vmatpush1.msra.mxu0 0.0
      %5166 = vmatprep.subr.mxu0 0.0
      %5167 = vmatpush1.msra.mxu0 0.0
      %5168 = vmatprep.subr.mxu0 0.0
      %5169 = vmatpush1.msra.mxu0 0.0
      %5170 = vmatprep.subr.mxu0 0.0
      %5171 = vmatpush1.msra.mxu0 0.0
      %5172 = vmatprep.subr.mxu0 0.0
      %5173 = vmatpush1.msra.mxu0 0.0
      %5174 = vmatprep.subr.mxu0 0.0
      %5175 = vmatpush1.msra.mxu0 0.0
      %5176 = vmatprep.subr.mxu0 0.0
      %5177 = vmatpush1.msra.mxu0 0.0
      %5178 = vmatprep.subr.mxu0 0.0
      %5179 = vmatpush1.msra.mxu0 0.0
      %5180 = vmatprep.subr.mxu0 0.0
      %5181 = vmatpush1.msra.mxu0 0.0
      %5182 = vmatprep.subr.mxu0 0.0
      %5183 = vmatpush1.msra.mxu0 0.0
      %5184 = vmatprep.subr.mxu0 0.0
      %5185 = vmatpush1.msra.mxu0 0.0
      %5186 = vmatprep.subr.mxu0 0.0
      %5187 = vmatpush1.msra.mxu0 0.0
      %5188 = vmatprep.subr.mxu0 0.0
      %5189 = vmatpush1.msra.mxu0 0.0
      %5190 = vmatprep.subr.mxu0 0.0
      %5191 = vmatpush1.msra.mxu0 0.0
      %5192 = vmatprep.subr.mxu0 0.0
      %5193 = vmatpush1.msra.mxu0 0.0
      %5194 = vmatprep.subr.mxu0 0.0
      %5195 = vmatpush1.msra.mxu0 0.0
      %5196 = vmatprep.subr.mxu0 0.0
      %5197 = vmatpush1.msra.mxu0 0.0
      %5198 = vmatprep.subr.mxu0 0.0
      %5199 = vmatpush1.msra.mxu0 0.0
      %5200 = vmatprep.mubr.f32.mxu0 0.0
      %5201 = vmatmul.mubr.f32.gmra.mrb[0].mxu0 %v4621
      %v5202 = vpop.f32.mrb[0].mxu0
      %v5203 = vadd.f32 0.0, %v5202
      %v5204 = vpop.f32.mrb[0].mxu0
      %v5205 = vadd.f32 0.0, %v5204
      %5206 = vmatprep.mubr.f32.mxu0 0.0
      %5207 = vmatmul.mubr.f32.gmra.mrb[0].mxu0 %v4624
      %v5208 = vpop.f32.mrb[0].mxu0
      %v5209 = vadd.f32 0.0, %v5208
      %v5210 = vpop.f32.mrb[0].mxu0
      %v5211 = vadd.f32 0.0, %v5210
      %5212 = vdwg.mxu0
      %5213 = vmatprep.subr.mxu0 %v4672
      %5214 = vmatpush1.msra.mxu0 %v4669
      %5215 = vmatprep.subr.mxu0 0.0
      %5216 = vmatpush1.msra.mxu0 0.0
      %5217 = vmatprep.subr.mxu0 0.0
      %5218 = vmatpush1.msra.mxu0 0.0
      %5219 = vmatprep.subr.mxu0 0.0
      %5220 = vmatpush1.msra.mxu0 0.0
      %5221 = vmatprep.subr.mxu0 0.0
      %5222 = vmatpush1.msra.mxu0 0.0
      %5223 = vmatprep.subr.mxu0 0.0
      %5224 = vmatpush1.msra.mxu0 0.0
      %5225 = vmatprep.subr.mxu0 0.0
      %5226 = vmatpush1.msra.mxu0 0.0
      %5227 = vmatprep.subr.mxu0 0.0
      %5228 = vmatpush1.msra.mxu0 0.0
      %5229 = vmatprep.subr.mxu0 0.0
      %5230 = vmatpush1.msra.mxu0 0.0
      %5231 = vmatprep.subr.mxu0 0.0
      %5232 = vmatpush1.msra.mxu0 0.0
      %5233 = vmatprep.subr.mxu0 0.0
      %5234 = vmatpush1.msra.mxu0 0.0
      %5235 = vmatprep.subr.mxu0 0.0
      %5236 = vmatpush1.msra.mxu0 0.0
      %5237 = vmatprep.subr.mxu0 0.0
      %5238 = vmatpush1.msra.mxu0 0.0
      %5239 = vmatprep.subr.mxu0 0.0
      %5240 = vmatpush1.msra.mxu0 0.0
      %5241 = vmatprep.subr.mxu0 0.0
      %5242 = vmatpush1.msra.mxu0 0.0
      %5243 = vmatprep.subr.mxu0 0.0
      %5244 = vmatpush1.msra.mxu0 0.0
      %5245 = vmatprep.subr.mxu0 0.0
      %5246 = vmatpush1.msra.mxu0 0.0
      %5247 = vmatprep.subr.mxu0 0.0
      %5248 = vmatpush1.msra.mxu0 0.0
      %5249 = vmatprep.subr.mxu0 0.0
      %5250 = vmatpush1.msra.mxu0 0.0
      %5251 = vmatprep.subr.mxu0 0.0
      %5252 = vmatpush1.msra.mxu0 0.0
      %5253 = vmatprep.subr.mxu0 0.0
      %5254 = vmatpush1.msra.mxu0 0.0
      %5255 = vmatprep.subr.mxu0 0.0
      %5256 = vmatpush1.msra.mxu0 0.0
      %5257 = vmatprep.subr.mxu0 0.0
      %5258 = vmatpush1.msra.mxu0 0.0
      %5259 = vmatprep.subr.mxu0 0.0
      %5260 = vmatpush1.msra.mxu0 0.0
      %5261 = vmatprep.subr.mxu0 0.0
      %5262 = vmatpush1.msra.mxu0 0.0
      %5263 = vmatprep.subr.mxu0 0.0
      %5264 = vmatpush1.msra.mxu0 0.0
      %5265 = vmatprep.subr.mxu0 0.0
      %5266 = vmatpush1.msra.mxu0 0.0
      %5267 = vmatprep.subr.mxu0 0.0
      %5268 = vmatpush1.msra.mxu0 0.0
      %5269 = vmatprep.subr.mxu0 0.0
      %5270 = vmatpush1.msra.mxu0 0.0
      %5271 = vmatprep.subr.mxu0 0.0
      %5272 = vmatpush1.msra.mxu0 0.0
      %5273 = vmatprep.subr.mxu0 0.0
      %5274 = vmatpush1.msra.mxu0 0.0
      %5275 = vmatprep.subr.mxu0 0.0
      %5276 = vmatpush1.msra.mxu0 0.0
      %5277 = vmatprep.mubr.f32.mxu0 0.0
      %5278 = vmatmul.mubr.f32.gmra.mrb[0].mxu0 %v4621
      %v5279 = vpop.f32.mrb[0].mxu0
      %v5280 = vadd.f32 0.0, %v5279
      %v5281 = vpop.f32.mrb[0].mxu0
      %v5282 = vadd.f32 0.0, %v5281
      %5283 = vmatprep.mubr.f32.mxu0 0.0
      %5284 = vmatmul.mubr.f32.gmra.mrb[0].mxu0 %v4624
      %v5285 = vpop.f32.mrb[0].mxu0
      %v5286 = vadd.f32 0.0, %v5285
      %v5287 = vpop.f32.mrb[0].mxu0
      %v5288 = vadd.f32 0.0, %v5287
      %5289 = vdwg.mxu0
      %v5290 = vadd.f32 %v4435, %v4741
      %v5291 = vadd.f32 %v4436, %v4743
      %v5292 = vadd.f32 %v4437, %v4818
      %v5293 = vadd.f32 %v4438, %v4820
      %v5294 = vadd.f32 %v4439, %v4895
      %v5295 = vadd.f32 %v4440, %v4897
      %v5296 = vadd.f32 %v4441, %v4972
      %v5297 = vadd.f32 %v4442, %v4974
      %v5298 = vadd.f32 %v4443, %v5049
      %v5299 = vadd.f32 %v4444, %v5051
      %v5300 = vadd.f32 %v4445, %v5126
      %v5301 = vadd.f32 %v4446, %v5128
      %v5302 = vadd.f32 %v4447, %v5203
      %v5303 = vadd.f32 %v4448, %v5205
      %v5304 = vadd.f32 %v4449, %v5280
      %v5305 = vadd.f32 %v4450, %v5282
      %v5306 = vadd.f32 %v4451, %v4747
      %v5307 = vadd.f32 %v4452, %v4749
      %v5308 = vadd.f32 %v4453, %v4824
      %v5309 = vadd.f32 %v4454, %v4826
      %v5310 = vadd.f32 %v4455, %v4901
      %v5311 = vadd.f32 %v4456, %v4903
      %v5312 = vadd.f32 %v4457, %v4978
      %v5313 = vadd.f32 %v4458, %v4980
      %v5314 = vadd.f32 %v4459, %v5055
      %v5315 = vadd.f32 %v4460, %v5057
      %v5316 = vadd.f32 %v4461, %v5132
      %v5317 = vadd.f32 %v4462, %v5134
      %v5318 = vadd.f32 %v4463, %v5209
      %v5319 = vadd.f32 %v4464, %v5211
      %v5320 = vadd.f32 %v4465, %v5286
      %v5321 = vadd.f32 %v4466, %v5288
      %5322 = vrot.lane.b32.xlu0 %v279, 113
      %v5323 = vpop.permute.xlu0 %5322
      %5324 = vrot.lane.b32.xlu0 %v295, 113
      %v5325 = vpop.permute.xlu0 %5324
      %5326 = vrot.lane.b32.xlu0 %v280, 113
      %v5327 = vpop.permute.xlu0 %5326
      %5328 = vrot.lane.b32.xlu0 %v296, 113
      %v5329 = vpop.permute.xlu0 %5328
      %5330 = vrot.lane.b32.xlu0 %v281, 113
      %v5331 = vpop.permute.xlu0 %5330
      %5332 = vrot.lane.b32.xlu0 %v297, 113
      %v5333 = vpop.permute.xlu0 %5332
      %5334 = vrot.lane.b32.xlu0 %v282, 113
      %v5335 = vpop.permute.xlu0 %5334
      %5336 = vrot.lane.b32.xlu0 %v298, 113
      %v5337 = vpop.permute.xlu0 %5336
      %5338 = vrot.lane.b32.xlu0 %v283, 113
      %v5339 = vpop.permute.xlu0 %5338
      %5340 = vrot.lane.b32.xlu0 %v299, 113
      %v5341 = vpop.permute.xlu0 %5340
      %5342 = vrot.lane.b32.xlu0 %v284, 113
      %v5343 = vpop.permute.xlu0 %5342
      %5344 = vrot.lane.b32.xlu0 %v300, 113
      %v5345 = vpop.permute.xlu0 %5344
      %5346 = vrot.lane.b32.xlu0 %v285, 113
      %v5347 = vpop.permute.xlu0 %5346
      %5348 = vrot.lane.b32.xlu0 %v301, 113
      %v5349 = vpop.permute.xlu0 %5348
      %5350 = vrot.lane.b32.xlu0 %v286, 113
      %v5351 = vpop.permute.xlu0 %5350
      %5352 = vrot.lane.b32.xlu0 %v302, 113
      %v5353 = vpop.permute.xlu0 %5352
      %vm5354 = vcmp.lt.s32.totalorder %v344, 113
      %v5355 = vsel %vm5354, %v5351, %v5353
      %v5356 = vsel %vm5354, %v5349, %v5351
      %v5357 = vsel %vm5354, %v5347, %v5349
      %v5358 = vsel %vm5354, %v5345, %v5347
      %v5359 = vsel %vm5354, %v5343, %v5345
      %v5360 = vsel %vm5354, %v5341, %v5343
      %v5361 = vsel %vm5354, %v5339, %v5341
      %v5362 = vsel %vm5354, %v5337, %v5339
      %v5363 = vsel %vm5354, %v5335, %v5337
      %v5364 = vsel %vm5354, %v5333, %v5335
      %v5365 = vsel %vm5354, %v5331, %v5333
      %v5366 = vsel %vm5354, %v5329, %v5331
      %v5367 = vsel %vm5354, %v5327, %v5329
      %v5368 = vsel %vm5354, %v5325, %v5327
      %v5369 = vsel %vm5354, %v5323, %v5325
      %v5370 = vsel %vm5354, %v5353, %v5323
      %s5371 = scalar_lea.vmem %s5, 96
      %v5372 = vld [vmem:[%s5371] sm:$0xff]
      %v5373 = vld [vmem:[%s5371 + $0x8] sm:$0xff]
      %v5376 = vlaneseq
      %v5377 = vshrl.u32 %v5376, 7
      %v5378 = vsub.s32 0, %v5377
      %v5379 = vrot.slane %v5372, %v5378
      %v5380 = vlaneseq
      %v5381 = vshrl.u32 %v5380, 7
      %v5382 = vsub.s32 1, %v5381
      %v5383 = vrot.slane %v5372, %v5382
      %v5384 = vlaneseq
      %v5385 = vshrl.u32 %v5384, 7
      %v5386 = vsub.s32 2, %v5385
      %v5387 = vrot.slane %v5372, %v5386
      %v5388 = vlaneseq
      %v5389 = vshrl.u32 %v5388, 7
      %v5390 = vsub.s32 3, %v5389
      %v5391 = vrot.slane %v5372, %v5390
      %v5392 = vlaneseq
      %v5393 = vshrl.u32 %v5392, 7
      %v5394 = vsub.s32 4, %v5393
      %v5395 = vrot.slane %v5372, %v5394
      %v5396 = vlaneseq
      %v5397 = vshrl.u32 %v5396, 7
      %v5398 = vsub.s32 5, %v5397
      %v5399 = vrot.slane %v5372, %v5398
      %v5400 = vlaneseq
      %v5401 = vshrl.u32 %v5400, 7
      %v5402 = vsub.s32 6, %v5401
      %v5403 = vrot.slane %v5372, %v5402
      %v5404 = vlaneseq
      %v5405 = vshrl.u32 %v5404, 7
      %v5406 = vsub.s32 7, %v5405
      %v5407 = vrot.slane %v5372, %v5406
      %v5408 = vlaneseq
      %v5409 = vshrl.u32 %v5408, 7
      %v5410 = vsub.s32 0, %v5409
      %v5411 = vrot.slane %v5373, %v5410
      %v5412 = vlaneseq
      %v5413 = vshrl.u32 %v5412, 7
      %v5414 = vsub.s32 1, %v5413
      %v5415 = vrot.slane %v5373, %v5414
      %v5416 = vlaneseq
      %v5417 = vshrl.u32 %v5416, 7
      %v5418 = vsub.s32 2, %v5417
      %v5419 = vrot.slane %v5373, %v5418
      %v5420 = vlaneseq
      %v5421 = vshrl.u32 %v5420, 7
      %v5422 = vsub.s32 3, %v5421
      %v5423 = vrot.slane %v5373, %v5422
      %v5424 = vlaneseq
      %v5425 = vshrl.u32 %v5424, 7
      %v5426 = vsub.s32 4, %v5425
      %v5427 = vrot.slane %v5373, %v5426
      %v5428 = vlaneseq
      %v5429 = vshrl.u32 %v5428, 7
      %v5430 = vsub.s32 5, %v5429
      %v5431 = vrot.slane %v5373, %v5430
      %v5432 = vlaneseq
      %v5433 = vshrl.u32 %v5432, 7
      %v5434 = vsub.s32 6, %v5433
      %v5435 = vrot.slane %v5373, %v5434
      %v5436 = vlaneseq
      %v5437 = vshrl.u32 %v5436, 7
      %v5438 = vsub.s32 7, %v5437
      %v5439 = vrot.slane %v5373, %v5438
      %v5456 = vmul.f32 %v5369, %v5379
      %v5457 = vmul.f32 %v5368, %v5383
      %v5458 = vmul.f32 %v5367, %v5387
      %v5459 = vmul.f32 %v5366, %v5391
      %v5460 = vmul.f32 %v5365, %v5395
      %v5461 = vmul.f32 %v5364, %v5399
      %v5462 = vmul.f32 %v5363, %v5403
      %v5463 = vmul.f32 %v5362, %v5407
      %v5464 = vmul.f32 %v5361, %v5411
      %v5465 = vmul.f32 %v5360, %v5415
      %v5466 = vmul.f32 %v5359, %v5419
      %v5467 = vmul.f32 %v5358, %v5423
      %v5468 = vmul.f32 %v5357, %v5427
      %v5469 = vmul.f32 %v5356, %v5431
      %v5470 = vmul.f32 %v5355, %v5435
      %v5471 = vmul.f32 %v5370, %v5439
      %s5472 = scalar_lea.vmem %s1, 96
      %v5473 = vld [vmem:[%s5472] sm:$0xff]
      %v5474 = vld [vmem:[%s5472 + $0x8] sm:$0x1]
      %v5476 = vsel %vm617, %v5473, 0
      %v5479 = vsel %vm617, %v5474, 0
      %v5482 = vsel %vm624, %v5456, 0
      %v5485 = vsel %vm624, %v5457, 0
      %v5488 = vsel %vm624, %v5458, 0
      %v5491 = vsel %vm624, %v5459, 0
      %v5494 = vsel %vm624, %v5460, 0
      %v5497 = vsel %vm624, %v5461, 0
      %v5500 = vsel %vm624, %v5462, 0
      %v5503 = vsel %vm624, %v5463, 0
      %v5506 = vsel %vm624, %v5464, 0
      %v5509 = vsel %vm624, %v5465, 0
      %v5512 = vsel %vm624, %v5466, 0
      %v5515 = vsel %vm624, %v5467, 0
      %v5518 = vsel %vm624, %v5468, 0
      %v5521 = vsel %vm624, %v5469, 0
      %v5524 = vsel %vm624, %v5470, 0
      %v5527 = vsel %vm624, %v5471, 0
      %5529 = vmatprep.subr.mxu0 %v5485
      %5530 = vmatpush1.msra.mxu0 %v5482
      %5531 = vmatprep.subr.mxu0 0.0
      %5532 = vmatpush1.msra.mxu0 0.0
      %5533 = vmatprep.subr.mxu0 0.0
      %5534 = vmatpush1.msra.mxu0 0.0
      %5535 = vmatprep.subr.mxu0 0.0
      %5536 = vmatpush1.msra.mxu0 0.0
      %5537 = vmatprep.subr.mxu0 0.0
      %5538 = vmatpush1.msra.mxu0 0.0
      %5539 = vmatprep.subr.mxu0 0.0
      %5540 = vmatpush1.msra.mxu0 0.0
      %5541 = vmatprep.subr.mxu0 0.0
      %5542 = vmatpush1.msra.mxu0 0.0
      %5543 = vmatprep.subr.mxu0 0.0
      %5544 = vmatpush1.msra.mxu0 0.0
      %5545 = vmatprep.subr.mxu0 0.0
      %5546 = vmatpush1.msra.mxu0 0.0
      %5547 = vmatprep.subr.mxu0 0.0
      %5548 = vmatpush1.msra.mxu0 0.0
      %5549 = vmatprep.subr.mxu0 0.0
      %5550 = vmatpush1.msra.mxu0 0.0
      %5551 = vmatprep.subr.mxu0 0.0
      %5552 = vmatpush1.msra.mxu0 0.0
      %5553 = vmatprep.subr.mxu0 0.0
      %5554 = vmatpush1.msra.mxu0 0.0
      %5555 = vmatprep.subr.mxu0 0.0
      %5556 = vmatpush1.msra.mxu0 0.0
      %5557 = vmatprep.subr.mxu0 0.0
      %5558 = vmatpush1.msra.mxu0 0.0
      %5559 = vmatprep.subr.mxu0 0.0
      %5560 = vmatpush1.msra.mxu0 0.0
      %5561 = vmatprep.subr.mxu0 0.0
      %5562 = vmatpush1.msra.mxu0 0.0
      %5563 = vmatprep.subr.mxu0 0.0
      %5564 = vmatpush1.msra.mxu0 0.0
      %5565 = vmatprep.subr.mxu0 0.0
      %5566 = vmatpush1.msra.mxu0 0.0
      %5567 = vmatprep.subr.mxu0 0.0
      %5568 = vmatpush1.msra.mxu0 0.0
      %5569 = vmatprep.subr.mxu0 0.0
      %5570 = vmatpush1.msra.mxu0 0.0
      %5571 = vmatprep.subr.mxu0 0.0
      %5572 = vmatpush1.msra.mxu0 0.0
      %5573 = vmatprep.subr.mxu0 0.0
      %5574 = vmatpush1.msra.mxu0 0.0
      %5575 = vmatprep.subr.mxu0 0.0
      %5576 = vmatpush1.msra.mxu0 0.0
      %5577 = vmatprep.subr.mxu0 0.0
      %5578 = vmatpush1.msra.mxu0 0.0
      %5579 = vmatprep.subr.mxu0 0.0
      %5580 = vmatpush1.msra.mxu0 0.0
      %5581 = vmatprep.subr.mxu0 0.0
      %5582 = vmatpush1.msra.mxu0 0.0
      %5583 = vmatprep.subr.mxu0 0.0
      %5584 = vmatpush1.msra.mxu0 0.0
      %5585 = vmatprep.subr.mxu0 0.0
      %5586 = vmatpush1.msra.mxu0 0.0
      %5587 = vmatprep.subr.mxu0 0.0
      %5588 = vmatpush1.msra.mxu0 0.0
      %5589 = vmatprep.subr.mxu0 0.0
      %5590 = vmatpush1.msra.mxu0 0.0
      %5591 = vmatprep.subr.mxu0 0.0
      %5592 = vmatpush1.msra.mxu0 0.0
      %5593 = vmatprep.mubr.f32.mxu0 0.0
      %5594 = vmatmul.mubr.f32.gmra.mrb[0].mxu0 %v5476
      %v5595 = vpop.f32.mrb[0].mxu0
      %v5596 = vadd.f32 0.0, %v5595
      %v5597 = vpop.f32.mrb[0].mxu0
      %v5598 = vadd.f32 0.0, %v5597
      %5599 = vmatprep.mubr.f32.mxu0 0.0
      %5600 = vmatmul.mubr.f32.gmra.mrb[0].mxu0 %v5479
      %v5601 = vpop.f32.mrb[0].mxu0
      %v5602 = vadd.f32 0.0, %v5601
      %v5603 = vpop.f32.mrb[0].mxu0
      %v5604 = vadd.f32 0.0, %v5603
      %5605 = vdwg.mxu0
      %5606 = vmatprep.subr.mxu0 %v5491
      %5607 = vmatpush1.msra.mxu0 %v5488
      %5608 = vmatprep.subr.mxu0 0.0
      %5609 = vmatpush1.msra.mxu0 0.0
      %5610 = vmatprep.subr.mxu0 0.0
      %5611 = vmatpush1.msra.mxu0 0.0
      %5612 = vmatprep.subr.mxu0 0.0
      %5613 = vmatpush1.msra.mxu0 0.0
      %5614 = vmatprep.subr.mxu0 0.0
      %5615 = vmatpush1.msra.mxu0 0.0
      %5616 = vmatprep.subr.mxu0 0.0
      %5617 = vmatpush1.msra.mxu0 0.0
      %5618 = vmatprep.subr.mxu0 0.0
      %5619 = vmatpush1.msra.mxu0 0.0
      %5620 = vmatprep.subr.mxu0 0.0
      %5621 = vmatpush1.msra.mxu0 0.0
      %5622 = vmatprep.subr.mxu0 0.0
      %5623 = vmatpush1.msra.mxu0 0.0
      %5624 = vmatprep.subr.mxu0 0.0
      %5625 = vmatpush1.msra.mxu0 0.0
      %5626 = vmatprep.subr.mxu0 0.0
      %5627 = vmatpush1.msra.mxu0 0.0
      %5628 = vmatprep.subr.mxu0 0.0
      %5629 = vmatpush1.msra.mxu0 0.0
      %5630 = vmatprep.subr.mxu0 0.0
      %5631 = vmatpush1.msra.mxu0 0.0
      %5632 = vmatprep.subr.mxu0 0.0
      %5633 = vmatpush1.msra.mxu0 0.0
      %5634 = vmatprep.subr.mxu0 0.0
      %5635 = vmatpush1.msra.mxu0 0.0
      %5636 = vmatprep.subr.mxu0 0.0
      %5637 = vmatpush1.msra.mxu0 0.0
      %5638 = vmatprep.subr.mxu0 0.0
      %5639 = vmatpush1.msra.mxu0 0.0
      %5640 = vmatprep.subr.mxu0 0.0
      %5641 = vmatpush1.msra.mxu0 0.0
      %5642 = vmatprep.subr.mxu0 0.0
      %5643 = vmatpush1.msra.mxu0 0.0
      %5644 = vmatprep.subr.mxu0 0.0
      %5645 = vmatpush1.msra.mxu0 0.0
      %5646 = vmatprep.subr.mxu0 0.0
      %5647 = vmatpush1.msra.mxu0 0.0
      %5648 = vmatprep.subr.mxu0 0.0
      %5649 = vmatpush1.msra.mxu0 0.0
      %5650 = vmatprep.subr.mxu0 0.0
      %5651 = vmatpush1.msra.mxu0 0.0
      %5652 = vmatprep.subr.mxu0 0.0
      %5653 = vmatpush1.msra.mxu0 0.0
      %5654 = vmatprep.subr.mxu0 0.0
      %5655 = vmatpush1.msra.mxu0 0.0
      %5656 = vmatprep.subr.mxu0 0.0
      %5657 = vmatpush1.msra.mxu0 0.0
      %5658 = vmatprep.subr.mxu0 0.0
      %5659 = vmatpush1.msra.mxu0 0.0
      %5660 = vmatprep.subr.mxu0 0.0
      %5661 = vmatpush1.msra.mxu0 0.0
      %5662 = vmatprep.subr.mxu0 0.0
      %5663 = vmatpush1.msra.mxu0 0.0
      %5664 = vmatprep.subr.mxu0 0.0
      %5665 = vmatpush1.msra.mxu0 0.0
      %5666 = vmatprep.subr.mxu0 0.0
      %5667 = vmatpush1.msra.mxu0 0.0
      %5668 = vmatprep.subr.mxu0 0.0
      %5669 = vmatpush1.msra.mxu0 0.0
      %5670 = vmatprep.mubr.f32.mxu0 0.0
      %5671 = vmatmul.mubr.f32.gmra.mrb[0].mxu0 %v5476
      %v5672 = vpop.f32.mrb[0].mxu0
      %v5673 = vadd.f32 0.0, %v5672
      %v5674 = vpop.f32.mrb[0].mxu0
      %v5675 = vadd.f32 0.0, %v5674
      %5676 = vmatprep.mubr.f32.mxu0 0.0
      %5677 = vmatmul.mubr.f32.gmra.mrb[0].mxu0 %v5479
      %v5678 = vpop.f32.mrb[0].mxu0
      %v5679 = vadd.f32 0.0, %v5678
      %v5680 = vpop.f32.mrb[0].mxu0
      %v5681 = vadd.f32 0.0, %v5680
      %5682 = vdwg.mxu0
      %5683 = vmatprep.subr.mxu0 %v5497
      %5684 = vmatpush1.msra.mxu0 %v5494
      %5685 = vmatprep.subr.mxu0 0.0
      %5686 = vmatpush1.msra.mxu0 0.0
      %5687 = vmatprep.subr.mxu0 0.0
      %5688 = vmatpush1.msra.mxu0 0.0
      %5689 = vmatprep.subr.mxu0 0.0
      %5690 = vmatpush1.msra.mxu0 0.0
      %5691 = vmatprep.subr.mxu0 0.0
      %5692 = vmatpush1.msra.mxu0 0.0
      %5693 = vmatprep.subr.mxu0 0.0
      %5694 = vmatpush1.msra.mxu0 0.0
      %5695 = vmatprep.subr.mxu0 0.0
      %5696 = vmatpush1.msra.mxu0 0.0
      %5697 = vmatprep.subr.mxu0 0.0
      %5698 = vmatpush1.msra.mxu0 0.0
      %5699 = vmatprep.subr.mxu0 0.0
      %5700 = vmatpush1.msra.mxu0 0.0
      %5701 = vmatprep.subr.mxu0 0.0
      %5702 = vmatpush1.msra.mxu0 0.0
      %5703 = vmatprep.subr.mxu0 0.0
      %5704 = vmatpush1.msra.mxu0 0.0
      %5705 = vmatprep.subr.mxu0 0.0
      %5706 = vmatpush1.msra.mxu0 0.0
      %5707 = vmatprep.subr.mxu0 0.0
      %5708 = vmatpush1.msra.mxu0 0.0
      %5709 = vmatprep.subr.mxu0 0.0
      %5710 = vmatpush1.msra.mxu0 0.0
      %5711 = vmatprep.subr.mxu0 0.0
      %5712 = vmatpush1.msra.mxu0 0.0
      %5713 = vmatprep.subr.mxu0 0.0
      %5714 = vmatpush1.msra.mxu0 0.0
      %5715 = vmatprep.subr.mxu0 0.0
      %5716 = vmatpush1.msra.mxu0 0.0
      %5717 = vmatprep.subr.mxu0 0.0
      %5718 = vmatpush1.msra.mxu0 0.0
      %5719 = vmatprep.subr.mxu0 0.0
      %5720 = vmatpush1.msra.mxu0 0.0
      %5721 = vmatprep.subr.mxu0 0.0
      %5722 = vmatpush1.msra.mxu0 0.0
      %5723 = vmatprep.subr.mxu0 0.0
      %5724 = vmatpush1.msra.mxu0 0.0
      %5725 = vmatprep.subr.mxu0 0.0
      %5726 = vmatpush1.msra.mxu0 0.0
      %5727 = vmatprep.subr.mxu0 0.0
      %5728 = vmatpush1.msra.mxu0 0.0
      %5729 = vmatprep.subr.mxu0 0.0
      %5730 = vmatpush1.msra.mxu0 0.0
      %5731 = vmatprep.subr.mxu0 0.0
      %5732 = vmatpush1.msra.mxu0 0.0
      %5733 = vmatprep.subr.mxu0 0.0
      %5734 = vmatpush1.msra.mxu0 0.0
      %5735 = vmatprep.subr.mxu0 0.0
      %5736 = vmatpush1.msra.mxu0 0.0
      %5737 = vmatprep.subr.mxu0 0.0
      %5738 = vmatpush1.msra.mxu0 0.0
      %5739 = vmatprep.subr.mxu0 0.0
      %5740 = vmatpush1.msra.mxu0 0.0
      %5741 = vmatprep.subr.mxu0 0.0
      %5742 = vmatpush1.msra.mxu0 0.0
      %5743 = vmatprep.subr.mxu0 0.0
      %5744 = vmatpush1.msra.mxu0 0.0
      %5745 = vmatprep.subr.mxu0 0.0
      %5746 = vmatpush1.msra.mxu0 0.0
      %5747 = vmatprep.mubr.f32.mxu0 0.0
      %5748 = vmatmul.mubr.f32.gmra.mrb[0].mxu0 %v5476
      %v5749 = vpop.f32.mrb[0].mxu0
      %v5750 = vadd.f32 0.0, %v5749
      %v5751 = vpop.f32.mrb[0].mxu0
      %v5752 = vadd.f32 0.0, %v5751
      %5753 = vmatprep.mubr.f32.mxu0 0.0
      %5754 = vmatmul.mubr.f32.gmra.mrb[0].mxu0 %v5479
      %v5755 = vpop.f32.mrb[0].mxu0
      %v5756 = vadd.f32 0.0, %v5755
      %v5757 = vpop.f32.mrb[0].mxu0
      %v5758 = vadd.f32 0.0, %v5757
      %5759 = vdwg.mxu0
      %5760 = vmatprep.subr.mxu0 %v5503
      %5761 = vmatpush1.msra.mxu0 %v5500
      %5762 = vmatprep.subr.mxu0 0.0
      %5763 = vmatpush1.msra.mxu0 0.0
      %5764 = vmatprep.subr.mxu0 0.0
      %5765 = vmatpush1.msra.mxu0 0.0
      %5766 = vmatprep.subr.mxu0 0.0
      %5767 = vmatpush1.msra.mxu0 0.0
      %5768 = vmatprep.subr.mxu0 0.0
      %5769 = vmatpush1.msra.mxu0 0.0
      %5770 = vmatprep.subr.mxu0 0.0
      %5771 = vmatpush1.msra.mxu0 0.0
      %5772 = vmatprep.subr.mxu0 0.0
      %5773 = vmatpush1.msra.mxu0 0.0
      %5774 = vmatprep.subr.mxu0 0.0
      %5775 = vmatpush1.msra.mxu0 0.0
      %5776 = vmatprep.subr.mxu0 0.0
      %5777 = vmatpush1.msra.mxu0 0.0
      %5778 = vmatprep.subr.mxu0 0.0
      %5779 = vmatpush1.msra.mxu0 0.0
      %5780 = vmatprep.subr.mxu0 0.0
      %5781 = vmatpush1.msra.mxu0 0.0
      %5782 = vmatprep.subr.mxu0 0.0
      %5783 = vmatpush1.msra.mxu0 0.0
      %5784 = vmatprep.subr.mxu0 0.0
      %5785 = vmatpush1.msra.mxu0 0.0
      %5786 = vmatprep.subr.mxu0 0.0
      %5787 = vmatpush1.msra.mxu0 0.0
      %5788 = vmatprep.subr.mxu0 0.0
      %5789 = vmatpush1.msra.mxu0 0.0
      %5790 = vmatprep.subr.mxu0 0.0
      %5791 = vmatpush1.msra.mxu0 0.0
      %5792 = vmatprep.subr.mxu0 0.0
      %5793 = vmatpush1.msra.mxu0 0.0
      %5794 = vmatprep.subr.mxu0 0.0
      %5795 = vmatpush1.msra.mxu0 0.0
      %5796 = vmatprep.subr.mxu0 0.0
      %5797 = vmatpush1.msra.mxu0 0.0
      %5798 = vmatprep.subr.mxu0 0.0
      %5799 = vmatpush1.msra.mxu0 0.0
      %5800 = vmatprep.subr.mxu0 0.0
      %5801 = vmatpush1.msra.mxu0 0.0
      %5802 = vmatprep.subr.mxu0 0.0
      %5803 = vmatpush1.msra.mxu0 0.0
      %5804 = vmatprep.subr.mxu0 0.0
      %5805 = vmatpush1.msra.mxu0 0.0
      %5806 = vmatprep.subr.mxu0 0.0
      %5807 = vmatpush1.msra.mxu0 0.0
      %5808 = vmatprep.subr.mxu0 0.0
      %5809 = vmatpush1.msra.mxu0 0.0
      %5810 = vmatprep.subr.mxu0 0.0
      %5811 = vmatpush1.msra.mxu0 0.0
      %5812 = vmatprep.subr.mxu0 0.0
      %5813 = vmatpush1.msra.mxu0 0.0
      %5814 = vmatprep.subr.mxu0 0.0
      %5815 = vmatpush1.msra.mxu0 0.0
      %5816 = vmatprep.subr.mxu0 0.0
      %5817 = vmatpush1.msra.mxu0 0.0
      %5818 = vmatprep.subr.mxu0 0.0
      %5819 = vmatpush1.msra.mxu0 0.0
      %5820 = vmatprep.subr.mxu0 0.0
      %5821 = vmatpush1.msra.mxu0 0.0
      %5822 = vmatprep.subr.mxu0 0.0
      %5823 = vmatpush1.msra.mxu0 0.0
      %5824 = vmatprep.mubr.f32.mxu0 0.0
      %5825 = vmatmul.mubr.f32.gmra.mrb[0].mxu0 %v5476
      %v5826 = vpop.f32.mrb[0].mxu0
      %v5827 = vadd.f32 0.0, %v5826
      %v5828 = vpop.f32.mrb[0].mxu0
      %v5829 = vadd.f32 0.0, %v5828
      %5830 = vmatprep.mubr.f32.mxu0 0.0
      %5831 = vmatmul.mubr.f32.gmra.mrb[0].mxu0 %v5479
      %v5832 = vpop.f32.mrb[0].mxu0
      %v5833 = vadd.f32 0.0, %v5832
      %v5834 = vpop.f32.mrb[0].mxu0
      %v5835 = vadd.f32 0.0, %v5834
      %5836 = vdwg.mxu0
      %5837 = vmatprep.subr.mxu0 %v5509
      %5838 = vmatpush1.msra.mxu0 %v5506
      %5839 = vmatprep.subr.mxu0 0.0
      %5840 = vmatpush1.msra.mxu0 0.0
      %5841 = vmatprep.subr.mxu0 0.0
      %5842 = vmatpush1.msra.mxu0 0.0
      %5843 = vmatprep.subr.mxu0 0.0
      %5844 = vmatpush1.msra.mxu0 0.0
      %5845 = vmatprep.subr.mxu0 0.0
      %5846 = vmatpush1.msra.mxu0 0.0
      %5847 = vmatprep.subr.mxu0 0.0
      %5848 = vmatpush1.msra.mxu0 0.0
      %5849 = vmatprep.subr.mxu0 0.0
      %5850 = vmatpush1.msra.mxu0 0.0
      %5851 = vmatprep.subr.mxu0 0.0
      %5852 = vmatpush1.msra.mxu0 0.0
      %5853 = vmatprep.subr.mxu0 0.0
      %5854 = vmatpush1.msra.mxu0 0.0
      %5855 = vmatprep.subr.mxu0 0.0
      %5856 = vmatpush1.msra.mxu0 0.0
      %5857 = vmatprep.subr.mxu0 0.0
      %5858 = vmatpush1.msra.mxu0 0.0
      %5859 = vmatprep.subr.mxu0 0.0
      %5860 = vmatpush1.msra.mxu0 0.0
      %5861 = vmatprep.subr.mxu0 0.0
      %5862 = vmatpush1.msra.mxu0 0.0
      %5863 = vmatprep.subr.mxu0 0.0
      %5864 = vmatpush1.msra.mxu0 0.0
      %5865 = vmatprep.subr.mxu0 0.0
      %5866 = vmatpush1.msra.mxu0 0.0
      %5867 = vmatprep.subr.mxu0 0.0
      %5868 = vmatpush1.msra.mxu0 0.0
      %5869 = vmatprep.subr.mxu0 0.0
      %5870 = vmatpush1.msra.mxu0 0.0
      %5871 = vmatprep.subr.mxu0 0.0
      %5872 = vmatpush1.msra.mxu0 0.0
      %5873 = vmatprep.subr.mxu0 0.0
      %5874 = vmatpush1.msra.mxu0 0.0
      %5875 = vmatprep.subr.mxu0 0.0
      %5876 = vmatpush1.msra.mxu0 0.0
      %5877 = vmatprep.subr.mxu0 0.0
      %5878 = vmatpush1.msra.mxu0 0.0
      %5879 = vmatprep.subr.mxu0 0.0
      %5880 = vmatpush1.msra.mxu0 0.0
      %5881 = vmatprep.subr.mxu0 0.0
      %5882 = vmatpush1.msra.mxu0 0.0
      %5883 = vmatprep.subr.mxu0 0.0
      %5884 = vmatpush1.msra.mxu0 0.0
      %5885 = vmatprep.subr.mxu0 0.0
      %5886 = vmatpush1.msra.mxu0 0.0
      %5887 = vmatprep.subr.mxu0 0.0
      %5888 = vmatpush1.msra.mxu0 0.0
      %5889 = vmatprep.subr.mxu0 0.0
      %5890 = vmatpush1.msra.mxu0 0.0
      %5891 = vmatprep.subr.mxu0 0.0
      %5892 = vmatpush1.msra.mxu0 0.0
      %5893 = vmatprep.subr.mxu0 0.0
      %5894 = vmatpush1.msra.mxu0 0.0
      %5895 = vmatprep.subr.mxu0 0.0
      %5896 = vmatpush1.msra.mxu0 0.0
      %5897 = vmatprep.subr.mxu0 0.0
      %5898 = vmatpush1.msra.mxu0 0.0
      %5899 = vmatprep.subr.mxu0 0.0
      %5900 = vmatpush1.msra.mxu0 0.0
      %5901 = vmatprep.mubr.f32.mxu0 0.0
      %5902 = vmatmul.mubr.f32.gmra.mrb[0].mxu0 %v5476
      %v5903 = vpop.f32.mrb[0].mxu0
      %v5904 = vadd.f32 0.0, %v5903
      %v5905 = vpop.f32.mrb[0].mxu0
      %v5906 = vadd.f32 0.0, %v5905
      %5907 = vmatprep.mubr.f32.mxu0 0.0
      %5908 = vmatmul.mubr.f32.gmra.mrb[0].mxu0 %v5479
      %v5909 = vpop.f32.mrb[0].mxu0
      %v5910 = vadd.f32 0.0, %v5909
      %v5911 = vpop.f32.mrb[0].mxu0
      %v5912 = vadd.f32 0.0, %v5911
      %5913 = vdwg.mxu0
      %5914 = vmatprep.subr.mxu0 %v5515
      %5915 = vmatpush1.msra.mxu0 %v5512
      %5916 = vmatprep.subr.mxu0 0.0
      %5917 = vmatpush1.msra.mxu0 0.0
      %5918 = vmatprep.subr.mxu0 0.0
      %5919 = vmatpush1.msra.mxu0 0.0
      %5920 = vmatprep.subr.mxu0 0.0
      %5921 = vmatpush1.msra.mxu0 0.0
      %5922 = vmatprep.subr.mxu0 0.0
      %5923 = vmatpush1.msra.mxu0 0.0
      %5924 = vmatprep.subr.mxu0 0.0
      %5925 = vmatpush1.msra.mxu0 0.0
      %5926 = vmatprep.subr.mxu0 0.0
      %5927 = vmatpush1.msra.mxu0 0.0
      %5928 = vmatprep.subr.mxu0 0.0
      %5929 = vmatpush1.msra.mxu0 0.0
      %5930 = vmatprep.subr.mxu0 0.0
      %5931 = vmatpush1.msra.mxu0 0.0
      %5932 = vmatprep.subr.mxu0 0.0
      %5933 = vmatpush1.msra.mxu0 0.0
      %5934 = vmatprep.subr.mxu0 0.0
      %5935 = vmatpush1.msra.mxu0 0.0
      %5936 = vmatprep.subr.mxu0 0.0
      %5937 = vmatpush1.msra.mxu0 0.0
      %5938 = vmatprep.subr.mxu0 0.0
      %5939 = vmatpush1.msra.mxu0 0.0
      %5940 = vmatprep.subr.mxu0 0.0
      %5941 = vmatpush1.msra.mxu0 0.0
      %5942 = vmatprep.subr.mxu0 0.0
      %5943 = vmatpush1.msra.mxu0 0.0
      %5944 = vmatprep.subr.mxu0 0.0
      %5945 = vmatpush1.msra.mxu0 0.0
      %5946 = vmatprep.subr.mxu0 0.0
      %5947 = vmatpush1.msra.mxu0 0.0
      %5948 = vmatprep.subr.mxu0 0.0
      %5949 = vmatpush1.msra.mxu0 0.0
      %5950 = vmatprep.subr.mxu0 0.0
      %5951 = vmatpush1.msra.mxu0 0.0
      %5952 = vmatprep.subr.mxu0 0.0
      %5953 = vmatpush1.msra.mxu0 0.0
      %5954 = vmatprep.subr.mxu0 0.0
      %5955 = vmatpush1.msra.mxu0 0.0
      %5956 = vmatprep.subr.mxu0 0.0
      %5957 = vmatpush1.msra.mxu0 0.0
      %5958 = vmatprep.subr.mxu0 0.0
      %5959 = vmatpush1.msra.mxu0 0.0
      %5960 = vmatprep.subr.mxu0 0.0
      %5961 = vmatpush1.msra.mxu0 0.0
      %5962 = vmatprep.subr.mxu0 0.0
      %5963 = vmatpush1.msra.mxu0 0.0
      %5964 = vmatprep.subr.mxu0 0.0
      %5965 = vmatpush1.msra.mxu0 0.0
      %5966 = vmatprep.subr.mxu0 0.0
      %5967 = vmatpush1.msra.mxu0 0.0
      %5968 = vmatprep.subr.mxu0 0.0
      %5969 = vmatpush1.msra.mxu0 0.0
      %5970 = vmatprep.subr.mxu0 0.0
      %5971 = vmatpush1.msra.mxu0 0.0
      %5972 = vmatprep.subr.mxu0 0.0
      %5973 = vmatpush1.msra.mxu0 0.0
      %5974 = vmatprep.subr.mxu0 0.0
      %5975 = vmatpush1.msra.mxu0 0.0
      %5976 = vmatprep.subr.mxu0 0.0
      %5977 = vmatpush1.msra.mxu0 0.0
      %5978 = vmatprep.mubr.f32.mxu0 0.0
      %5979 = vmatmul.mubr.f32.gmra.mrb[0].mxu0 %v5476
      %v5980 = vpop.f32.mrb[0].mxu0
      %v5981 = vadd.f32 0.0, %v5980
      %v5982 = vpop.f32.mrb[0].mxu0
      %v5983 = vadd.f32 0.0, %v5982
      %5984 = vmatprep.mubr.f32.mxu0 0.0
      %5985 = vmatmul.mubr.f32.gmra.mrb[0].mxu0 %v5479
      %v5986 = vpop.f32.mrb[0].mxu0
      %v5987 = vadd.f32 0.0, %v5986
      %v5988 = vpop.f32.mrb[0].mxu0
      %v5989 = vadd.f32 0.0, %v5988
      %5990 = vdwg.mxu0
      %5991 = vmatprep.subr.mxu0 %v5521
      %5992 = vmatpush1.msra.mxu0 %v5518
      %5993 = vmatprep.subr.mxu0 0.0
      %5994 = vmatpush1.msra.mxu0 0.0
      %5995 = vmatprep.subr.mxu0 0.0
      %5996 = vmatpush1.msra.mxu0 0.0
      %5997 = vmatprep.subr.mxu0 0.0
      %5998 = vmatpush1.msra.mxu0 0.0
      %5999 = vmatprep.subr.mxu0 0.0
      %6000 = vmatpush1.msra.mxu0 0.0
      %6001 = vmatprep.subr.mxu0 0.0
      %6002 = vmatpush1.msra.mxu0 0.0
      %6003 = vmatprep.subr.mxu0 0.0
      %6004 = vmatpush1.msra.mxu0 0.0
      %6005 = vmatprep.subr.mxu0 0.0
      %6006 = vmatpush1.msra.mxu0 0.0
      %6007 = vmatprep.subr.mxu0 0.0
      %6008 = vmatpush1.msra.mxu0 0.0
      %6009 = vmatprep.subr.mxu0 0.0
      %6010 = vmatpush1.msra.mxu0 0.0
      %6011 = vmatprep.subr.mxu0 0.0
      %6012 = vmatpush1.msra.mxu0 0.0
      %6013 = vmatprep.subr.mxu0 0.0
      %6014 = vmatpush1.msra.mxu0 0.0
      %6015 = vmatprep.subr.mxu0 0.0
      %6016 = vmatpush1.msra.mxu0 0.0
      %6017 = vmatprep.subr.mxu0 0.0
      %6018 = vmatpush1.msra.mxu0 0.0
      %6019 = vmatprep.subr.mxu0 0.0
      %6020 = vmatpush1.msra.mxu0 0.0
      %6021 = vmatprep.subr.mxu0 0.0
      %6022 = vmatpush1.msra.mxu0 0.0
      %6023 = vmatprep.subr.mxu0 0.0
      %6024 = vmatpush1.msra.mxu0 0.0
      %6025 = vmatprep.subr.mxu0 0.0
      %6026 = vmatpush1.msra.mxu0 0.0
      %6027 = vmatprep.subr.mxu0 0.0
      %6028 = vmatpush1.msra.mxu0 0.0
      %6029 = vmatprep.subr.mxu0 0.0
      %6030 = vmatpush1.msra.mxu0 0.0
      %6031 = vmatprep.subr.mxu0 0.0
      %6032 = vmatpush1.msra.mxu0 0.0
      %6033 = vmatprep.subr.mxu0 0.0
      %6034 = vmatpush1.msra.mxu0 0.0
      %6035 = vmatprep.subr.mxu0 0.0
      %6036 = vmatpush1.msra.mxu0 0.0
      %6037 = vmatprep.subr.mxu0 0.0
      %6038 = vmatpush1.msra.mxu0 0.0
      %6039 = vmatprep.subr.mxu0 0.0
      %6040 = vmatpush1.msra.mxu0 0.0
      %6041 = vmatprep.subr.mxu0 0.0
      %6042 = vmatpush1.msra.mxu0 0.0
      %6043 = vmatprep.subr.mxu0 0.0
      %6044 = vmatpush1.msra.mxu0 0.0
      %6045 = vmatprep.subr.mxu0 0.0
      %6046 = vmatpush1.msra.mxu0 0.0
      %6047 = vmatprep.subr.mxu0 0.0
      %6048 = vmatpush1.msra.mxu0 0.0
      %6049 = vmatprep.subr.mxu0 0.0
      %6050 = vmatpush1.msra.mxu0 0.0
      %6051 = vmatprep.subr.mxu0 0.0
      %6052 = vmatpush1.msra.mxu0 0.0
      %6053 = vmatprep.subr.mxu0 0.0
      %6054 = vmatpush1.msra.mxu0 0.0
      %6055 = vmatprep.mubr.f32.mxu0 0.0
      %6056 = vmatmul.mubr.f32.gmra.mrb[0].mxu0 %v5476
      %v6057 = vpop.f32.mrb[0].mxu0
      %v6058 = vadd.f32 0.0, %v6057
      %v6059 = vpop.f32.mrb[0].mxu0
      %v6060 = vadd.f32 0.0, %v6059
      %6061 = vmatprep.mubr.f32.mxu0 0.0
      %6062 = vmatmul.mubr.f32.gmra.mrb[0].mxu0 %v5479
      %v6063 = vpop.f32.mrb[0].mxu0
      %v6064 = vadd.f32 0.0, %v6063
      %v6065 = vpop.f32.mrb[0].mxu0
      %v6066 = vadd.f32 0.0, %v6065
      %6067 = vdwg.mxu0
      %6068 = vmatprep.subr.mxu0 %v5527
      %6069 = vmatpush1.msra.mxu0 %v5524
      %6070 = vmatprep.subr.mxu0 0.0
      %6071 = vmatpush1.msra.mxu0 0.0
      %6072 = vmatprep.subr.mxu0 0.0
      %6073 = vmatpush1.msra.mxu0 0.0
      %6074 = vmatprep.subr.mxu0 0.0
      %6075 = vmatpush1.msra.mxu0 0.0
      %6076 = vmatprep.subr.mxu0 0.0
      %6077 = vmatpush1.msra.mxu0 0.0
      %6078 = vmatprep.subr.mxu0 0.0
      %6079 = vmatpush1.msra.mxu0 0.0
      %6080 = vmatprep.subr.mxu0 0.0
      %6081 = vmatpush1.msra.mxu0 0.0
      %6082 = vmatprep.subr.mxu0 0.0
      %6083 = vmatpush1.msra.mxu0 0.0
      %6084 = vmatprep.subr.mxu0 0.0
      %6085 = vmatpush1.msra.mxu0 0.0
      %6086 = vmatprep.subr.mxu0 0.0
      %6087 = vmatpush1.msra.mxu0 0.0
      %6088 = vmatprep.subr.mxu0 0.0
      %6089 = vmatpush1.msra.mxu0 0.0
      %6090 = vmatprep.subr.mxu0 0.0
      %6091 = vmatpush1.msra.mxu0 0.0
      %6092 = vmatprep.subr.mxu0 0.0
      %6093 = vmatpush1.msra.mxu0 0.0
      %6094 = vmatprep.subr.mxu0 0.0
      %6095 = vmatpush1.msra.mxu0 0.0
      %6096 = vmatprep.subr.mxu0 0.0
      %6097 = vmatpush1.msra.mxu0 0.0
      %6098 = vmatprep.subr.mxu0 0.0
      %6099 = vmatpush1.msra.mxu0 0.0
      %6100 = vmatprep.subr.mxu0 0.0
      %6101 = vmatpush1.msra.mxu0 0.0
      %6102 = vmatprep.subr.mxu0 0.0
      %6103 = vmatpush1.msra.mxu0 0.0
      %6104 = vmatprep.subr.mxu0 0.0
      %6105 = vmatpush1.msra.mxu0 0.0
      %6106 = vmatprep.subr.mxu0 0.0
      %6107 = vmatpush1.msra.mxu0 0.0
      %6108 = vmatprep.subr.mxu0 0.0
      %6109 = vmatpush1.msra.mxu0 0.0
      %6110 = vmatprep.subr.mxu0 0.0
      %6111 = vmatpush1.msra.mxu0 0.0
      %6112 = vmatprep.subr.mxu0 0.0
      %6113 = vmatpush1.msra.mxu0 0.0
      %6114 = vmatprep.subr.mxu0 0.0
      %6115 = vmatpush1.msra.mxu0 0.0
      %6116 = vmatprep.subr.mxu0 0.0
      %6117 = vmatpush1.msra.mxu0 0.0
      %6118 = vmatprep.subr.mxu0 0.0
      %6119 = vmatpush1.msra.mxu0 0.0
      %6120 = vmatprep.subr.mxu0 0.0
      %6121 = vmatpush1.msra.mxu0 0.0
      %6122 = vmatprep.subr.mxu0 0.0
      %6123 = vmatpush1.msra.mxu0 0.0
      %6124 = vmatprep.subr.mxu0 0.0
      %6125 = vmatpush1.msra.mxu0 0.0
      %6126 = vmatprep.subr.mxu0 0.0
      %6127 = vmatpush1.msra.mxu0 0.0
      %6128 = vmatprep.subr.mxu0 0.0
      %6129 = vmatpush1.msra.mxu0 0.0
      %6130 = vmatprep.subr.mxu0 0.0
      %6131 = vmatpush1.msra.mxu0 0.0
      %6132 = vmatprep.mubr.f32.mxu0 0.0
      %6133 = vmatmul.mubr.f32.gmra.mrb[0].mxu0 %v5476
      %v6134 = vpop.f32.mrb[0].mxu0
      %v6135 = vadd.f32 0.0, %v6134
      %v6136 = vpop.f32.mrb[0].mxu0
      %v6137 = vadd.f32 0.0, %v6136
      %6138 = vmatprep.mubr.f32.mxu0 0.0
      %6139 = vmatmul.mubr.f32.gmra.mrb[0].mxu0 %v5479
      %v6140 = vpop.f32.mrb[0].mxu0
      %v6141 = vadd.f32 0.0, %v6140
      %v6142 = vpop.f32.mrb[0].mxu0
      %v6143 = vadd.f32 0.0, %v6142
      %6144 = vdwg.mxu0
      %v6145 = vadd.f32 %v5290, %v5596
      %v6146 = vadd.f32 %v5291, %v5598
      %v6147 = vadd.f32 %v5292, %v5673
      %v6148 = vadd.f32 %v5293, %v5675
      %v6149 = vadd.f32 %v5294, %v5750
      %v6150 = vadd.f32 %v5295, %v5752
      %v6151 = vadd.f32 %v5296, %v5827
      %v6152 = vadd.f32 %v5297, %v5829
      %v6153 = vadd.f32 %v5298, %v5904
      %v6154 = vadd.f32 %v5299, %v5906
      %v6155 = vadd.f32 %v5300, %v5981
      %v6156 = vadd.f32 %v5301, %v5983
      %v6157 = vadd.f32 %v5302, %v6058
      %v6158 = vadd.f32 %v5303, %v6060
      %v6159 = vadd.f32 %v5304, %v6135
      %v6160 = vadd.f32 %v5305, %v6137
      %v6161 = vadd.f32 %v5306, %v5602
      %v6162 = vadd.f32 %v5307, %v5604
      %v6163 = vadd.f32 %v5308, %v5679
      %v6164 = vadd.f32 %v5309, %v5681
      %v6165 = vadd.f32 %v5310, %v5756
      %v6166 = vadd.f32 %v5311, %v5758
      %v6167 = vadd.f32 %v5312, %v5833
      %v6168 = vadd.f32 %v5313, %v5835
      %v6169 = vadd.f32 %v5314, %v5910
      %v6170 = vadd.f32 %v5315, %v5912
      %v6171 = vadd.f32 %v5316, %v5987
      %v6172 = vadd.f32 %v5317, %v5989
      %v6173 = vadd.f32 %v5318, %v6064
      %v6174 = vadd.f32 %v5319, %v6066
      %v6175 = vadd.f32 %v5320, %v6141
      %v6176 = vadd.f32 %v5321, %v6143
      %6177 = vrot.lane.b32.xlu0 %v279, 112
      %v6178 = vpop.permute.xlu0 %6177
      %6179 = vrot.lane.b32.xlu0 %v295, 112
      %v6180 = vpop.permute.xlu0 %6179
      %6181 = vrot.lane.b32.xlu0 %v280, 112
      %v6182 = vpop.permute.xlu0 %6181
      %6183 = vrot.lane.b32.xlu0 %v296, 112
      %v6184 = vpop.permute.xlu0 %6183
      %6185 = vrot.lane.b32.xlu0 %v281, 112
      %v6186 = vpop.permute.xlu0 %6185
      %6187 = vrot.lane.b32.xlu0 %v297, 112
      %v6188 = vpop.permute.xlu0 %6187
      %6189 = vrot.lane.b32.xlu0 %v282, 112
      %v6190 = vpop.permute.xlu0 %6189
      %6191 = vrot.lane.b32.xlu0 %v298, 112
      %v6192 = vpop.permute.xlu0 %6191
      %6193 = vrot.lane.b32.xlu0 %v283, 112
      %v6194 = vpop.permute.xlu0 %6193
      %6195 = vrot.lane.b32.xlu0 %v299, 112
      %v6196 = vpop.permute.xlu0 %6195
      %6197 = vrot.lane.b32.xlu0 %v284, 112
      %v6198 = vpop.permute.xlu0 %6197
      %6199 = vrot.lane.b32.xlu0 %v300, 112
      %v6200 = vpop.permute.xlu0 %6199
      %6201 = vrot.lane.b32.xlu0 %v285, 112
      %v6202 = vpop.permute.xlu0 %6201
      %6203 = vrot.lane.b32.xlu0 %v301, 112
      %v6204 = vpop.permute.xlu0 %6203
      %6205 = vrot.lane.b32.xlu0 %v286, 112
      %v6206 = vpop.permute.xlu0 %6205
      %6207 = vrot.lane.b32.xlu0 %v302, 112
      %v6208 = vpop.permute.xlu0 %6207
      %vm6209 = vcmp.lt.s32.totalorder %v344, 112
      %v6210 = vsel %vm6209, %v6206, %v6208
      %v6211 = vsel %vm6209, %v6204, %v6206
      %v6212 = vsel %vm6209, %v6202, %v6204
      %v6213 = vsel %vm6209, %v6200, %v6202
      %v6214 = vsel %vm6209, %v6198, %v6200
      %v6215 = vsel %vm6209, %v6196, %v6198
      %v6216 = vsel %vm6209, %v6194, %v6196
      %v6217 = vsel %vm6209, %v6192, %v6194
      %v6218 = vsel %vm6209, %v6190, %v6192
      %v6219 = vsel %vm6209, %v6188, %v6190
      %v6220 = vsel %vm6209, %v6186, %v6188
      %v6221 = vsel %vm6209, %v6184, %v6186
      %v6222 = vsel %vm6209, %v6182, %v6184
      %v6223 = vsel %vm6209, %v6180, %v6182
      %v6224 = vsel %vm6209, %v6178, %v6180
      %v6225 = vsel %vm6209, %v6208, %v6178
      %s6226 = scalar_lea.vmem %s5, 112
      %v6227 = vld [vmem:[%s6226] sm:$0xff]
      %v6228 = vld [vmem:[%s6226 + $0x8] sm:$0xff]
      %v6231 = vlaneseq
      %v6232 = vshrl.u32 %v6231, 7
      %v6233 = vsub.s32 0, %v6232
      %v6234 = vrot.slane %v6227, %v6233
      %v6235 = vlaneseq
      %v6236 = vshrl.u32 %v6235, 7
      %v6237 = vsub.s32 1, %v6236
      %v6238 = vrot.slane %v6227, %v6237
      %v6239 = vlaneseq
      %v6240 = vshrl.u32 %v6239, 7
      %v6241 = vsub.s32 2, %v6240
      %v6242 = vrot.slane %v6227, %v6241
      %v6243 = vlaneseq
      %v6244 = vshrl.u32 %v6243, 7
      %v6245 = vsub.s32 3, %v6244
      %v6246 = vrot.slane %v6227, %v6245
      %v6247 = vlaneseq
      %v6248 = vshrl.u32 %v6247, 7
      %v6249 = vsub.s32 4, %v6248
      %v6250 = vrot.slane %v6227, %v6249
      %v6251 = vlaneseq
      %v6252 = vshrl.u32 %v6251, 7
      %v6253 = vsub.s32 5, %v6252
      %v6254 = vrot.slane %v6227, %v6253
      %v6255 = vlaneseq
      %v6256 = vshrl.u32 %v6255, 7
      %v6257 = vsub.s32 6, %v6256
      %v6258 = vrot.slane %v6227, %v6257
      %v6259 = vlaneseq
      %v6260 = vshrl.u32 %v6259, 7
      %v6261 = vsub.s32 7, %v6260
      %v6262 = vrot.slane %v6227, %v6261
      %v6263 = vlaneseq
      %v6264 = vshrl.u32 %v6263, 7
      %v6265 = vsub.s32 0, %v6264
      %v6266 = vrot.slane %v6228, %v6265
      %v6267 = vlaneseq
      %v6268 = vshrl.u32 %v6267, 7
      %v6269 = vsub.s32 1, %v6268
      %v6270 = vrot.slane %v6228, %v6269
      %v6271 = vlaneseq
      %v6272 = vshrl.u32 %v6271, 7
      %v6273 = vsub.s32 2, %v6272
      %v6274 = vrot.slane %v6228, %v6273
      %v6275 = vlaneseq
      %v6276 = vshrl.u32 %v6275, 7
      %v6277 = vsub.s32 3, %v6276
      %v6278 = vrot.slane %v6228, %v6277
      %v6279 = vlaneseq
      %v6280 = vshrl.u32 %v6279, 7
      %v6281 = vsub.s32 4, %v6280
      %v6282 = vrot.slane %v6228, %v6281
      %v6283 = vlaneseq
      %v6284 = vshrl.u32 %v6283, 7
      %v6285 = vsub.s32 5, %v6284
      %v6286 = vrot.slane %v6228, %v6285
      %v6287 = vlaneseq
      %v6288 = vshrl.u32 %v6287, 7
      %v6289 = vsub.s32 6, %v6288
      %v6290 = vrot.slane %v6228, %v6289
      %v6291 = vlaneseq
      %v6292 = vshrl.u32 %v6291, 7
      %v6293 = vsub.s32 7, %v6292
      %v6294 = vrot.slane %v6228, %v6293
      %v6311 = vmul.f32 %v6224, %v6234
      %v6312 = vmul.f32 %v6223, %v6238
      %v6313 = vmul.f32 %v6222, %v6242
      %v6314 = vmul.f32 %v6221, %v6246
      %v6315 = vmul.f32 %v6220, %v6250
      %v6316 = vmul.f32 %v6219, %v6254
      %v6317 = vmul.f32 %v6218, %v6258
      %v6318 = vmul.f32 %v6217, %v6262
      %v6319 = vmul.f32 %v6216, %v6266
      %v6320 = vmul.f32 %v6215, %v6270
      %v6321 = vmul.f32 %v6214, %v6274
      %v6322 = vmul.f32 %v6213, %v6278
      %v6323 = vmul.f32 %v6212, %v6282
      %v6324 = vmul.f32 %v6211, %v6286
      %v6325 = vmul.f32 %v6210, %v6290
      %v6326 = vmul.f32 %v6225, %v6294
      %s6327 = scalar_lea.vmem %s1, 112
      %v6328 = vld [vmem:[%s6327] sm:$0xff]
      %v6329 = vld [vmem:[%s6327 + $0x8] sm:$0x1]
      %v6331 = vsel %vm617, %v6328, 0
      %v6334 = vsel %vm617, %v6329, 0
      %v6337 = vsel %vm624, %v6311, 0
      %v6340 = vsel %vm624, %v6312, 0
      %v6343 = vsel %vm624, %v6313, 0
      %v6346 = vsel %vm624, %v6314, 0
      %v6349 = vsel %vm624, %v6315, 0
      %v6352 = vsel %vm624, %v6316, 0
      %v6355 = vsel %vm624, %v6317, 0
      %v6358 = vsel %vm624, %v6318, 0
      %v6361 = vsel %vm624, %v6319, 0
      %v6364 = vsel %vm624, %v6320, 0
      %v6367 = vsel %vm624, %v6321, 0
      %v6370 = vsel %vm624, %v6322, 0
      %v6373 = vsel %vm624, %v6323, 0
      %v6376 = vsel %vm624, %v6324, 0
      %v6379 = vsel %vm624, %v6325, 0
      %v6382 = vsel %vm624, %v6326, 0
      %6384 = vmatprep.subr.mxu0 %v6340
      %6385 = vmatpush1.msra.mxu0 %v6337
      %6386 = vmatprep.subr.mxu0 0.0
      %6387 = vmatpush1.msra.mxu0 0.0
      %6388 = vmatprep.subr.mxu0 0.0
      %6389 = vmatpush1.msra.mxu0 0.0
      %6390 = vmatprep.subr.mxu0 0.0
      %6391 = vmatpush1.msra.mxu0 0.0
      %6392 = vmatprep.subr.mxu0 0.0
      %6393 = vmatpush1.msra.mxu0 0.0
      %6394 = vmatprep.subr.mxu0 0.0
      %6395 = vmatpush1.msra.mxu0 0.0
      %6396 = vmatprep.subr.mxu0 0.0
      %6397 = vmatpush1.msra.mxu0 0.0
      %6398 = vmatprep.subr.mxu0 0.0
      %6399 = vmatpush1.msra.mxu0 0.0
      %6400 = vmatprep.subr.mxu0 0.0
      %6401 = vmatpush1.msra.mxu0 0.0
      %6402 = vmatprep.subr.mxu0 0.0
      %6403 = vmatpush1.msra.mxu0 0.0
      %6404 = vmatprep.subr.mxu0 0.0
      %6405 = vmatpush1.msra.mxu0 0.0
      %6406 = vmatprep.subr.mxu0 0.0
      %6407 = vmatpush1.msra.mxu0 0.0
      %6408 = vmatprep.subr.mxu0 0.0
      %6409 = vmatpush1.msra.mxu0 0.0
      %6410 = vmatprep.subr.mxu0 0.0
      %6411 = vmatpush1.msra.mxu0 0.0
      %6412 = vmatprep.subr.mxu0 0.0
      %6413 = vmatpush1.msra.mxu0 0.0
      %6414 = vmatprep.subr.mxu0 0.0
      %6415 = vmatpush1.msra.mxu0 0.0
      %6416 = vmatprep.subr.mxu0 0.0
      %6417 = vmatpush1.msra.mxu0 0.0
      %6418 = vmatprep.subr.mxu0 0.0
      %6419 = vmatpush1.msra.mxu0 0.0
      %6420 = vmatprep.subr.mxu0 0.0
      %6421 = vmatpush1.msra.mxu0 0.0
      %6422 = vmatprep.subr.mxu0 0.0
      %6423 = vmatpush1.msra.mxu0 0.0
      %6424 = vmatprep.subr.mxu0 0.0
      %6425 = vmatpush1.msra.mxu0 0.0
      %6426 = vmatprep.subr.mxu0 0.0
      %6427 = vmatpush1.msra.mxu0 0.0
      %6428 = vmatprep.subr.mxu0 0.0
      %6429 = vmatpush1.msra.mxu0 0.0
      %6430 = vmatprep.subr.mxu0 0.0
      %6431 = vmatpush1.msra.mxu0 0.0
      %6432 = vmatprep.subr.mxu0 0.0
      %6433 = vmatpush1.msra.mxu0 0.0
      %6434 = vmatprep.subr.mxu0 0.0
      %6435 = vmatpush1.msra.mxu0 0.0
      %6436 = vmatprep.subr.mxu0 0.0
      %6437 = vmatpush1.msra.mxu0 0.0
      %6438 = vmatprep.subr.mxu0 0.0
      %6439 = vmatpush1.msra.mxu0 0.0
      %6440 = vmatprep.subr.mxu0 0.0
      %6441 = vmatpush1.msra.mxu0 0.0
      %6442 = vmatprep.subr.mxu0 0.0
      %6443 = vmatpush1.msra.mxu0 0.0
      %6444 = vmatprep.subr.mxu0 0.0
      %6445 = vmatpush1.msra.mxu0 0.0
      %6446 = vmatprep.subr.mxu0 0.0
      %6447 = vmatpush1.msra.mxu0 0.0
      %6448 = vmatprep.mubr.f32.mxu0 0.0
      %6449 = vmatmul.mubr.f32.gmra.mrb[0].mxu0 %v6331
      %v6450 = vpop.f32.mrb[0].mxu0
      %v6451 = vadd.f32 0.0, %v6450
      %v6452 = vpop.f32.mrb[0].mxu0
      %v6453 = vadd.f32 0.0, %v6452
      %6454 = vmatprep.mubr.f32.mxu0 0.0
      %6455 = vmatmul.mubr.f32.gmra.mrb[0].mxu0 %v6334
      %v6456 = vpop.f32.mrb[0].mxu0
      %v6457 = vadd.f32 0.0, %v6456
      %v6458 = vpop.f32.mrb[0].mxu0
      %v6459 = vadd.f32 0.0, %v6458
      %6460 = vdwg.mxu0
      %6461 = vmatprep.subr.mxu0 %v6346
      %6462 = vmatpush1.msra.mxu0 %v6343
      %6463 = vmatprep.subr.mxu0 0.0
      %6464 = vmatpush1.msra.mxu0 0.0
      %6465 = vmatprep.subr.mxu0 0.0
      %6466 = vmatpush1.msra.mxu0 0.0
      %6467 = vmatprep.subr.mxu0 0.0
      %6468 = vmatpush1.msra.mxu0 0.0
      %6469 = vmatprep.subr.mxu0 0.0
      %6470 = vmatpush1.msra.mxu0 0.0
      %6471 = vmatprep.subr.mxu0 0.0
      %6472 = vmatpush1.msra.mxu0 0.0
      %6473 = vmatprep.subr.mxu0 0.0
      %6474 = vmatpush1.msra.mxu0 0.0
      %6475 = vmatprep.subr.mxu0 0.0
      %6476 = vmatpush1.msra.mxu0 0.0
      %6477 = vmatprep.subr.mxu0 0.0
      %6478 = vmatpush1.msra.mxu0 0.0
      %6479 = vmatprep.subr.mxu0 0.0
      %6480 = vmatpush1.msra.mxu0 0.0
      %6481 = vmatprep.subr.mxu0 0.0
      %6482 = vmatpush1.msra.mxu0 0.0
      %6483 = vmatprep.subr.mxu0 0.0
      %6484 = vmatpush1.msra.mxu0 0.0
      %6485 = vmatprep.subr.mxu0 0.0
      %6486 = vmatpush1.msra.mxu0 0.0
      %6487 = vmatprep.subr.mxu0 0.0
      %6488 = vmatpush1.msra.mxu0 0.0
      %6489 = vmatprep.subr.mxu0 0.0
      %6490 = vmatpush1.msra.mxu0 0.0
      %6491 = vmatprep.subr.mxu0 0.0
      %6492 = vmatpush1.msra.mxu0 0.0
      %6493 = vmatprep.subr.mxu0 0.0
      %6494 = vmatpush1.msra.mxu0 0.0
      %6495 = vmatprep.subr.mxu0 0.0
      %6496 = vmatpush1.msra.mxu0 0.0
      %6497 = vmatprep.subr.mxu0 0.0
      %6498 = vmatpush1.msra.mxu0 0.0
      %6499 = vmatprep.subr.mxu0 0.0
      %6500 = vmatpush1.msra.mxu0 0.0
      %6501 = vmatprep.subr.mxu0 0.0
      %6502 = vmatpush1.msra.mxu0 0.0
      %6503 = vmatprep.subr.mxu0 0.0
      %6504 = vmatpush1.msra.mxu0 0.0
      %6505 = vmatprep.subr.mxu0 0.0
      %6506 = vmatpush1.msra.mxu0 0.0
      %6507 = vmatprep.subr.mxu0 0.0
      %6508 = vmatpush1.msra.mxu0 0.0
      %6509 = vmatprep.subr.mxu0 0.0
      %6510 = vmatpush1.msra.mxu0 0.0
      %6511 = vmatprep.subr.mxu0 0.0
      %6512 = vmatpush1.msra.mxu0 0.0
      %6513 = vmatprep.subr.mxu0 0.0
      %6514 = vmatpush1.msra.mxu0 0.0
      %6515 = vmatprep.subr.mxu0 0.0
      %6516 = vmatpush1.msra.mxu0 0.0
      %6517 = vmatprep.subr.mxu0 0.0
      %6518 = vmatpush1.msra.mxu0 0.0
      %6519 = vmatprep.subr.mxu0 0.0
      %6520 = vmatpush1.msra.mxu0 0.0
      %6521 = vmatprep.subr.mxu0 0.0
      %6522 = vmatpush1.msra.mxu0 0.0
      %6523 = vmatprep.subr.mxu0 0.0
      %6524 = vmatpush1.msra.mxu0 0.0
      %6525 = vmatprep.mubr.f32.mxu0 0.0
      %6526 = vmatmul.mubr.f32.gmra.mrb[0].mxu0 %v6331
      %v6527 = vpop.f32.mrb[0].mxu0
      %v6528 = vadd.f32 0.0, %v6527
      %v6529 = vpop.f32.mrb[0].mxu0
      %v6530 = vadd.f32 0.0, %v6529
      %6531 = vmatprep.mubr.f32.mxu0 0.0
      %6532 = vmatmul.mubr.f32.gmra.mrb[0].mxu0 %v6334
      %v6533 = vpop.f32.mrb[0].mxu0
      %v6534 = vadd.f32 0.0, %v6533
      %v6535 = vpop.f32.mrb[0].mxu0
      %v6536 = vadd.f32 0.0, %v6535
      %6537 = vdwg.mxu0
      %6538 = vmatprep.subr.mxu0 %v6352
      %6539 = vmatpush1.msra.mxu0 %v6349
      %6540 = vmatprep.subr.mxu0 0.0
      %6541 = vmatpush1.msra.mxu0 0.0
      %6542 = vmatprep.subr.mxu0 0.0
      %6543 = vmatpush1.msra.mxu0 0.0
      %6544 = vmatprep.subr.mxu0 0.0
      %6545 = vmatpush1.msra.mxu0 0.0
      %6546 = vmatprep.subr.mxu0 0.0
      %6547 = vmatpush1.msra.mxu0 0.0
      %6548 = vmatprep.subr.mxu0 0.0
      %6549 = vmatpush1.msra.mxu0 0.0
      %6550 = vmatprep.subr.mxu0 0.0
      %6551 = vmatpush1.msra.mxu0 0.0
      %6552 = vmatprep.subr.mxu0 0.0
      %6553 = vmatpush1.msra.mxu0 0.0
      %6554 = vmatprep.subr.mxu0 0.0
      %6555 = vmatpush1.msra.mxu0 0.0
      %6556 = vmatprep.subr.mxu0 0.0
      %6557 = vmatpush1.msra.mxu0 0.0
      %6558 = vmatprep.subr.mxu0 0.0
      %6559 = vmatpush1.msra.mxu0 0.0
      %6560 = vmatprep.subr.mxu0 0.0
      %6561 = vmatpush1.msra.mxu0 0.0
      %6562 = vmatprep.subr.mxu0 0.0
      %6563 = vmatpush1.msra.mxu0 0.0
      %6564 = vmatprep.subr.mxu0 0.0
      %6565 = vmatpush1.msra.mxu0 0.0
      %6566 = vmatprep.subr.mxu0 0.0
      %6567 = vmatpush1.msra.mxu0 0.0
      %6568 = vmatprep.subr.mxu0 0.0
      %6569 = vmatpush1.msra.mxu0 0.0
      %6570 = vmatprep.subr.mxu0 0.0
      %6571 = vmatpush1.msra.mxu0 0.0
      %6572 = vmatprep.subr.mxu0 0.0
      %6573 = vmatpush1.msra.mxu0 0.0
      %6574 = vmatprep.subr.mxu0 0.0
      %6575 = vmatpush1.msra.mxu0 0.0
      %6576 = vmatprep.subr.mxu0 0.0
      %6577 = vmatpush1.msra.mxu0 0.0
      %6578 = vmatprep.subr.mxu0 0.0
      %6579 = vmatpush1.msra.mxu0 0.0
      %6580 = vmatprep.subr.mxu0 0.0
      %6581 = vmatpush1.msra.mxu0 0.0
      %6582 = vmatprep.subr.mxu0 0.0
      %6583 = vmatpush1.msra.mxu0 0.0
      %6584 = vmatprep.subr.mxu0 0.0
      %6585 = vmatpush1.msra.mxu0 0.0
      %6586 = vmatprep.subr.mxu0 0.0
      %6587 = vmatpush1.msra.mxu0 0.0
      %6588 = vmatprep.subr.mxu0 0.0
      %6589 = vmatpush1.msra.mxu0 0.0
      %6590 = vmatprep.subr.mxu0 0.0
      %6591 = vmatpush1.msra.mxu0 0.0
      %6592 = vmatprep.subr.mxu0 0.0
      %6593 = vmatpush1.msra.mxu0 0.0
      %6594 = vmatprep.subr.mxu0 0.0
      %6595 = vmatpush1.msra.mxu0 0.0
      %6596 = vmatprep.subr.mxu0 0.0
      %6597 = vmatpush1.msra.mxu0 0.0
      %6598 = vmatprep.subr.mxu0 0.0
      %6599 = vmatpush1.msra.mxu0 0.0
      %6600 = vmatprep.subr.mxu0 0.0
      %6601 = vmatpush1.msra.mxu0 0.0
      %6602 = vmatprep.mubr.f32.mxu0 0.0
      %6603 = vmatmul.mubr.f32.gmra.mrb[0].mxu0 %v6331
      %v6604 = vpop.f32.mrb[0].mxu0
      %v6605 = vadd.f32 0.0, %v6604
      %v6606 = vpop.f32.mrb[0].mxu0
      %v6607 = vadd.f32 0.0, %v6606
      %6608 = vmatprep.mubr.f32.mxu0 0.0
      %6609 = vmatmul.mubr.f32.gmra.mrb[0].mxu0 %v6334
      %v6610 = vpop.f32.mrb[0].mxu0
      %v6611 = vadd.f32 0.0, %v6610
      %v6612 = vpop.f32.mrb[0].mxu0
      %v6613 = vadd.f32 0.0, %v6612
      %6614 = vdwg.mxu0
      %6615 = vmatprep.subr.mxu0 %v6358
      %6616 = vmatpush1.msra.mxu0 %v6355
      %6617 = vmatprep.subr.mxu0 0.0
      %6618 = vmatpush1.msra.mxu0 0.0
      %6619 = vmatprep.subr.mxu0 0.0
      %6620 = vmatpush1.msra.mxu0 0.0
      %6621 = vmatprep.subr.mxu0 0.0
      %6622 = vmatpush1.msra.mxu0 0.0
      %6623 = vmatprep.subr.mxu0 0.0
      %6624 = vmatpush1.msra.mxu0 0.0
      %6625 = vmatprep.subr.mxu0 0.0
      %6626 = vmatpush1.msra.mxu0 0.0
      %6627 = vmatprep.subr.mxu0 0.0
      %6628 = vmatpush1.msra.mxu0 0.0
      %6629 = vmatprep.subr.mxu0 0.0
      %6630 = vmatpush1.msra.mxu0 0.0
      %6631 = vmatprep.subr.mxu0 0.0
      %6632 = vmatpush1.msra.mxu0 0.0
      %6633 = vmatprep.subr.mxu0 0.0
      %6634 = vmatpush1.msra.mxu0 0.0
      %6635 = vmatprep.subr.mxu0 0.0
      %6636 = vmatpush1.msra.mxu0 0.0
      %6637 = vmatprep.subr.mxu0 0.0
      %6638 = vmatpush1.msra.mxu0 0.0
      %6639 = vmatprep.subr.mxu0 0.0
      %6640 = vmatpush1.msra.mxu0 0.0
      %6641 = vmatprep.subr.mxu0 0.0
      %6642 = vmatpush1.msra.mxu0 0.0
      %6643 = vmatprep.subr.mxu0 0.0
      %6644 = vmatpush1.msra.mxu0 0.0
      %6645 = vmatprep.subr.mxu0 0.0
      %6646 = vmatpush1.msra.mxu0 0.0
      %6647 = vmatprep.subr.mxu0 0.0
      %6648 = vmatpush1.msra.mxu0 0.0
      %6649 = vmatprep.subr.mxu0 0.0
      %6650 = vmatpush1.msra.mxu0 0.0
      %6651 = vmatprep.subr.mxu0 0.0
      %6652 = vmatpush1.msra.mxu0 0.0
      %6653 = vmatprep.subr.mxu0 0.0
      %6654 = vmatpush1.msra.mxu0 0.0
      %6655 = vmatprep.subr.mxu0 0.0
      %6656 = vmatpush1.msra.mxu0 0.0
      %6657 = vmatprep.subr.mxu0 0.0
      %6658 = vmatpush1.msra.mxu0 0.0
      %6659 = vmatprep.subr.mxu0 0.0
      %6660 = vmatpush1.msra.mxu0 0.0
      %6661 = vmatprep.subr.mxu0 0.0
      %6662 = vmatpush1.msra.mxu0 0.0
      %6663 = vmatprep.subr.mxu0 0.0
      %6664 = vmatpush1.msra.mxu0 0.0
      %6665 = vmatprep.subr.mxu0 0.0
      %6666 = vmatpush1.msra.mxu0 0.0
      %6667 = vmatprep.subr.mxu0 0.0
      %6668 = vmatpush1.msra.mxu0 0.0
      %6669 = vmatprep.subr.mxu0 0.0
      %6670 = vmatpush1.msra.mxu0 0.0
      %6671 = vmatprep.subr.mxu0 0.0
      %6672 = vmatpush1.msra.mxu0 0.0
      %6673 = vmatprep.subr.mxu0 0.0
      %6674 = vmatpush1.msra.mxu0 0.0
      %6675 = vmatprep.subr.mxu0 0.0
      %6676 = vmatpush1.msra.mxu0 0.0
      %6677 = vmatprep.subr.mxu0 0.0
      %6678 = vmatpush1.msra.mxu0 0.0
      %6679 = vmatprep.mubr.f32.mxu0 0.0
      %6680 = vmatmul.mubr.f32.gmra.mrb[0].mxu0 %v6331
      %v6681 = vpop.f32.mrb[0].mxu0
      %v6682 = vadd.f32 0.0, %v6681
      %v6683 = vpop.f32.mrb[0].mxu0
      %v6684 = vadd.f32 0.0, %v6683
      %6685 = vmatprep.mubr.f32.mxu0 0.0
      %6686 = vmatmul.mubr.f32.gmra.mrb[0].mxu0 %v6334
      %v6687 = vpop.f32.mrb[0].mxu0
      %v6688 = vadd.f32 0.0, %v6687
      %v6689 = vpop.f32.mrb[0].mxu0
      %v6690 = vadd.f32 0.0, %v6689
      %6691 = vdwg.mxu0
      %6692 = vmatprep.subr.mxu0 %v6364
      %6693 = vmatpush1.msra.mxu0 %v6361
      %6694 = vmatprep.subr.mxu0 0.0
      %6695 = vmatpush1.msra.mxu0 0.0
      %6696 = vmatprep.subr.mxu0 0.0
      %6697 = vmatpush1.msra.mxu0 0.0
      %6698 = vmatprep.subr.mxu0 0.0
      %6699 = vmatpush1.msra.mxu0 0.0
      %6700 = vmatprep.subr.mxu0 0.0
      %6701 = vmatpush1.msra.mxu0 0.0
      %6702 = vmatprep.subr.mxu0 0.0
      %6703 = vmatpush1.msra.mxu0 0.0
      %6704 = vmatprep.subr.mxu0 0.0
      %6705 = vmatpush1.msra.mxu0 0.0
      %6706 = vmatprep.subr.mxu0 0.0
      %6707 = vmatpush1.msra.mxu0 0.0
      %6708 = vmatprep.subr.mxu0 0.0
      %6709 = vmatpush1.msra.mxu0 0.0
      %6710 = vmatprep.subr.mxu0 0.0
      %6711 = vmatpush1.msra.mxu0 0.0
      %6712 = vmatprep.subr.mxu0 0.0
      %6713 = vmatpush1.msra.mxu0 0.0
      %6714 = vmatprep.subr.mxu0 0.0
      %6715 = vmatpush1.msra.mxu0 0.0
      %6716 = vmatprep.subr.mxu0 0.0
      %6717 = vmatpush1.msra.mxu0 0.0
      %6718 = vmatprep.subr.mxu0 0.0
      %6719 = vmatpush1.msra.mxu0 0.0
      %6720 = vmatprep.subr.mxu0 0.0
      %6721 = vmatpush1.msra.mxu0 0.0
      %6722 = vmatprep.subr.mxu0 0.0
      %6723 = vmatpush1.msra.mxu0 0.0
      %6724 = vmatprep.subr.mxu0 0.0
      %6725 = vmatpush1.msra.mxu0 0.0
      %6726 = vmatprep.subr.mxu0 0.0
      %6727 = vmatpush1.msra.mxu0 0.0
      %6728 = vmatprep.subr.mxu0 0.0
      %6729 = vmatpush1.msra.mxu0 0.0
      %6730 = vmatprep.subr.mxu0 0.0
      %6731 = vmatpush1.msra.mxu0 0.0
      %6732 = vmatprep.subr.mxu0 0.0
      %6733 = vmatpush1.msra.mxu0 0.0
      %6734 = vmatprep.subr.mxu0 0.0
      %6735 = vmatpush1.msra.mxu0 0.0
      %6736 = vmatprep.subr.mxu0 0.0
      %6737 = vmatpush1.msra.mxu0 0.0
      %6738 = vmatprep.subr.mxu0 0.0
      %6739 = vmatpush1.msra.mxu0 0.0
      %6740 = vmatprep.subr.mxu0 0.0
      %6741 = vmatpush1.msra.mxu0 0.0
      %6742 = vmatprep.subr.mxu0 0.0
      %6743 = vmatpush1.msra.mxu0 0.0
      %6744 = vmatprep.subr.mxu0 0.0
      %6745 = vmatpush1.msra.mxu0 0.0
      %6746 = vmatprep.subr.mxu0 0.0
      %6747 = vmatpush1.msra.mxu0 0.0
      %6748 = vmatprep.subr.mxu0 0.0
      %6749 = vmatpush1.msra.mxu0 0.0
      %6750 = vmatprep.subr.mxu0 0.0
      %6751 = vmatpush1.msra.mxu0 0.0
      %6752 = vmatprep.subr.mxu0 0.0
      %6753 = vmatpush1.msra.mxu0 0.0
      %6754 = vmatprep.subr.mxu0 0.0
      %6755 = vmatpush1.msra.mxu0 0.0
      %6756 = vmatprep.mubr.f32.mxu0 0.0
      %6757 = vmatmul.mubr.f32.gmra.mrb[0].mxu0 %v6331
      %v6758 = vpop.f32.mrb[0].mxu0
      %v6759 = vadd.f32 0.0, %v6758
      %v6760 = vpop.f32.mrb[0].mxu0
      %v6761 = vadd.f32 0.0, %v6760
      %6762 = vmatprep.mubr.f32.mxu0 0.0
      %6763 = vmatmul.mubr.f32.gmra.mrb[0].mxu0 %v6334
      %v6764 = vpop.f32.mrb[0].mxu0
      %v6765 = vadd.f32 0.0, %v6764
      %v6766 = vpop.f32.mrb[0].mxu0
      %v6767 = vadd.f32 0.0, %v6766
      %6768 = vdwg.mxu0
      %6769 = vmatprep.subr.mxu0 %v6370
      %6770 = vmatpush1.msra.mxu0 %v6367
      %6771 = vmatprep.subr.mxu0 0.0
      %6772 = vmatpush1.msra.mxu0 0.0
      %6773 = vmatprep.subr.mxu0 0.0
      %6774 = vmatpush1.msra.mxu0 0.0
      %6775 = vmatprep.subr.mxu0 0.0
      %6776 = vmatpush1.msra.mxu0 0.0
      %6777 = vmatprep.subr.mxu0 0.0
      %6778 = vmatpush1.msra.mxu0 0.0
      %6779 = vmatprep.subr.mxu0 0.0
      %6780 = vmatpush1.msra.mxu0 0.0
      %6781 = vmatprep.subr.mxu0 0.0
      %6782 = vmatpush1.msra.mxu0 0.0
      %6783 = vmatprep.subr.mxu0 0.0
      %6784 = vmatpush1.msra.mxu0 0.0
      %6785 = vmatprep.subr.mxu0 0.0
      %6786 = vmatpush1.msra.mxu0 0.0
      %6787 = vmatprep.subr.mxu0 0.0
      %6788 = vmatpush1.msra.mxu0 0.0
      %6789 = vmatprep.subr.mxu0 0.0
      %6790 = vmatpush1.msra.mxu0 0.0
      %6791 = vmatprep.subr.mxu0 0.0
      %6792 = vmatpush1.msra.mxu0 0.0
      %6793 = vmatprep.subr.mxu0 0.0
      %6794 = vmatpush1.msra.mxu0 0.0
      %6795 = vmatprep.subr.mxu0 0.0
      %6796 = vmatpush1.msra.mxu0 0.0
      %6797 = vmatprep.subr.mxu0 0.0
      %6798 = vmatpush1.msra.mxu0 0.0
      %6799 = vmatprep.subr.mxu0 0.0
      %6800 = vmatpush1.msra.mxu0 0.0
      %6801 = vmatprep.subr.mxu0 0.0
      %6802 = vmatpush1.msra.mxu0 0.0
      %6803 = vmatprep.subr.mxu0 0.0
      %6804 = vmatpush1.msra.mxu0 0.0
      %6805 = vmatprep.subr.mxu0 0.0
      %6806 = vmatpush1.msra.mxu0 0.0
      %6807 = vmatprep.subr.mxu0 0.0
      %6808 = vmatpush1.msra.mxu0 0.0
      %6809 = vmatprep.subr.mxu0 0.0
      %6810 = vmatpush1.msra.mxu0 0.0
      %6811 = vmatprep.subr.mxu0 0.0
      %6812 = vmatpush1.msra.mxu0 0.0
      %6813 = vmatprep.subr.mxu0 0.0
      %6814 = vmatpush1.msra.mxu0 0.0
      %6815 = vmatprep.subr.mxu0 0.0
      %6816 = vmatpush1.msra.mxu0 0.0
      %6817 = vmatprep.subr.mxu0 0.0
      %6818 = vmatpush1.msra.mxu0 0.0
      %6819 = vmatprep.subr.mxu0 0.0
      %6820 = vmatpush1.msra.mxu0 0.0
      %6821 = vmatprep.subr.mxu0 0.0
      %6822 = vmatpush1.msra.mxu0 0.0
      %6823 = vmatprep.subr.mxu0 0.0
      %6824 = vmatpush1.msra.mxu0 0.0
      %6825 = vmatprep.subr.mxu0 0.0
      %6826 = vmatpush1.msra.mxu0 0.0
      %6827 = vmatprep.subr.mxu0 0.0
      %6828 = vmatpush1.msra.mxu0 0.0
      %6829 = vmatprep.subr.mxu0 0.0
      %6830 = vmatpush1.msra.mxu0 0.0
      %6831 = vmatprep.subr.mxu0 0.0
      %6832 = vmatpush1.msra.mxu0 0.0
      %6833 = vmatprep.mubr.f32.mxu0 0.0
      %6834 = vmatmul.mubr.f32.gmra.mrb[0].mxu0 %v6331
      %v6835 = vpop.f32.mrb[0].mxu0
      %v6836 = vadd.f32 0.0, %v6835
      %v6837 = vpop.f32.mrb[0].mxu0
      %v6838 = vadd.f32 0.0, %v6837
      %6839 = vmatprep.mubr.f32.mxu0 0.0
      %6840 = vmatmul.mubr.f32.gmra.mrb[0].mxu0 %v6334
      %v6841 = vpop.f32.mrb[0].mxu0
      %v6842 = vadd.f32 0.0, %v6841
      %v6843 = vpop.f32.mrb[0].mxu0
      %v6844 = vadd.f32 0.0, %v6843
      %6845 = vdwg.mxu0
      %6846 = vmatprep.subr.mxu0 %v6376
      %6847 = vmatpush1.msra.mxu0 %v6373
      %6848 = vmatprep.subr.mxu0 0.0
      %6849 = vmatpush1.msra.mxu0 0.0
      %6850 = vmatprep.subr.mxu0 0.0
      %6851 = vmatpush1.msra.mxu0 0.0
      %6852 = vmatprep.subr.mxu0 0.0
      %6853 = vmatpush1.msra.mxu0 0.0
      %6854 = vmatprep.subr.mxu0 0.0
      %6855 = vmatpush1.msra.mxu0 0.0
      %6856 = vmatprep.subr.mxu0 0.0
      %6857 = vmatpush1.msra.mxu0 0.0
      %6858 = vmatprep.subr.mxu0 0.0
      %6859 = vmatpush1.msra.mxu0 0.0
      %6860 = vmatprep.subr.mxu0 0.0
      %6861 = vmatpush1.msra.mxu0 0.0
      %6862 = vmatprep.subr.mxu0 0.0
      %6863 = vmatpush1.msra.mxu0 0.0
      %6864 = vmatprep.subr.mxu0 0.0
      %6865 = vmatpush1.msra.mxu0 0.0
      %6866 = vmatprep.subr.mxu0 0.0
      %6867 = vmatpush1.msra.mxu0 0.0
      %6868 = vmatprep.subr.mxu0 0.0
      %6869 = vmatpush1.msra.mxu0 0.0
      %6870 = vmatprep.subr.mxu0 0.0
      %6871 = vmatpush1.msra.mxu0 0.0
      %6872 = vmatprep.subr.mxu0 0.0
      %6873 = vmatpush1.msra.mxu0 0.0
      %6874 = vmatprep.subr.mxu0 0.0
      %6875 = vmatpush1.msra.mxu0 0.0
      %6876 = vmatprep.subr.mxu0 0.0
      %6877 = vmatpush1.msra.mxu0 0.0
      %6878 = vmatprep.subr.mxu0 0.0
      %6879 = vmatpush1.msra.mxu0 0.0
      %6880 = vmatprep.subr.mxu0 0.0
      %6881 = vmatpush1.msra.mxu0 0.0
      %6882 = vmatprep.subr.mxu0 0.0
      %6883 = vmatpush1.msra.mxu0 0.0
      %6884 = vmatprep.subr.mxu0 0.0
      %6885 = vmatpush1.msra.mxu0 0.0
      %6886 = vmatprep.subr.mxu0 0.0
      %6887 = vmatpush1.msra.mxu0 0.0
      %6888 = vmatprep.subr.mxu0 0.0
      %6889 = vmatpush1.msra.mxu0 0.0
      %6890 = vmatprep.subr.mxu0 0.0
      %6891 = vmatpush1.msra.mxu0 0.0
      %6892 = vmatprep.subr.mxu0 0.0
      %6893 = vmatpush1.msra.mxu0 0.0
      %6894 = vmatprep.subr.mxu0 0.0
      %6895 = vmatpush1.msra.mxu0 0.0
      %6896 = vmatprep.subr.mxu0 0.0
      %6897 = vmatpush1.msra.mxu0 0.0
      %6898 = vmatprep.subr.mxu0 0.0
      %6899 = vmatpush1.msra.mxu0 0.0
      %6900 = vmatprep.subr.mxu0 0.0
      %6901 = vmatpush1.msra.mxu0 0.0
      %6902 = vmatprep.subr.mxu0 0.0
      %6903 = vmatpush1.msra.mxu0 0.0
      %6904 = vmatprep.subr.mxu0 0.0
      %6905 = vmatpush1.msra.mxu0 0.0
      %6906 = vmatprep.subr.mxu0 0.0
      %6907 = vmatpush1.msra.mxu0 0.0
      %6908 = vmatprep.subr.mxu0 0.0
      %6909 = vmatpush1.msra.mxu0 0.0
      %6910 = vmatprep.mubr.f32.mxu0 0.0
      %6911 = vmatmul.mubr.f32.gmra.mrb[0].mxu0 %v6331
      %v6912 = vpop.f32.mrb[0].mxu0
      %v6913 = vadd.f32 0.0, %v6912
      %v6914 = vpop.f32.mrb[0].mxu0
      %v6915 = vadd.f32 0.0, %v6914
      %6916 = vmatprep.mubr.f32.mxu0 0.0
      %6917 = vmatmul.mubr.f32.gmra.mrb[0].mxu0 %v6334
      %v6918 = vpop.f32.mrb[0].mxu0
      %v6919 = vadd.f32 0.0, %v6918
      %v6920 = vpop.f32.mrb[0].mxu0
      %v6921 = vadd.f32 0.0, %v6920
      %6922 = vdwg.mxu0
      %6923 = vmatprep.subr.mxu0 %v6382
      %6924 = vmatpush1.msra.mxu0 %v6379
      %6925 = vmatprep.subr.mxu0 0.0
      %6926 = vmatpush1.msra.mxu0 0.0
      %6927 = vmatprep.subr.mxu0 0.0
      %6928 = vmatpush1.msra.mxu0 0.0
      %6929 = vmatprep.subr.mxu0 0.0
      %6930 = vmatpush1.msra.mxu0 0.0
      %6931 = vmatprep.subr.mxu0 0.0
      %6932 = vmatpush1.msra.mxu0 0.0
      %6933 = vmatprep.subr.mxu0 0.0
      %6934 = vmatpush1.msra.mxu0 0.0
      %6935 = vmatprep.subr.mxu0 0.0
      %6936 = vmatpush1.msra.mxu0 0.0
      %6937 = vmatprep.subr.mxu0 0.0
      %6938 = vmatpush1.msra.mxu0 0.0
      %6939 = vmatprep.subr.mxu0 0.0
      %6940 = vmatpush1.msra.mxu0 0.0
      %6941 = vmatprep.subr.mxu0 0.0
      %6942 = vmatpush1.msra.mxu0 0.0
      %6943 = vmatprep.subr.mxu0 0.0
      %6944 = vmatpush1.msra.mxu0 0.0
      %6945 = vmatprep.subr.mxu0 0.0
      %6946 = vmatpush1.msra.mxu0 0.0
      %6947 = vmatprep.subr.mxu0 0.0
      %6948 = vmatpush1.msra.mxu0 0.0
      %6949 = vmatprep.subr.mxu0 0.0
      %6950 = vmatpush1.msra.mxu0 0.0
      %6951 = vmatprep.subr.mxu0 0.0
      %6952 = vmatpush1.msra.mxu0 0.0
      %6953 = vmatprep.subr.mxu0 0.0
      %6954 = vmatpush1.msra.mxu0 0.0
      %6955 = vmatprep.subr.mxu0 0.0
      %6956 = vmatpush1.msra.mxu0 0.0
      %6957 = vmatprep.subr.mxu0 0.0
      %6958 = vmatpush1.msra.mxu0 0.0
      %6959 = vmatprep.subr.mxu0 0.0
      %6960 = vmatpush1.msra.mxu0 0.0
      %6961 = vmatprep.subr.mxu0 0.0
      %6962 = vmatpush1.msra.mxu0 0.0
      %6963 = vmatprep.subr.mxu0 0.0
      %6964 = vmatpush1.msra.mxu0 0.0
      %6965 = vmatprep.subr.mxu0 0.0
      %6966 = vmatpush1.msra.mxu0 0.0
      %6967 = vmatprep.subr.mxu0 0.0
      %6968 = vmatpush1.msra.mxu0 0.0
      %6969 = vmatprep.subr.mxu0 0.0
      %6970 = vmatpush1.msra.mxu0 0.0
      %6971 = vmatprep.subr.mxu0 0.0
      %6972 = vmatpush1.msra.mxu0 0.0
      %6973 = vmatprep.subr.mxu0 0.0
      %6974 = vmatpush1.msra.mxu0 0.0
      %6975 = vmatprep.subr.mxu0 0.0
      %6976 = vmatpush1.msra.mxu0 0.0
      %6977 = vmatprep.subr.mxu0 0.0
      %6978 = vmatpush1.msra.mxu0 0.0
      %6979 = vmatprep.subr.mxu0 0.0
      %6980 = vmatpush1.msra.mxu0 0.0
      %6981 = vmatprep.subr.mxu0 0.0
      %6982 = vmatpush1.msra.mxu0 0.0
      %6983 = vmatprep.subr.mxu0 0.0
      %6984 = vmatpush1.msra.mxu0 0.0
      %6985 = vmatprep.subr.mxu0 0.0
      %6986 = vmatpush1.msra.mxu0 0.0
      %6987 = vmatprep.mubr.f32.mxu0 0.0
      %6988 = vmatmul.mubr.f32.gmra.mrb[0].mxu0 %v6331
      %v6989 = vpop.f32.mrb[0].mxu0
      %v6990 = vadd.f32 0.0, %v6989
      %v6991 = vpop.f32.mrb[0].mxu0
      %v6992 = vadd.f32 0.0, %v6991
      %6993 = vmatprep.mubr.f32.mxu0 0.0
      %6994 = vmatmul.mubr.f32.gmra.mrb[0].mxu0 %v6334
      %v6995 = vpop.f32.mrb[0].mxu0
      %v6996 = vadd.f32 0.0, %v6995
      %v6997 = vpop.f32.mrb[0].mxu0
      %v6998 = vadd.f32 0.0, %v6997
      %6999 = vdwg.mxu0
      %v7000 = vadd.f32 %v6145, %v6451
      %v7001 = vadd.f32 %v6146, %v6453
      %v7002 = vadd.f32 %v6147, %v6528
      %v7003 = vadd.f32 %v6148, %v6530
      %v7004 = vadd.f32 %v6149, %v6605
      %v7005 = vadd.f32 %v6150, %v6607
      %v7006 = vadd.f32 %v6151, %v6682
      %v7007 = vadd.f32 %v6152, %v6684
      %v7008 = vadd.f32 %v6153, %v6759
      %v7009 = vadd.f32 %v6154, %v6761
      %v7010 = vadd.f32 %v6155, %v6836
      %v7011 = vadd.f32 %v6156, %v6838
      %v7012 = vadd.f32 %v6157, %v6913
      %v7013 = vadd.f32 %v6158, %v6915
      %v7014 = vadd.f32 %v6159, %v6990
      %v7015 = vadd.f32 %v6160, %v6992
      %v7016 = vadd.f32 %v6161, %v6457
      %v7017 = vadd.f32 %v6162, %v6459
      %v7018 = vadd.f32 %v6163, %v6534
      %v7019 = vadd.f32 %v6164, %v6536
      %v7020 = vadd.f32 %v6165, %v6611
      %v7021 = vadd.f32 %v6166, %v6613
      %v7022 = vadd.f32 %v6167, %v6688
      %v7023 = vadd.f32 %v6168, %v6690
      %v7024 = vadd.f32 %v6169, %v6765
      %v7025 = vadd.f32 %v6170, %v6767
      %v7026 = vadd.f32 %v6171, %v6842
      %v7027 = vadd.f32 %v6172, %v6844
      %v7028 = vadd.f32 %v6173, %v6919
      %v7029 = vadd.f32 %v6174, %v6921
      %v7030 = vadd.f32 %v6175, %v6996
      %v7031 = vadd.f32 %v6176, %v6998
      %7032 = vrot.lane.b32.xlu0 %v279, 111
      %v7033 = vpop.permute.xlu0 %7032
      %7034 = vrot.lane.b32.xlu0 %v295, 111
      %v7035 = vpop.permute.xlu0 %7034
      %7036 = vrot.lane.b32.xlu0 %v280, 111
      %v7037 = vpop.permute.xlu0 %7036
      %7038 = vrot.lane.b32.xlu0 %v296, 111
      %v7039 = vpop.permute.xlu0 %7038
      %7040 = vrot.lane.b32.xlu0 %v281, 111
      %v7041 = vpop.permute.xlu0 %7040
      %7042 = vrot.lane.b32.xlu0 %v297, 111
      %v7043 = vpop.permute.xlu0 %7042
      %7044 = vrot.lane.b32.xlu0 %v282, 111
      %v7045 = vpop.permute.xlu0 %7044
      %7046 = vrot.lane.b32.xlu0 %v298, 111
      %v7047 = vpop.permute.xlu0 %7046
      %7048 = vrot.lane.b32.xlu0 %v283, 111
      %v7049 = vpop.permute.xlu0 %7048
      %7050 = vrot.lane.b32.xlu0 %v299, 111
      %v7051 = vpop.permute.xlu0 %7050
      %7052 = vrot.lane.b32.xlu0 %v284, 111
      %v7053 = vpop.permute.xlu0 %7052
      %7054 = vrot.lane.b32.xlu0 %v300, 111
      %v7055 = vpop.permute.xlu0 %7054
      %7056 = vrot.lane.b32.xlu0 %v285, 111
      %v7057 = vpop.permute.xlu0 %7056
      %7058 = vrot.lane.b32.xlu0 %v301, 111
      %v7059 = vpop.permute.xlu0 %7058
      %7060 = vrot.lane.b32.xlu0 %v286, 111
      %v7061 = vpop.permute.xlu0 %7060
      %7062 = vrot.lane.b32.xlu0 %v302, 111
      %v7063 = vpop.permute.xlu0 %7062
      %vm7064 = vcmp.lt.s32.totalorder %v344, 111
      %v7065 = vsel %vm7064, %v7061, %v7063
      %v7066 = vsel %vm7064, %v7059, %v7061
      %v7067 = vsel %vm7064, %v7057, %v7059
      %v7068 = vsel %vm7064, %v7055, %v7057
      %v7069 = vsel %vm7064, %v7053, %v7055
      %v7070 = vsel %vm7064, %v7051, %v7053
      %v7071 = vsel %vm7064, %v7049, %v7051
      %v7072 = vsel %vm7064, %v7047, %v7049
      %v7073 = vsel %vm7064, %v7045, %v7047
      %v7074 = vsel %vm7064, %v7043, %v7045
      %v7075 = vsel %vm7064, %v7041, %v7043
      %v7076 = vsel %vm7064, %v7039, %v7041
      %v7077 = vsel %vm7064, %v7037, %v7039
      %v7078 = vsel %vm7064, %v7035, %v7037
      %v7079 = vsel %vm7064, %v7033, %v7035
      %v7080 = vsel %vm7064, %v7063, %v7033
      %s7081 = scalar_lea.vmem %s5, 128
      %v7082 = vld [vmem:[%s7081] sm:$0xff]
      %v7083 = vld [vmem:[%s7081 + $0x8] sm:$0xff]
      %v7086 = vlaneseq
      %v7087 = vshrl.u32 %v7086, 7
      %v7088 = vsub.s32 0, %v7087
      %v7089 = vrot.slane %v7082, %v7088
      %v7090 = vlaneseq
      %v7091 = vshrl.u32 %v7090, 7
      %v7092 = vsub.s32 1, %v7091
      %v7093 = vrot.slane %v7082, %v7092
      %v7094 = vlaneseq
      %v7095 = vshrl.u32 %v7094, 7
      %v7096 = vsub.s32 2, %v7095
      %v7097 = vrot.slane %v7082, %v7096
      %v7098 = vlaneseq
      %v7099 = vshrl.u32 %v7098, 7
      %v7100 = vsub.s32 3, %v7099
      %v7101 = vrot.slane %v7082, %v7100
      %v7102 = vlaneseq
      %v7103 = vshrl.u32 %v7102, 7
      %v7104 = vsub.s32 4, %v7103
      %v7105 = vrot.slane %v7082, %v7104
      %v7106 = vlaneseq
      %v7107 = vshrl.u32 %v7106, 7
      %v7108 = vsub.s32 5, %v7107
      %v7109 = vrot.slane %v7082, %v7108
      %v7110 = vlaneseq
      %v7111 = vshrl.u32 %v7110, 7
      %v7112 = vsub.s32 6, %v7111
      %v7113 = vrot.slane %v7082, %v7112
      %v7114 = vlaneseq
      %v7115 = vshrl.u32 %v7114, 7
      %v7116 = vsub.s32 7, %v7115
      %v7117 = vrot.slane %v7082, %v7116
      %v7118 = vlaneseq
      %v7119 = vshrl.u32 %v7118, 7
      %v7120 = vsub.s32 0, %v7119
      %v7121 = vrot.slane %v7083, %v7120
      %v7122 = vlaneseq
      %v7123 = vshrl.u32 %v7122, 7
      %v7124 = vsub.s32 1, %v7123
      %v7125 = vrot.slane %v7083, %v7124
      %v7126 = vlaneseq
      %v7127 = vshrl.u32 %v7126, 7
      %v7128 = vsub.s32 2, %v7127
      %v7129 = vrot.slane %v7083, %v7128
      %v7130 = vlaneseq
      %v7131 = vshrl.u32 %v7130, 7
      %v7132 = vsub.s32 3, %v7131
      %v7133 = vrot.slane %v7083, %v7132
      %v7134 = vlaneseq
      %v7135 = vshrl.u32 %v7134, 7
      %v7136 = vsub.s32 4, %v7135
      %v7137 = vrot.slane %v7083, %v7136
      %v7138 = vlaneseq
      %v7139 = vshrl.u32 %v7138, 7
      %v7140 = vsub.s32 5, %v7139
      %v7141 = vrot.slane %v7083, %v7140
      %v7142 = vlaneseq
      %v7143 = vshrl.u32 %v7142, 7
      %v7144 = vsub.s32 6, %v7143
      %v7145 = vrot.slane %v7083, %v7144
      %v7146 = vlaneseq
      %v7147 = vshrl.u32 %v7146, 7
      %v7148 = vsub.s32 7, %v7147
      %v7149 = vrot.slane %v7083, %v7148
      %v7166 = vmul.f32 %v7079, %v7089
      %v7167 = vmul.f32 %v7078, %v7093
      %v7168 = vmul.f32 %v7077, %v7097
      %v7169 = vmul.f32 %v7076, %v7101
      %v7170 = vmul.f32 %v7075, %v7105
      %v7171 = vmul.f32 %v7074, %v7109
      %v7172 = vmul.f32 %v7073, %v7113
      %v7173 = vmul.f32 %v7072, %v7117
      %v7174 = vmul.f32 %v7071, %v7121
      %v7175 = vmul.f32 %v7070, %v7125
      %v7176 = vmul.f32 %v7069, %v7129
      %v7177 = vmul.f32 %v7068, %v7133
      %v7178 = vmul.f32 %v7067, %v7137
      %v7179 = vmul.f32 %v7066, %v7141
      %v7180 = vmul.f32 %v7065, %v7145
      %v7181 = vmul.f32 %v7080, %v7149
      %s7182 = scalar_lea.vmem %s1, 128
      %v7183 = vld [vmem:[%s7182] sm:$0xff]
      %v7184 = vld [vmem:[%s7182 + $0x8] sm:$0x1]
      %v7186 = vsel %vm617, %v7183, 0
      %v7189 = vsel %vm617, %v7184, 0
      %v7192 = vsel %vm624, %v7166, 0
      %v7195 = vsel %vm624, %v7167, 0
      %v7198 = vsel %vm624, %v7168, 0
      %v7201 = vsel %vm624, %v7169, 0
      %v7204 = vsel %vm624, %v7170, 0
      %v7207 = vsel %vm624, %v7171, 0
      %v7210 = vsel %vm624, %v7172, 0
      %v7213 = vsel %vm624, %v7173, 0
      %v7216 = vsel %vm624, %v7174, 0
      %v7219 = vsel %vm624, %v7175, 0
      %v7222 = vsel %vm624, %v7176, 0
      %v7225 = vsel %vm624, %v7177, 0
      %v7228 = vsel %vm624, %v7178, 0
      %v7231 = vsel %vm624, %v7179, 0
      %v7234 = vsel %vm624, %v7180, 0
      %v7237 = vsel %vm624, %v7181, 0
      %7239 = vmatprep.subr.mxu0 %v7195
      %7240 = vmatpush1.msra.mxu0 %v7192
      %7241 = vmatprep.subr.mxu0 0.0
      %7242 = vmatpush1.msra.mxu0 0.0
      %7243 = vmatprep.subr.mxu0 0.0
      %7244 = vmatpush1.msra.mxu0 0.0
      %7245 = vmatprep.subr.mxu0 0.0
      %7246 = vmatpush1.msra.mxu0 0.0
      %7247 = vmatprep.subr.mxu0 0.0
      %7248 = vmatpush1.msra.mxu0 0.0
      %7249 = vmatprep.subr.mxu0 0.0
      %7250 = vmatpush1.msra.mxu0 0.0
      %7251 = vmatprep.subr.mxu0 0.0
      %7252 = vmatpush1.msra.mxu0 0.0
      %7253 = vmatprep.subr.mxu0 0.0
      %7254 = vmatpush1.msra.mxu0 0.0
      %7255 = vmatprep.subr.mxu0 0.0
      %7256 = vmatpush1.msra.mxu0 0.0
      %7257 = vmatprep.subr.mxu0 0.0
      %7258 = vmatpush1.msra.mxu0 0.0
      %7259 = vmatprep.subr.mxu0 0.0
      %7260 = vmatpush1.msra.mxu0 0.0
      %7261 = vmatprep.subr.mxu0 0.0
      %7262 = vmatpush1.msra.mxu0 0.0
      %7263 = vmatprep.subr.mxu0 0.0
      %7264 = vmatpush1.msra.mxu0 0.0
      %7265 = vmatprep.subr.mxu0 0.0
      %7266 = vmatpush1.msra.mxu0 0.0
      %7267 = vmatprep.subr.mxu0 0.0
      %7268 = vmatpush1.msra.mxu0 0.0
      %7269 = vmatprep.subr.mxu0 0.0
      %7270 = vmatpush1.msra.mxu0 0.0
      %7271 = vmatprep.subr.mxu0 0.0
      %7272 = vmatpush1.msra.mxu0 0.0
      %7273 = vmatprep.subr.mxu0 0.0
      %7274 = vmatpush1.msra.mxu0 0.0
      %7275 = vmatprep.subr.mxu0 0.0
      %7276 = vmatpush1.msra.mxu0 0.0
      %7277 = vmatprep.subr.mxu0 0.0
      %7278 = vmatpush1.msra.mxu0 0.0
      %7279 = vmatprep.subr.mxu0 0.0
      %7280 = vmatpush1.msra.mxu0 0.0
      %7281 = vmatprep.subr.mxu0 0.0
      %7282 = vmatpush1.msra.mxu0 0.0
      %7283 = vmatprep.subr.mxu0 0.0
      %7284 = vmatpush1.msra.mxu0 0.0
      %7285 = vmatprep.subr.mxu0 0.0
      %7286 = vmatpush1.msra.mxu0 0.0
      %7287 = vmatprep.subr.mxu0 0.0
      %7288 = vmatpush1.msra.mxu0 0.0
      %7289 = vmatprep.subr.mxu0 0.0
      %7290 = vmatpush1.msra.mxu0 0.0
      %7291 = vmatprep.subr.mxu0 0.0
      %7292 = vmatpush1.msra.mxu0 0.0
      %7293 = vmatprep.subr.mxu0 0.0
      %7294 = vmatpush1.msra.mxu0 0.0
      %7295 = vmatprep.subr.mxu0 0.0
      %7296 = vmatpush1.msra.mxu0 0.0
      %7297 = vmatprep.subr.mxu0 0.0
      %7298 = vmatpush1.msra.mxu0 0.0
      %7299 = vmatprep.subr.mxu0 0.0
      %7300 = vmatpush1.msra.mxu0 0.0
      %7301 = vmatprep.subr.mxu0 0.0
      %7302 = vmatpush1.msra.mxu0 0.0
      %7303 = vmatprep.mubr.f32.mxu0 0.0
      %7304 = vmatmul.mubr.f32.gmra.mrb[0].mxu0 %v7186
      %v7305 = vpop.f32.mrb[0].mxu0
      %v7306 = vadd.f32 0.0, %v7305
      %v7307 = vpop.f32.mrb[0].mxu0
      %v7308 = vadd.f32 0.0, %v7307
      %7309 = vmatprep.mubr.f32.mxu0 0.0
      %7310 = vmatmul.mubr.f32.gmra.mrb[0].mxu0 %v7189
      %v7311 = vpop.f32.mrb[0].mxu0
      %v7312 = vadd.f32 0.0, %v7311
      %v7313 = vpop.f32.mrb[0].mxu0
      %v7314 = vadd.f32 0.0, %v7313
      %7315 = vdwg.mxu0
      %7316 = vmatprep.subr.mxu0 %v7201
      %7317 = vmatpush1.msra.mxu0 %v7198
      %7318 = vmatprep.subr.mxu0 0.0
      %7319 = vmatpush1.msra.mxu0 0.0
      %7320 = vmatprep.subr.mxu0 0.0
      %7321 = vmatpush1.msra.mxu0 0.0
      %7322 = vmatprep.subr.mxu0 0.0
      %7323 = vmatpush1.msra.mxu0 0.0
      %7324 = vmatprep.subr.mxu0 0.0
      %7325 = vmatpush1.msra.mxu0 0.0
      %7326 = vmatprep.subr.mxu0 0.0
      %7327 = vmatpush1.msra.mxu0 0.0
      %7328 = vmatprep.subr.mxu0 0.0
      %7329 = vmatpush1.msra.mxu0 0.0
      %7330 = vmatprep.subr.mxu0 0.0
      %7331 = vmatpush1.msra.mxu0 0.0
      %7332 = vmatprep.subr.mxu0 0.0
      %7333 = vmatpush1.msra.mxu0 0.0
      %7334 = vmatprep.subr.mxu0 0.0
      %7335 = vmatpush1.msra.mxu0 0.0
      %7336 = vmatprep.subr.mxu0 0.0
      %7337 = vmatpush1.msra.mxu0 0.0
      %7338 = vmatprep.subr.mxu0 0.0
      %7339 = vmatpush1.msra.mxu0 0.0
      %7340 = vmatprep.subr.mxu0 0.0
      %7341 = vmatpush1.msra.mxu0 0.0
      %7342 = vmatprep.subr.mxu0 0.0
      %7343 = vmatpush1.msra.mxu0 0.0
      %7344 = vmatprep.subr.mxu0 0.0
      %7345 = vmatpush1.msra.mxu0 0.0
      %7346 = vmatprep.subr.mxu0 0.0
      %7347 = vmatpush1.msra.mxu0 0.0
      %7348 = vmatprep.subr.mxu0 0.0
      %7349 = vmatpush1.msra.mxu0 0.0
      %7350 = vmatprep.subr.mxu0 0.0
      %7351 = vmatpush1.msra.mxu0 0.0
      %7352 = vmatprep.subr.mxu0 0.0
      %7353 = vmatpush1.msra.mxu0 0.0
      %7354 = vmatprep.subr.mxu0 0.0
      %7355 = vmatpush1.msra.mxu0 0.0
      %7356 = vmatprep.subr.mxu0 0.0
      %7357 = vmatpush1.msra.mxu0 0.0
      %7358 = vmatprep.subr.mxu0 0.0
      %7359 = vmatpush1.msra.mxu0 0.0
      %7360 = vmatprep.subr.mxu0 0.0
      %7361 = vmatpush1.msra.mxu0 0.0
      %7362 = vmatprep.subr.mxu0 0.0
      %7363 = vmatpush1.msra.mxu0 0.0
      %7364 = vmatprep.subr.mxu0 0.0
      %7365 = vmatpush1.msra.mxu0 0.0
      %7366 = vmatprep.subr.mxu0 0.0
      %7367 = vmatpush1.msra.mxu0 0.0
      %7368 = vmatprep.subr.mxu0 0.0
      %7369 = vmatpush1.msra.mxu0 0.0
      %7370 = vmatprep.subr.mxu0 0.0
      %7371 = vmatpush1.msra.mxu0 0.0
      %7372 = vmatprep.subr.mxu0 0.0
      %7373 = vmatpush1.msra.mxu0 0.0
      %7374 = vmatprep.subr.mxu0 0.0
      %7375 = vmatpush1.msra.mxu0 0.0
      %7376 = vmatprep.subr.mxu0 0.0
      %7377 = vmatpush1.msra.mxu0 0.0
      %7378 = vmatprep.subr.mxu0 0.0
      %7379 = vmatpush1.msra.mxu0 0.0
      %7380 = vmatprep.mubr.f32.mxu0 0.0
      %7381 = vmatmul.mubr.f32.gmra.mrb[0].mxu0 %v7186
      %v7382 = vpop.f32.mrb[0].mxu0
      %v7383 = vadd.f32 0.0, %v7382
      %v7384 = vpop.f32.mrb[0].mxu0
      %v7385 = vadd.f32 0.0, %v7384
      %7386 = vmatprep.mubr.f32.mxu0 0.0
      %7387 = vmatmul.mubr.f32.gmra.mrb[0].mxu0 %v7189
      %v7388 = vpop.f32.mrb[0].mxu0
      %v7389 = vadd.f32 0.0, %v7388
      %v7390 = vpop.f32.mrb[0].mxu0
      %v7391 = vadd.f32 0.0, %v7390
      %7392 = vdwg.mxu0
      %7393 = vmatprep.subr.mxu0 %v7207
      %7394 = vmatpush1.msra.mxu0 %v7204
      %7395 = vmatprep.subr.mxu0 0.0
      %7396 = vmatpush1.msra.mxu0 0.0
      %7397 = vmatprep.subr.mxu0 0.0
      %7398 = vmatpush1.msra.mxu0 0.0
      %7399 = vmatprep.subr.mxu0 0.0
      %7400 = vmatpush1.msra.mxu0 0.0
      %7401 = vmatprep.subr.mxu0 0.0
      %7402 = vmatpush1.msra.mxu0 0.0
      %7403 = vmatprep.subr.mxu0 0.0
      %7404 = vmatpush1.msra.mxu0 0.0
      %7405 = vmatprep.subr.mxu0 0.0
      %7406 = vmatpush1.msra.mxu0 0.0
      %7407 = vmatprep.subr.mxu0 0.0
      %7408 = vmatpush1.msra.mxu0 0.0
      %7409 = vmatprep.subr.mxu0 0.0
      %7410 = vmatpush1.msra.mxu0 0.0
      %7411 = vmatprep.subr.mxu0 0.0
      %7412 = vmatpush1.msra.mxu0 0.0
      %7413 = vmatprep.subr.mxu0 0.0
      %7414 = vmatpush1.msra.mxu0 0.0
      %7415 = vmatprep.subr.mxu0 0.0
      %7416 = vmatpush1.msra.mxu0 0.0
      %7417 = vmatprep.subr.mxu0 0.0
      %7418 = vmatpush1.msra.mxu0 0.0
      %7419 = vmatprep.subr.mxu0 0.0
      %7420 = vmatpush1.msra.mxu0 0.0
      %7421 = vmatprep.subr.mxu0 0.0
      %7422 = vmatpush1.msra.mxu0 0.0
      %7423 = vmatprep.subr.mxu0 0.0
      %7424 = vmatpush1.msra.mxu0 0.0
      %7425 = vmatprep.subr.mxu0 0.0
      %7426 = vmatpush1.msra.mxu0 0.0
      %7427 = vmatprep.subr.mxu0 0.0
      %7428 = vmatpush1.msra.mxu0 0.0
      %7429 = vmatprep.subr.mxu0 0.0
      %7430 = vmatpush1.msra.mxu0 0.0
      %7431 = vmatprep.subr.mxu0 0.0
      %7432 = vmatpush1.msra.mxu0 0.0
      %7433 = vmatprep.subr.mxu0 0.0
      %7434 = vmatpush1.msra.mxu0 0.0
      %7435 = vmatprep.subr.mxu0 0.0
      %7436 = vmatpush1.msra.mxu0 0.0
      %7437 = vmatprep.subr.mxu0 0.0
      %7438 = vmatpush1.msra.mxu0 0.0
      %7439 = vmatprep.subr.mxu0 0.0
      %7440 = vmatpush1.msra.mxu0 0.0
      %7441 = vmatprep.subr.mxu0 0.0
      %7442 = vmatpush1.msra.mxu0 0.0
      %7443 = vmatprep.subr.mxu0 0.0
      %7444 = vmatpush1.msra.mxu0 0.0
      %7445 = vmatprep.subr.mxu0 0.0
      %7446 = vmatpush1.msra.mxu0 0.0
      %7447 = vmatprep.subr.mxu0 0.0
      %7448 = vmatpush1.msra.mxu0 0.0
      %7449 = vmatprep.subr.mxu0 0.0
      %7450 = vmatpush1.msra.mxu0 0.0
      %7451 = vmatprep.subr.mxu0 0.0
      %7452 = vmatpush1.msra.mxu0 0.0
      %7453 = vmatprep.subr.mxu0 0.0
      %7454 = vmatpush1.msra.mxu0 0.0
      %7455 = vmatprep.subr.mxu0 0.0
      %7456 = vmatpush1.msra.mxu0 0.0
      %7457 = vmatprep.mubr.f32.mxu0 0.0
      %7458 = vmatmul.mubr.f32.gmra.mrb[0].mxu0 %v7186
      %v7459 = vpop.f32.mrb[0].mxu0
      %v7460 = vadd.f32 0.0, %v7459
      %v7461 = vpop.f32.mrb[0].mxu0
      %v7462 = vadd.f32 0.0, %v7461
      %7463 = vmatprep.mubr.f32.mxu0 0.0
      %7464 = vmatmul.mubr.f32.gmra.mrb[0].mxu0 %v7189
      %v7465 = vpop.f32.mrb[0].mxu0
      %v7466 = vadd.f32 0.0, %v7465
      %v7467 = vpop.f32.mrb[0].mxu0
      %v7468 = vadd.f32 0.0, %v7467
      %7469 = vdwg.mxu0
      %7470 = vmatprep.subr.mxu0 %v7213
      %7471 = vmatpush1.msra.mxu0 %v7210
      %7472 = vmatprep.subr.mxu0 0.0
      %7473 = vmatpush1.msra.mxu0 0.0
      %7474 = vmatprep.subr.mxu0 0.0
      %7475 = vmatpush1.msra.mxu0 0.0
      %7476 = vmatprep.subr.mxu0 0.0
      %7477 = vmatpush1.msra.mxu0 0.0
      %7478 = vmatprep.subr.mxu0 0.0
      %7479 = vmatpush1.msra.mxu0 0.0
      %7480 = vmatprep.subr.mxu0 0.0
      %7481 = vmatpush1.msra.mxu0 0.0
      %7482 = vmatprep.subr.mxu0 0.0
      %7483 = vmatpush1.msra.mxu0 0.0
      %7484 = vmatprep.subr.mxu0 0.0
      %7485 = vmatpush1.msra.mxu0 0.0
      %7486 = vmatprep.subr.mxu0 0.0
      %7487 = vmatpush1.msra.mxu0 0.0
      %7488 = vmatprep.subr.mxu0 0.0
      %7489 = vmatpush1.msra.mxu0 0.0
      %7490 = vmatprep.subr.mxu0 0.0
      %7491 = vmatpush1.msra.mxu0 0.0
      %7492 = vmatprep.subr.mxu0 0.0
      %7493 = vmatpush1.msra.mxu0 0.0
      %7494 = vmatprep.subr.mxu0 0.0
      %7495 = vmatpush1.msra.mxu0 0.0
      %7496 = vmatprep.subr.mxu0 0.0
      %7497 = vmatpush1.msra.mxu0 0.0
      %7498 = vmatprep.subr.mxu0 0.0
      %7499 = vmatpush1.msra.mxu0 0.0
      %7500 = vmatprep.subr.mxu0 0.0
      %7501 = vmatpush1.msra.mxu0 0.0
      %7502 = vmatprep.subr.mxu0 0.0
      %7503 = vmatpush1.msra.mxu0 0.0
      %7504 = vmatprep.subr.mxu0 0.0
      %7505 = vmatpush1.msra.mxu0 0.0
      %7506 = vmatprep.subr.mxu0 0.0
      %7507 = vmatpush1.msra.mxu0 0.0
      %7508 = vmatprep.subr.mxu0 0.0
      %7509 = vmatpush1.msra.mxu0 0.0
      %7510 = vmatprep.subr.mxu0 0.0
      %7511 = vmatpush1.msra.mxu0 0.0
      %7512 = vmatprep.subr.mxu0 0.0
      %7513 = vmatpush1.msra.mxu0 0.0
      %7514 = vmatprep.subr.mxu0 0.0
      %7515 = vmatpush1.msra.mxu0 0.0
      %7516 = vmatprep.subr.mxu0 0.0
      %7517 = vmatpush1.msra.mxu0 0.0
      %7518 = vmatprep.subr.mxu0 0.0
      %7519 = vmatpush1.msra.mxu0 0.0
      %7520 = vmatprep.subr.mxu0 0.0
      %7521 = vmatpush1.msra.mxu0 0.0
      %7522 = vmatprep.subr.mxu0 0.0
      %7523 = vmatpush1.msra.mxu0 0.0
      %7524 = vmatprep.subr.mxu0 0.0
      %7525 = vmatpush1.msra.mxu0 0.0
      %7526 = vmatprep.subr.mxu0 0.0
      %7527 = vmatpush1.msra.mxu0 0.0
      %7528 = vmatprep.subr.mxu0 0.0
      %7529 = vmatpush1.msra.mxu0 0.0
      %7530 = vmatprep.subr.mxu0 0.0
      %7531 = vmatpush1.msra.mxu0 0.0
      %7532 = vmatprep.subr.mxu0 0.0
      %7533 = vmatpush1.msra.mxu0 0.0
      %7534 = vmatprep.mubr.f32.mxu0 0.0
      %7535 = vmatmul.mubr.f32.gmra.mrb[0].mxu0 %v7186
      %v7536 = vpop.f32.mrb[0].mxu0
      %v7537 = vadd.f32 0.0, %v7536
      %v7538 = vpop.f32.mrb[0].mxu0
      %v7539 = vadd.f32 0.0, %v7538
      %7540 = vmatprep.mubr.f32.mxu0 0.0
      %7541 = vmatmul.mubr.f32.gmra.mrb[0].mxu0 %v7189
      %v7542 = vpop.f32.mrb[0].mxu0
      %v7543 = vadd.f32 0.0, %v7542
      %v7544 = vpop.f32.mrb[0].mxu0
      %v7545 = vadd.f32 0.0, %v7544
      %7546 = vdwg.mxu0
      %7547 = vmatprep.subr.mxu0 %v7219
      %7548 = vmatpush1.msra.mxu0 %v7216
      %7549 = vmatprep.subr.mxu0 0.0
      %7550 = vmatpush1.msra.mxu0 0.0
      %7551 = vmatprep.subr.mxu0 0.0
      %7552 = vmatpush1.msra.mxu0 0.0
      %7553 = vmatprep.subr.mxu0 0.0
      %7554 = vmatpush1.msra.mxu0 0.0
      %7555 = vmatprep.subr.mxu0 0.0
      %7556 = vmatpush1.msra.mxu0 0.0
      %7557 = vmatprep.subr.mxu0 0.0
      %7558 = vmatpush1.msra.mxu0 0.0
      %7559 = vmatprep.subr.mxu0 0.0
      %7560 = vmatpush1.msra.mxu0 0.0
      %7561 = vmatprep.subr.mxu0 0.0
      %7562 = vmatpush1.msra.mxu0 0.0
      %7563 = vmatprep.subr.mxu0 0.0
      %7564 = vmatpush1.msra.mxu0 0.0
      %7565 = vmatprep.subr.mxu0 0.0
      %7566 = vmatpush1.msra.mxu0 0.0
      %7567 = vmatprep.subr.mxu0 0.0
      %7568 = vmatpush1.msra.mxu0 0.0
      %7569 = vmatprep.subr.mxu0 0.0
      %7570 = vmatpush1.msra.mxu0 0.0
      %7571 = vmatprep.subr.mxu0 0.0
      %7572 = vmatpush1.msra.mxu0 0.0
      %7573 = vmatprep.subr.mxu0 0.0
      %7574 = vmatpush1.msra.mxu0 0.0
      %7575 = vmatprep.subr.mxu0 0.0
      %7576 = vmatpush1.msra.mxu0 0.0
      %7577 = vmatprep.subr.mxu0 0.0
      %7578 = vmatpush1.msra.mxu0 0.0
      %7579 = vmatprep.subr.mxu0 0.0
      %7580 = vmatpush1.msra.mxu0 0.0
      %7581 = vmatprep.subr.mxu0 0.0
      %7582 = vmatpush1.msra.mxu0 0.0
      %7583 = vmatprep.subr.mxu0 0.0
      %7584 = vmatpush1.msra.mxu0 0.0
      %7585 = vmatprep.subr.mxu0 0.0
      %7586 = vmatpush1.msra.mxu0 0.0
      %7587 = vmatprep.subr.mxu0 0.0
      %7588 = vmatpush1.msra.mxu0 0.0
      %7589 = vmatprep.subr.mxu0 0.0
      %7590 = vmatpush1.msra.mxu0 0.0
      %7591 = vmatprep.subr.mxu0 0.0
      %7592 = vmatpush1.msra.mxu0 0.0
      %7593 = vmatprep.subr.mxu0 0.0
      %7594 = vmatpush1.msra.mxu0 0.0
      %7595 = vmatprep.subr.mxu0 0.0
      %7596 = vmatpush1.msra.mxu0 0.0
      %7597 = vmatprep.subr.mxu0 0.0
      %7598 = vmatpush1.msra.mxu0 0.0
      %7599 = vmatprep.subr.mxu0 0.0
      %7600 = vmatpush1.msra.mxu0 0.0
      %7601 = vmatprep.subr.mxu0 0.0
      %7602 = vmatpush1.msra.mxu0 0.0
      %7603 = vmatprep.subr.mxu0 0.0
      %7604 = vmatpush1.msra.mxu0 0.0
      %7605 = vmatprep.subr.mxu0 0.0
      %7606 = vmatpush1.msra.mxu0 0.0
      %7607 = vmatprep.subr.mxu0 0.0
      %7608 = vmatpush1.msra.mxu0 0.0
      %7609 = vmatprep.subr.mxu0 0.0
      %7610 = vmatpush1.msra.mxu0 0.0
      %7611 = vmatprep.mubr.f32.mxu0 0.0
      %7612 = vmatmul.mubr.f32.gmra.mrb[0].mxu0 %v7186
      %v7613 = vpop.f32.mrb[0].mxu0
      %v7614 = vadd.f32 0.0, %v7613
      %v7615 = vpop.f32.mrb[0].mxu0
      %v7616 = vadd.f32 0.0, %v7615
      %7617 = vmatprep.mubr.f32.mxu0 0.0
      %7618 = vmatmul.mubr.f32.gmra.mrb[0].mxu0 %v7189
      %v7619 = vpop.f32.mrb[0].mxu0
      %v7620 = vadd.f32 0.0, %v7619
      %v7621 = vpop.f32.mrb[0].mxu0
      %v7622 = vadd.f32 0.0, %v7621
      %7623 = vdwg.mxu0
      %7624 = vmatprep.subr.mxu0 %v7225
      %7625 = vmatpush1.msra.mxu0 %v7222
      %7626 = vmatprep.subr.mxu0 0.0
      %7627 = vmatpush1.msra.mxu0 0.0
      %7628 = vmatprep.subr.mxu0 0.0
      %7629 = vmatpush1.msra.mxu0 0.0
      %7630 = vmatprep.subr.mxu0 0.0
      %7631 = vmatpush1.msra.mxu0 0.0
      %7632 = vmatprep.subr.mxu0 0.0
      %7633 = vmatpush1.msra.mxu0 0.0
      %7634 = vmatprep.subr.mxu0 0.0
      %7635 = vmatpush1.msra.mxu0 0.0
      %7636 = vmatprep.subr.mxu0 0.0
      %7637 = vmatpush1.msra.mxu0 0.0
      %7638 = vmatprep.subr.mxu0 0.0
      %7639 = vmatpush1.msra.mxu0 0.0
      %7640 = vmatprep.subr.mxu0 0.0
      %7641 = vmatpush1.msra.mxu0 0.0
      %7642 = vmatprep.subr.mxu0 0.0
      %7643 = vmatpush1.msra.mxu0 0.0
      %7644 = vmatprep.subr.mxu0 0.0
      %7645 = vmatpush1.msra.mxu0 0.0
      %7646 = vmatprep.subr.mxu0 0.0
      %7647 = vmatpush1.msra.mxu0 0.0
      %7648 = vmatprep.subr.mxu0 0.0
      %7649 = vmatpush1.msra.mxu0 0.0
      %7650 = vmatprep.subr.mxu0 0.0
      %7651 = vmatpush1.msra.mxu0 0.0
      %7652 = vmatprep.subr.mxu0 0.0
      %7653 = vmatpush1.msra.mxu0 0.0
      %7654 = vmatprep.subr.mxu0 0.0
      %7655 = vmatpush1.msra.mxu0 0.0
      %7656 = vmatprep.subr.mxu0 0.0
      %7657 = vmatpush1.msra.mxu0 0.0
      %7658 = vmatprep.subr.mxu0 0.0
      %7659 = vmatpush1.msra.mxu0 0.0
      %7660 = vmatprep.subr.mxu0 0.0
      %7661 = vmatpush1.msra.mxu0 0.0
      %7662 = vmatprep.subr.mxu0 0.0
      %7663 = vmatpush1.msra.mxu0 0.0
      %7664 = vmatprep.subr.mxu0 0.0
      %7665 = vmatpush1.msra.mxu0 0.0
      %7666 = vmatprep.subr.mxu0 0.0
      %7667 = vmatpush1.msra.mxu0 0.0
      %7668 = vmatprep.subr.mxu0 0.0
      %7669 = vmatpush1.msra.mxu0 0.0
      %7670 = vmatprep.subr.mxu0 0.0
      %7671 = vmatpush1.msra.mxu0 0.0
      %7672 = vmatprep.subr.mxu0 0.0
      %7673 = vmatpush1.msra.mxu0 0.0
      %7674 = vmatprep.subr.mxu0 0.0
      %7675 = vmatpush1.msra.mxu0 0.0
      %7676 = vmatprep.subr.mxu0 0.0
      %7677 = vmatpush1.msra.mxu0 0.0
      %7678 = vmatprep.subr.mxu0 0.0
      %7679 = vmatpush1.msra.mxu0 0.0
      %7680 = vmatprep.subr.mxu0 0.0
      %7681 = vmatpush1.msra.mxu0 0.0
      %7682 = vmatprep.subr.mxu0 0.0
      %7683 = vmatpush1.msra.mxu0 0.0
      %7684 = vmatprep.subr.mxu0 0.0
      %7685 = vmatpush1.msra.mxu0 0.0
      %7686 = vmatprep.subr.mxu0 0.0
      %7687 = vmatpush1.msra.mxu0 0.0
      %7688 = vmatprep.mubr.f32.mxu0 0.0
      %7689 = vmatmul.mubr.f32.gmra.mrb[0].mxu0 %v7186
      %v7690 = vpop.f32.mrb[0].mxu0
      %v7691 = vadd.f32 0.0, %v7690
      %v7692 = vpop.f32.mrb[0].mxu0
      %v7693 = vadd.f32 0.0, %v7692
      %7694 = vmatprep.mubr.f32.mxu0 0.0
      %7695 = vmatmul.mubr.f32.gmra.mrb[0].mxu0 %v7189
      %v7696 = vpop.f32.mrb[0].mxu0
      %v7697 = vadd.f32 0.0, %v7696
      %v7698 = vpop.f32.mrb[0].mxu0
      %v7699 = vadd.f32 0.0, %v7698
      %7700 = vdwg.mxu0
      %7701 = vmatprep.subr.mxu0 %v7231
      %7702 = vmatpush1.msra.mxu0 %v7228
      %7703 = vmatprep.subr.mxu0 0.0
      %7704 = vmatpush1.msra.mxu0 0.0
      %7705 = vmatprep.subr.mxu0 0.0
      %7706 = vmatpush1.msra.mxu0 0.0
      %7707 = vmatprep.subr.mxu0 0.0
      %7708 = vmatpush1.msra.mxu0 0.0
      %7709 = vmatprep.subr.mxu0 0.0
      %7710 = vmatpush1.msra.mxu0 0.0
      %7711 = vmatprep.subr.mxu0 0.0
      %7712 = vmatpush1.msra.mxu0 0.0
      %7713 = vmatprep.subr.mxu0 0.0
      %7714 = vmatpush1.msra.mxu0 0.0
      %7715 = vmatprep.subr.mxu0 0.0
      %7716 = vmatpush1.msra.mxu0 0.0
      %7717 = vmatprep.subr.mxu0 0.0
      %7718 = vmatpush1.msra.mxu0 0.0
      %7719 = vmatprep.subr.mxu0 0.0
      %7720 = vmatpush1.msra.mxu0 0.0
      %7721 = vmatprep.subr.mxu0 0.0
      %7722 = vmatpush1.msra.mxu0 0.0
      %7723 = vmatprep.subr.mxu0 0.0
      %7724 = vmatpush1.msra.mxu0 0.0
      %7725 = vmatprep.subr.mxu0 0.0
      %7726 = vmatpush1.msra.mxu0 0.0
      %7727 = vmatprep.subr.mxu0 0.0
      %7728 = vmatpush1.msra.mxu0 0.0
      %7729 = vmatprep.subr.mxu0 0.0
      %7730 = vmatpush1.msra.mxu0 0.0
      %7731 = vmatprep.subr.mxu0 0.0
      %7732 = vmatpush1.msra.mxu0 0.0
      %7733 = vmatprep.subr.mxu0 0.0
      %7734 = vmatpush1.msra.mxu0 0.0
      %7735 = vmatprep.subr.mxu0 0.0
      %7736 = vmatpush1.msra.mxu0 0.0
      %7737 = vmatprep.subr.mxu0 0.0
      %7738 = vmatpush1.msra.mxu0 0.0
      %7739 = vmatprep.subr.mxu0 0.0
      %7740 = vmatpush1.msra.mxu0 0.0
      %7741 = vmatprep.subr.mxu0 0.0
      %7742 = vmatpush1.msra.mxu0 0.0
      %7743 = vmatprep.subr.mxu0 0.0
      %7744 = vmatpush1.msra.mxu0 0.0
      %7745 = vmatprep.subr.mxu0 0.0
      %7746 = vmatpush1.msra.mxu0 0.0
      %7747 = vmatprep.subr.mxu0 0.0
      %7748 = vmatpush1.msra.mxu0 0.0
      %7749 = vmatprep.subr.mxu0 0.0
      %7750 = vmatpush1.msra.mxu0 0.0
      %7751 = vmatprep.subr.mxu0 0.0
      %7752 = vmatpush1.msra.mxu0 0.0
      %7753 = vmatprep.subr.mxu0 0.0
      %7754 = vmatpush1.msra.mxu0 0.0
      %7755 = vmatprep.subr.mxu0 0.0
      %7756 = vmatpush1.msra.mxu0 0.0
      %7757 = vmatprep.subr.mxu0 0.0
      %7758 = vmatpush1.msra.mxu0 0.0
      %7759 = vmatprep.subr.mxu0 0.0
      %7760 = vmatpush1.msra.mxu0 0.0
      %7761 = vmatprep.subr.mxu0 0.0
      %7762 = vmatpush1.msra.mxu0 0.0
      %7763 = vmatprep.subr.mxu0 0.0
      %7764 = vmatpush1.msra.mxu0 0.0
      %7765 = vmatprep.mubr.f32.mxu0 0.0
      %7766 = vmatmul.mubr.f32.gmra.mrb[0].mxu0 %v7186
      %v7767 = vpop.f32.mrb[0].mxu0
      %v7768 = vadd.f32 0.0, %v7767
      %v7769 = vpop.f32.mrb[0].mxu0
      %v7770 = vadd.f32 0.0, %v7769
      %7771 = vmatprep.mubr.f32.mxu0 0.0
      %7772 = vmatmul.mubr.f32.gmra.mrb[0].mxu0 %v7189
      %v7773 = vpop.f32.mrb[0].mxu0
      %v7774 = vadd.f32 0.0, %v7773
      %v7775 = vpop.f32.mrb[0].mxu0
      %v7776 = vadd.f32 0.0, %v7775
      %7777 = vdwg.mxu0
      %7778 = vmatprep.subr.mxu0 %v7237
      %7779 = vmatpush1.msra.mxu0 %v7234
      %7780 = vmatprep.subr.mxu0 0.0
      %7781 = vmatpush1.msra.mxu0 0.0
      %7782 = vmatprep.subr.mxu0 0.0
      %7783 = vmatpush1.msra.mxu0 0.0
      %7784 = vmatprep.subr.mxu0 0.0
      %7785 = vmatpush1.msra.mxu0 0.0
      %7786 = vmatprep.subr.mxu0 0.0
      %7787 = vmatpush1.msra.mxu0 0.0
      %7788 = vmatprep.subr.mxu0 0.0
      %7789 = vmatpush1.msra.mxu0 0.0
      %7790 = vmatprep.subr.mxu0 0.0
      %7791 = vmatpush1.msra.mxu0 0.0
      %7792 = vmatprep.subr.mxu0 0.0
      %7793 = vmatpush1.msra.mxu0 0.0
      %7794 = vmatprep.subr.mxu0 0.0
      %7795 = vmatpush1.msra.mxu0 0.0
      %7796 = vmatprep.subr.mxu0 0.0
      %7797 = vmatpush1.msra.mxu0 0.0
      %7798 = vmatprep.subr.mxu0 0.0
      %7799 = vmatpush1.msra.mxu0 0.0
      %7800 = vmatprep.subr.mxu0 0.0
      %7801 = vmatpush1.msra.mxu0 0.0
      %7802 = vmatprep.subr.mxu0 0.0
      %7803 = vmatpush1.msra.mxu0 0.0
      %7804 = vmatprep.subr.mxu0 0.0
      %7805 = vmatpush1.msra.mxu0 0.0
      %7806 = vmatprep.subr.mxu0 0.0
      %7807 = vmatpush1.msra.mxu0 0.0
      %7808 = vmatprep.subr.mxu0 0.0
      %7809 = vmatpush1.msra.mxu0 0.0
      %7810 = vmatprep.subr.mxu0 0.0
      %7811 = vmatpush1.msra.mxu0 0.0
      %7812 = vmatprep.subr.mxu0 0.0
      %7813 = vmatpush1.msra.mxu0 0.0
      %7814 = vmatprep.subr.mxu0 0.0
      %7815 = vmatpush1.msra.mxu0 0.0
      %7816 = vmatprep.subr.mxu0 0.0
      %7817 = vmatpush1.msra.mxu0 0.0
      %7818 = vmatprep.subr.mxu0 0.0
      %7819 = vmatpush1.msra.mxu0 0.0
      %7820 = vmatprep.subr.mxu0 0.0
      %7821 = vmatpush1.msra.mxu0 0.0
      %7822 = vmatprep.subr.mxu0 0.0
      %7823 = vmatpush1.msra.mxu0 0.0
      %7824 = vmatprep.subr.mxu0 0.0
      %7825 = vmatpush1.msra.mxu0 0.0
      %7826 = vmatprep.subr.mxu0 0.0
      %7827 = vmatpush1.msra.mxu0 0.0
      %7828 = vmatprep.subr.mxu0 0.0
      %7829 = vmatpush1.msra.mxu0 0.0
      %7830 = vmatprep.subr.mxu0 0.0
      %7831 = vmatpush1.msra.mxu0 0.0
      %7832 = vmatprep.subr.mxu0 0.0
      %7833 = vmatpush1.msra.mxu0 0.0
      %7834 = vmatprep.subr.mxu0 0.0
      %7835 = vmatpush1.msra.mxu0 0.0
      %7836 = vmatprep.subr.mxu0 0.0
      %7837 = vmatpush1.msra.mxu0 0.0
      %7838 = vmatprep.subr.mxu0 0.0
      %7839 = vmatpush1.msra.mxu0 0.0
      %7840 = vmatprep.subr.mxu0 0.0
      %7841 = vmatpush1.msra.mxu0 0.0
      %7842 = vmatprep.mubr.f32.mxu0 0.0
      %7843 = vmatmul.mubr.f32.gmra.mrb[0].mxu0 %v7186
      %v7844 = vpop.f32.mrb[0].mxu0
      %v7845 = vadd.f32 0.0, %v7844
      %v7846 = vpop.f32.mrb[0].mxu0
      %v7847 = vadd.f32 0.0, %v7846
      %7848 = vmatprep.mubr.f32.mxu0 0.0
      %7849 = vmatmul.mubr.f32.gmra.mrb[0].mxu0 %v7189
      %v7850 = vpop.f32.mrb[0].mxu0
      %v7851 = vadd.f32 0.0, %v7850
      %v7852 = vpop.f32.mrb[0].mxu0
      %v7853 = vadd.f32 0.0, %v7852
      %7854 = vdwg.mxu0
      %v7855 = vadd.f32 %v7000, %v7306
      %v7856 = vadd.f32 %v7001, %v7308
      %v7857 = vadd.f32 %v7002, %v7383
      %v7858 = vadd.f32 %v7003, %v7385
      %v7859 = vadd.f32 %v7004, %v7460
      %v7860 = vadd.f32 %v7005, %v7462
      %v7861 = vadd.f32 %v7006, %v7537
      %v7862 = vadd.f32 %v7007, %v7539
      %v7863 = vadd.f32 %v7008, %v7614
      %v7864 = vadd.f32 %v7009, %v7616
      %v7865 = vadd.f32 %v7010, %v7691
      %v7866 = vadd.f32 %v7011, %v7693
      %v7867 = vadd.f32 %v7012, %v7768
      %v7868 = vadd.f32 %v7013, %v7770
      %v7869 = vadd.f32 %v7014, %v7845
      %v7870 = vadd.f32 %v7015, %v7847
      %v7871 = vadd.f32 %v7016, %v7312
      %v7872 = vadd.f32 %v7017, %v7314
      %v7873 = vadd.f32 %v7018, %v7389
      %v7874 = vadd.f32 %v7019, %v7391
      %v7875 = vadd.f32 %v7020, %v7466
      %v7876 = vadd.f32 %v7021, %v7468
      %v7877 = vadd.f32 %v7022, %v7543
      %v7878 = vadd.f32 %v7023, %v7545
      %v7879 = vadd.f32 %v7024, %v7620
      %v7880 = vadd.f32 %v7025, %v7622
      %v7881 = vadd.f32 %v7026, %v7697
      %v7882 = vadd.f32 %v7027, %v7699
      %v7883 = vadd.f32 %v7028, %v7774
      %v7884 = vadd.f32 %v7029, %v7776
      %v7885 = vadd.f32 %v7030, %v7851
      %v7886 = vadd.f32 %v7031, %v7853
      %v7887 = vld [vmem:[%s2] sm:$0xff]
      %v7888 = vld [vmem:[%s2 + $0x8] sm:$0x1]
      %7890 = vset.pattern.permute.xlu0 0
      %7891 = vperm.xlu0 %7890, %v7887
      %v7892 = vpop.permute.xlu0 %7891
      %7895 = vset.pattern.permute.xlu0 0
      %7896 = vperm.xlu0 %7895, %v7888
      %v7897 = vpop.permute.xlu0 %7896
      %v7899 = vadd.f32 %v7855, %v7892
      %v7900 = vadd.f32 %v7856, %v7892
      %v7901 = vadd.f32 %v7857, %v7892
      %v7902 = vadd.f32 %v7858, %v7892
      %v7903 = vadd.f32 %v7859, %v7892
      %v7904 = vadd.f32 %v7860, %v7892
      %v7905 = vadd.f32 %v7861, %v7892
      %v7906 = vadd.f32 %v7862, %v7892
      %v7907 = vadd.f32 %v7863, %v7892
      %v7908 = vadd.f32 %v7864, %v7892
      %v7909 = vadd.f32 %v7865, %v7892
      %v7910 = vadd.f32 %v7866, %v7892
      %v7911 = vadd.f32 %v7867, %v7892
      %v7912 = vadd.f32 %v7868, %v7892
      %v7913 = vadd.f32 %v7869, %v7892
      %v7914 = vadd.f32 %v7870, %v7892
      %v7915 = vadd.f32 %v7871, %v7897
      %v7916 = vadd.f32 %v7872, %v7897
      %v7917 = vadd.f32 %v7873, %v7897
      %v7918 = vadd.f32 %v7874, %v7897
      %v7919 = vadd.f32 %v7875, %v7897
      %v7920 = vadd.f32 %v7876, %v7897
      %v7921 = vadd.f32 %v7877, %v7897
      %v7922 = vadd.f32 %v7878, %v7897
      %v7923 = vadd.f32 %v7879, %v7897
      %v7924 = vadd.f32 %v7880, %v7897
      %v7925 = vadd.f32 %v7881, %v7897
      %v7926 = vadd.f32 %v7882, %v7897
      %v7927 = vadd.f32 %v7883, %v7897
      %v7928 = vadd.f32 %v7884, %v7897
      %v7929 = vadd.f32 %v7885, %v7897
      %v7930 = vadd.f32 %v7886, %v7897
      %v7931 = vmax.f32 %v7899, 0.0
      %v7932 = vmax.f32 %v7900, 0.0
      %v7933 = vmax.f32 %v7901, 0.0
      %v7934 = vmax.f32 %v7902, 0.0
      %v7935 = vmax.f32 %v7903, 0.0
      %v7936 = vmax.f32 %v7904, 0.0
      %v7937 = vmax.f32 %v7905, 0.0
      %v7938 = vmax.f32 %v7906, 0.0
      %v7939 = vmax.f32 %v7907, 0.0
      %v7940 = vmax.f32 %v7908, 0.0
      %v7941 = vmax.f32 %v7909, 0.0
      %v7942 = vmax.f32 %v7910, 0.0
      %v7943 = vmax.f32 %v7911, 0.0
      %v7944 = vmax.f32 %v7912, 0.0
      %v7945 = vmax.f32 %v7913, 0.0
      %v7946 = vmax.f32 %v7914, 0.0
      %v7947 = vmax.f32 %v7915, 0.0
      %v7948 = vmax.f32 %v7916, 0.0
      %v7949 = vmax.f32 %v7917, 0.0
      %v7950 = vmax.f32 %v7918, 0.0
      %v7951 = vmax.f32 %v7919, 0.0
      %v7952 = vmax.f32 %v7920, 0.0
      %v7953 = vmax.f32 %v7921, 0.0
      %v7954 = vmax.f32 %v7922, 0.0
      %v7955 = vmax.f32 %v7923, 0.0
      %v7956 = vmax.f32 %v7924, 0.0
      %v7957 = vmax.f32 %v7925, 0.0
      %v7958 = vmax.f32 %v7926, 0.0
      %v7959 = vmax.f32 %v7927, 0.0
      %v7960 = vmax.f32 %v7928, 0.0
      %v7961 = vmax.f32 %v7929, 0.0
      %v7962 = vmax.f32 %v7930, 0.0
      %7963 = vst [vmem:[#allocation2] sm:$0xff] %v7931
      %7964 = vst [vmem:[#allocation2 + $0x8] sm:$0xff] %v7932
      %7965 = vst [vmem:[#allocation2 + $0x10] sm:$0xff] %v7933
      %7966 = vst [vmem:[#allocation2 + $0x18] sm:$0xff] %v7934
      %7967 = vst [vmem:[#allocation2 + $0x20] sm:$0xff] %v7935
      %7968 = vst [vmem:[#allocation2 + $0x28] sm:$0xff] %v7936
      %7969 = vst [vmem:[#allocation2 + $0x30] sm:$0xff] %v7937
      %7970 = vst [vmem:[#allocation2 + $0x38] sm:$0xff] %v7938
      %7971 = vst [vmem:[#allocation2 + $0x40] sm:$0xff] %v7939
      %7972 = vst [vmem:[#allocation2 + $0x48] sm:$0xff] %v7940
      %7973 = vst [vmem:[#allocation2 + $0x50] sm:$0xff] %v7941
      %7974 = vst [vmem:[#allocation2 + $0x58] sm:$0xff] %v7942
      %7975 = vst [vmem:[#allocation2 + $0x60] sm:$0xff] %v7943
      %7976 = vst [vmem:[#allocation2 + $0x68] sm:$0xff] %v7944
      %7977 = vst [vmem:[#allocation2 + $0x70] sm:$0xff] %v7945
      %7978 = vst [vmem:[#allocation2 + $0x78] sm:$0xff] %v7946
      %7979 = vst [vmem:[#allocation2 + $0x80] sm:$0x1] %v7947
      %7980 = vst [vmem:[#allocation2 + $0x88] sm:$0x1] %v7948
      %7981 = vst [vmem:[#allocation2 + $0x90] sm:$0x1] %v7949
      %7982 = vst [vmem:[#allocation2 + $0x98] sm:$0x1] %v7950
      %7983 = vst [vmem:[#allocation2 + $0xa0] sm:$0x1] %v7951
      %7984 = vst [vmem:[#allocation2 + $0xa8] sm:$0x1] %v7952
      %7985 = vst [vmem:[#allocation2 + $0xb0] sm:$0x1] %v7953
      %7986 = vst [vmem:[#allocation2 + $0xb8] sm:$0x1] %v7954
      %7987 = vst [vmem:[#allocation2 + $0xc0] sm:$0x1] %v7955
      %7988 = vst [vmem:[#allocation2 + $0xc8] sm:$0x1] %v7956
      %7989 = vst [vmem:[#allocation2 + $0xd0] sm:$0x1] %v7957
      %7990 = vst [vmem:[#allocation2 + $0xd8] sm:$0x1] %v7958
      %7991 = vst [vmem:[#allocation2 + $0xe0] sm:$0x1] %v7959
      %7992 = vst [vmem:[#allocation2 + $0xe8] sm:$0x1] %v7960
      %7993 = vst [vmem:[#allocation2 + $0xf0] sm:$0x1] %v7961
      %7994 = vst [vmem:[#allocation2 + $0xf8] sm:$0x1] %v7962
      %v7995 = vld [vmem:[#allocation2] sm:$0xff]
      %v7996 = vld [vmem:[#allocation2 + $0x8] sm:$0xff]
      %v7997 = vld [vmem:[#allocation2 + $0x10] sm:$0xff]
      %v7998 = vld [vmem:[#allocation2 + $0x18] sm:$0xff]
      %v7999 = vld [vmem:[#allocation2 + $0x20] sm:$0xff]
      %v8000 = vld [vmem:[#allocation2 + $0x28] sm:$0xff]
      %v8001 = vld [vmem:[#allocation2 + $0x30] sm:$0xff]
      %v8002 = vld [vmem:[#allocation2 + $0x38] sm:$0xff]
      %v8003 = vld [vmem:[#allocation2 + $0x40] sm:$0xff]
      %v8004 = vld [vmem:[#allocation2 + $0x48] sm:$0xff]
      %v8005 = vld [vmem:[#allocation2 + $0x50] sm:$0xff]
      %v8006 = vld [vmem:[#allocation2 + $0x58] sm:$0xff]
      %v8007 = vld [vmem:[#allocation2 + $0x60] sm:$0xff]
      %v8008 = vld [vmem:[#allocation2 + $0x68] sm:$0xff]
      %v8009 = vld [vmem:[#allocation2 + $0x70] sm:$0xff]
      %v8010 = vld [vmem:[#allocation2 + $0x78] sm:$0xff]
      %v8011 = vld [vmem:[#allocation2 + $0x80] sm:$0x1]
      %v8012 = vld [vmem:[#allocation2 + $0x88] sm:$0x1]
      %v8013 = vld [vmem:[#allocation2 + $0x90] sm:$0x1]
      %v8014 = vld [vmem:[#allocation2 + $0x98] sm:$0x1]
      %v8015 = vld [vmem:[#allocation2 + $0xa0] sm:$0x1]
      %v8016 = vld [vmem:[#allocation2 + $0xa8] sm:$0x1]
      %v8017 = vld [vmem:[#allocation2 + $0xb0] sm:$0x1]
      %v8018 = vld [vmem:[#allocation2 + $0xb8] sm:$0x1]
      %v8019 = vld [vmem:[#allocation2 + $0xc0] sm:$0x1]
      %v8020 = vld [vmem:[#allocation2 + $0xc8] sm:$0x1]
      %v8021 = vld [vmem:[#allocation2 + $0xd0] sm:$0x1]
      %v8022 = vld [vmem:[#allocation2 + $0xd8] sm:$0x1]
      %v8023 = vld [vmem:[#allocation2 + $0xe0] sm:$0x1]
      %v8024 = vld [vmem:[#allocation2 + $0xe8] sm:$0x1]
      %v8025 = vld [vmem:[#allocation2 + $0xf0] sm:$0x1]
      %v8026 = vld [vmem:[#allocation2 + $0xf8] sm:$0x1]
      %v8027 = vld [vmem:[%s3] sm:$0xf]
      %vm8028 = vcmask 72704
      %v8030 = vsel %vm8028, %v8027, 0
      %vm8032 = vcmask 1040384
      %v8034 = vsel %vm8032, %v8025, 0
      %v8037 = vsel %vm8032, %v8026, 0
      %v8040 = vsel %vm8032, %v8011, 0
      %v8043 = vsel %vm8032, %v8012, 0
      %v8046 = vsel %vm8032, %v8013, 0
      %v8049 = vsel %vm8032, %v8014, 0
      %v8052 = vsel %vm8032, %v8015, 0
      %v8055 = vsel %vm8032, %v8016, 0
      %v8058 = vsel %vm8032, %v8017, 0
      %v8061 = vsel %vm8032, %v8018, 0
      %v8064 = vsel %vm8032, %v8019, 0
      %v8067 = vsel %vm8032, %v8020, 0
      %v8070 = vsel %vm8032, %v8021, 0
      %v8073 = vsel %vm8032, %v8022, 0
      %v8076 = vsel %vm8032, %v8023, 0
      %v8079 = vsel %vm8032, %v8024, 0
      %8081 = vmatprep.subr.mxu0 %v8010
      %8082 = vmatpush1.msra.mxu0 %v8009
      %8083 = vmatprep.subr.mxu0 %v8037
      %8084 = vmatpush1.msra.mxu0 %v8034
      %8085 = vmatprep.subr.mxu0 0.0
      %8086 = vmatpush1.msra.mxu0 0.0
      %8087 = vmatprep.subr.mxu0 0.0
      %8088 = vmatpush1.msra.mxu0 0.0
      %8089 = vmatprep.subr.mxu0 0.0
      %8090 = vmatpush1.msra.mxu0 0.0
      %8091 = vmatprep.subr.mxu0 0.0
      %8092 = vmatpush1.msra.mxu0 0.0
      %8093 = vmatprep.subr.mxu0 0.0
      %8094 = vmatpush1.msra.mxu0 0.0
      %8095 = vmatprep.subr.mxu0 0.0
      %8096 = vmatpush1.msra.mxu0 0.0
      %8097 = vmatprep.subr.mxu0 0.0
      %8098 = vmatpush1.msra.mxu0 0.0
      %8099 = vmatprep.subr.mxu0 0.0
      %8100 = vmatpush1.msra.mxu0 0.0
      %8101 = vmatprep.subr.mxu0 0.0
      %8102 = vmatpush1.msra.mxu0 0.0
      %8103 = vmatprep.subr.mxu0 0.0
      %8104 = vmatpush1.msra.mxu0 0.0
      %8105 = vmatprep.subr.mxu0 0.0
      %8106 = vmatpush1.msra.mxu0 0.0
      %8107 = vmatprep.subr.mxu0 0.0
      %8108 = vmatpush1.msra.mxu0 0.0
      %8109 = vmatprep.subr.mxu0 0.0
      %8110 = vmatpush1.msra.mxu0 0.0
      %8111 = vmatprep.subr.mxu0 0.0
      %8112 = vmatpush1.msra.mxu0 0.0
      %8113 = vmatprep.subr.mxu0 0.0
      %8114 = vmatpush1.msra.mxu0 0.0
      %8115 = vmatprep.subr.mxu0 0.0
      %8116 = vmatpush1.msra.mxu0 0.0
      %8117 = vmatprep.subr.mxu0 0.0
      %8118 = vmatpush1.msra.mxu0 0.0
      %8119 = vmatprep.subr.mxu0 0.0
      %8120 = vmatpush1.msra.mxu0 0.0
      %8121 = vmatprep.subr.mxu0 0.0
      %8122 = vmatpush1.msra.mxu0 0.0
      %8123 = vmatprep.subr.mxu0 0.0
      %8124 = vmatpush1.msra.mxu0 0.0
      %8125 = vmatprep.subr.mxu0 0.0
      %8126 = vmatpush1.msra.mxu0 0.0
      %8127 = vmatprep.subr.mxu0 0.0
      %8128 = vmatpush1.msra.mxu0 0.0
      %8129 = vmatprep.subr.mxu0 0.0
      %8130 = vmatpush1.msra.mxu0 0.0
      %8131 = vmatprep.subr.mxu0 0.0
      %8132 = vmatpush1.msra.mxu0 0.0
      %8133 = vmatprep.subr.mxu0 0.0
      %8134 = vmatpush1.msra.mxu0 0.0
      %8135 = vmatprep.subr.mxu0 0.0
      %8136 = vmatpush1.msra.mxu0 0.0
      %8137 = vmatprep.subr.mxu0 0.0
      %8138 = vmatpush1.msra.mxu0 0.0
      %8139 = vmatprep.subr.mxu0 0.0
      %8140 = vmatpush1.msra.mxu0 0.0
      %8141 = vmatprep.subr.mxu0 0.0
      %8142 = vmatpush1.msra.mxu0 0.0
      %8143 = vmatprep.subr.mxu0 0.0
      %8144 = vmatpush1.msra.mxu0 0.0
      %8145 = vmatprep.mubr.f32.mxu0 0.0
      %8146 = vmatmul.mubr.f32.gmra.mrb[0].mxu0 %v8030
      %v8147 = vpop.f32.mrb[0].mxu0
      %v8148 = vadd.f32 0.0, %v8147
      %v8149 = vpop.f32.mrb[0].mxu0
      %v8150 = vadd.f32 0.0, %v8149
      %8151 = vdwg.mxu0
      %8152 = vmatprep.subr.mxu0 %v7996
      %8153 = vmatpush1.msra.mxu0 %v7995
      %8154 = vmatprep.subr.mxu0 %v8043
      %8155 = vmatpush1.msra.mxu0 %v8040
      %8156 = vmatprep.subr.mxu0 0.0
      %8157 = vmatpush1.msra.mxu0 0.0
      %8158 = vmatprep.subr.mxu0 0.0
      %8159 = vmatpush1.msra.mxu0 0.0
      %8160 = vmatprep.subr.mxu0 0.0
      %8161 = vmatpush1.msra.mxu0 0.0
      %8162 = vmatprep.subr.mxu0 0.0
      %8163 = vmatpush1.msra.mxu0 0.0
      %8164 = vmatprep.subr.mxu0 0.0
      %8165 = vmatpush1.msra.mxu0 0.0
      %8166 = vmatprep.subr.mxu0 0.0
      %8167 = vmatpush1.msra.mxu0 0.0
      %8168 = vmatprep.subr.mxu0 0.0
      %8169 = vmatpush1.msra.mxu0 0.0
      %8170 = vmatprep.subr.mxu0 0.0
      %8171 = vmatpush1.msra.mxu0 0.0
      %8172 = vmatprep.subr.mxu0 0.0
      %8173 = vmatpush1.msra.mxu0 0.0
      %8174 = vmatprep.subr.mxu0 0.0
      %8175 = vmatpush1.msra.mxu0 0.0
      %8176 = vmatprep.subr.mxu0 0.0
      %8177 = vmatpush1.msra.mxu0 0.0
      %8178 = vmatprep.subr.mxu0 0.0
      %8179 = vmatpush1.msra.mxu0 0.0
      %8180 = vmatprep.subr.mxu0 0.0
      %8181 = vmatpush1.msra.mxu0 0.0
      %8182 = vmatprep.subr.mxu0 0.0
      %8183 = vmatpush1.msra.mxu0 0.0
      %8184 = vmatprep.subr.mxu0 0.0
      %8185 = vmatpush1.msra.mxu0 0.0
      %8186 = vmatprep.subr.mxu0 0.0
      %8187 = vmatpush1.msra.mxu0 0.0
      %8188 = vmatprep.subr.mxu0 0.0
      %8189 = vmatpush1.msra.mxu0 0.0
      %8190 = vmatprep.subr.mxu0 0.0
      %8191 = vmatpush1.msra.mxu0 0.0
      %8192 = vmatprep.subr.mxu0 0.0
      %8193 = vmatpush1.msra.mxu0 0.0
      %8194 = vmatprep.subr.mxu0 0.0
      %8195 = vmatpush1.msra.mxu0 0.0
      %8196 = vmatprep.subr.mxu0 0.0
      %8197 = vmatpush1.msra.mxu0 0.0
      %8198 = vmatprep.subr.mxu0 0.0
      %8199 = vmatpush1.msra.mxu0 0.0
      %8200 = vmatprep.subr.mxu0 0.0
      %8201 = vmatpush1.msra.mxu0 0.0
      %8202 = vmatprep.subr.mxu0 0.0
      %8203 = vmatpush1.msra.mxu0 0.0
      %8204 = vmatprep.subr.mxu0 0.0
      %8205 = vmatpush1.msra.mxu0 0.0
      %8206 = vmatprep.subr.mxu0 0.0
      %8207 = vmatpush1.msra.mxu0 0.0
      %8208 = vmatprep.subr.mxu0 0.0
      %8209 = vmatpush1.msra.mxu0 0.0
      %8210 = vmatprep.subr.mxu0 0.0
      %8211 = vmatpush1.msra.mxu0 0.0
      %8212 = vmatprep.subr.mxu0 0.0
      %8213 = vmatpush1.msra.mxu0 0.0
      %8214 = vmatprep.subr.mxu0 0.0
      %8215 = vmatpush1.msra.mxu0 0.0
      %8216 = vmatprep.mubr.f32.mxu0 0.0
      %8217 = vmatmul.mubr.f32.gmra.mrb[0].mxu0 %v8030
      %v8218 = vpop.f32.mrb[0].mxu0
      %v8219 = vadd.f32 0.0, %v8218
      %v8220 = vpop.f32.mrb[0].mxu0
      %v8221 = vadd.f32 0.0, %v8220
      %8222 = vdwg.mxu0
      %8223 = vmatprep.subr.mxu0 %v7998
      %8224 = vmatpush1.msra.mxu0 %v7997
      %8225 = vmatprep.subr.mxu0 %v8049
      %8226 = vmatpush1.msra.mxu0 %v8046
      %8227 = vmatprep.subr.mxu0 0.0
      %8228 = vmatpush1.msra.mxu0 0.0
      %8229 = vmatprep.subr.mxu0 0.0
      %8230 = vmatpush1.msra.mxu0 0.0
      %8231 = vmatprep.subr.mxu0 0.0
      %8232 = vmatpush1.msra.mxu0 0.0
      %8233 = vmatprep.subr.mxu0 0.0
      %8234 = vmatpush1.msra.mxu0 0.0
      %8235 = vmatprep.subr.mxu0 0.0
      %8236 = vmatpush1.msra.mxu0 0.0
      %8237 = vmatprep.subr.mxu0 0.0
      %8238 = vmatpush1.msra.mxu0 0.0
      %8239 = vmatprep.subr.mxu0 0.0
      %8240 = vmatpush1.msra.mxu0 0.0
      %8241 = vmatprep.subr.mxu0 0.0
      %8242 = vmatpush1.msra.mxu0 0.0
      %8243 = vmatprep.subr.mxu0 0.0
      %8244 = vmatpush1.msra.mxu0 0.0
      %8245 = vmatprep.subr.mxu0 0.0
      %8246 = vmatpush1.msra.mxu0 0.0
      %8247 = vmatprep.subr.mxu0 0.0
      %8248 = vmatpush1.msra.mxu0 0.0
      %8249 = vmatprep.subr.mxu0 0.0
      %8250 = vmatpush1.msra.mxu0 0.0
      %8251 = vmatprep.subr.mxu0 0.0
      %8252 = vmatpush1.msra.mxu0 0.0
      %8253 = vmatprep.subr.mxu0 0.0
      %8254 = vmatpush1.msra.mxu0 0.0
      %8255 = vmatprep.subr.mxu0 0.0
      %8256 = vmatpush1.msra.mxu0 0.0
      %8257 = vmatprep.subr.mxu0 0.0
      %8258 = vmatpush1.msra.mxu0 0.0
      %8259 = vmatprep.subr.mxu0 0.0
      %8260 = vmatpush1.msra.mxu0 0.0
      %8261 = vmatprep.subr.mxu0 0.0
      %8262 = vmatpush1.msra.mxu0 0.0
      %8263 = vmatprep.subr.mxu0 0.0
      %8264 = vmatpush1.msra.mxu0 0.0
      %8265 = vmatprep.subr.mxu0 0.0
      %8266 = vmatpush1.msra.mxu0 0.0
      %8267 = vmatprep.subr.mxu0 0.0
      %8268 = vmatpush1.msra.mxu0 0.0
      %8269 = vmatprep.subr.mxu0 0.0
      %8270 = vmatpush1.msra.mxu0 0.0
      %8271 = vmatprep.subr.mxu0 0.0
      %8272 = vmatpush1.msra.mxu0 0.0
      %8273 = vmatprep.subr.mxu0 0.0
      %8274 = vmatpush1.msra.mxu0 0.0
      %8275 = vmatprep.subr.mxu0 0.0
      %8276 = vmatpush1.msra.mxu0 0.0
      %8277 = vmatprep.subr.mxu0 0.0
      %8278 = vmatpush1.msra.mxu0 0.0
      %8279 = vmatprep.subr.mxu0 0.0
      %8280 = vmatpush1.msra.mxu0 0.0
      %8281 = vmatprep.subr.mxu0 0.0
      %8282 = vmatpush1.msra.mxu0 0.0
      %8283 = vmatprep.subr.mxu0 0.0
      %8284 = vmatpush1.msra.mxu0 0.0
      %8285 = vmatprep.subr.mxu0 0.0
      %8286 = vmatpush1.msra.mxu0 0.0
      %8287 = vmatprep.mubr.f32.mxu0 0.0
      %8288 = vmatmul.mubr.f32.gmra.mrb[0].mxu0 %v8030
      %v8289 = vpop.f32.mrb[0].mxu0
      %v8290 = vadd.f32 0.0, %v8289
      %v8291 = vpop.f32.mrb[0].mxu0
      %v8292 = vadd.f32 0.0, %v8291
      %8293 = vdwg.mxu0
      %8294 = vmatprep.subr.mxu0 %v8000
      %8295 = vmatpush1.msra.mxu0 %v7999
      %8296 = vmatprep.subr.mxu0 %v8055
      %8297 = vmatpush1.msra.mxu0 %v8052
      %8298 = vmatprep.subr.mxu0 0.0
      %8299 = vmatpush1.msra.mxu0 0.0
      %8300 = vmatprep.subr.mxu0 0.0
      %8301 = vmatpush1.msra.mxu0 0.0
      %8302 = vmatprep.subr.mxu0 0.0
      %8303 = vmatpush1.msra.mxu0 0.0
      %8304 = vmatprep.subr.mxu0 0.0
      %8305 = vmatpush1.msra.mxu0 0.0
      %8306 = vmatprep.subr.mxu0 0.0
      %8307 = vmatpush1.msra.mxu0 0.0
      %8308 = vmatprep.subr.mxu0 0.0
      %8309 = vmatpush1.msra.mxu0 0.0
      %8310 = vmatprep.subr.mxu0 0.0
      %8311 = vmatpush1.msra.mxu0 0.0
      %8312 = vmatprep.subr.mxu0 0.0
      %8313 = vmatpush1.msra.mxu0 0.0
      %8314 = vmatprep.subr.mxu0 0.0
      %8315 = vmatpush1.msra.mxu0 0.0
      %8316 = vmatprep.subr.mxu0 0.0
      %8317 = vmatpush1.msra.mxu0 0.0
      %8318 = vmatprep.subr.mxu0 0.0
      %8319 = vmatpush1.msra.mxu0 0.0
      %8320 = vmatprep.subr.mxu0 0.0
      %8321 = vmatpush1.msra.mxu0 0.0
      %8322 = vmatprep.subr.mxu0 0.0
      %8323 = vmatpush1.msra.mxu0 0.0
      %8324 = vmatprep.subr.mxu0 0.0
      %8325 = vmatpush1.msra.mxu0 0.0
      %8326 = vmatprep.subr.mxu0 0.0
      %8327 = vmatpush1.msra.mxu0 0.0
      %8328 = vmatprep.subr.mxu0 0.0
      %8329 = vmatpush1.msra.mxu0 0.0
      %8330 = vmatprep.subr.mxu0 0.0
      %8331 = vmatpush1.msra.mxu0 0.0
      %8332 = vmatprep.subr.mxu0 0.0
      %8333 = vmatpush1.msra.mxu0 0.0
      %8334 = vmatprep.subr.mxu0 0.0
      %8335 = vmatpush1.msra.mxu0 0.0
      %8336 = vmatprep.subr.mxu0 0.0
      %8337 = vmatpush1.msra.mxu0 0.0
      %8338 = vmatprep.subr.mxu0 0.0
      %8339 = vmatpush1.msra.mxu0 0.0
      %8340 = vmatprep.subr.mxu0 0.0
      %8341 = vmatpush1.msra.mxu0 0.0
      %8342 = vmatprep.subr.mxu0 0.0
      %8343 = vmatpush1.msra.mxu0 0.0
      %8344 = vmatprep.subr.mxu0 0.0
      %8345 = vmatpush1.msra.mxu0 0.0
      %8346 = vmatprep.subr.mxu0 0.0
      %8347 = vmatpush1.msra.mxu0 0.0
      %8348 = vmatprep.subr.mxu0 0.0
      %8349 = vmatpush1.msra.mxu0 0.0
      %8350 = vmatprep.subr.mxu0 0.0
      %8351 = vmatpush1.msra.mxu0 0.0
      %8352 = vmatprep.subr.mxu0 0.0
      %8353 = vmatpush1.msra.mxu0 0.0
      %8354 = vmatprep.subr.mxu0 0.0
      %8355 = vmatpush1.msra.mxu0 0.0
      %8356 = vmatprep.subr.mxu0 0.0
      %8357 = vmatpush1.msra.mxu0 0.0
      %8358 = vmatprep.mubr.f32.mxu0 0.0
      %8359 = vmatmul.mubr.f32.gmra.mrb[0].mxu0 %v8030
      %v8360 = vpop.f32.mrb[0].mxu0
      %v8361 = vadd.f32 0.0, %v8360
      %v8362 = vpop.f32.mrb[0].mxu0
      %v8363 = vadd.f32 0.0, %v8362
      %8364 = vdwg.mxu0
      %8365 = vmatprep.subr.mxu0 %v8002
      %8366 = vmatpush1.msra.mxu0 %v8001
      %8367 = vmatprep.subr.mxu0 %v8061
      %8368 = vmatpush1.msra.mxu0 %v8058
      %8369 = vmatprep.subr.mxu0 0.0
      %8370 = vmatpush1.msra.mxu0 0.0
      %8371 = vmatprep.subr.mxu0 0.0
      %8372 = vmatpush1.msra.mxu0 0.0
      %8373 = vmatprep.subr.mxu0 0.0
      %8374 = vmatpush1.msra.mxu0 0.0
      %8375 = vmatprep.subr.mxu0 0.0
      %8376 = vmatpush1.msra.mxu0 0.0
      %8377 = vmatprep.subr.mxu0 0.0
      %8378 = vmatpush1.msra.mxu0 0.0
      %8379 = vmatprep.subr.mxu0 0.0
      %8380 = vmatpush1.msra.mxu0 0.0
      %8381 = vmatprep.subr.mxu0 0.0
      %8382 = vmatpush1.msra.mxu0 0.0
      %8383 = vmatprep.subr.mxu0 0.0
      %8384 = vmatpush1.msra.mxu0 0.0
      %8385 = vmatprep.subr.mxu0 0.0
      %8386 = vmatpush1.msra.mxu0 0.0
      %8387 = vmatprep.subr.mxu0 0.0
      %8388 = vmatpush1.msra.mxu0 0.0
      %8389 = vmatprep.subr.mxu0 0.0
      %8390 = vmatpush1.msra.mxu0 0.0
      %8391 = vmatprep.subr.mxu0 0.0
      %8392 = vmatpush1.msra.mxu0 0.0
      %8393 = vmatprep.subr.mxu0 0.0
      %8394 = vmatpush1.msra.mxu0 0.0
      %8395 = vmatprep.subr.mxu0 0.0
      %8396 = vmatpush1.msra.mxu0 0.0
      %8397 = vmatprep.subr.mxu0 0.0
      %8398 = vmatpush1.msra.mxu0 0.0
      %8399 = vmatprep.subr.mxu0 0.0
      %8400 = vmatpush1.msra.mxu0 0.0
      %8401 = vmatprep.subr.mxu0 0.0
      %8402 = vmatpush1.msra.mxu0 0.0
      %8403 = vmatprep.subr.mxu0 0.0
      %8404 = vmatpush1.msra.mxu0 0.0
      %8405 = vmatprep.subr.mxu0 0.0
      %8406 = vmatpush1.msra.mxu0 0.0
      %8407 = vmatprep.subr.mxu0 0.0
      %8408 = vmatpush1.msra.mxu0 0.0
      %8409 = vmatprep.subr.mxu0 0.0
      %8410 = vmatpush1.msra.mxu0 0.0
      %8411 = vmatprep.subr.mxu0 0.0
      %8412 = vmatpush1.msra.mxu0 0.0
      %8413 = vmatprep.subr.mxu0 0.0
      %8414 = vmatpush1.msra.mxu0 0.0
      %8415 = vmatprep.subr.mxu0 0.0
      %8416 = vmatpush1.msra.mxu0 0.0
      %8417 = vmatprep.subr.mxu0 0.0
      %8418 = vmatpush1.msra.mxu0 0.0
      %8419 = vmatprep.subr.mxu0 0.0
      %8420 = vmatpush1.msra.mxu0 0.0
      %8421 = vmatprep.subr.mxu0 0.0
      %8422 = vmatpush1.msra.mxu0 0.0
      %8423 = vmatprep.subr.mxu0 0.0
      %8424 = vmatpush1.msra.mxu0 0.0
      %8425 = vmatprep.subr.mxu0 0.0
      %8426 = vmatpush1.msra.mxu0 0.0
      %8427 = vmatprep.subr.mxu0 0.0
      %8428 = vmatpush1.msra.mxu0 0.0
      %8429 = vmatprep.mubr.f32.mxu0 0.0
      %8430 = vmatmul.mubr.f32.gmra.mrb[0].mxu0 %v8030
      %v8431 = vpop.f32.mrb[0].mxu0
      %v8432 = vadd.f32 0.0, %v8431
      %v8433 = vpop.f32.mrb[0].mxu0
      %v8434 = vadd.f32 0.0, %v8433
      %8435 = vdwg.mxu0
      %8436 = vmatprep.subr.mxu0 %v8004
      %8437 = vmatpush1.msra.mxu0 %v8003
      %8438 = vmatprep.subr.mxu0 %v8067
      %8439 = vmatpush1.msra.mxu0 %v8064
      %8440 = vmatprep.subr.mxu0 0.0
      %8441 = vmatpush1.msra.mxu0 0.0
      %8442 = vmatprep.subr.mxu0 0.0
      %8443 = vmatpush1.msra.mxu0 0.0
      %8444 = vmatprep.subr.mxu0 0.0
      %8445 = vmatpush1.msra.mxu0 0.0
      %8446 = vmatprep.subr.mxu0 0.0
      %8447 = vmatpush1.msra.mxu0 0.0
      %8448 = vmatprep.subr.mxu0 0.0
      %8449 = vmatpush1.msra.mxu0 0.0
      %8450 = vmatprep.subr.mxu0 0.0
      %8451 = vmatpush1.msra.mxu0 0.0
      %8452 = vmatprep.subr.mxu0 0.0
      %8453 = vmatpush1.msra.mxu0 0.0
      %8454 = vmatprep.subr.mxu0 0.0
      %8455 = vmatpush1.msra.mxu0 0.0
      %8456 = vmatprep.subr.mxu0 0.0
      %8457 = vmatpush1.msra.mxu0 0.0
      %8458 = vmatprep.subr.mxu0 0.0
      %8459 = vmatpush1.msra.mxu0 0.0
      %8460 = vmatprep.subr.mxu0 0.0
      %8461 = vmatpush1.msra.mxu0 0.0
      %8462 = vmatprep.subr.mxu0 0.0
      %8463 = vmatpush1.msra.mxu0 0.0
      %8464 = vmatprep.subr.mxu0 0.0
      %8465 = vmatpush1.msra.mxu0 0.0
      %8466 = vmatprep.subr.mxu0 0.0
      %8467 = vmatpush1.msra.mxu0 0.0
      %8468 = vmatprep.subr.mxu0 0.0
      %8469 = vmatpush1.msra.mxu0 0.0
      %8470 = vmatprep.subr.mxu0 0.0
      %8471 = vmatpush1.msra.mxu0 0.0
      %8472 = vmatprep.subr.mxu0 0.0
      %8473 = vmatpush1.msra.mxu0 0.0
      %8474 = vmatprep.subr.mxu0 0.0
      %8475 = vmatpush1.msra.mxu0 0.0
      %8476 = vmatprep.subr.mxu0 0.0
      %8477 = vmatpush1.msra.mxu0 0.0
      %8478 = vmatprep.subr.mxu0 0.0
      %8479 = vmatpush1.msra.mxu0 0.0
      %8480 = vmatprep.subr.mxu0 0.0
      %8481 = vmatpush1.msra.mxu0 0.0
      %8482 = vmatprep.subr.mxu0 0.0
      %8483 = vmatpush1.msra.mxu0 0.0
      %8484 = vmatprep.subr.mxu0 0.0
      %8485 = vmatpush1.msra.mxu0 0.0
      %8486 = vmatprep.subr.mxu0 0.0
      %8487 = vmatpush1.msra.mxu0 0.0
      %8488 = vmatprep.subr.mxu0 0.0
      %8489 = vmatpush1.msra.mxu0 0.0
      %8490 = vmatprep.subr.mxu0 0.0
      %8491 = vmatpush1.msra.mxu0 0.0
      %8492 = vmatprep.subr.mxu0 0.0
      %8493 = vmatpush1.msra.mxu0 0.0
      %8494 = vmatprep.subr.mxu0 0.0
      %8495 = vmatpush1.msra.mxu0 0.0
      %8496 = vmatprep.subr.mxu0 0.0
      %8497 = vmatpush1.msra.mxu0 0.0
      %8498 = vmatprep.subr.mxu0 0.0
      %8499 = vmatpush1.msra.mxu0 0.0
      %8500 = vmatprep.mubr.f32.mxu0 0.0
      %8501 = vmatmul.mubr.f32.gmra.mrb[0].mxu0 %v8030
      %v8502 = vpop.f32.mrb[0].mxu0
      %v8503 = vadd.f32 0.0, %v8502
      %v8504 = vpop.f32.mrb[0].mxu0
      %v8505 = vadd.f32 0.0, %v8504
      %8506 = vdwg.mxu0
      %8507 = vmatprep.subr.mxu0 %v8006
      %8508 = vmatpush1.msra.mxu0 %v8005
      %8509 = vmatprep.subr.mxu0 %v8073
      %8510 = vmatpush1.msra.mxu0 %v8070
      %8511 = vmatprep.subr.mxu0 0.0
      %8512 = vmatpush1.msra.mxu0 0.0
      %8513 = vmatprep.subr.mxu0 0.0
      %8514 = vmatpush1.msra.mxu0 0.0
      %8515 = vmatprep.subr.mxu0 0.0
      %8516 = vmatpush1.msra.mxu0 0.0
      %8517 = vmatprep.subr.mxu0 0.0
      %8518 = vmatpush1.msra.mxu0 0.0
      %8519 = vmatprep.subr.mxu0 0.0
      %8520 = vmatpush1.msra.mxu0 0.0
      %8521 = vmatprep.subr.mxu0 0.0
      %8522 = vmatpush1.msra.mxu0 0.0
      %8523 = vmatprep.subr.mxu0 0.0
      %8524 = vmatpush1.msra.mxu0 0.0
      %8525 = vmatprep.subr.mxu0 0.0
      %8526 = vmatpush1.msra.mxu0 0.0
      %8527 = vmatprep.subr.mxu0 0.0
      %8528 = vmatpush1.msra.mxu0 0.0
      %8529 = vmatprep.subr.mxu0 0.0
      %8530 = vmatpush1.msra.mxu0 0.0
      %8531 = vmatprep.subr.mxu0 0.0
      %8532 = vmatpush1.msra.mxu0 0.0
      %8533 = vmatprep.subr.mxu0 0.0
      %8534 = vmatpush1.msra.mxu0 0.0
      %8535 = vmatprep.subr.mxu0 0.0
      %8536 = vmatpush1.msra.mxu0 0.0
      %8537 = vmatprep.subr.mxu0 0.0
      %8538 = vmatpush1.msra.mxu0 0.0
      %8539 = vmatprep.subr.mxu0 0.0
      %8540 = vmatpush1.msra.mxu0 0.0
      %8541 = vmatprep.subr.mxu0 0.0
      %8542 = vmatpush1.msra.mxu0 0.0
      %8543 = vmatprep.subr.mxu0 0.0
      %8544 = vmatpush1.msra.mxu0 0.0
      %8545 = vmatprep.subr.mxu0 0.0
      %8546 = vmatpush1.msra.mxu0 0.0
      %8547 = vmatprep.subr.mxu0 0.0
      %8548 = vmatpush1.msra.mxu0 0.0
      %8549 = vmatprep.subr.mxu0 0.0
      %8550 = vmatpush1.msra.mxu0 0.0
      %8551 = vmatprep.subr.mxu0 0.0
      %8552 = vmatpush1.msra.mxu0 0.0
      %8553 = vmatprep.subr.mxu0 0.0
      %8554 = vmatpush1.msra.mxu0 0.0
      %8555 = vmatprep.subr.mxu0 0.0
      %8556 = vmatpush1.msra.mxu0 0.0
      %8557 = vmatprep.subr.mxu0 0.0
      %8558 = vmatpush1.msra.mxu0 0.0
      %8559 = vmatprep.subr.mxu0 0.0
      %8560 = vmatpush1.msra.mxu0 0.0
      %8561 = vmatprep.subr.mxu0 0.0
      %8562 = vmatpush1.msra.mxu0 0.0
      %8563 = vmatprep.subr.mxu0 0.0
      %8564 = vmatpush1.msra.mxu0 0.0
      %8565 = vmatprep.subr.mxu0 0.0
      %8566 = vmatpush1.msra.mxu0 0.0
      %8567 = vmatprep.subr.mxu0 0.0
      %8568 = vmatpush1.msra.mxu0 0.0
      %8569 = vmatprep.subr.mxu0 0.0
      %8570 = vmatpush1.msra.mxu0 0.0
      %8571 = vmatprep.mubr.f32.mxu0 0.0
      %8572 = vmatmul.mubr.f32.gmra.mrb[0].mxu0 %v8030
      %v8573 = vpop.f32.mrb[0].mxu0
      %v8574 = vadd.f32 0.0, %v8573
      %v8575 = vpop.f32.mrb[0].mxu0
      %v8576 = vadd.f32 0.0, %v8575
      %8577 = vdwg.mxu0
      %8578 = vmatprep.subr.mxu0 %v8008
      %8579 = vmatpush1.msra.mxu0 %v8007
      %8580 = vmatprep.subr.mxu0 %v8079
      %8581 = vmatpush1.msra.mxu0 %v8076
      %8582 = vmatprep.subr.mxu0 0.0
      %8583 = vmatpush1.msra.mxu0 0.0
      %8584 = vmatprep.subr.mxu0 0.0
      %8585 = vmatpush1.msra.mxu0 0.0
      %8586 = vmatprep.subr.mxu0 0.0
      %8587 = vmatpush1.msra.mxu0 0.0
      %8588 = vmatprep.subr.mxu0 0.0
      %8589 = vmatpush1.msra.mxu0 0.0
      %8590 = vmatprep.subr.mxu0 0.0
      %8591 = vmatpush1.msra.mxu0 0.0
      %8592 = vmatprep.subr.mxu0 0.0
      %8593 = vmatpush1.msra.mxu0 0.0
      %8594 = vmatprep.subr.mxu0 0.0
      %8595 = vmatpush1.msra.mxu0 0.0
      %8596 = vmatprep.subr.mxu0 0.0
      %8597 = vmatpush1.msra.mxu0 0.0
      %8598 = vmatprep.subr.mxu0 0.0
      %8599 = vmatpush1.msra.mxu0 0.0
      %8600 = vmatprep.subr.mxu0 0.0
      %8601 = vmatpush1.msra.mxu0 0.0
      %8602 = vmatprep.subr.mxu0 0.0
      %8603 = vmatpush1.msra.mxu0 0.0
      %8604 = vmatprep.subr.mxu0 0.0
      %8605 = vmatpush1.msra.mxu0 0.0
      %8606 = vmatprep.subr.mxu0 0.0
      %8607 = vmatpush1.msra.mxu0 0.0
      %8608 = vmatprep.subr.mxu0 0.0
      %8609 = vmatpush1.msra.mxu0 0.0
      %8610 = vmatprep.subr.mxu0 0.0
      %8611 = vmatpush1.msra.mxu0 0.0
      %8612 = vmatprep.subr.mxu0 0.0
      %8613 = vmatpush1.msra.mxu0 0.0
      %8614 = vmatprep.subr.mxu0 0.0
      %8615 = vmatpush1.msra.mxu0 0.0
      %8616 = vmatprep.subr.mxu0 0.0
      %8617 = vmatpush1.msra.mxu0 0.0
      %8618 = vmatprep.subr.mxu0 0.0
      %8619 = vmatpush1.msra.mxu0 0.0
      %8620 = vmatprep.subr.mxu0 0.0
      %8621 = vmatpush1.msra.mxu0 0.0
      %8622 = vmatprep.subr.mxu0 0.0
      %8623 = vmatpush1.msra.mxu0 0.0
      %8624 = vmatprep.subr.mxu0 0.0
      %8625 = vmatpush1.msra.mxu0 0.0
      %8626 = vmatprep.subr.mxu0 0.0
      %8627 = vmatpush1.msra.mxu0 0.0
      %8628 = vmatprep.subr.mxu0 0.0
      %8629 = vmatpush1.msra.mxu0 0.0
      %8630 = vmatprep.subr.mxu0 0.0
      %8631 = vmatpush1.msra.mxu0 0.0
      %8632 = vmatprep.subr.mxu0 0.0
      %8633 = vmatpush1.msra.mxu0 0.0
      %8634 = vmatprep.subr.mxu0 0.0
      %8635 = vmatpush1.msra.mxu0 0.0
      %8636 = vmatprep.subr.mxu0 0.0
      %8637 = vmatpush1.msra.mxu0 0.0
      %8638 = vmatprep.subr.mxu0 0.0
      %8639 = vmatpush1.msra.mxu0 0.0
      %8640 = vmatprep.subr.mxu0 0.0
      %8641 = vmatpush1.msra.mxu0 0.0
      %8642 = vmatprep.mubr.f32.mxu0 0.0
      %8643 = vmatmul.mubr.f32.gmra.mrb[0].mxu0 %v8030
      %v8644 = vpop.f32.mrb[0].mxu0
      %v8645 = vadd.f32 0.0, %v8644
      %v8646 = vpop.f32.mrb[0].mxu0
      %v8647 = vadd.f32 0.0, %v8646
      %8648 = vdwg.mxu0
      %v8649 = vld [vmem:[%s6] sm:$0xff]
      %v8650 = vld [vmem:[%s6 + $0x8] sm:$0xff]
      %v8653 = vlaneseq
      %v8654 = vshrl.u32 %v8653, 7
      %v8655 = vsub.s32 0, %v8654
      %v8656 = vrot.slane %v8649, %v8655
      %v8657 = vlaneseq
      %v8658 = vshrl.u32 %v8657, 7
      %v8659 = vsub.s32 1, %v8658
      %v8660 = vrot.slane %v8649, %v8659
      %v8661 = vlaneseq
      %v8662 = vshrl.u32 %v8661, 7
      %v8663 = vsub.s32 2, %v8662
      %v8664 = vrot.slane %v8649, %v8663
      %v8665 = vlaneseq
      %v8666 = vshrl.u32 %v8665, 7
      %v8667 = vsub.s32 3, %v8666
      %v8668 = vrot.slane %v8649, %v8667
      %v8669 = vlaneseq
      %v8670 = vshrl.u32 %v8669, 7
      %v8671 = vsub.s32 4, %v8670
      %v8672 = vrot.slane %v8649, %v8671
      %v8673 = vlaneseq
      %v8674 = vshrl.u32 %v8673, 7
      %v8675 = vsub.s32 5, %v8674
      %v8676 = vrot.slane %v8649, %v8675
      %v8677 = vlaneseq
      %v8678 = vshrl.u32 %v8677, 7
      %v8679 = vsub.s32 6, %v8678
      %v8680 = vrot.slane %v8649, %v8679
      %v8681 = vlaneseq
      %v8682 = vshrl.u32 %v8681, 7
      %v8683 = vsub.s32 7, %v8682
      %v8684 = vrot.slane %v8649, %v8683
      %v8685 = vlaneseq
      %v8686 = vshrl.u32 %v8685, 7
      %v8687 = vsub.s32 0, %v8686
      %v8688 = vrot.slane %v8650, %v8687
      %v8689 = vlaneseq
      %v8690 = vshrl.u32 %v8689, 7
      %v8691 = vsub.s32 1, %v8690
      %v8692 = vrot.slane %v8650, %v8691
      %v8693 = vlaneseq
      %v8694 = vshrl.u32 %v8693, 7
      %v8695 = vsub.s32 2, %v8694
      %v8696 = vrot.slane %v8650, %v8695
      %v8697 = vlaneseq
      %v8698 = vshrl.u32 %v8697, 7
      %v8699 = vsub.s32 3, %v8698
      %v8700 = vrot.slane %v8650, %v8699
      %v8701 = vlaneseq
      %v8702 = vshrl.u32 %v8701, 7
      %v8703 = vsub.s32 4, %v8702
      %v8704 = vrot.slane %v8650, %v8703
      %v8705 = vlaneseq
      %v8706 = vshrl.u32 %v8705, 7
      %v8707 = vsub.s32 5, %v8706
      %v8708 = vrot.slane %v8650, %v8707
      %v8709 = vlaneseq
      %v8710 = vshrl.u32 %v8709, 7
      %v8711 = vsub.s32 6, %v8710
      %v8712 = vrot.slane %v8650, %v8711
      %v8713 = vlaneseq
      %v8714 = vshrl.u32 %v8713, 7
      %v8715 = vsub.s32 7, %v8714
      %v8716 = vrot.slane %v8650, %v8715
      %v8733 = vmul.f32 %v8148, %v8656
      %v8734 = vmul.f32 %v8150, %v8660
      %v8735 = vmul.f32 %v8219, %v8664
      %v8736 = vmul.f32 %v8221, %v8668
      %v8737 = vmul.f32 %v8290, %v8672
      %v8738 = vmul.f32 %v8292, %v8676
      %v8739 = vmul.f32 %v8361, %v8680
      %v8740 = vmul.f32 %v8363, %v8684
      %v8741 = vmul.f32 %v8432, %v8688
      %v8742 = vmul.f32 %v8434, %v8692
      %v8743 = vmul.f32 %v8503, %v8696
      %v8744 = vmul.f32 %v8505, %v8700
      %v8745 = vmul.f32 %v8574, %v8704
      %v8746 = vmul.f32 %v8576, %v8708
      %v8747 = vmul.f32 %v8645, %v8712
      %v8748 = vmul.f32 %v8647, %v8716
      %v8749 = vadd.f32 %v8733, 0.0
      %v8750 = vadd.f32 %v8734, 0.0
      %v8751 = vadd.f32 %v8735, 0.0
      %v8752 = vadd.f32 %v8736, 0.0
      %v8753 = vadd.f32 %v8737, 0.0
      %v8754 = vadd.f32 %v8738, 0.0
      %v8755 = vadd.f32 %v8739, 0.0
      %v8756 = vadd.f32 %v8740, 0.0
      %v8757 = vadd.f32 %v8741, 0.0
      %v8758 = vadd.f32 %v8742, 0.0
      %v8759 = vadd.f32 %v8743, 0.0
      %v8760 = vadd.f32 %v8744, 0.0
      %v8761 = vadd.f32 %v8745, 0.0
      %v8762 = vadd.f32 %v8746, 0.0
      %v8763 = vadd.f32 %v8747, 0.0
      %v8764 = vadd.f32 %v8748, 0.0
      %s8765 = scalar_lea.vmem %s3, 4
      %v8766 = vld [vmem:[%s8765] sm:$0xf]
      %v8768 = vsel %vm8028, %v8766, 0
      %8770 = vmatprep.subr.mxu0 %v7996
      %8771 = vmatpush1.msra.mxu0 %v7995
      %8772 = vmatprep.subr.mxu0 %v8043
      %8773 = vmatpush1.msra.mxu0 %v8040
      %8774 = vmatprep.subr.mxu0 0.0
      %8775 = vmatpush1.msra.mxu0 0.0
      %8776 = vmatprep.subr.mxu0 0.0
      %8777 = vmatpush1.msra.mxu0 0.0
      %8778 = vmatprep.subr.mxu0 0.0
      %8779 = vmatpush1.msra.mxu0 0.0
      %8780 = vmatprep.subr.mxu0 0.0
      %8781 = vmatpush1.msra.mxu0 0.0
      %8782 = vmatprep.subr.mxu0 0.0
      %8783 = vmatpush1.msra.mxu0 0.0
      %8784 = vmatprep.subr.mxu0 0.0
      %8785 = vmatpush1.msra.mxu0 0.0
      %8786 = vmatprep.subr.mxu0 0.0
      %8787 = vmatpush1.msra.mxu0 0.0
      %8788 = vmatprep.subr.mxu0 0.0
      %8789 = vmatpush1.msra.mxu0 0.0
      %8790 = vmatprep.subr.mxu0 0.0
      %8791 = vmatpush1.msra.mxu0 0.0
      %8792 = vmatprep.subr.mxu0 0.0
      %8793 = vmatpush1.msra.mxu0 0.0
      %8794 = vmatprep.subr.mxu0 0.0
      %8795 = vmatpush1.msra.mxu0 0.0
      %8796 = vmatprep.subr.mxu0 0.0
      %8797 = vmatpush1.msra.mxu0 0.0
      %8798 = vmatprep.subr.mxu0 0.0
      %8799 = vmatpush1.msra.mxu0 0.0
      %8800 = vmatprep.subr.mxu0 0.0
      %8801 = vmatpush1.msra.mxu0 0.0
      %8802 = vmatprep.subr.mxu0 0.0
      %8803 = vmatpush1.msra.mxu0 0.0
      %8804 = vmatprep.subr.mxu0 0.0
      %8805 = vmatpush1.msra.mxu0 0.0
      %8806 = vmatprep.subr.mxu0 0.0
      %8807 = vmatpush1.msra.mxu0 0.0
      %8808 = vmatprep.subr.mxu0 0.0
      %8809 = vmatpush1.msra.mxu0 0.0
      %8810 = vmatprep.subr.mxu0 0.0
      %8811 = vmatpush1.msra.mxu0 0.0
      %8812 = vmatprep.subr.mxu0 0.0
      %8813 = vmatpush1.msra.mxu0 0.0
      %8814 = vmatprep.subr.mxu0 0.0
      %8815 = vmatpush1.msra.mxu0 0.0
      %8816 = vmatprep.subr.mxu0 0.0
      %8817 = vmatpush1.msra.mxu0 0.0
      %8818 = vmatprep.subr.mxu0 0.0
      %8819 = vmatpush1.msra.mxu0 0.0
      %8820 = vmatprep.subr.mxu0 0.0
      %8821 = vmatpush1.msra.mxu0 0.0
      %8822 = vmatprep.subr.mxu0 0.0
      %8823 = vmatpush1.msra.mxu0 0.0
      %8824 = vmatprep.subr.mxu0 0.0
      %8825 = vmatpush1.msra.mxu0 0.0
      %8826 = vmatprep.subr.mxu0 0.0
      %8827 = vmatpush1.msra.mxu0 0.0
      %8828 = vmatprep.subr.mxu0 0.0
      %8829 = vmatpush1.msra.mxu0 0.0
      %8830 = vmatprep.subr.mxu0 0.0
      %8831 = vmatpush1.msra.mxu0 0.0
      %8832 = vmatprep.subr.mxu0 0.0
      %8833 = vmatpush1.msra.mxu0 0.0
      %8834 = vmatprep.mubr.f32.mxu0 0.0
      %8835 = vmatmul.mubr.f32.gmra.mrb[0].mxu0 %v8768
      %v8836 = vpop.f32.mrb[0].mxu0
      %v8837 = vadd.f32 0.0, %v8836
      %v8838 = vpop.f32.mrb[0].mxu0
      %v8839 = vadd.f32 0.0, %v8838
      %8840 = vdwg.mxu0
      %8841 = vmatprep.subr.mxu0 %v7998
      %8842 = vmatpush1.msra.mxu0 %v7997
      %8843 = vmatprep.subr.mxu0 %v8049
      %8844 = vmatpush1.msra.mxu0 %v8046
      %8845 = vmatprep.subr.mxu0 0.0
      %8846 = vmatpush1.msra.mxu0 0.0
      %8847 = vmatprep.subr.mxu0 0.0
      %8848 = vmatpush1.msra.mxu0 0.0
      %8849 = vmatprep.subr.mxu0 0.0
      %8850 = vmatpush1.msra.mxu0 0.0
      %8851 = vmatprep.subr.mxu0 0.0
      %8852 = vmatpush1.msra.mxu0 0.0
      %8853 = vmatprep.subr.mxu0 0.0
      %8854 = vmatpush1.msra.mxu0 0.0
      %8855 = vmatprep.subr.mxu0 0.0
      %8856 = vmatpush1.msra.mxu0 0.0
      %8857 = vmatprep.subr.mxu0 0.0
      %8858 = vmatpush1.msra.mxu0 0.0
      %8859 = vmatprep.subr.mxu0 0.0
      %8860 = vmatpush1.msra.mxu0 0.0
      %8861 = vmatprep.subr.mxu0 0.0
      %8862 = vmatpush1.msra.mxu0 0.0
      %8863 = vmatprep.subr.mxu0 0.0
      %8864 = vmatpush1.msra.mxu0 0.0
      %8865 = vmatprep.subr.mxu0 0.0
      %8866 = vmatpush1.msra.mxu0 0.0
      %8867 = vmatprep.subr.mxu0 0.0
      %8868 = vmatpush1.msra.mxu0 0.0
      %8869 = vmatprep.subr.mxu0 0.0
      %8870 = vmatpush1.msra.mxu0 0.0
      %8871 = vmatprep.subr.mxu0 0.0
      %8872 = vmatpush1.msra.mxu0 0.0
      %8873 = vmatprep.subr.mxu0 0.0
      %8874 = vmatpush1.msra.mxu0 0.0
      %8875 = vmatprep.subr.mxu0 0.0
      %8876 = vmatpush1.msra.mxu0 0.0
      %8877 = vmatprep.subr.mxu0 0.0
      %8878 = vmatpush1.msra.mxu0 0.0
      %8879 = vmatprep.subr.mxu0 0.0
      %8880 = vmatpush1.msra.mxu0 0.0
      %8881 = vmatprep.subr.mxu0 0.0
      %8882 = vmatpush1.msra.mxu0 0.0
      %8883 = vmatprep.subr.mxu0 0.0
      %8884 = vmatpush1.msra.mxu0 0.0
      %8885 = vmatprep.subr.mxu0 0.0
      %8886 = vmatpush1.msra.mxu0 0.0
      %8887 = vmatprep.subr.mxu0 0.0
      %8888 = vmatpush1.msra.mxu0 0.0
      %8889 = vmatprep.subr.mxu0 0.0
      %8890 = vmatpush1.msra.mxu0 0.0
      %8891 = vmatprep.subr.mxu0 0.0
      %8892 = vmatpush1.msra.mxu0 0.0
      %8893 = vmatprep.subr.mxu0 0.0
      %8894 = vmatpush1.msra.mxu0 0.0
      %8895 = vmatprep.subr.mxu0 0.0
      %8896 = vmatpush1.msra.mxu0 0.0
      %8897 = vmatprep.subr.mxu0 0.0
      %8898 = vmatpush1.msra.mxu0 0.0
      %8899 = vmatprep.subr.mxu0 0.0
      %8900 = vmatpush1.msra.mxu0 0.0
      %8901 = vmatprep.subr.mxu0 0.0
      %8902 = vmatpush1.msra.mxu0 0.0
      %8903 = vmatprep.subr.mxu0 0.0
      %8904 = vmatpush1.msra.mxu0 0.0
      %8905 = vmatprep.mubr.f32.mxu0 0.0
      %8906 = vmatmul.mubr.f32.gmra.mrb[0].mxu0 %v8768
      %v8907 = vpop.f32.mrb[0].mxu0
      %v8908 = vadd.f32 0.0, %v8907
      %v8909 = vpop.f32.mrb[0].mxu0
      %v8910 = vadd.f32 0.0, %v8909
      %8911 = vdwg.mxu0
      %8912 = vmatprep.subr.mxu0 %v8000
      %8913 = vmatpush1.msra.mxu0 %v7999
      %8914 = vmatprep.subr.mxu0 %v8055
      %8915 = vmatpush1.msra.mxu0 %v8052
      %8916 = vmatprep.subr.mxu0 0.0
      %8917 = vmatpush1.msra.mxu0 0.0
      %8918 = vmatprep.subr.mxu0 0.0
      %8919 = vmatpush1.msra.mxu0 0.0
      %8920 = vmatprep.subr.mxu0 0.0
      %8921 = vmatpush1.msra.mxu0 0.0
      %8922 = vmatprep.subr.mxu0 0.0
      %8923 = vmatpush1.msra.mxu0 0.0
      %8924 = vmatprep.subr.mxu0 0.0
      %8925 = vmatpush1.msra.mxu0 0.0
      %8926 = vmatprep.subr.mxu0 0.0
      %8927 = vmatpush1.msra.mxu0 0.0
      %8928 = vmatprep.subr.mxu0 0.0
      %8929 = vmatpush1.msra.mxu0 0.0
      %8930 = vmatprep.subr.mxu0 0.0
      %8931 = vmatpush1.msra.mxu0 0.0
      %8932 = vmatprep.subr.mxu0 0.0
      %8933 = vmatpush1.msra.mxu0 0.0
      %8934 = vmatprep.subr.mxu0 0.0
      %8935 = vmatpush1.msra.mxu0 0.0
      %8936 = vmatprep.subr.mxu0 0.0
      %8937 = vmatpush1.msra.mxu0 0.0
      %8938 = vmatprep.subr.mxu0 0.0
      %8939 = vmatpush1.msra.mxu0 0.0
      %8940 = vmatprep.subr.mxu0 0.0
      %8941 = vmatpush1.msra.mxu0 0.0
      %8942 = vmatprep.subr.mxu0 0.0
      %8943 = vmatpush1.msra.mxu0 0.0
      %8944 = vmatprep.subr.mxu0 0.0
      %8945 = vmatpush1.msra.mxu0 0.0
      %8946 = vmatprep.subr.mxu0 0.0
      %8947 = vmatpush1.msra.mxu0 0.0
      %8948 = vmatprep.subr.mxu0 0.0
      %8949 = vmatpush1.msra.mxu0 0.0
      %8950 = vmatprep.subr.mxu0 0.0
      %8951 = vmatpush1.msra.mxu0 0.0
      %8952 = vmatprep.subr.mxu0 0.0
      %8953 = vmatpush1.msra.mxu0 0.0
      %8954 = vmatprep.subr.mxu0 0.0
      %8955 = vmatpush1.msra.mxu0 0.0
      %8956 = vmatprep.subr.mxu0 0.0
      %8957 = vmatpush1.msra.mxu0 0.0
      %8958 = vmatprep.subr.mxu0 0.0
      %8959 = vmatpush1.msra.mxu0 0.0
      %8960 = vmatprep.subr.mxu0 0.0
      %8961 = vmatpush1.msra.mxu0 0.0
      %8962 = vmatprep.subr.mxu0 0.0
      %8963 = vmatpush1.msra.mxu0 0.0
      %8964 = vmatprep.subr.mxu0 0.0
      %8965 = vmatpush1.msra.mxu0 0.0
      %8966 = vmatprep.subr.mxu0 0.0
      %8967 = vmatpush1.msra.mxu0 0.0
      %8968 = vmatprep.subr.mxu0 0.0
      %8969 = vmatpush1.msra.mxu0 0.0
      %8970 = vmatprep.subr.mxu0 0.0
      %8971 = vmatpush1.msra.mxu0 0.0
      %8972 = vmatprep.subr.mxu0 0.0
      %8973 = vmatpush1.msra.mxu0 0.0
      %8974 = vmatprep.subr.mxu0 0.0
      %8975 = vmatpush1.msra.mxu0 0.0
      %8976 = vmatprep.mubr.f32.mxu0 0.0
      %8977 = vmatmul.mubr.f32.gmra.mrb[0].mxu0 %v8768
      %v8978 = vpop.f32.mrb[0].mxu0
      %v8979 = vadd.f32 0.0, %v8978
      %v8980 = vpop.f32.mrb[0].mxu0
      %v8981 = vadd.f32 0.0, %v8980
      %8982 = vdwg.mxu0
      %8983 = vmatprep.subr.mxu0 %v8002
      %8984 = vmatpush1.msra.mxu0 %v8001
      %8985 = vmatprep.subr.mxu0 %v8061
      %8986 = vmatpush1.msra.mxu0 %v8058
      %8987 = vmatprep.subr.mxu0 0.0
      %8988 = vmatpush1.msra.mxu0 0.0
      %8989 = vmatprep.subr.mxu0 0.0
      %8990 = vmatpush1.msra.mxu0 0.0
      %8991 = vmatprep.subr.mxu0 0.0
      %8992 = vmatpush1.msra.mxu0 0.0
      %8993 = vmatprep.subr.mxu0 0.0
      %8994 = vmatpush1.msra.mxu0 0.0
      %8995 = vmatprep.subr.mxu0 0.0
      %8996 = vmatpush1.msra.mxu0 0.0
      %8997 = vmatprep.subr.mxu0 0.0
      %8998 = vmatpush1.msra.mxu0 0.0
      %8999 = vmatprep.subr.mxu0 0.0
      %9000 = vmatpush1.msra.mxu0 0.0
      %9001 = vmatprep.subr.mxu0 0.0
      %9002 = vmatpush1.msra.mxu0 0.0
      %9003 = vmatprep.subr.mxu0 0.0
      %9004 = vmatpush1.msra.mxu0 0.0
      %9005 = vmatprep.subr.mxu0 0.0
      %9006 = vmatpush1.msra.mxu0 0.0
      %9007 = vmatprep.subr.mxu0 0.0
      %9008 = vmatpush1.msra.mxu0 0.0
      %9009 = vmatprep.subr.mxu0 0.0
      %9010 = vmatpush1.msra.mxu0 0.0
      %9011 = vmatprep.subr.mxu0 0.0
      %9012 = vmatpush1.msra.mxu0 0.0
      %9013 = vmatprep.subr.mxu0 0.0
      %9014 = vmatpush1.msra.mxu0 0.0
      %9015 = vmatprep.subr.mxu0 0.0
      %9016 = vmatpush1.msra.mxu0 0.0
      %9017 = vmatprep.subr.mxu0 0.0
      %9018 = vmatpush1.msra.mxu0 0.0
      %9019 = vmatprep.subr.mxu0 0.0
      %9020 = vmatpush1.msra.mxu0 0.0
      %9021 = vmatprep.subr.mxu0 0.0
      %9022 = vmatpush1.msra.mxu0 0.0
      %9023 = vmatprep.subr.mxu0 0.0
      %9024 = vmatpush1.msra.mxu0 0.0
      %9025 = vmatprep.subr.mxu0 0.0
      %9026 = vmatpush1.msra.mxu0 0.0
      %9027 = vmatprep.subr.mxu0 0.0
      %9028 = vmatpush1.msra.mxu0 0.0
      %9029 = vmatprep.subr.mxu0 0.0
      %9030 = vmatpush1.msra.mxu0 0.0
      %9031 = vmatprep.subr.mxu0 0.0
      %9032 = vmatpush1.msra.mxu0 0.0
      %9033 = vmatprep.subr.mxu0 0.0
      %9034 = vmatpush1.msra.mxu0 0.0
      %9035 = vmatprep.subr.mxu0 0.0
      %9036 = vmatpush1.msra.mxu0 0.0
      %9037 = vmatprep.subr.mxu0 0.0
      %9038 = vmatpush1.msra.mxu0 0.0
      %9039 = vmatprep.subr.mxu0 0.0
      %9040 = vmatpush1.msra.mxu0 0.0
      %9041 = vmatprep.subr.mxu0 0.0
      %9042 = vmatpush1.msra.mxu0 0.0
      %9043 = vmatprep.subr.mxu0 0.0
      %9044 = vmatpush1.msra.mxu0 0.0
      %9045 = vmatprep.subr.mxu0 0.0
      %9046 = vmatpush1.msra.mxu0 0.0
      %9047 = vmatprep.mubr.f32.mxu0 0.0
      %9048 = vmatmul.mubr.f32.gmra.mrb[0].mxu0 %v8768
      %v9049 = vpop.f32.mrb[0].mxu0
      %v9050 = vadd.f32 0.0, %v9049
      %v9051 = vpop.f32.mrb[0].mxu0
      %v9052 = vadd.f32 0.0, %v9051
      %9053 = vdwg.mxu0
      %9054 = vmatprep.subr.mxu0 %v8004
      %9055 = vmatpush1.msra.mxu0 %v8003
      %9056 = vmatprep.subr.mxu0 %v8067
      %9057 = vmatpush1.msra.mxu0 %v8064
      %9058 = vmatprep.subr.mxu0 0.0
      %9059 = vmatpush1.msra.mxu0 0.0
      %9060 = vmatprep.subr.mxu0 0.0
      %9061 = vmatpush1.msra.mxu0 0.0
      %9062 = vmatprep.subr.mxu0 0.0
      %9063 = vmatpush1.msra.mxu0 0.0
      %9064 = vmatprep.subr.mxu0 0.0
      %9065 = vmatpush1.msra.mxu0 0.0
      %9066 = vmatprep.subr.mxu0 0.0
      %9067 = vmatpush1.msra.mxu0 0.0
      %9068 = vmatprep.subr.mxu0 0.0
      %9069 = vmatpush1.msra.mxu0 0.0
      %9070 = vmatprep.subr.mxu0 0.0
      %9071 = vmatpush1.msra.mxu0 0.0
      %9072 = vmatprep.subr.mxu0 0.0
      %9073 = vmatpush1.msra.mxu0 0.0
      %9074 = vmatprep.subr.mxu0 0.0
      %9075 = vmatpush1.msra.mxu0 0.0
      %9076 = vmatprep.subr.mxu0 0.0
      %9077 = vmatpush1.msra.mxu0 0.0
      %9078 = vmatprep.subr.mxu0 0.0
      %9079 = vmatpush1.msra.mxu0 0.0
      %9080 = vmatprep.subr.mxu0 0.0
      %9081 = vmatpush1.msra.mxu0 0.0
      %9082 = vmatprep.subr.mxu0 0.0
      %9083 = vmatpush1.msra.mxu0 0.0
      %9084 = vmatprep.subr.mxu0 0.0
      %9085 = vmatpush1.msra.mxu0 0.0
      %9086 = vmatprep.subr.mxu0 0.0
      %9087 = vmatpush1.msra.mxu0 0.0
      %9088 = vmatprep.subr.mxu0 0.0
      %9089 = vmatpush1.msra.mxu0 0.0
      %9090 = vmatprep.subr.mxu0 0.0
      %9091 = vmatpush1.msra.mxu0 0.0
      %9092 = vmatprep.subr.mxu0 0.0
      %9093 = vmatpush1.msra.mxu0 0.0
      %9094 = vmatprep.subr.mxu0 0.0
      %9095 = vmatpush1.msra.mxu0 0.0
      %9096 = vmatprep.subr.mxu0 0.0
      %9097 = vmatpush1.msra.mxu0 0.0
      %9098 = vmatprep.subr.mxu0 0.0
      %9099 = vmatpush1.msra.mxu0 0.0
      %9100 = vmatprep.subr.mxu0 0.0
      %9101 = vmatpush1.msra.mxu0 0.0
      %9102 = vmatprep.subr.mxu0 0.0
      %9103 = vmatpush1.msra.mxu0 0.0
      %9104 = vmatprep.subr.mxu0 0.0
      %9105 = vmatpush1.msra.mxu0 0.0
      %9106 = vmatprep.subr.mxu0 0.0
      %9107 = vmatpush1.msra.mxu0 0.0
      %9108 = vmatprep.subr.mxu0 0.0
      %9109 = vmatpush1.msra.mxu0 0.0
      %9110 = vmatprep.subr.mxu0 0.0
      %9111 = vmatpush1.msra.mxu0 0.0
      %9112 = vmatprep.subr.mxu0 0.0
      %9113 = vmatpush1.msra.mxu0 0.0
      %9114 = vmatprep.subr.mxu0 0.0
      %9115 = vmatpush1.msra.mxu0 0.0
      %9116 = vmatprep.subr.mxu0 0.0
      %9117 = vmatpush1.msra.mxu0 0.0
      %9118 = vmatprep.mubr.f32.mxu0 0.0
      %9119 = vmatmul.mubr.f32.gmra.mrb[0].mxu0 %v8768
      %v9120 = vpop.f32.mrb[0].mxu0
      %v9121 = vadd.f32 0.0, %v9120
      %v9122 = vpop.f32.mrb[0].mxu0
      %v9123 = vadd.f32 0.0, %v9122
      %9124 = vdwg.mxu0
      %9125 = vmatprep.subr.mxu0 %v8006
      %9126 = vmatpush1.msra.mxu0 %v8005
      %9127 = vmatprep.subr.mxu0 %v8073
      %9128 = vmatpush1.msra.mxu0 %v8070
      %9129 = vmatprep.subr.mxu0 0.0
      %9130 = vmatpush1.msra.mxu0 0.0
      %9131 = vmatprep.subr.mxu0 0.0
      %9132 = vmatpush1.msra.mxu0 0.0
      %9133 = vmatprep.subr.mxu0 0.0
      %9134 = vmatpush1.msra.mxu0 0.0
      %9135 = vmatprep.subr.mxu0 0.0
      %9136 = vmatpush1.msra.mxu0 0.0
      %9137 = vmatprep.subr.mxu0 0.0
      %9138 = vmatpush1.msra.mxu0 0.0
      %9139 = vmatprep.subr.mxu0 0.0
      %9140 = vmatpush1.msra.mxu0 0.0
      %9141 = vmatprep.subr.mxu0 0.0
      %9142 = vmatpush1.msra.mxu0 0.0
      %9143 = vmatprep.subr.mxu0 0.0
      %9144 = vmatpush1.msra.mxu0 0.0
      %9145 = vmatprep.subr.mxu0 0.0
      %9146 = vmatpush1.msra.mxu0 0.0
      %9147 = vmatprep.subr.mxu0 0.0
      %9148 = vmatpush1.msra.mxu0 0.0
      %9149 = vmatprep.subr.mxu0 0.0
      %9150 = vmatpush1.msra.mxu0 0.0
      %9151 = vmatprep.subr.mxu0 0.0
      %9152 = vmatpush1.msra.mxu0 0.0
      %9153 = vmatprep.subr.mxu0 0.0
      %9154 = vmatpush1.msra.mxu0 0.0
      %9155 = vmatprep.subr.mxu0 0.0
      %9156 = vmatpush1.msra.mxu0 0.0
      %9157 = vmatprep.subr.mxu0 0.0
      %9158 = vmatpush1.msra.mxu0 0.0
      %9159 = vmatprep.subr.mxu0 0.0
      %9160 = vmatpush1.msra.mxu0 0.0
      %9161 = vmatprep.subr.mxu0 0.0
      %9162 = vmatpush1.msra.mxu0 0.0
      %9163 = vmatprep.subr.mxu0 0.0
      %9164 = vmatpush1.msra.mxu0 0.0
      %9165 = vmatprep.subr.mxu0 0.0
      %9166 = vmatpush1.msra.mxu0 0.0
      %9167 = vmatprep.subr.mxu0 0.0
      %9168 = vmatpush1.msra.mxu0 0.0
      %9169 = vmatprep.subr.mxu0 0.0
      %9170 = vmatpush1.msra.mxu0 0.0
      %9171 = vmatprep.subr.mxu0 0.0
      %9172 = vmatpush1.msra.mxu0 0.0
      %9173 = vmatprep.subr.mxu0 0.0
      %9174 = vmatpush1.msra.mxu0 0.0
      %9175 = vmatprep.subr.mxu0 0.0
      %9176 = vmatpush1.msra.mxu0 0.0
      %9177 = vmatprep.subr.mxu0 0.0
      %9178 = vmatpush1.msra.mxu0 0.0
      %9179 = vmatprep.subr.mxu0 0.0
      %9180 = vmatpush1.msra.mxu0 0.0
      %9181 = vmatprep.subr.mxu0 0.0
      %9182 = vmatpush1.msra.mxu0 0.0
      %9183 = vmatprep.subr.mxu0 0.0
      %9184 = vmatpush1.msra.mxu0 0.0
      %9185 = vmatprep.subr.mxu0 0.0
      %9186 = vmatpush1.msra.mxu0 0.0
      %9187 = vmatprep.subr.mxu0 0.0
      %9188 = vmatpush1.msra.mxu0 0.0
      %9189 = vmatprep.mubr.f32.mxu0 0.0
      %9190 = vmatmul.mubr.f32.gmra.mrb[0].mxu0 %v8768
      %v9191 = vpop.f32.mrb[0].mxu0
      %v9192 = vadd.f32 0.0, %v9191
      %v9193 = vpop.f32.mrb[0].mxu0
      %v9194 = vadd.f32 0.0, %v9193
      %9195 = vdwg.mxu0
      %9196 = vmatprep.subr.mxu0 %v8008
      %9197 = vmatpush1.msra.mxu0 %v8007
      %9198 = vmatprep.subr.mxu0 %v8079
      %9199 = vmatpush1.msra.mxu0 %v8076
      %9200 = vmatprep.subr.mxu0 0.0
      %9201 = vmatpush1.msra.mxu0 0.0
      %9202 = vmatprep.subr.mxu0 0.0
      %9203 = vmatpush1.msra.mxu0 0.0
      %9204 = vmatprep.subr.mxu0 0.0
      %9205 = vmatpush1.msra.mxu0 0.0
      %9206 = vmatprep.subr.mxu0 0.0
      %9207 = vmatpush1.msra.mxu0 0.0
      %9208 = vmatprep.subr.mxu0 0.0
      %9209 = vmatpush1.msra.mxu0 0.0
      %9210 = vmatprep.subr.mxu0 0.0
      %9211 = vmatpush1.msra.mxu0 0.0
      %9212 = vmatprep.subr.mxu0 0.0
      %9213 = vmatpush1.msra.mxu0 0.0
      %9214 = vmatprep.subr.mxu0 0.0
      %9215 = vmatpush1.msra.mxu0 0.0
      %9216 = vmatprep.subr.mxu0 0.0
      %9217 = vmatpush1.msra.mxu0 0.0
      %9218 = vmatprep.subr.mxu0 0.0
      %9219 = vmatpush1.msra.mxu0 0.0
      %9220 = vmatprep.subr.mxu0 0.0
      %9221 = vmatpush1.msra.mxu0 0.0
      %9222 = vmatprep.subr.mxu0 0.0
      %9223 = vmatpush1.msra.mxu0 0.0
      %9224 = vmatprep.subr.mxu0 0.0
      %9225 = vmatpush1.msra.mxu0 0.0
      %9226 = vmatprep.subr.mxu0 0.0
      %9227 = vmatpush1.msra.mxu0 0.0
      %9228 = vmatprep.subr.mxu0 0.0
      %9229 = vmatpush1.msra.mxu0 0.0
      %9230 = vmatprep.subr.mxu0 0.0
      %9231 = vmatpush1.msra.mxu0 0.0
      %9232 = vmatprep.subr.mxu0 0.0
      %9233 = vmatpush1.msra.mxu0 0.0
      %9234 = vmatprep.subr.mxu0 0.0
      %9235 = vmatpush1.msra.mxu0 0.0
      %9236 = vmatprep.subr.mxu0 0.0
      %9237 = vmatpush1.msra.mxu0 0.0
      %9238 = vmatprep.subr.mxu0 0.0
      %9239 = vmatpush1.msra.mxu0 0.0
      %9240 = vmatprep.subr.mxu0 0.0
      %9241 = vmatpush1.msra.mxu0 0.0
      %9242 = vmatprep.subr.mxu0 0.0
      %9243 = vmatpush1.msra.mxu0 0.0
      %9244 = vmatprep.subr.mxu0 0.0
      %9245 = vmatpush1.msra.mxu0 0.0
      %9246 = vmatprep.subr.mxu0 0.0
      %9247 = vmatpush1.msra.mxu0 0.0
      %9248 = vmatprep.subr.mxu0 0.0
      %9249 = vmatpush1.msra.mxu0 0.0
      %9250 = vmatprep.subr.mxu0 0.0
      %9251 = vmatpush1.msra.mxu0 0.0
      %9252 = vmatprep.subr.mxu0 0.0
      %9253 = vmatpush1.msra.mxu0 0.0
      %9254 = vmatprep.subr.mxu0 0.0
      %9255 = vmatpush1.msra.mxu0 0.0
      %9256 = vmatprep.subr.mxu0 0.0
      %9257 = vmatpush1.msra.mxu0 0.0
      %9258 = vmatprep.subr.mxu0 0.0
      %9259 = vmatpush1.msra.mxu0 0.0
      %9260 = vmatprep.mubr.f32.mxu0 0.0
      %9261 = vmatmul.mubr.f32.gmra.mrb[0].mxu0 %v8768
      %v9262 = vpop.f32.mrb[0].mxu0
      %v9263 = vadd.f32 0.0, %v9262
      %v9264 = vpop.f32.mrb[0].mxu0
      %v9265 = vadd.f32 0.0, %v9264
      %9266 = vdwg.mxu0
      %9267 = vmatprep.subr.mxu0 %v8010
      %9268 = vmatpush1.msra.mxu0 %v8009
      %9269 = vmatprep.subr.mxu0 %v8037
      %9270 = vmatpush1.msra.mxu0 %v8034
      %9271 = vmatprep.subr.mxu0 0.0
      %9272 = vmatpush1.msra.mxu0 0.0
      %9273 = vmatprep.subr.mxu0 0.0
      %9274 = vmatpush1.msra.mxu0 0.0
      %9275 = vmatprep.subr.mxu0 0.0
      %9276 = vmatpush1.msra.mxu0 0.0
      %9277 = vmatprep.subr.mxu0 0.0
      %9278 = vmatpush1.msra.mxu0 0.0
      %9279 = vmatprep.subr.mxu0 0.0
      %9280 = vmatpush1.msra.mxu0 0.0
      %9281 = vmatprep.subr.mxu0 0.0
      %9282 = vmatpush1.msra.mxu0 0.0
      %9283 = vmatprep.subr.mxu0 0.0
      %9284 = vmatpush1.msra.mxu0 0.0
      %9285 = vmatprep.subr.mxu0 0.0
      %9286 = vmatpush1.msra.mxu0 0.0
      %9287 = vmatprep.subr.mxu0 0.0
      %9288 = vmatpush1.msra.mxu0 0.0
      %9289 = vmatprep.subr.mxu0 0.0
      %9290 = vmatpush1.msra.mxu0 0.0
      %9291 = vmatprep.subr.mxu0 0.0
      %9292 = vmatpush1.msra.mxu0 0.0
      %9293 = vmatprep.subr.mxu0 0.0
      %9294 = vmatpush1.msra.mxu0 0.0
      %9295 = vmatprep.subr.mxu0 0.0
      %9296 = vmatpush1.msra.mxu0 0.0
      %9297 = vmatprep.subr.mxu0 0.0
      %9298 = vmatpush1.msra.mxu0 0.0
      %9299 = vmatprep.subr.mxu0 0.0
      %9300 = vmatpush1.msra.mxu0 0.0
      %9301 = vmatprep.subr.mxu0 0.0
      %9302 = vmatpush1.msra.mxu0 0.0
      %9303 = vmatprep.subr.mxu0 0.0
      %9304 = vmatpush1.msra.mxu0 0.0
      %9305 = vmatprep.subr.mxu0 0.0
      %9306 = vmatpush1.msra.mxu0 0.0
      %9307 = vmatprep.subr.mxu0 0.0
      %9308 = vmatpush1.msra.mxu0 0.0
      %9309 = vmatprep.subr.mxu0 0.0
      %9310 = vmatpush1.msra.mxu0 0.0
      %9311 = vmatprep.subr.mxu0 0.0
      %9312 = vmatpush1.msra.mxu0 0.0
      %9313 = vmatprep.subr.mxu0 0.0
      %9314 = vmatpush1.msra.mxu0 0.0
      %9315 = vmatprep.subr.mxu0 0.0
      %9316 = vmatpush1.msra.mxu0 0.0
      %9317 = vmatprep.subr.mxu0 0.0
      %9318 = vmatpush1.msra.mxu0 0.0
      %9319 = vmatprep.subr.mxu0 0.0
      %9320 = vmatpush1.msra.mxu0 0.0
      %9321 = vmatprep.subr.mxu0 0.0
      %9322 = vmatpush1.msra.mxu0 0.0
      %9323 = vmatprep.subr.mxu0 0.0
      %9324 = vmatpush1.msra.mxu0 0.0
      %9325 = vmatprep.subr.mxu0 0.0
      %9326 = vmatpush1.msra.mxu0 0.0
      %9327 = vmatprep.subr.mxu0 0.0
      %9328 = vmatpush1.msra.mxu0 0.0
      %9329 = vmatprep.subr.mxu0 0.0
      %9330 = vmatpush1.msra.mxu0 0.0
      %9331 = vmatprep.mubr.f32.mxu0 0.0
      %9332 = vmatmul.mubr.f32.gmra.mrb[0].mxu0 %v8768
      %v9333 = vpop.f32.mrb[0].mxu0
      %v9334 = vadd.f32 0.0, %v9333
      %v9335 = vpop.f32.mrb[0].mxu0
      %v9336 = vadd.f32 0.0, %v9335
      %9337 = vdwg.mxu0
      %s9338 = scalar_lea.vmem %s6, 16
      %v9339 = vld [vmem:[%s9338] sm:$0xff]
      %v9340 = vld [vmem:[%s9338 + $0x8] sm:$0xff]
      %v9343 = vlaneseq
      %v9344 = vshrl.u32 %v9343, 7
      %v9345 = vsub.s32 0, %v9344
      %v9346 = vrot.slane %v9339, %v9345
      %v9347 = vlaneseq
      %v9348 = vshrl.u32 %v9347, 7
      %v9349 = vsub.s32 1, %v9348
      %v9350 = vrot.slane %v9339, %v9349
      %v9351 = vlaneseq
      %v9352 = vshrl.u32 %v9351, 7
      %v9353 = vsub.s32 2, %v9352
      %v9354 = vrot.slane %v9339, %v9353
      %v9355 = vlaneseq
      %v9356 = vshrl.u32 %v9355, 7
      %v9357 = vsub.s32 3, %v9356
      %v9358 = vrot.slane %v9339, %v9357
      %v9359 = vlaneseq
      %v9360 = vshrl.u32 %v9359, 7
      %v9361 = vsub.s32 4, %v9360
      %v9362 = vrot.slane %v9339, %v9361
      %v9363 = vlaneseq
      %v9364 = vshrl.u32 %v9363, 7
      %v9365 = vsub.s32 5, %v9364
      %v9366 = vrot.slane %v9339, %v9365
      %v9367 = vlaneseq
      %v9368 = vshrl.u32 %v9367, 7
      %v9369 = vsub.s32 6, %v9368
      %v9370 = vrot.slane %v9339, %v9369
      %v9371 = vlaneseq
      %v9372 = vshrl.u32 %v9371, 7
      %v9373 = vsub.s32 7, %v9372
      %v9374 = vrot.slane %v9339, %v9373
      %v9375 = vlaneseq
      %v9376 = vshrl.u32 %v9375, 7
      %v9377 = vsub.s32 0, %v9376
      %v9378 = vrot.slane %v9340, %v9377
      %v9379 = vlaneseq
      %v9380 = vshrl.u32 %v9379, 7
      %v9381 = vsub.s32 1, %v9380
      %v9382 = vrot.slane %v9340, %v9381
      %v9383 = vlaneseq
      %v9384 = vshrl.u32 %v9383, 7
      %v9385 = vsub.s32 2, %v9384
      %v9386 = vrot.slane %v9340, %v9385
      %v9387 = vlaneseq
      %v9388 = vshrl.u32 %v9387, 7
      %v9389 = vsub.s32 3, %v9388
      %v9390 = vrot.slane %v9340, %v9389
      %v9391 = vlaneseq
      %v9392 = vshrl.u32 %v9391, 7
      %v9393 = vsub.s32 4, %v9392
      %v9394 = vrot.slane %v9340, %v9393
      %v9395 = vlaneseq
      %v9396 = vshrl.u32 %v9395, 7
      %v9397 = vsub.s32 5, %v9396
      %v9398 = vrot.slane %v9340, %v9397
      %v9399 = vlaneseq
      %v9400 = vshrl.u32 %v9399, 7
      %v9401 = vsub.s32 6, %v9400
      %v9402 = vrot.slane %v9340, %v9401
      %v9403 = vlaneseq
      %v9404 = vshrl.u32 %v9403, 7
      %v9405 = vsub.s32 7, %v9404
      %v9406 = vrot.slane %v9340, %v9405
      %v9423 = vmul.f32 %v8837, %v9346
      %v9424 = vmul.f32 %v8839, %v9350
      %v9425 = vmul.f32 %v8908, %v9354
      %v9426 = vmul.f32 %v8910, %v9358
      %v9427 = vmul.f32 %v8979, %v9362
      %v9428 = vmul.f32 %v8981, %v9366
      %v9429 = vmul.f32 %v9050, %v9370
      %v9430 = vmul.f32 %v9052, %v9374
      %v9431 = vmul.f32 %v9121, %v9378
      %v9432 = vmul.f32 %v9123, %v9382
      %v9433 = vmul.f32 %v9192, %v9386
      %v9434 = vmul.f32 %v9194, %v9390
      %v9435 = vmul.f32 %v9263, %v9394
      %v9436 = vmul.f32 %v9265, %v9398
      %v9437 = vmul.f32 %v9334, %v9402
      %v9438 = vmul.f32 %v9336, %v9406
      %v9439 = vadd.f32 %v8749, %v9423
      %v9440 = vadd.f32 %v8750, %v9424
      %v9441 = vadd.f32 %v8751, %v9425
      %v9442 = vadd.f32 %v8752, %v9426
      %v9443 = vadd.f32 %v8753, %v9427
      %v9444 = vadd.f32 %v8754, %v9428
      %v9445 = vadd.f32 %v8755, %v9429
      %v9446 = vadd.f32 %v8756, %v9430
      %v9447 = vadd.f32 %v8757, %v9431
      %v9448 = vadd.f32 %v8758, %v9432
      %v9449 = vadd.f32 %v8759, %v9433
      %v9450 = vadd.f32 %v8760, %v9434
      %v9451 = vadd.f32 %v8761, %v9435
      %v9452 = vadd.f32 %v8762, %v9436
      %v9453 = vadd.f32 %v8763, %v9437
      %v9454 = vadd.f32 %v8764, %v9438
      %s9455 = scalar_lea.vmem %s3, 8
      %v9456 = vld [vmem:[%s9455] sm:$0xf]
      %v9458 = vsel %vm8028, %v9456, 0
      %9460 = vmatprep.subr.mxu0 %v7998
      %9461 = vmatpush1.msra.mxu0 %v7997
      %9462 = vmatprep.subr.mxu0 %v8049
      %9463 = vmatpush1.msra.mxu0 %v8046
      %9464 = vmatprep.subr.mxu0 0.0
      %9465 = vmatpush1.msra.mxu0 0.0
      %9466 = vmatprep.subr.mxu0 0.0
      %9467 = vmatpush1.msra.mxu0 0.0
      %9468 = vmatprep.subr.mxu0 0.0
      %9469 = vmatpush1.msra.mxu0 0.0
      %9470 = vmatprep.subr.mxu0 0.0
      %9471 = vmatpush1.msra.mxu0 0.0
      %9472 = vmatprep.subr.mxu0 0.0
      %9473 = vmatpush1.msra.mxu0 0.0
      %9474 = vmatprep.subr.mxu0 0.0
      %9475 = vmatpush1.msra.mxu0 0.0
      %9476 = vmatprep.subr.mxu0 0.0
      %9477 = vmatpush1.msra.mxu0 0.0
      %9478 = vmatprep.subr.mxu0 0.0
      %9479 = vmatpush1.msra.mxu0 0.0
      %9480 = vmatprep.subr.mxu0 0.0
      %9481 = vmatpush1.msra.mxu0 0.0
      %9482 = vmatprep.subr.mxu0 0.0
      %9483 = vmatpush1.msra.mxu0 0.0
      %9484 = vmatprep.subr.mxu0 0.0
      %9485 = vmatpush1.msra.mxu0 0.0
      %9486 = vmatprep.subr.mxu0 0.0
      %9487 = vmatpush1.msra.mxu0 0.0
      %9488 = vmatprep.subr.mxu0 0.0
      %9489 = vmatpush1.msra.mxu0 0.0
      %9490 = vmatprep.subr.mxu0 0.0
      %9491 = vmatpush1.msra.mxu0 0.0
      %9492 = vmatprep.subr.mxu0 0.0
      %9493 = vmatpush1.msra.mxu0 0.0
      %9494 = vmatprep.subr.mxu0 0.0
      %9495 = vmatpush1.msra.mxu0 0.0
      %9496 = vmatprep.subr.mxu0 0.0
      %9497 = vmatpush1.msra.mxu0 0.0
      %9498 = vmatprep.subr.mxu0 0.0
      %9499 = vmatpush1.msra.mxu0 0.0
      %9500 = vmatprep.subr.mxu0 0.0
      %9501 = vmatpush1.msra.mxu0 0.0
      %9502 = vmatprep.subr.mxu0 0.0
      %9503 = vmatpush1.msra.mxu0 0.0
      %9504 = vmatprep.subr.mxu0 0.0
      %9505 = vmatpush1.msra.mxu0 0.0
      %9506 = vmatprep.subr.mxu0 0.0
      %9507 = vmatpush1.msra.mxu0 0.0
      %9508 = vmatprep.subr.mxu0 0.0
      %9509 = vmatpush1.msra.mxu0 0.0
      %9510 = vmatprep.subr.mxu0 0.0
      %9511 = vmatpush1.msra.mxu0 0.0
      %9512 = vmatprep.subr.mxu0 0.0
      %9513 = vmatpush1.msra.mxu0 0.0
      %9514 = vmatprep.subr.mxu0 0.0
      %9515 = vmatpush1.msra.mxu0 0.0
      %9516 = vmatprep.subr.mxu0 0.0
      %9517 = vmatpush1.msra.mxu0 0.0
      %9518 = vmatprep.subr.mxu0 0.0
      %9519 = vmatpush1.msra.mxu0 0.0
      %9520 = vmatprep.subr.mxu0 0.0
      %9521 = vmatpush1.msra.mxu0 0.0
      %9522 = vmatprep.subr.mxu0 0.0
      %9523 = vmatpush1.msra.mxu0 0.0
      %9524 = vmatprep.mubr.f32.mxu0 0.0
      %9525 = vmatmul.mubr.f32.gmra.mrb[0].mxu0 %v9458
      %v9526 = vpop.f32.mrb[0].mxu0
      %v9527 = vadd.f32 0.0, %v9526
      %v9528 = vpop.f32.mrb[0].mxu0
      %v9529 = vadd.f32 0.0, %v9528
      %9530 = vdwg.mxu0
      %9531 = vmatprep.subr.mxu0 %v8000
      %9532 = vmatpush1.msra.mxu0 %v7999
      %9533 = vmatprep.subr.mxu0 %v8055
      %9534 = vmatpush1.msra.mxu0 %v8052
      %9535 = vmatprep.subr.mxu0 0.0
      %9536 = vmatpush1.msra.mxu0 0.0
      %9537 = vmatprep.subr.mxu0 0.0
      %9538 = vmatpush1.msra.mxu0 0.0
      %9539 = vmatprep.subr.mxu0 0.0
      %9540 = vmatpush1.msra.mxu0 0.0
      %9541 = vmatprep.subr.mxu0 0.0
      %9542 = vmatpush1.msra.mxu0 0.0
      %9543 = vmatprep.subr.mxu0 0.0
      %9544 = vmatpush1.msra.mxu0 0.0
      %9545 = vmatprep.subr.mxu0 0.0
      %9546 = vmatpush1.msra.mxu0 0.0
      %9547 = vmatprep.subr.mxu0 0.0
      %9548 = vmatpush1.msra.mxu0 0.0
      %9549 = vmatprep.subr.mxu0 0.0
      %9550 = vmatpush1.msra.mxu0 0.0
      %9551 = vmatprep.subr.mxu0 0.0
      %9552 = vmatpush1.msra.mxu0 0.0
      %9553 = vmatprep.subr.mxu0 0.0
      %9554 = vmatpush1.msra.mxu0 0.0
      %9555 = vmatprep.subr.mxu0 0.0
      %9556 = vmatpush1.msra.mxu0 0.0
      %9557 = vmatprep.subr.mxu0 0.0
      %9558 = vmatpush1.msra.mxu0 0.0
      %9559 = vmatprep.subr.mxu0 0.0
      %9560 = vmatpush1.msra.mxu0 0.0
      %9561 = vmatprep.subr.mxu0 0.0
      %9562 = vmatpush1.msra.mxu0 0.0
      %9563 = vmatprep.subr.mxu0 0.0
      %9564 = vmatpush1.msra.mxu0 0.0
      %9565 = vmatprep.subr.mxu0 0.0
      %9566 = vmatpush1.msra.mxu0 0.0
      %9567 = vmatprep.subr.mxu0 0.0
      %9568 = vmatpush1.msra.mxu0 0.0
      %9569 = vmatprep.subr.mxu0 0.0
      %9570 = vmatpush1.msra.mxu0 0.0
      %9571 = vmatprep.subr.mxu0 0.0
      %9572 = vmatpush1.msra.mxu0 0.0
      %9573 = vmatprep.subr.mxu0 0.0
      %9574 = vmatpush1.msra.mxu0 0.0
      %9575 = vmatprep.subr.mxu0 0.0
      %9576 = vmatpush1.msra.mxu0 0.0
      %9577 = vmatprep.subr.mxu0 0.0
      %9578 = vmatpush1.msra.mxu0 0.0
      %9579 = vmatprep.subr.mxu0 0.0
      %9580 = vmatpush1.msra.mxu0 0.0
      %9581 = vmatprep.subr.mxu0 0.0
      %9582 = vmatpush1.msra.mxu0 0.0
      %9583 = vmatprep.subr.mxu0 0.0
      %9584 = vmatpush1.msra.mxu0 0.0
      %9585 = vmatprep.subr.mxu0 0.0
      %9586 = vmatpush1.msra.mxu0 0.0
      %9587 = vmatprep.subr.mxu0 0.0
      %9588 = vmatpush1.msra.mxu0 0.0
      %9589 = vmatprep.subr.mxu0 0.0
      %9590 = vmatpush1.msra.mxu0 0.0
      %9591 = vmatprep.subr.mxu0 0.0
      %9592 = vmatpush1.msra.mxu0 0.0
      %9593 = vmatprep.subr.mxu0 0.0
      %9594 = vmatpush1.msra.mxu0 0.0
      %9595 = vmatprep.mubr.f32.mxu0 0.0
      %9596 = vmatmul.mubr.f32.gmra.mrb[0].mxu0 %v9458
      %v9597 = vpop.f32.mrb[0].mxu0
      %v9598 = vadd.f32 0.0, %v9597
      %v9599 = vpop.f32.mrb[0].mxu0
      %v9600 = vadd.f32 0.0, %v9599
      %9601 = vdwg.mxu0
      %9602 = vmatprep.subr.mxu0 %v8002
      %9603 = vmatpush1.msra.mxu0 %v8001
      %9604 = vmatprep.subr.mxu0 %v8061
      %9605 = vmatpush1.msra.mxu0 %v8058
      %9606 = vmatprep.subr.mxu0 0.0
      %9607 = vmatpush1.msra.mxu0 0.0
      %9608 = vmatprep.subr.mxu0 0.0
      %9609 = vmatpush1.msra.mxu0 0.0
      %9610 = vmatprep.subr.mxu0 0.0
      %9611 = vmatpush1.msra.mxu0 0.0
      %9612 = vmatprep.subr.mxu0 0.0
      %9613 = vmatpush1.msra.mxu0 0.0
      %9614 = vmatprep.subr.mxu0 0.0
      %9615 = vmatpush1.msra.mxu0 0.0
      %9616 = vmatprep.subr.mxu0 0.0
      %9617 = vmatpush1.msra.mxu0 0.0
      %9618 = vmatprep.subr.mxu0 0.0
      %9619 = vmatpush1.msra.mxu0 0.0
      %9620 = vmatprep.subr.mxu0 0.0
      %9621 = vmatpush1.msra.mxu0 0.0
      %9622 = vmatprep.subr.mxu0 0.0
      %9623 = vmatpush1.msra.mxu0 0.0
      %9624 = vmatprep.subr.mxu0 0.0
      %9625 = vmatpush1.msra.mxu0 0.0
      %9626 = vmatprep.subr.mxu0 0.0
      %9627 = vmatpush1.msra.mxu0 0.0
      %9628 = vmatprep.subr.mxu0 0.0
      %9629 = vmatpush1.msra.mxu0 0.0
      %9630 = vmatprep.subr.mxu0 0.0
      %9631 = vmatpush1.msra.mxu0 0.0
      %9632 = vmatprep.subr.mxu0 0.0
      %9633 = vmatpush1.msra.mxu0 0.0
      %9634 = vmatprep.subr.mxu0 0.0
      %9635 = vmatpush1.msra.mxu0 0.0
      %9636 = vmatprep.subr.mxu0 0.0
      %9637 = vmatpush1.msra.mxu0 0.0
      %9638 = vmatprep.subr.mxu0 0.0
      %9639 = vmatpush1.msra.mxu0 0.0
      %9640 = vmatprep.subr.mxu0 0.0
      %9641 = vmatpush1.msra.mxu0 0.0
      %9642 = vmatprep.subr.mxu0 0.0
      %9643 = vmatpush1.msra.mxu0 0.0
      %9644 = vmatprep.subr.mxu0 0.0
      %9645 = vmatpush1.msra.mxu0 0.0
      %9646 = vmatprep.subr.mxu0 0.0
      %9647 = vmatpush1.msra.mxu0 0.0
      %9648 = vmatprep.subr.mxu0 0.0
      %9649 = vmatpush1.msra.mxu0 0.0
      %9650 = vmatprep.subr.mxu0 0.0
      %9651 = vmatpush1.msra.mxu0 0.0
      %9652 = vmatprep.subr.mxu0 0.0
      %9653 = vmatpush1.msra.mxu0 0.0
      %9654 = vmatprep.subr.mxu0 0.0
      %9655 = vmatpush1.msra.mxu0 0.0
      %9656 = vmatprep.subr.mxu0 0.0
      %9657 = vmatpush1.msra.mxu0 0.0
      %9658 = vmatprep.subr.mxu0 0.0
      %9659 = vmatpush1.msra.mxu0 0.0
      %9660 = vmatprep.subr.mxu0 0.0
      %9661 = vmatpush1.msra.mxu0 0.0
      %9662 = vmatprep.subr.mxu0 0.0
      %9663 = vmatpush1.msra.mxu0 0.0
      %9664 = vmatprep.subr.mxu0 0.0
      %9665 = vmatpush1.msra.mxu0 0.0
      %9666 = vmatprep.mubr.f32.mxu0 0.0
      %9667 = vmatmul.mubr.f32.gmra.mrb[0].mxu0 %v9458
      %v9668 = vpop.f32.mrb[0].mxu0
      %v9669 = vadd.f32 0.0, %v9668
      %v9670 = vpop.f32.mrb[0].mxu0
      %v9671 = vadd.f32 0.0, %v9670
      %9672 = vdwg.mxu0
      %9673 = vmatprep.subr.mxu0 %v8004
      %9674 = vmatpush1.msra.mxu0 %v8003
      %9675 = vmatprep.subr.mxu0 %v8067
      %9676 = vmatpush1.msra.mxu0 %v8064
      %9677 = vmatprep.subr.mxu0 0.0
      %9678 = vmatpush1.msra.mxu0 0.0
      %9679 = vmatprep.subr.mxu0 0.0
      %9680 = vmatpush1.msra.mxu0 0.0
      %9681 = vmatprep.subr.mxu0 0.0
      %9682 = vmatpush1.msra.mxu0 0.0
      %9683 = vmatprep.subr.mxu0 0.0
      %9684 = vmatpush1.msra.mxu0 0.0
      %9685 = vmatprep.subr.mxu0 0.0
      %9686 = vmatpush1.msra.mxu0 0.0
      %9687 = vmatprep.subr.mxu0 0.0
      %9688 = vmatpush1.msra.mxu0 0.0
      %9689 = vmatprep.subr.mxu0 0.0
      %9690 = vmatpush1.msra.mxu0 0.0
      %9691 = vmatprep.subr.mxu0 0.0
      %9692 = vmatpush1.msra.mxu0 0.0
      %9693 = vmatprep.subr.mxu0 0.0
      %9694 = vmatpush1.msra.mxu0 0.0
      %9695 = vmatprep.subr.mxu0 0.0
      %9696 = vmatpush1.msra.mxu0 0.0
      %9697 = vmatprep.subr.mxu0 0.0
      %9698 = vmatpush1.msra.mxu0 0.0
      %9699 = vmatprep.subr.mxu0 0.0
      %9700 = vmatpush1.msra.mxu0 0.0
      %9701 = vmatprep.subr.mxu0 0.0
      %9702 = vmatpush1.msra.mxu0 0.0
      %9703 = vmatprep.subr.mxu0 0.0
      %9704 = vmatpush1.msra.mxu0 0.0
      %9705 = vmatprep.subr.mxu0 0.0
      %9706 = vmatpush1.msra.mxu0 0.0
      %9707 = vmatprep.subr.mxu0 0.0
      %9708 = vmatpush1.msra.mxu0 0.0
      %9709 = vmatprep.subr.mxu0 0.0
      %9710 = vmatpush1.msra.mxu0 0.0
      %9711 = vmatprep.subr.mxu0 0.0
      %9712 = vmatpush1.msra.mxu0 0.0
      %9713 = vmatprep.subr.mxu0 0.0
      %9714 = vmatpush1.msra.mxu0 0.0
      %9715 = vmatprep.subr.mxu0 0.0
      %9716 = vmatpush1.msra.mxu0 0.0
      %9717 = vmatprep.subr.mxu0 0.0
      %9718 = vmatpush1.msra.mxu0 0.0
      %9719 = vmatprep.subr.mxu0 0.0
      %9720 = vmatpush1.msra.mxu0 0.0
      %9721 = vmatprep.subr.mxu0 0.0
      %9722 = vmatpush1.msra.mxu0 0.0
      %9723 = vmatprep.subr.mxu0 0.0
      %9724 = vmatpush1.msra.mxu0 0.0
      %9725 = vmatprep.subr.mxu0 0.0
      %9726 = vmatpush1.msra.mxu0 0.0
      %9727 = vmatprep.subr.mxu0 0.0
      %9728 = vmatpush1.msra.mxu0 0.0
      %9729 = vmatprep.subr.mxu0 0.0
      %9730 = vmatpush1.msra.mxu0 0.0
      %9731 = vmatprep.subr.mxu0 0.0
      %9732 = vmatpush1.msra.mxu0 0.0
      %9733 = vmatprep.subr.mxu0 0.0
      %9734 = vmatpush1.msra.mxu0 0.0
      %9735 = vmatprep.subr.mxu0 0.0
      %9736 = vmatpush1.msra.mxu0 0.0
      %9737 = vmatprep.mubr.f32.mxu0 0.0
      %9738 = vmatmul.mubr.f32.gmra.mrb[0].mxu0 %v9458
      %v9739 = vpop.f32.mrb[0].mxu0
      %v9740 = vadd.f32 0.0, %v9739
      %v9741 = vpop.f32.mrb[0].mxu0
      %v9742 = vadd.f32 0.0, %v9741
      %9743 = vdwg.mxu0
      %9744 = vmatprep.subr.mxu0 %v8006
      %9745 = vmatpush1.msra.mxu0 %v8005
      %9746 = vmatprep.subr.mxu0 %v8073
      %9747 = vmatpush1.msra.mxu0 %v8070
      %9748 = vmatprep.subr.mxu0 0.0
      %9749 = vmatpush1.msra.mxu0 0.0
      %9750 = vmatprep.subr.mxu0 0.0
      %9751 = vmatpush1.msra.mxu0 0.0
      %9752 = vmatprep.subr.mxu0 0.0
      %9753 = vmatpush1.msra.mxu0 0.0
      %9754 = vmatprep.subr.mxu0 0.0
      %9755 = vmatpush1.msra.mxu0 0.0
      %9756 = vmatprep.subr.mxu0 0.0
      %9757 = vmatpush1.msra.mxu0 0.0
      %9758 = vmatprep.subr.mxu0 0.0
      %9759 = vmatpush1.msra.mxu0 0.0
      %9760 = vmatprep.subr.mxu0 0.0
      %9761 = vmatpush1.msra.mxu0 0.0
      %9762 = vmatprep.subr.mxu0 0.0
      %9763 = vmatpush1.msra.mxu0 0.0
      %9764 = vmatprep.subr.mxu0 0.0
      %9765 = vmatpush1.msra.mxu0 0.0
      %9766 = vmatprep.subr.mxu0 0.0
      %9767 = vmatpush1.msra.mxu0 0.0
      %9768 = vmatprep.subr.mxu0 0.0
      %9769 = vmatpush1.msra.mxu0 0.0
      %9770 = vmatprep.subr.mxu0 0.0
      %9771 = vmatpush1.msra.mxu0 0.0
      %9772 = vmatprep.subr.mxu0 0.0
      %9773 = vmatpush1.msra.mxu0 0.0
      %9774 = vmatprep.subr.mxu0 0.0
      %9775 = vmatpush1.msra.mxu0 0.0
      %9776 = vmatprep.subr.mxu0 0.0
      %9777 = vmatpush1.msra.mxu0 0.0
      %9778 = vmatprep.subr.mxu0 0.0
      %9779 = vmatpush1.msra.mxu0 0.0
      %9780 = vmatprep.subr.mxu0 0.0
      %9781 = vmatpush1.msra.mxu0 0.0
      %9782 = vmatprep.subr.mxu0 0.0
      %9783 = vmatpush1.msra.mxu0 0.0
      %9784 = vmatprep.subr.mxu0 0.0
      %9785 = vmatpush1.msra.mxu0 0.0
      %9786 = vmatprep.subr.mxu0 0.0
      %9787 = vmatpush1.msra.mxu0 0.0
      %9788 = vmatprep.subr.mxu0 0.0
      %9789 = vmatpush1.msra.mxu0 0.0
      %9790 = vmatprep.subr.mxu0 0.0
      %9791 = vmatpush1.msra.mxu0 0.0
      %9792 = vmatprep.subr.mxu0 0.0
      %9793 = vmatpush1.msra.mxu0 0.0
      %9794 = vmatprep.subr.mxu0 0.0
      %9795 = vmatpush1.msra.mxu0 0.0
      %9796 = vmatprep.subr.mxu0 0.0
      %9797 = vmatpush1.msra.mxu0 0.0
      %9798 = vmatprep.subr.mxu0 0.0
      %9799 = vmatpush1.msra.mxu0 0.0
      %9800 = vmatprep.subr.mxu0 0.0
      %9801 = vmatpush1.msra.mxu0 0.0
      %9802 = vmatprep.subr.mxu0 0.0
      %9803 = vmatpush1.msra.mxu0 0.0
      %9804 = vmatprep.subr.mxu0 0.0
      %9805 = vmatpush1.msra.mxu0 0.0
      %9806 = vmatprep.subr.mxu0 0.0
      %9807 = vmatpush1.msra.mxu0 0.0
      %9808 = vmatprep.mubr.f32.mxu0 0.0
      %9809 = vmatmul.mubr.f32.gmra.mrb[0].mxu0 %v9458
      %v9810 = vpop.f32.mrb[0].mxu0
      %v9811 = vadd.f32 0.0, %v9810
      %v9812 = vpop.f32.mrb[0].mxu0
      %v9813 = vadd.f32 0.0, %v9812
      %9814 = vdwg.mxu0
      %9815 = vmatprep.subr.mxu0 %v8008
      %9816 = vmatpush1.msra.mxu0 %v8007
      %9817 = vmatprep.subr.mxu0 %v8079
      %9818 = vmatpush1.msra.mxu0 %v8076
      %9819 = vmatprep.subr.mxu0 0.0
      %9820 = vmatpush1.msra.mxu0 0.0
      %9821 = vmatprep.subr.mxu0 0.0
      %9822 = vmatpush1.msra.mxu0 0.0
      %9823 = vmatprep.subr.mxu0 0.0
      %9824 = vmatpush1.msra.mxu0 0.0
      %9825 = vmatprep.subr.mxu0 0.0
      %9826 = vmatpush1.msra.mxu0 0.0
      %9827 = vmatprep.subr.mxu0 0.0
      %9828 = vmatpush1.msra.mxu0 0.0
      %9829 = vmatprep.subr.mxu0 0.0
      %9830 = vmatpush1.msra.mxu0 0.0
      %9831 = vmatprep.subr.mxu0 0.0
      %9832 = vmatpush1.msra.mxu0 0.0
      %9833 = vmatprep.subr.mxu0 0.0
      %9834 = vmatpush1.msra.mxu0 0.0
      %9835 = vmatprep.subr.mxu0 0.0
      %9836 = vmatpush1.msra.mxu0 0.0
      %9837 = vmatprep.subr.mxu0 0.0
      %9838 = vmatpush1.msra.mxu0 0.0
      %9839 = vmatprep.subr.mxu0 0.0
      %9840 = vmatpush1.msra.mxu0 0.0
      %9841 = vmatprep.subr.mxu0 0.0
      %9842 = vmatpush1.msra.mxu0 0.0
      %9843 = vmatprep.subr.mxu0 0.0
      %9844 = vmatpush1.msra.mxu0 0.0
      %9845 = vmatprep.subr.mxu0 0.0
      %9846 = vmatpush1.msra.mxu0 0.0
      %9847 = vmatprep.subr.mxu0 0.0
      %9848 = vmatpush1.msra.mxu0 0.0
      %9849 = vmatprep.subr.mxu0 0.0
      %9850 = vmatpush1.msra.mxu0 0.0
      %9851 = vmatprep.subr.mxu0 0.0
      %9852 = vmatpush1.msra.mxu0 0.0
      %9853 = vmatprep.subr.mxu0 0.0
      %9854 = vmatpush1.msra.mxu0 0.0
      %9855 = vmatprep.subr.mxu0 0.0
      %9856 = vmatpush1.msra.mxu0 0.0
      %9857 = vmatprep.subr.mxu0 0.0
      %9858 = vmatpush1.msra.mxu0 0.0
      %9859 = vmatprep.subr.mxu0 0.0
      %9860 = vmatpush1.msra.mxu0 0.0
      %9861 = vmatprep.subr.mxu0 0.0
      %9862 = vmatpush1.msra.mxu0 0.0
      %9863 = vmatprep.subr.mxu0 0.0
      %9864 = vmatpush1.msra.mxu0 0.0
      %9865 = vmatprep.subr.mxu0 0.0
      %9866 = vmatpush1.msra.mxu0 0.0
      %9867 = vmatprep.subr.mxu0 0.0
      %9868 = vmatpush1.msra.mxu0 0.0
      %9869 = vmatprep.subr.mxu0 0.0
      %9870 = vmatpush1.msra.mxu0 0.0
      %9871 = vmatprep.subr.mxu0 0.0
      %9872 = vmatpush1.msra.mxu0 0.0
      %9873 = vmatprep.subr.mxu0 0.0
      %9874 = vmatpush1.msra.mxu0 0.0
      %9875 = vmatprep.subr.mxu0 0.0
      %9876 = vmatpush1.msra.mxu0 0.0
      %9877 = vmatprep.subr.mxu0 0.0
      %9878 = vmatpush1.msra.mxu0 0.0
      %9879 = vmatprep.mubr.f32.mxu0 0.0
      %9880 = vmatmul.mubr.f32.gmra.mrb[0].mxu0 %v9458
      %v9881 = vpop.f32.mrb[0].mxu0
      %v9882 = vadd.f32 0.0, %v9881
      %v9883 = vpop.f32.mrb[0].mxu0
      %v9884 = vadd.f32 0.0, %v9883
      %9885 = vdwg.mxu0
      %9886 = vmatprep.subr.mxu0 %v8010
      %9887 = vmatpush1.msra.mxu0 %v8009
      %9888 = vmatprep.subr.mxu0 %v8037
      %9889 = vmatpush1.msra.mxu0 %v8034
      %9890 = vmatprep.subr.mxu0 0.0
      %9891 = vmatpush1.msra.mxu0 0.0
      %9892 = vmatprep.subr.mxu0 0.0
      %9893 = vmatpush1.msra.mxu0 0.0
      %9894 = vmatprep.subr.mxu0 0.0
      %9895 = vmatpush1.msra.mxu0 0.0
      %9896 = vmatprep.subr.mxu0 0.0
      %9897 = vmatpush1.msra.mxu0 0.0
      %9898 = vmatprep.subr.mxu0 0.0
      %9899 = vmatpush1.msra.mxu0 0.0
      %9900 = vmatprep.subr.mxu0 0.0
      %9901 = vmatpush1.msra.mxu0 0.0
      %9902 = vmatprep.subr.mxu0 0.0
      %9903 = vmatpush1.msra.mxu0 0.0
      %9904 = vmatprep.subr.mxu0 0.0
      %9905 = vmatpush1.msra.mxu0 0.0
      %9906 = vmatprep.subr.mxu0 0.0
      %9907 = vmatpush1.msra.mxu0 0.0
      %9908 = vmatprep.subr.mxu0 0.0
      %9909 = vmatpush1.msra.mxu0 0.0
      %9910 = vmatprep.subr.mxu0 0.0
      %9911 = vmatpush1.msra.mxu0 0.0
      %9912 = vmatprep.subr.mxu0 0.0
      %9913 = vmatpush1.msra.mxu0 0.0
      %9914 = vmatprep.subr.mxu0 0.0
      %9915 = vmatpush1.msra.mxu0 0.0
      %9916 = vmatprep.subr.mxu0 0.0
      %9917 = vmatpush1.msra.mxu0 0.0
      %9918 = vmatprep.subr.mxu0 0.0
      %9919 = vmatpush1.msra.mxu0 0.0
      %9920 = vmatprep.subr.mxu0 0.0
      %9921 = vmatpush1.msra.mxu0 0.0
      %9922 = vmatprep.subr.mxu0 0.0
      %9923 = vmatpush1.msra.mxu0 0.0
      %9924 = vmatprep.subr.mxu0 0.0
      %9925 = vmatpush1.msra.mxu0 0.0
      %9926 = vmatprep.subr.mxu0 0.0
      %9927 = vmatpush1.msra.mxu0 0.0
      %9928 = vmatprep.subr.mxu0 0.0
      %9929 = vmatpush1.msra.mxu0 0.0
      %9930 = vmatprep.subr.mxu0 0.0
      %9931 = vmatpush1.msra.mxu0 0.0
      %9932 = vmatprep.subr.mxu0 0.0
      %9933 = vmatpush1.msra.mxu0 0.0
      %9934 = vmatprep.subr.mxu0 0.0
      %9935 = vmatpush1.msra.mxu0 0.0
      %9936 = vmatprep.subr.mxu0 0.0
      %9937 = vmatpush1.msra.mxu0 0.0
      %9938 = vmatprep.subr.mxu0 0.0
      %9939 = vmatpush1.msra.mxu0 0.0
      %9940 = vmatprep.subr.mxu0 0.0
      %9941 = vmatpush1.msra.mxu0 0.0
      %9942 = vmatprep.subr.mxu0 0.0
      %9943 = vmatpush1.msra.mxu0 0.0
      %9944 = vmatprep.subr.mxu0 0.0
      %9945 = vmatpush1.msra.mxu0 0.0
      %9946 = vmatprep.subr.mxu0 0.0
      %9947 = vmatpush1.msra.mxu0 0.0
      %9948 = vmatprep.subr.mxu0 0.0
      %9949 = vmatpush1.msra.mxu0 0.0
      %9950 = vmatprep.mubr.f32.mxu0 0.0
      %9951 = vmatmul.mubr.f32.gmra.mrb[0].mxu0 %v9458
      %v9952 = vpop.f32.mrb[0].mxu0
      %v9953 = vadd.f32 0.0, %v9952
      %v9954 = vpop.f32.mrb[0].mxu0
      %v9955 = vadd.f32 0.0, %v9954
      %9956 = vdwg.mxu0
      %9957 = vmatprep.subr.mxu0 %v7996
      %9958 = vmatpush1.msra.mxu0 %v7995
      %9959 = vmatprep.subr.mxu0 %v8043
      %9960 = vmatpush1.msra.mxu0 %v8040
      %9961 = vmatprep.subr.mxu0 0.0
      %9962 = vmatpush1.msra.mxu0 0.0
      %9963 = vmatprep.subr.mxu0 0.0
      %9964 = vmatpush1.msra.mxu0 0.0
      %9965 = vmatprep.subr.mxu0 0.0
      %9966 = vmatpush1.msra.mxu0 0.0
      %9967 = vmatprep.subr.mxu0 0.0
      %9968 = vmatpush1.msra.mxu0 0.0
      %9969 = vmatprep.subr.mxu0 0.0
      %9970 = vmatpush1.msra.mxu0 0.0
      %9971 = vmatprep.subr.mxu0 0.0
      %9972 = vmatpush1.msra.mxu0 0.0
      %9973 = vmatprep.subr.mxu0 0.0
      %9974 = vmatpush1.msra.mxu0 0.0
      %9975 = vmatprep.subr.mxu0 0.0
      %9976 = vmatpush1.msra.mxu0 0.0
      %9977 = vmatprep.subr.mxu0 0.0
      %9978 = vmatpush1.msra.mxu0 0.0
      %9979 = vmatprep.subr.mxu0 0.0
      %9980 = vmatpush1.msra.mxu0 0.0
      %9981 = vmatprep.subr.mxu0 0.0
      %9982 = vmatpush1.msra.mxu0 0.0
      %9983 = vmatprep.subr.mxu0 0.0
      %9984 = vmatpush1.msra.mxu0 0.0
      %9985 = vmatprep.subr.mxu0 0.0
      %9986 = vmatpush1.msra.mxu0 0.0
      %9987 = vmatprep.subr.mxu0 0.0
      %9988 = vmatpush1.msra.mxu0 0.0
      %9989 = vmatprep.subr.mxu0 0.0
      %9990 = vmatpush1.msra.mxu0 0.0
      %9991 = vmatprep.subr.mxu0 0.0
      %9992 = vmatpush1.msra.mxu0 0.0
      %9993 = vmatprep.subr.mxu0 0.0
      %9994 = vmatpush1.msra.mxu0 0.0
      %9995 = vmatprep.subr.mxu0 0.0
      %9996 = vmatpush1.msra.mxu0 0.0
      %9997 = vmatprep.subr.mxu0 0.0
      %9998 = vmatpush1.msra.mxu0 0.0
      %9999 = vmatprep.subr.mxu0 0.0
      %10000 = vmatpush1.msra.mxu0 0.0
      %10001 = vmatprep.subr.mxu0 0.0
      %10002 = vmatpush1.msra.mxu0 0.0
      %10003 = vmatprep.subr.mxu0 0.0
      %10004 = vmatpush1.msra.mxu0 0.0
      %10005 = vmatprep.subr.mxu0 0.0
      %10006 = vmatpush1.msra.mxu0 0.0
      %10007 = vmatprep.subr.mxu0 0.0
      %10008 = vmatpush1.msra.mxu0 0.0
      %10009 = vmatprep.subr.mxu0 0.0
      %10010 = vmatpush1.msra.mxu0 0.0
      %10011 = vmatprep.subr.mxu0 0.0
      %10012 = vmatpush1.msra.mxu0 0.0
      %10013 = vmatprep.subr.mxu0 0.0
      %10014 = vmatpush1.msra.mxu0 0.0
      %10015 = vmatprep.subr.mxu0 0.0
      %10016 = vmatpush1.msra.mxu0 0.0
      %10017 = vmatprep.subr.mxu0 0.0
      %10018 = vmatpush1.msra.mxu0 0.0
      %10019 = vmatprep.subr.mxu0 0.0
      %10020 = vmatpush1.msra.mxu0 0.0
      %10021 = vmatprep.mubr.f32.mxu0 0.0
      %10022 = vmatmul.mubr.f32.gmra.mrb[0].mxu0 %v9458
      %v10023 = vpop.f32.mrb[0].mxu0
      %v10024 = vadd.f32 0.0, %v10023
      %v10025 = vpop.f32.mrb[0].mxu0
      %v10026 = vadd.f32 0.0, %v10025
      %10027 = vdwg.mxu0
      %s10028 = scalar_lea.vmem %s6, 32
      %v10029 = vld [vmem:[%s10028] sm:$0xff]
      %v10030 = vld [vmem:[%s10028 + $0x8] sm:$0xff]
      %v10033 = vlaneseq
      %v10034 = vshrl.u32 %v10033, 7
      %v10035 = vsub.s32 0, %v10034
      %v10036 = vrot.slane %v10029, %v10035
      %v10037 = vlaneseq
      %v10038 = vshrl.u32 %v10037, 7
      %v10039 = vsub.s32 1, %v10038
      %v10040 = vrot.slane %v10029, %v10039
      %v10041 = vlaneseq
      %v10042 = vshrl.u32 %v10041, 7
      %v10043 = vsub.s32 2, %v10042
      %v10044 = vrot.slane %v10029, %v10043
      %v10045 = vlaneseq
      %v10046 = vshrl.u32 %v10045, 7
      %v10047 = vsub.s32 3, %v10046
      %v10048 = vrot.slane %v10029, %v10047
      %v10049 = vlaneseq
      %v10050 = vshrl.u32 %v10049, 7
      %v10051 = vsub.s32 4, %v10050
      %v10052 = vrot.slane %v10029, %v10051
      %v10053 = vlaneseq
      %v10054 = vshrl.u32 %v10053, 7
      %v10055 = vsub.s32 5, %v10054
      %v10056 = vrot.slane %v10029, %v10055
      %v10057 = vlaneseq
      %v10058 = vshrl.u32 %v10057, 7
      %v10059 = vsub.s32 6, %v10058
      %v10060 = vrot.slane %v10029, %v10059
      %v10061 = vlaneseq
      %v10062 = vshrl.u32 %v10061, 7
      %v10063 = vsub.s32 7, %v10062
      %v10064 = vrot.slane %v10029, %v10063
      %v10065 = vlaneseq
      %v10066 = vshrl.u32 %v10065, 7
      %v10067 = vsub.s32 0, %v10066
      %v10068 = vrot.slane %v10030, %v10067
      %v10069 = vlaneseq
      %v10070 = vshrl.u32 %v10069, 7
      %v10071 = vsub.s32 1, %v10070
      %v10072 = vrot.slane %v10030, %v10071
      %v10073 = vlaneseq
      %v10074 = vshrl.u32 %v10073, 7
      %v10075 = vsub.s32 2, %v10074
      %v10076 = vrot.slane %v10030, %v10075
      %v10077 = vlaneseq
      %v10078 = vshrl.u32 %v10077, 7
      %v10079 = vsub.s32 3, %v10078
      %v10080 = vrot.slane %v10030, %v10079
      %v10081 = vlaneseq
      %v10082 = vshrl.u32 %v10081, 7
      %v10083 = vsub.s32 4, %v10082
      %v10084 = vrot.slane %v10030, %v10083
      %v10085 = vlaneseq
      %v10086 = vshrl.u32 %v10085, 7
      %v10087 = vsub.s32 5, %v10086
      %v10088 = vrot.slane %v10030, %v10087
      %v10089 = vlaneseq
      %v10090 = vshrl.u32 %v10089, 7
      %v10091 = vsub.s32 6, %v10090
      %v10092 = vrot.slane %v10030, %v10091
      %v10093 = vlaneseq
      %v10094 = vshrl.u32 %v10093, 7
      %v10095 = vsub.s32 7, %v10094
      %v10096 = vrot.slane %v10030, %v10095
      %v10113 = vmul.f32 %v9527, %v10036
      %v10114 = vmul.f32 %v9529, %v10040
      %v10115 = vmul.f32 %v9598, %v10044
      %v10116 = vmul.f32 %v9600, %v10048
      %v10117 = vmul.f32 %v9669, %v10052
      %v10118 = vmul.f32 %v9671, %v10056
      %v10119 = vmul.f32 %v9740, %v10060
      %v10120 = vmul.f32 %v9742, %v10064
      %v10121 = vmul.f32 %v9811, %v10068
      %v10122 = vmul.f32 %v9813, %v10072
      %v10123 = vmul.f32 %v9882, %v10076
      %v10124 = vmul.f32 %v9884, %v10080
      %v10125 = vmul.f32 %v9953, %v10084
      %v10126 = vmul.f32 %v9955, %v10088
      %v10127 = vmul.f32 %v10024, %v10092
      %v10128 = vmul.f32 %v10026, %v10096
      %v10129 = vadd.f32 %v9439, %v10113
      %v10130 = vadd.f32 %v9440, %v10114
      %v10131 = vadd.f32 %v9441, %v10115
      %v10132 = vadd.f32 %v9442, %v10116
      %v10133 = vadd.f32 %v9443, %v10117
      %v10134 = vadd.f32 %v9444, %v10118
      %v10135 = vadd.f32 %v9445, %v10119
      %v10136 = vadd.f32 %v9446, %v10120
      %v10137 = vadd.f32 %v9447, %v10121
      %v10138 = vadd.f32 %v9448, %v10122
      %v10139 = vadd.f32 %v9449, %v10123
      %v10140 = vadd.f32 %v9450, %v10124
      %v10141 = vadd.f32 %v9451, %v10125
      %v10142 = vadd.f32 %v9452, %v10126
      %v10143 = vadd.f32 %v9453, %v10127
      %v10144 = vadd.f32 %v9454, %v10128
      %v10145 = vld [vmem:[%s4] sm:$0xf]
      %10147 = vset.pattern.permute.xlu0 0
      %10148 = vperm.xlu0 %10147, %v10145
      %v10149 = vpop.permute.xlu0 %10148
      %v10151 = vadd.f32 %v10129, %v10149
      %v10152 = vadd.f32 %v10130, %v10149
      %v10153 = vadd.f32 %v10131, %v10149
      %v10154 = vadd.f32 %v10132, %v10149
      %v10155 = vadd.f32 %v10133, %v10149
      %v10156 = vadd.f32 %v10134, %v10149
      %v10157 = vadd.f32 %v10135, %v10149
      %v10158 = vadd.f32 %v10136, %v10149
      %v10159 = vadd.f32 %v10137, %v10149
      %v10160 = vadd.f32 %v10138, %v10149
      %v10161 = vadd.f32 %v10139, %v10149
      %v10162 = vadd.f32 %v10140, %v10149
      %v10163 = vadd.f32 %v10141, %v10149
      %v10164 = vadd.f32 %v10142, %v10149
      %v10165 = vadd.f32 %v10143, %v10149
      %v10166 = vadd.f32 %v10144, %v10149
      %v10183 = vcombine.low %v10151, %v10152
      %v10184 = vcombine.low %v10153, %v10154
      %v10185 = vcombine.low %v10155, %v10156
      %v10186 = vcombine.low %v10157, %v10158
      %v10187 = vcombine.low %v10159, %v10160
      %v10188 = vcombine.low %v10161, %v10162
      %v10189 = vcombine.low %v10163, %v10164
      %v10190 = vcombine.low %v10165, %v10166
      %10199 = vst [vmem:[%s278] sm:$0xff] %v10183
      %10200 = vst [vmem:[%s278 + $0x8] sm:$0xff] %v10184
      %10201 = vst [vmem:[%s278 + $0x10] sm:$0xff] %v10185
      %10202 = vst [vmem:[%s278 + $0x18] sm:$0xff] %v10186
      %10203 = vst [vmem:[%s278 + $0x20] sm:$0xff] %v10187
      %10204 = vst [vmem:[%s278 + $0x28] sm:$0xff] %v10188
      %10205 = vst [vmem:[%s278 + $0x30] sm:$0xff] %v10189
      %10206 = vst [vmem:[%s278 + $0x38] sm:$0xff] %v10190
      %p10207 = scmp.lt.s32.totalorder %s18, 1
      %s10208 = scalar_select %p10207, %s18, 1
      %s10209 = smul.addr %s10208, 16
      %s10210 = smul.addr %s10209, 4
      %s10211 = scalar_lea.vmem %s7, %s10210
      // Predicated region
      $region49: #{separable_conv3d_pallas.1} parent=47 // pred_check
        %p10212 = pneg %p188
      $region50: #{separable_conv3d_pallas.1} parent=47 // pred_check_branch
        %10214 = sbr.rel (%p10212) target = $region52
      $region51: #{separable_conv3d_pallas.1} parent=47 // pred_region
        _
      $region52: #{separable_conv3d_pallas.1} parent=47 // pred_fallthru
        _
    $region48: #{separable_conv3d_pallas.1} parent=5 // pred_fallthru
      _
    %p10215 = scmp.le.s32.totalorder 2, %s13
    // Predicated region
    $region53: #{separable_conv3d_pallas.1} parent=5 // pred_check
      %p10216 = pneg %p10215
    $region54: #{separable_conv3d_pallas.1} parent=5 // pred_check_branch
      %10218 = sbr.rel (%p10216) target = $region56
    $region55: #{separable_conv3d_pallas.1} parent=5 // pred_region
      %s10219 = ssub.s32 %s13, 2
      // Predicated region
      $region57: #{separable_conv3d_pallas.1} parent=55 // pred_check
        %p10220 = pneg %p194
      $region58: #{separable_conv3d_pallas.1} parent=55 // pred_check_branch
        %10222 = sbr.rel (%p10220) target = $region60
      $region59: #{separable_conv3d_pallas.1} parent=55 // pred_region
        %p10223 = scmp.lt.s32.totalorder %s19, 1
        %s10224 = scalar_select %p10223, %s19, 1
        %s10225 = smul.addr %s10224, 16
        %s10226 = smul.addr %s10225, 4
        %s10227 = scalar_lea.vmem %s7, %s10226
      $region60: #{separable_conv3d_pallas.1} parent=55 // pred_fallthru
        _
    $region56: #{separable_conv3d_pallas.1} parent=5 // pred_fallthru
      _
  $region6: #{separable_conv3d_pallas.1} parent=0 // loop_footer
    %s17 = sadd.s32 1, %s13
  $region7: #{separable_conv3d_pallas.1} parent=0 // loop_footer_branch
    %12 = sbr.rel target = $region3
  $region8: #{separable_conv3d_pallas.1} parent=0 // loop_exit
    _

</llo_original>
